<compile_context>
chip_gen: v7x
topology: tpu7x:2x2x1
jax: 0.10.0
libtpu: 0.0.40
codegen_flags: <defaults>
</compile_context>

<pallas_src>
import jax
import jax.numpy as jnp
from jax.experimental import pallas as pl
from jax.experimental.pallas import tpu as pltpu


FEAT_DIM = 2048              # InceptionV3 feature width
FEAT_HW = 64                 # InceptionV3 final feature map is 8x8 spatial
HEAD_DIMS = (168, 11, 7)     # l0 / l1 / l2
HEADS_RAW = sum(HEAD_DIMS)   # 186
HEADS_PAD = 256              # lane-dense padded head width (2 x 128)
SUBLANE_BF16 = 16            # bf16 packs 16 sublanes per vreg


# --------------------------------------------------------------------------
# Fused Pallas kernel: adaptive_avg_pool2d + fused (l0|l1|l2) heads
# --------------------------------------------------------------------------
def _pool_heads_kernel(f_ref, wc_ref, bc_ref, o_ref):
    # f_ref  : [TB, HW, 2048] bf16  feature-map tile (channels-last)
    # wc_ref : [2048, 256]    bf16  concat(l0,l1,l2) weights, zero-padded
    # bc_ref : [1, 256]       f32   concat biases, zero-padded
    # o_ref  : [TB, 256]      f32

    # F.adaptive_avg_pool2d(x, 1).reshape(bs, -1): mean over the spatial
    # (sublane) axis, accumulated in f32.
    pooled = jnp.mean(f_ref[...].astype(jnp.float32), axis=1)    # [TB, 2048]

    # Fused l0/l1/l2 heads: one lane-dense MXU matmul (bf16 in, f32 acc).
    acc = jnp.dot(pooled.astype(jnp.bfloat16), wc_ref[...],
                  preferred_element_type=jnp.float32)            # [TB, 256]
    o_ref[...] = (acc + bc_ref[...]).astype(o_ref.dtype)


# --------------------------------------------------------------------------
# Stand-in feature extractor (outside the kernel)
# --------------------------------------------------------------------------
def _standin_features(x, params):
    # TODO(synk): stands in for the pretrained InceptionV3 conv stack
    # (self.model.features); downsamples to an 8x8 map and projects channels
    # -> 2048 so the kernel sees a realistic bf16 [B, 64, 2048] feature map.
    B, C, H, W = x.shape
    assert H % 8 == 0 and W % 8 == 0, "demo stand-in expects H, W divisible by 8"
    xc = jnp.transpose(x, (0, 2, 3, 1))                              # [B, H, W, C]
    xc = xc.reshape(B, 8, H // 8, 8, W // 8, C).mean(axis=(2, 4))    # [B, 8, 8, C]
    xc = xc.reshape(B, FEAT_HW, C)                                   # [B, 64, C]
    feats = jnp.dot(xc, params["wf"]) + params["bf"]                 # [B, 64, 2048]
    return feats.astype(jnp.bfloat16)


# --------------------------------------------------------------------------
# Wrapper
# --------------------------------------------------------------------------
def inceptionv3_forward(x, params):
    """forward: features(stand-in) -> adaptive_avg_pool2d -> (l0, l1, l2)."""
    B = x.shape[0]
    feats = _standin_features(x, params)                     # [B, 64, 2048] bf16
    HW = feats.shape[1]

    # Pad batch to a multiple of 16 (bf16 sublane packing) and pick a batch
    # tile that keeps the per-step VMEM footprint small (~2 x 4 MiB buffers
    # at TB=32) so it is portable to v7x's 64 MiB VMEM.
    b16 = ((B + SUBLANE_BF16 - 1) // SUBLANE_BF16) * SUBLANE_BF16
    tb = min(32, b16)
    b_pad = ((b16 + tb - 1) // tb) * tb
    if b_pad != B:
        feats = jnp.pad(feats, ((0, b_pad - B), (0, 0), (0, 0)))

    out = pl.pallas_call(
        _pool_heads_kernel,
        out_shape=jax.ShapeDtypeStruct((b_pad, HEADS_PAD), jnp.float32),
        grid_spec=pl.GridSpec(
            grid=(b_pad // tb,),
            in_specs=[
                # Streamed per batch tile (auto double-buffered).
                pl.BlockSpec((tb, HW, FEAT_DIM), lambda i: (i, 0, 0)),
                # Weights/bias: constant index_map -> resident across tiles.
                pl.BlockSpec((FEAT_DIM, HEADS_PAD), lambda i: (0, 0)),
                pl.BlockSpec((1, HEADS_PAD), lambda i: (0, 0)),
            ],
            out_specs=pl.BlockSpec((tb, HEADS_PAD), lambda i: (i, 0)),
        ),
        compiler_params=pltpu.CompilerParams(
            dimension_semantics=("parallel",),       # v7x: shard across 2 TCs
            vmem_limit_bytes=48 * 1024 * 1024,       # safe on v7x (64 MiB phys)
        ),
    )(feats, params["w_cat"], params["b_cat"])

    out = out[:B]
    l0 = out[:, :HEAD_DIMS[0]]
    l1 = out[:, HEAD_DIMS[0]:HEAD_DIMS[0] + HEAD_DIMS[1]]
    l2 = out[:, HEAD_DIMS[0] + HEAD_DIMS[1]:HEADS_RAW]
    return l0, l1, l2


# --------------------------------------------------------------------------
# Deterministic parameter init (mimics nn.Linear's U(-k, k) init).
# --------------------------------------------------------------------------
def init_params(key, in_channels):
    keys = jax.random.split(key, 8)

    # Stand-in 'features' projection (image channels -> 2048).
    kf = 1.0 / jnp.sqrt(jnp.float32(in_channels))
    wf = jax.random.uniform(keys[0], (in_channels, FEAT_DIM), jnp.float32, -kf, kf)
    bf = jax.random.uniform(keys[1], (FEAT_DIM,), jnp.float32, -kf, kf)

    # Heads: nn.Linear(2048, 168 / 11 / 7), stored PyTorch-style [out, in].
    kh = 1.0 / jnp.sqrt(jnp.float32(FEAT_DIM))
    w0 = jax.random.uniform(keys[2], (HEAD_DIMS[0], FEAT_DIM), jnp.float32, -kh, kh)
    b0 = jax.random.uniform(keys[3], (HEAD_DIMS[0],), jnp.float32, -kh, kh)
    w1 = jax.random.uniform(keys[4], (HEAD_DIMS[1], FEAT_DIM), jnp.float32, -kh, kh)
    b1 = jax.random.uniform(keys[5], (HEAD_DIMS[1],), jnp.float32, -kh, kh)
    w2 = jax.random.uniform(keys[6], (HEAD_DIMS[2], FEAT_DIM), jnp.float32, -kh, kh)
    b2 = jax.random.uniform(keys[7], (HEAD_DIMS[2],), jnp.float32, -kh, kh)

    # Fuse heads (W^T concat along output axis) and zero-pad 186 -> 256 so the
    # kernel output is lane-dense; padded columns contribute zeros and are
    # sliced away in the wrapper.
    w_cat = jnp.concatenate([w0, w1, w2], axis=0).T                   # [2048, 186]
    w_cat = jnp.pad(w_cat, ((0, 0), (0, HEADS_PAD - HEADS_RAW)))      # [2048, 256]
    b_cat = jnp.concatenate([b0, b1, b2], axis=0)
    b_cat = jnp.pad(b_cat, (0, HEADS_PAD - HEADS_RAW))[None, :]       # [1, 256]

    return {
        "wf": wf,
        "bf": bf,
        "w_cat": w_cat.astype(jnp.bfloat16),   # MXU operand in bf16
        "b_cat": b_cat,                        # bias added in f32
    }


if __name__ == "__main__":
    key = jax.random.PRNGKey(0)
    k_x, k_p = jax.random.split(key)

    B, C, H, W = 2, 4, 16, 16
    x = jax.random.normal(k_x, (B, C, H, W), jnp.float32)
    params = init_params(k_p, C)

    fwd = jax.jit(inceptionv3_forward)
    l0, l1, l2 = fwd(x, params)
    jax.block_until_ready((l0, l1, l2))

    assert l0.shape == (B, 168), l0.shape
    assert l1.shape == (B, 11), l1.shape
    assert l2.shape == (B, 7), l2.shape
    assert bool(jnp.all(jnp.isfinite(l0)))
    assert bool(jnp.all(jnp.isfinite(l1)))
    assert bool(jnp.all(jnp.isfinite(l2)))

    # Pure-JAX reference for the pool + heads portion (same bf16 rounding).
    feats = _standin_features(x, params).astype(jnp.float32)
    pooled = feats.mean(axis=1)
    ref = (pooled.astype(jnp.bfloat16).astype(jnp.float32)
           @ params["w_cat"].astype(jnp.float32)
           + params["b_cat"].astype(jnp.float32))
    assert bool(jnp.allclose(l0, ref[:, :168], atol=2e-2, rtol=2e-2))
    assert bool(jnp.allclose(l1, ref[:, 168:179], atol=2e-2, rtol=2e-2))
    assert bool(jnp.allclose(l2, ref[:, 179:186], atol=2e-2, rtol=2e-2))

    print("KERNEL_OK")
</pallas_src>

<mosaic_0001>
module attributes {stable_mosaic.version = 11 : i64} {
  func.func @_pool_heads_kernel(%arg0: i32, %arg1: memref<16x64x2048xbf16, #tpu.memory_space<vmem>>, %arg2: memref<2048x256xbf16, #tpu.memory_space<vmem>>, %arg3: memref<1x256xf32, #tpu.memory_space<vmem>>, %arg4: memref<16x256xf32, #tpu.memory_space<vmem>>) attributes {dimension_semantics = [#tpu.dimension_semantics<parallel>], iteration_bounds = array<i64: 1>, scalar_prefetch = 0 : i64, scratch_operands = 0 : i64, tpu.core_type = #tpu.core_type<tc>, window_params = [{transform_indices = @transform_0, window_bounds = array<i64: 16, 64, 2048>}, {pipeline_mode = #tpu.pipeline_mode<synchronous>, transform_indices = @transform_1, window_bounds = array<i64: 2048, 256>}, {pipeline_mode = #tpu.pipeline_mode<synchronous>, transform_indices = @transform_2, window_bounds = array<i64: 1, 256>}, {transform_indices = @transform_3, window_bounds = array<i64: 16, 256>}]} {
    %c0 = arith.constant 0 : index
    %c0_0 = arith.constant 0 : index
    %c0_1 = arith.constant 0 : index
    %0 = vector.load %arg1[%c0, %c0_0, %c0_1] : memref<16x64x2048xbf16, #tpu.memory_space<vmem>>, vector<16x64x2048xbf16>
    %1 = arith.extf %0 : vector<16x64x2048xbf16> to vector<16x64x2048xf32>
    %cst = arith.constant dense<0.000000e+00> : vector<16x2048xf32>
    %2 = vector.multi_reduction <add>, %1, %cst [1] : vector<16x64x2048xf32> to vector<16x2048xf32>
    %cst_2 = arith.constant 6.400000e+01 : f32
    %3 = vector.broadcast %cst_2 : f32 to vector<16x2048xf32>
    %4 = arith.divf %2, %3 : vector<16x2048xf32>
    %5 = arith.truncf %4 : vector<16x2048xf32> to vector<16x2048xbf16>
    %c0_3 = arith.constant 0 : index
    %c0_4 = arith.constant 0 : index
    %6 = vector.load %arg2[%c0_3, %c0_4] : memref<2048x256xbf16, #tpu.memory_space<vmem>>, vector<2048x256xbf16>
    %cst_5 = arith.constant dense<0.000000e+00> : vector<16x256xf32>
    %7 = tpu.matmul %5, %6, %cst_5 {dimension_numbers = #tpu.dot_dimension_numbers<[1], [0], [0], [1], [0, 0, 1, 1], [], []>} : vector<16x2048xbf16>, vector<2048x256xbf16>, vector<16x256xf32> -> vector<16x256xf32>
    %c0_6 = arith.constant 0 : index
    %c0_7 = arith.constant 0 : index
    %8 = vector.load %arg3[%c0_6, %c0_7] : memref<1x256xf32, #tpu.memory_space<vmem>>, vector<1x256xf32>
    %9 = vector.broadcast %8 : vector<1x256xf32> to vector<16x256xf32>
    %10 = arith.addf %7, %9 : vector<16x256xf32>
    %c0_8 = arith.constant 0 : index
    %c0_9 = arith.constant 0 : index
    %11 = vector.load %arg4[%c0_8, %c0_9] : memref<16x256xf32, #tpu.memory_space<vmem>>, vector<16x256xf32>
    tpu.vector_store %arg4[%c0_8, %c0_9], %10 {strides = array<i32>} : memref<16x256xf32, #tpu.memory_space<vmem>>, vector<16x256xf32>,
    return
  }
  func.func @transform_0(%arg0: i32) -> (i32, i32, i32) {
    %c0_i32 = arith.constant 0 : i32
    %c0_i32_0 = arith.constant 0 : i32
    %c0_i32_1 = arith.constant 0 : i32
    return %arg0, %c0_i32, %c0_i32_0 : i32, i32, i32
  }
  func.func @transform_1(%arg0: i32) -> (i32, i32) {
    %c0_i32 = arith.constant 0 : i32
    %c0_i32_0 = arith.constant 0 : i32
    %c0_i32_1 = arith.constant 0 : i32
    return %c0_i32, %c0_i32_0 : i32, i32
  }
  func.func @transform_2(%arg0: i32) -> (i32, i32) {
    %c0_i32 = arith.constant 0 : i32
    %c0_i32_0 = arith.constant 0 : i32
    %c0_i32_1 = arith.constant 0 : i32
    return %c0_i32, %c0_i32_0 : i32, i32
  }
  func.func @transform_3(%arg0: i32) -> (i32, i32) {
    %c0_i32 = arith.constant 0 : i32
    %c0_i32_0 = arith.constant 0 : i32
    return %arg0, %c0_i32 : i32, i32
  }
}

</mosaic_0001>

<llo_original>
// kernel: inceptionv3_forward.1
$region0: #{inceptionv3_forward.1}
  #allocation0 [shape = 'u32[]', space=smem, size = 0x4, offset = 0x4, fixed_abs, tag = 'smem constant byte address 0x4 - core index']
  #allocation1 [shape = 'u32[144,128]{1,0:T(1,128)}', space=vmem, size = 0x12000, scoped, tag = 'internal scratch']
  %s0 = inlined_call_operand.vmem [shape: bf16[16,64,2048], index: 0, kind: input, shape index: {}]
  %s1 = inlined_call_operand.vmem [shape: bf16[2048,256], index: 1, kind: input, shape index: {}]
  %s2 = inlined_call_operand.vmem [shape: f32[1,256], index: 2, kind: input, shape index: {}]
  %s3 = inlined_call_operand.vmem [shape: f32[16,256], index: 3, kind: output, shape index: {}]
  %s4 = sld [smem:[#allocation0]]
  $region22: #{inceptionv3_forward.1} parent=0
    _
  %s6 = ssub.s32 1, %s4
  %s7 = scalar_select 0, %s6, %s4
  // Predicated region
  $region2: #{inceptionv3_forward.1} parent=0 // pred_check
    _
  $region3: #{inceptionv3_forward.1} parent=0 // pred_check_branch
    %9 = sbr.rel (0) target = $region5
  $region4: #{inceptionv3_forward.1} parent=0 // pred_region
    _
  $region5: #{inceptionv3_forward.1} parent=0 // pred_fallthru
    _
  // Predicated region
  $region6: #{inceptionv3_forward.1} parent=0 // pred_check
    _
  $region7: #{inceptionv3_forward.1} parent=0 // pred_check_branch
    %11 = sbr.rel (0) target = $region9
  $region8: #{inceptionv3_forward.1} parent=0 // pred_region
    _
  $region9: #{inceptionv3_forward.1} parent=0 // pred_fallthru
    _
  // Predicated region
  $region10: #{inceptionv3_forward.1} parent=0 // pred_check
    _
  $region11: #{inceptionv3_forward.1} parent=0 // pred_check_branch
    %13 = sbr.rel (0) target = $region13
  $region12: #{inceptionv3_forward.1} parent=0 // pred_region
    _
  $region13: #{inceptionv3_forward.1} parent=0 // pred_fallthru
    _
  %v14 = vld [vmem:[%s0] sm:$0xff]
  %v15 = vld [vmem:[%s0 + $0x8] sm:$0xff]
  %v16 = vld [vmem:[%s0 + $0x10] sm:$0xff]
  %v17 = vld [vmem:[%s0 + $0x18] sm:$0xff]
  %v18 = vld [vmem:[%s0 + $0x20] sm:$0xff]
  %v19 = vld [vmem:[%s0 + $0x28] sm:$0xff]
  %v20 = vld [vmem:[%s0 + $0x30] sm:$0xff]
  %v21 = vld [vmem:[%s0 + $0x38] sm:$0xff]
  %v22 = vld [vmem:[%s0 + $0x40] sm:$0xff]
  %v23 = vld [vmem:[%s0 + $0x48] sm:$0xff]
  %v24 = vld [vmem:[%s0 + $0x50] sm:$0xff]
  %v25 = vld [vmem:[%s0 + $0x58] sm:$0xff]
  %v26 = vld [vmem:[%s0 + $0x60] sm:$0xff]
  %v27 = vld [vmem:[%s0 + $0x68] sm:$0xff]
  %v28 = vld [vmem:[%s0 + $0x70] sm:$0xff]
  %v29 = vld [vmem:[%s0 + $0x78] sm:$0xff]
  %v30 = vld [vmem:[%s0 + $0x80] sm:$0xff]
  %v31 = vld [vmem:[%s0 + $0x88] sm:$0xff]
  %v32 = vld [vmem:[%s0 + $0x90] sm:$0xff]
  %v33 = vld [vmem:[%s0 + $0x98] sm:$0xff]
  %v34 = vld [vmem:[%s0 + $0xa0] sm:$0xff]
  %v35 = vld [vmem:[%s0 + $0xa8] sm:$0xff]
  %v36 = vld [vmem:[%s0 + $0xb0] sm:$0xff]
  %v37 = vld [vmem:[%s0 + $0xb8] sm:$0xff]
  %v38 = vld [vmem:[%s0 + $0xc0] sm:$0xff]
  %v39 = vld [vmem:[%s0 + $0xc8] sm:$0xff]
  %v40 = vld [vmem:[%s0 + $0xd0] sm:$0xff]
  %v41 = vld [vmem:[%s0 + $0xd8] sm:$0xff]
  %v42 = vld [vmem:[%s0 + $0xe0] sm:$0xff]
  %v43 = vld [vmem:[%s0 + $0xe8] sm:$0xff]
  %v44 = vld [vmem:[%s0 + $0xf0] sm:$0xff]
  %v45 = vld [vmem:[%s0 + $0xf8] sm:$0xff]
  %v46 = vld [vmem:[%s0 + $0x100] sm:$0xff]
  %v47 = vld [vmem:[%s0 + $0x108] sm:$0xff]
  %v48 = vld [vmem:[%s0 + $0x110] sm:$0xff]
  %v49 = vld [vmem:[%s0 + $0x118] sm:$0xff]
  %v50 = vld [vmem:[%s0 + $0x120] sm:$0xff]
  %v51 = vld [vmem:[%s0 + $0x128] sm:$0xff]
  %v52 = vld [vmem:[%s0 + $0x130] sm:$0xff]
  %v53 = vld [vmem:[%s0 + $0x138] sm:$0xff]
  %v54 = vld [vmem:[%s0 + $0x140] sm:$0xff]
  %v55 = vld [vmem:[%s0 + $0x148] sm:$0xff]
  %v56 = vld [vmem:[%s0 + $0x150] sm:$0xff]
  %v57 = vld [vmem:[%s0 + $0x158] sm:$0xff]
  %v58 = vld [vmem:[%s0 + $0x160] sm:$0xff]
  %v59 = vld [vmem:[%s0 + $0x168] sm:$0xff]
  %v60 = vld [vmem:[%s0 + $0x170] sm:$0xff]
  %v61 = vld [vmem:[%s0 + $0x178] sm:$0xff]
  %v62 = vld [vmem:[%s0 + $0x180] sm:$0xff]
  %v63 = vld [vmem:[%s0 + $0x188] sm:$0xff]
  %v64 = vld [vmem:[%s0 + $0x190] sm:$0xff]
  %v65 = vld [vmem:[%s0 + $0x198] sm:$0xff]
  %v66 = vld [vmem:[%s0 + $0x1a0] sm:$0xff]
  %v67 = vld [vmem:[%s0 + $0x1a8] sm:$0xff]
  %v68 = vld [vmem:[%s0 + $0x1b0] sm:$0xff]
  %v69 = vld [vmem:[%s0 + $0x1b8] sm:$0xff]
  %v70 = vld [vmem:[%s0 + $0x1c0] sm:$0xff]
  %v71 = vld [vmem:[%s0 + $0x1c8] sm:$0xff]
  %v72 = vld [vmem:[%s0 + $0x1d0] sm:$0xff]
  %v73 = vld [vmem:[%s0 + $0x1d8] sm:$0xff]
  %v74 = vld [vmem:[%s0 + $0x1e0] sm:$0xff]
  %v75 = vld [vmem:[%s0 + $0x1e8] sm:$0xff]
  %v76 = vld [vmem:[%s0 + $0x1f0] sm:$0xff]
  %v77 = vld [vmem:[%s0 + $0x1f8] sm:$0xff]
  %v78 = vld [vmem:[%s0 + $0x200] sm:$0xff]
  %v79 = vld [vmem:[%s0 + $0x208] sm:$0xff]
  %v80 = vld [vmem:[%s0 + $0x210] sm:$0xff]
  %v81 = vld [vmem:[%s0 + $0x218] sm:$0xff]
  %v82 = vld [vmem:[%s0 + $0x220] sm:$0xff]
  %v83 = vld [vmem:[%s0 + $0x228] sm:$0xff]
  %v84 = vld [vmem:[%s0 + $0x230] sm:$0xff]
  %v85 = vld [vmem:[%s0 + $0x238] sm:$0xff]
  %v86 = vld [vmem:[%s0 + $0x240] sm:$0xff]
  %v87 = vld [vmem:[%s0 + $0x248] sm:$0xff]
  %v88 = vld [vmem:[%s0 + $0x250] sm:$0xff]
  %v89 = vld [vmem:[%s0 + $0x258] sm:$0xff]
  %v90 = vld [vmem:[%s0 + $0x260] sm:$0xff]
  %v91 = vld [vmem:[%s0 + $0x268] sm:$0xff]
  %v92 = vld [vmem:[%s0 + $0x270] sm:$0xff]
  %v93 = vld [vmem:[%s0 + $0x278] sm:$0xff]
  %v94 = vld [vmem:[%s0 + $0x280] sm:$0xff]
  %v95 = vld [vmem:[%s0 + $0x288] sm:$0xff]
  %v96 = vld [vmem:[%s0 + $0x290] sm:$0xff]
  %v97 = vld [vmem:[%s0 + $0x298] sm:$0xff]
  %v98 = vld [vmem:[%s0 + $0x2a0] sm:$0xff]
  %v99 = vld [vmem:[%s0 + $0x2a8] sm:$0xff]
  %v100 = vld [vmem:[%s0 + $0x2b0] sm:$0xff]
  %v101 = vld [vmem:[%s0 + $0x2b8] sm:$0xff]
  %v102 = vld [vmem:[%s0 + $0x2c0] sm:$0xff]
  %v103 = vld [vmem:[%s0 + $0x2c8] sm:$0xff]
  %v104 = vld [vmem:[%s0 + $0x2d0] sm:$0xff]
  %v105 = vld [vmem:[%s0 + $0x2d8] sm:$0xff]
  %v106 = vld [vmem:[%s0 + $0x2e0] sm:$0xff]
  %v107 = vld [vmem:[%s0 + $0x2e8] sm:$0xff]
  %v108 = vld [vmem:[%s0 + $0x2f0] sm:$0xff]
  %v109 = vld [vmem:[%s0 + $0x2f8] sm:$0xff]
  %v110 = vld [vmem:[%s0 + $0x300] sm:$0xff]
  %v111 = vld [vmem:[%s0 + $0x308] sm:$0xff]
  %v112 = vld [vmem:[%s0 + $0x310] sm:$0xff]
  %v113 = vld [vmem:[%s0 + $0x318] sm:$0xff]
  %v114 = vld [vmem:[%s0 + $0x320] sm:$0xff]
  %v115 = vld [vmem:[%s0 + $0x328] sm:$0xff]
  %v116 = vld [vmem:[%s0 + $0x330] sm:$0xff]
  %v117 = vld [vmem:[%s0 + $0x338] sm:$0xff]
  %v118 = vld [vmem:[%s0 + $0x340] sm:$0xff]
  %v119 = vld [vmem:[%s0 + $0x348] sm:$0xff]
  %v120 = vld [vmem:[%s0 + $0x350] sm:$0xff]
  %v121 = vld [vmem:[%s0 + $0x358] sm:$0xff]
  %v122 = vld [vmem:[%s0 + $0x360] sm:$0xff]
  %v123 = vld [vmem:[%s0 + $0x368] sm:$0xff]
  %v124 = vld [vmem:[%s0 + $0x370] sm:$0xff]
  %v125 = vld [vmem:[%s0 + $0x378] sm:$0xff]
  %v126 = vld [vmem:[%s0 + $0x380] sm:$0xff]
  %v127 = vld [vmem:[%s0 + $0x388] sm:$0xff]
  %v128 = vld [vmem:[%s0 + $0x390] sm:$0xff]
  %v129 = vld [vmem:[%s0 + $0x398] sm:$0xff]
  %v130 = vld [vmem:[%s0 + $0x3a0] sm:$0xff]
  %v131 = vld [vmem:[%s0 + $0x3a8] sm:$0xff]
  %v132 = vld [vmem:[%s0 + $0x3b0] sm:$0xff]
  %v133 = vld [vmem:[%s0 + $0x3b8] sm:$0xff]
  %v134 = vld [vmem:[%s0 + $0x3c0] sm:$0xff]
  %v135 = vld [vmem:[%s0 + $0x3c8] sm:$0xff]
  %v136 = vld [vmem:[%s0 + $0x3d0] sm:$0xff]
  %v137 = vld [vmem:[%s0 + $0x3d8] sm:$0xff]
  %v138 = vld [vmem:[%s0 + $0x3e0] sm:$0xff]
  %v139 = vld [vmem:[%s0 + $0x3e8] sm:$0xff]
  %v140 = vld [vmem:[%s0 + $0x3f0] sm:$0xff]
  %v141 = vld [vmem:[%s0 + $0x3f8] sm:$0xff]
  %v142 = vld [vmem:[%s0 + $0x400] sm:$0xff]
  %v143 = vld [vmem:[%s0 + $0x408] sm:$0xff]
  %v144 = vld [vmem:[%s0 + $0x410] sm:$0xff]
  %v145 = vld [vmem:[%s0 + $0x418] sm:$0xff]
  %v146 = vld [vmem:[%s0 + $0x420] sm:$0xff]
  %v147 = vld [vmem:[%s0 + $0x428] sm:$0xff]
  %v148 = vld [vmem:[%s0 + $0x430] sm:$0xff]
  %v149 = vld [vmem:[%s0 + $0x438] sm:$0xff]
  %v150 = vld [vmem:[%s0 + $0x440] sm:$0xff]
  %v151 = vld [vmem:[%s0 + $0x448] sm:$0xff]
  %v152 = vld [vmem:[%s0 + $0x450] sm:$0xff]
  %v153 = vld [vmem:[%s0 + $0x458] sm:$0xff]
  %v154 = vld [vmem:[%s0 + $0x460] sm:$0xff]
  %v155 = vld [vmem:[%s0 + $0x468] sm:$0xff]
  %v156 = vld [vmem:[%s0 + $0x470] sm:$0xff]
  %v157 = vld [vmem:[%s0 + $0x478] sm:$0xff]
  %v158 = vld [vmem:[%s0 + $0x480] sm:$0xff]
  %v159 = vld [vmem:[%s0 + $0x488] sm:$0xff]
  %v160 = vld [vmem:[%s0 + $0x490] sm:$0xff]
  %v161 = vld [vmem:[%s0 + $0x498] sm:$0xff]
  %v162 = vld [vmem:[%s0 + $0x4a0] sm:$0xff]
  %v163 = vld [vmem:[%s0 + $0x4a8] sm:$0xff]
  %v164 = vld [vmem:[%s0 + $0x4b0] sm:$0xff]
  %v165 = vld [vmem:[%s0 + $0x4b8] sm:$0xff]
  %v166 = vld [vmem:[%s0 + $0x4c0] sm:$0xff]
  %v167 = vld [vmem:[%s0 + $0x4c8] sm:$0xff]
  %v168 = vld [vmem:[%s0 + $0x4d0] sm:$0xff]
  %v169 = vld [vmem:[%s0 + $0x4d8] sm:$0xff]
  %v170 = vld [vmem:[%s0 + $0x4e0] sm:$0xff]
  %v171 = vld [vmem:[%s0 + $0x4e8] sm:$0xff]
  %v172 = vld [vmem:[%s0 + $0x4f0] sm:$0xff]
  %v173 = vld [vmem:[%s0 + $0x4f8] sm:$0xff]
  %v174 = vld [vmem:[%s0 + $0x500] sm:$0xff]
  %v175 = vld [vmem:[%s0 + $0x508] sm:$0xff]
  %v176 = vld [vmem:[%s0 + $0x510] sm:$0xff]
  %v177 = vld [vmem:[%s0 + $0x518] sm:$0xff]
  %v178 = vld [vmem:[%s0 + $0x520] sm:$0xff]
  %v179 = vld [vmem:[%s0 + $0x528] sm:$0xff]
  %v180 = vld [vmem:[%s0 + $0x530] sm:$0xff]
  %v181 = vld [vmem:[%s0 + $0x538] sm:$0xff]
  %v182 = vld [vmem:[%s0 + $0x540] sm:$0xff]
  %v183 = vld [vmem:[%s0 + $0x548] sm:$0xff]
  %v184 = vld [vmem:[%s0 + $0x550] sm:$0xff]
  %v185 = vld [vmem:[%s0 + $0x558] sm:$0xff]
  %v186 = vld [vmem:[%s0 + $0x560] sm:$0xff]
  %v187 = vld [vmem:[%s0 + $0x568] sm:$0xff]
  %v188 = vld [vmem:[%s0 + $0x570] sm:$0xff]
  %v189 = vld [vmem:[%s0 + $0x578] sm:$0xff]
  %v190 = vld [vmem:[%s0 + $0x580] sm:$0xff]
  %v191 = vld [vmem:[%s0 + $0x588] sm:$0xff]
  %v192 = vld [vmem:[%s0 + $0x590] sm:$0xff]
  %v193 = vld [vmem:[%s0 + $0x598] sm:$0xff]
  %v194 = vld [vmem:[%s0 + $0x5a0] sm:$0xff]
  %v195 = vld [vmem:[%s0 + $0x5a8] sm:$0xff]
  %v196 = vld [vmem:[%s0 + $0x5b0] sm:$0xff]
  %v197 = vld [vmem:[%s0 + $0x5b8] sm:$0xff]
  %v198 = vld [vmem:[%s0 + $0x5c0] sm:$0xff]
  %v199 = vld [vmem:[%s0 + $0x5c8] sm:$0xff]
  %v200 = vld [vmem:[%s0 + $0x5d0] sm:$0xff]
  %v201 = vld [vmem:[%s0 + $0x5d8] sm:$0xff]
  %v202 = vld [vmem:[%s0 + $0x5e0] sm:$0xff]
  %v203 = vld [vmem:[%s0 + $0x5e8] sm:$0xff]
  %v204 = vld [vmem:[%s0 + $0x5f0] sm:$0xff]
  %v205 = vld [vmem:[%s0 + $0x5f8] sm:$0xff]
  %v206 = vld [vmem:[%s0 + $0x600] sm:$0xff]
  %v207 = vld [vmem:[%s0 + $0x608] sm:$0xff]
  %v208 = vld [vmem:[%s0 + $0x610] sm:$0xff]
  %v209 = vld [vmem:[%s0 + $0x618] sm:$0xff]
  %v210 = vld [vmem:[%s0 + $0x620] sm:$0xff]
  %v211 = vld [vmem:[%s0 + $0x628] sm:$0xff]
  %v212 = vld [vmem:[%s0 + $0x630] sm:$0xff]
  %v213 = vld [vmem:[%s0 + $0x638] sm:$0xff]
  %v214 = vld [vmem:[%s0 + $0x640] sm:$0xff]
  %v215 = vld [vmem:[%s0 + $0x648] sm:$0xff]
  %v216 = vld [vmem:[%s0 + $0x650] sm:$0xff]
  %v217 = vld [vmem:[%s0 + $0x658] sm:$0xff]
  %v218 = vld [vmem:[%s0 + $0x660] sm:$0xff]
  %v219 = vld [vmem:[%s0 + $0x668] sm:$0xff]
  %v220 = vld [vmem:[%s0 + $0x670] sm:$0xff]
  %v221 = vld [vmem:[%s0 + $0x678] sm:$0xff]
  %v222 = vld [vmem:[%s0 + $0x680] sm:$0xff]
  %v223 = vld [vmem:[%s0 + $0x688] sm:$0xff]
  %v224 = vld [vmem:[%s0 + $0x690] sm:$0xff]
  %v225 = vld [vmem:[%s0 + $0x698] sm:$0xff]
  %v226 = vld [vmem:[%s0 + $0x6a0] sm:$0xff]
  %v227 = vld [vmem:[%s0 + $0x6a8] sm:$0xff]
  %v228 = vld [vmem:[%s0 + $0x6b0] sm:$0xff]
  %v229 = vld [vmem:[%s0 + $0x6b8] sm:$0xff]
  %v230 = vld [vmem:[%s0 + $0x6c0] sm:$0xff]
  %v231 = vld [vmem:[%s0 + $0x6c8] sm:$0xff]
  %v232 = vld [vmem:[%s0 + $0x6d0] sm:$0xff]
  %v233 = vld [vmem:[%s0 + $0x6d8] sm:$0xff]
  %v234 = vld [vmem:[%s0 + $0x6e0] sm:$0xff]
  %v235 = vld [vmem:[%s0 + $0x6e8] sm:$0xff]
  %v236 = vld [vmem:[%s0 + $0x6f0] sm:$0xff]
  %v237 = vld [vmem:[%s0 + $0x6f8] sm:$0xff]
  %v238 = vld [vmem:[%s0 + $0x700] sm:$0xff]
  %v239 = vld [vmem:[%s0 + $0x708] sm:$0xff]
  %v240 = vld [vmem:[%s0 + $0x710] sm:$0xff]
  %v241 = vld [vmem:[%s0 + $0x718] sm:$0xff]
  %v242 = vld [vmem:[%s0 + $0x720] sm:$0xff]
  %v243 = vld [vmem:[%s0 + $0x728] sm:$0xff]
  %v244 = vld [vmem:[%s0 + $0x730] sm:$0xff]
  %v245 = vld [vmem:[%s0 + $0x738] sm:$0xff]
  %v246 = vld [vmem:[%s0 + $0x740] sm:$0xff]
  %v247 = vld [vmem:[%s0 + $0x748] sm:$0xff]
  %v248 = vld [vmem:[%s0 + $0x750] sm:$0xff]
  %v249 = vld [vmem:[%s0 + $0x758] sm:$0xff]
  %v250 = vld [vmem:[%s0 + $0x760] sm:$0xff]
  %v251 = vld [vmem:[%s0 + $0x768] sm:$0xff]
  %v252 = vld [vmem:[%s0 + $0x770] sm:$0xff]
  %v253 = vld [vmem:[%s0 + $0x778] sm:$0xff]
  %v254 = vld [vmem:[%s0 + $0x780] sm:$0xff]
  %v255 = vld [vmem:[%s0 + $0x788] sm:$0xff]
  %v256 = vld [vmem:[%s0 + $0x790] sm:$0xff]
  %v257 = vld [vmem:[%s0 + $0x798] sm:$0xff]
  %v258 = vld [vmem:[%s0 + $0x7a0] sm:$0xff]
  %v259 = vld [vmem:[%s0 + $0x7a8] sm:$0xff]
  %v260 = vld [vmem:[%s0 + $0x7b0] sm:$0xff]
  %v261 = vld [vmem:[%s0 + $0x7b8] sm:$0xff]
  %v262 = vld [vmem:[%s0 + $0x7c0] sm:$0xff]
  %v263 = vld [vmem:[%s0 + $0x7c8] sm:$0xff]
  %v264 = vld [vmem:[%s0 + $0x7d0] sm:$0xff]
  %v265 = vld [vmem:[%s0 + $0x7d8] sm:$0xff]
  %v266 = vld [vmem:[%s0 + $0x7e0] sm:$0xff]
  %v267 = vld [vmem:[%s0 + $0x7e8] sm:$0xff]
  %v268 = vld [vmem:[%s0 + $0x7f0] sm:$0xff]
  %v269 = vld [vmem:[%s0 + $0x7f8] sm:$0xff]
  %v270 = vld [vmem:[%s0 + $0x800] sm:$0xff]
  %v271 = vld [vmem:[%s0 + $0x808] sm:$0xff]
  %v272 = vld [vmem:[%s0 + $0x810] sm:$0xff]
  %v273 = vld [vmem:[%s0 + $0x818] sm:$0xff]
  %v274 = vld [vmem:[%s0 + $0x820] sm:$0xff]
  %v275 = vld [vmem:[%s0 + $0x828] sm:$0xff]
  %v276 = vld [vmem:[%s0 + $0x830] sm:$0xff]
  %v277 = vld [vmem:[%s0 + $0x838] sm:$0xff]
  %v278 = vld [vmem:[%s0 + $0x840] sm:$0xff]
  %v279 = vld [vmem:[%s0 + $0x848] sm:$0xff]
  %v280 = vld [vmem:[%s0 + $0x850] sm:$0xff]
  %v281 = vld [vmem:[%s0 + $0x858] sm:$0xff]
  %v282 = vld [vmem:[%s0 + $0x860] sm:$0xff]
  %v283 = vld [vmem:[%s0 + $0x868] sm:$0xff]
  %v284 = vld [vmem:[%s0 + $0x870] sm:$0xff]
  %v285 = vld [vmem:[%s0 + $0x878] sm:$0xff]
  %v286 = vld [vmem:[%s0 + $0x880] sm:$0xff]
  %v287 = vld [vmem:[%s0 + $0x888] sm:$0xff]
  %v288 = vld [vmem:[%s0 + $0x890] sm:$0xff]
  %v289 = vld [vmem:[%s0 + $0x898] sm:$0xff]
  %v290 = vld [vmem:[%s0 + $0x8a0] sm:$0xff]
  %v291 = vld [vmem:[%s0 + $0x8a8] sm:$0xff]
  %v292 = vld [vmem:[%s0 + $0x8b0] sm:$0xff]
  %v293 = vld [vmem:[%s0 + $0x8b8] sm:$0xff]
  %v294 = vld [vmem:[%s0 + $0x8c0] sm:$0xff]
  %v295 = vld [vmem:[%s0 + $0x8c8] sm:$0xff]
  %v296 = vld [vmem:[%s0 + $0x8d0] sm:$0xff]
  %v297 = vld [vmem:[%s0 + $0x8d8] sm:$0xff]
  %v298 = vld [vmem:[%s0 + $0x8e0] sm:$0xff]
  %v299 = vld [vmem:[%s0 + $0x8e8] sm:$0xff]
  %v300 = vld [vmem:[%s0 + $0x8f0] sm:$0xff]
  %v301 = vld [vmem:[%s0 + $0x8f8] sm:$0xff]
  %v302 = vld [vmem:[%s0 + $0x900] sm:$0xff]
  %v303 = vld [vmem:[%s0 + $0x908] sm:$0xff]
  %v304 = vld [vmem:[%s0 + $0x910] sm:$0xff]
  %v305 = vld [vmem:[%s0 + $0x918] sm:$0xff]
  %v306 = vld [vmem:[%s0 + $0x920] sm:$0xff]
  %v307 = vld [vmem:[%s0 + $0x928] sm:$0xff]
  %v308 = vld [vmem:[%s0 + $0x930] sm:$0xff]
  %v309 = vld [vmem:[%s0 + $0x938] sm:$0xff]
  %v310 = vld [vmem:[%s0 + $0x940] sm:$0xff]
  %v311 = vld [vmem:[%s0 + $0x948] sm:$0xff]
  %v312 = vld [vmem:[%s0 + $0x950] sm:$0xff]
  %v313 = vld [vmem:[%s0 + $0x958] sm:$0xff]
  %v314 = vld [vmem:[%s0 + $0x960] sm:$0xff]
  %v315 = vld [vmem:[%s0 + $0x968] sm:$0xff]
  %v316 = vld [vmem:[%s0 + $0x970] sm:$0xff]
  %v317 = vld [vmem:[%s0 + $0x978] sm:$0xff]
  %v318 = vld [vmem:[%s0 + $0x980] sm:$0xff]
  %v319 = vld [vmem:[%s0 + $0x988] sm:$0xff]
  %v320 = vld [vmem:[%s0 + $0x990] sm:$0xff]
  %v321 = vld [vmem:[%s0 + $0x998] sm:$0xff]
  %v322 = vld [vmem:[%s0 + $0x9a0] sm:$0xff]
  %v323 = vld [vmem:[%s0 + $0x9a8] sm:$0xff]
  %v324 = vld [vmem:[%s0 + $0x9b0] sm:$0xff]
  %v325 = vld [vmem:[%s0 + $0x9b8] sm:$0xff]
  %v326 = vld [vmem:[%s0 + $0x9c0] sm:$0xff]
  %v327 = vld [vmem:[%s0 + $0x9c8] sm:$0xff]
  %v328 = vld [vmem:[%s0 + $0x9d0] sm:$0xff]
  %v329 = vld [vmem:[%s0 + $0x9d8] sm:$0xff]
  %v330 = vld [vmem:[%s0 + $0x9e0] sm:$0xff]
  %v331 = vld [vmem:[%s0 + $0x9e8] sm:$0xff]
  %v332 = vld [vmem:[%s0 + $0x9f0] sm:$0xff]
  %v333 = vld [vmem:[%s0 + $0x9f8] sm:$0xff]
  %v334 = vld [vmem:[%s0 + $0xa00] sm:$0xff]
  %v335 = vld [vmem:[%s0 + $0xa08] sm:$0xff]
  %v336 = vld [vmem:[%s0 + $0xa10] sm:$0xff]
  %v337 = vld [vmem:[%s0 + $0xa18] sm:$0xff]
  %v338 = vld [vmem:[%s0 + $0xa20] sm:$0xff]
  %v339 = vld [vmem:[%s0 + $0xa28] sm:$0xff]
  %v340 = vld [vmem:[%s0 + $0xa30] sm:$0xff]
  %v341 = vld [vmem:[%s0 + $0xa38] sm:$0xff]
  %v342 = vld [vmem:[%s0 + $0xa40] sm:$0xff]
  %v343 = vld [vmem:[%s0 + $0xa48] sm:$0xff]
  %v344 = vld [vmem:[%s0 + $0xa50] sm:$0xff]
  %v345 = vld [vmem:[%s0 + $0xa58] sm:$0xff]
  %v346 = vld [vmem:[%s0 + $0xa60] sm:$0xff]
  %v347 = vld [vmem:[%s0 + $0xa68] sm:$0xff]
  %v348 = vld [vmem:[%s0 + $0xa70] sm:$0xff]
  %v349 = vld [vmem:[%s0 + $0xa78] sm:$0xff]
  %v350 = vld [vmem:[%s0 + $0xa80] sm:$0xff]
  %v351 = vld [vmem:[%s0 + $0xa88] sm:$0xff]
  %v352 = vld [vmem:[%s0 + $0xa90] sm:$0xff]
  %v353 = vld [vmem:[%s0 + $0xa98] sm:$0xff]
  %v354 = vld [vmem:[%s0 + $0xaa0] sm:$0xff]
  %v355 = vld [vmem:[%s0 + $0xaa8] sm:$0xff]
  %v356 = vld [vmem:[%s0 + $0xab0] sm:$0xff]
  %v357 = vld [vmem:[%s0 + $0xab8] sm:$0xff]
  %v358 = vld [vmem:[%s0 + $0xac0] sm:$0xff]
  %v359 = vld [vmem:[%s0 + $0xac8] sm:$0xff]
  %v360 = vld [vmem:[%s0 + $0xad0] sm:$0xff]
  %v361 = vld [vmem:[%s0 + $0xad8] sm:$0xff]
  %v362 = vld [vmem:[%s0 + $0xae0] sm:$0xff]
  %v363 = vld [vmem:[%s0 + $0xae8] sm:$0xff]
  %v364 = vld [vmem:[%s0 + $0xaf0] sm:$0xff]
  %v365 = vld [vmem:[%s0 + $0xaf8] sm:$0xff]
  %v366 = vld [vmem:[%s0 + $0xb00] sm:$0xff]
  %v367 = vld [vmem:[%s0 + $0xb08] sm:$0xff]
  %v368 = vld [vmem:[%s0 + $0xb10] sm:$0xff]
  %v369 = vld [vmem:[%s0 + $0xb18] sm:$0xff]
  %v370 = vld [vmem:[%s0 + $0xb20] sm:$0xff]
  %v371 = vld [vmem:[%s0 + $0xb28] sm:$0xff]
  %v372 = vld [vmem:[%s0 + $0xb30] sm:$0xff]
  %v373 = vld [vmem:[%s0 + $0xb38] sm:$0xff]
  %v374 = vld [vmem:[%s0 + $0xb40] sm:$0xff]
  %v375 = vld [vmem:[%s0 + $0xb48] sm:$0xff]
  %v376 = vld [vmem:[%s0 + $0xb50] sm:$0xff]
  %v377 = vld [vmem:[%s0 + $0xb58] sm:$0xff]
  %v378 = vld [vmem:[%s0 + $0xb60] sm:$0xff]
  %v379 = vld [vmem:[%s0 + $0xb68] sm:$0xff]
  %v380 = vld [vmem:[%s0 + $0xb70] sm:$0xff]
  %v381 = vld [vmem:[%s0 + $0xb78] sm:$0xff]
  %v382 = vld [vmem:[%s0 + $0xb80] sm:$0xff]
  %v383 = vld [vmem:[%s0 + $0xb88] sm:$0xff]
  %v384 = vld [vmem:[%s0 + $0xb90] sm:$0xff]
  %v385 = vld [vmem:[%s0 + $0xb98] sm:$0xff]
  %v386 = vld [vmem:[%s0 + $0xba0] sm:$0xff]
  %v387 = vld [vmem:[%s0 + $0xba8] sm:$0xff]
  %v388 = vld [vmem:[%s0 + $0xbb0] sm:$0xff]
  %v389 = vld [vmem:[%s0 + $0xbb8] sm:$0xff]
  %v390 = vld [vmem:[%s0 + $0xbc0] sm:$0xff]
  %v391 = vld [vmem:[%s0 + $0xbc8] sm:$0xff]
  %v392 = vld [vmem:[%s0 + $0xbd0] sm:$0xff]
  %v393 = vld [vmem:[%s0 + $0xbd8] sm:$0xff]
  %v394 = vld [vmem:[%s0 + $0xbe0] sm:$0xff]
  %v395 = vld [vmem:[%s0 + $0xbe8] sm:$0xff]
  %v396 = vld [vmem:[%s0 + $0xbf0] sm:$0xff]
  %v397 = vld [vmem:[%s0 + $0xbf8] sm:$0xff]
  %v398 = vld [vmem:[%s0 + $0xc00] sm:$0xff]
  %v399 = vld [vmem:[%s0 + $0xc08] sm:$0xff]
  %v400 = vld [vmem:[%s0 + $0xc10] sm:$0xff]
  %v401 = vld [vmem:[%s0 + $0xc18] sm:$0xff]
  %v402 = vld [vmem:[%s0 + $0xc20] sm:$0xff]
  %v403 = vld [vmem:[%s0 + $0xc28] sm:$0xff]
  %v404 = vld [vmem:[%s0 + $0xc30] sm:$0xff]
  %v405 = vld [vmem:[%s0 + $0xc38] sm:$0xff]
  %v406 = vld [vmem:[%s0 + $0xc40] sm:$0xff]
  %v407 = vld [vmem:[%s0 + $0xc48] sm:$0xff]
  %v408 = vld [vmem:[%s0 + $0xc50] sm:$0xff]
  %v409 = vld [vmem:[%s0 + $0xc58] sm:$0xff]
  %v410 = vld [vmem:[%s0 + $0xc60] sm:$0xff]
  %v411 = vld [vmem:[%s0 + $0xc68] sm:$0xff]
  %v412 = vld [vmem:[%s0 + $0xc70] sm:$0xff]
  %v413 = vld [vmem:[%s0 + $0xc78] sm:$0xff]
  %v414 = vld [vmem:[%s0 + $0xc80] sm:$0xff]
  %v415 = vld [vmem:[%s0 + $0xc88] sm:$0xff]
  %v416 = vld [vmem:[%s0 + $0xc90] sm:$0xff]
  %v417 = vld [vmem:[%s0 + $0xc98] sm:$0xff]
  %v418 = vld [vmem:[%s0 + $0xca0] sm:$0xff]
  %v419 = vld [vmem:[%s0 + $0xca8] sm:$0xff]
  %v420 = vld [vmem:[%s0 + $0xcb0] sm:$0xff]
  %v421 = vld [vmem:[%s0 + $0xcb8] sm:$0xff]
  %v422 = vld [vmem:[%s0 + $0xcc0] sm:$0xff]
  %v423 = vld [vmem:[%s0 + $0xcc8] sm:$0xff]
  %v424 = vld [vmem:[%s0 + $0xcd0] sm:$0xff]
  %v425 = vld [vmem:[%s0 + $0xcd8] sm:$0xff]
  %v426 = vld [vmem:[%s0 + $0xce0] sm:$0xff]
  %v427 = vld [vmem:[%s0 + $0xce8] sm:$0xff]
  %v428 = vld [vmem:[%s0 + $0xcf0] sm:$0xff]
  %v429 = vld [vmem:[%s0 + $0xcf8] sm:$0xff]
  %v430 = vld [vmem:[%s0 + $0xd00] sm:$0xff]
  %v431 = vld [vmem:[%s0 + $0xd08] sm:$0xff]
  %v432 = vld [vmem:[%s0 + $0xd10] sm:$0xff]
  %v433 = vld [vmem:[%s0 + $0xd18] sm:$0xff]
  %v434 = vld [vmem:[%s0 + $0xd20] sm:$0xff]
  %v435 = vld [vmem:[%s0 + $0xd28] sm:$0xff]
  %v436 = vld [vmem:[%s0 + $0xd30] sm:$0xff]
  %v437 = vld [vmem:[%s0 + $0xd38] sm:$0xff]
  %v438 = vld [vmem:[%s0 + $0xd40] sm:$0xff]
  %v439 = vld [vmem:[%s0 + $0xd48] sm:$0xff]
  %v440 = vld [vmem:[%s0 + $0xd50] sm:$0xff]
  %v441 = vld [vmem:[%s0 + $0xd58] sm:$0xff]
  %v442 = vld [vmem:[%s0 + $0xd60] sm:$0xff]
  %v443 = vld [vmem:[%s0 + $0xd68] sm:$0xff]
  %v444 = vld [vmem:[%s0 + $0xd70] sm:$0xff]
  %v445 = vld [vmem:[%s0 + $0xd78] sm:$0xff]
  %v446 = vld [vmem:[%s0 + $0xd80] sm:$0xff]
  %v447 = vld [vmem:[%s0 + $0xd88] sm:$0xff]
  %v448 = vld [vmem:[%s0 + $0xd90] sm:$0xff]
  %v449 = vld [vmem:[%s0 + $0xd98] sm:$0xff]
  %v450 = vld [vmem:[%s0 + $0xda0] sm:$0xff]
  %v451 = vld [vmem:[%s0 + $0xda8] sm:$0xff]
  %v452 = vld [vmem:[%s0 + $0xdb0] sm:$0xff]
  %v453 = vld [vmem:[%s0 + $0xdb8] sm:$0xff]
  %v454 = vld [vmem:[%s0 + $0xdc0] sm:$0xff]
  %v455 = vld [vmem:[%s0 + $0xdc8] sm:$0xff]
  %v456 = vld [vmem:[%s0 + $0xdd0] sm:$0xff]
  %v457 = vld [vmem:[%s0 + $0xdd8] sm:$0xff]
  %v458 = vld [vmem:[%s0 + $0xde0] sm:$0xff]
  %v459 = vld [vmem:[%s0 + $0xde8] sm:$0xff]
  %v460 = vld [vmem:[%s0 + $0xdf0] sm:$0xff]
  %v461 = vld [vmem:[%s0 + $0xdf8] sm:$0xff]
  %v462 = vld [vmem:[%s0 + $0xe00] sm:$0xff]
  %v463 = vld [vmem:[%s0 + $0xe08] sm:$0xff]
  %v464 = vld [vmem:[%s0 + $0xe10] sm:$0xff]
  %v465 = vld [vmem:[%s0 + $0xe18] sm:$0xff]
  %v466 = vld [vmem:[%s0 + $0xe20] sm:$0xff]
  %v467 = vld [vmem:[%s0 + $0xe28] sm:$0xff]
  %v468 = vld [vmem:[%s0 + $0xe30] sm:$0xff]
  %v469 = vld [vmem:[%s0 + $0xe38] sm:$0xff]
  %v470 = vld [vmem:[%s0 + $0xe40] sm:$0xff]
  %v471 = vld [vmem:[%s0 + $0xe48] sm:$0xff]
  %v472 = vld [vmem:[%s0 + $0xe50] sm:$0xff]
  %v473 = vld [vmem:[%s0 + $0xe58] sm:$0xff]
  %v474 = vld [vmem:[%s0 + $0xe60] sm:$0xff]
  %v475 = vld [vmem:[%s0 + $0xe68] sm:$0xff]
  %v476 = vld [vmem:[%s0 + $0xe70] sm:$0xff]
  %v477 = vld [vmem:[%s0 + $0xe78] sm:$0xff]
  %v478 = vld [vmem:[%s0 + $0xe80] sm:$0xff]
  %v479 = vld [vmem:[%s0 + $0xe88] sm:$0xff]
  %v480 = vld [vmem:[%s0 + $0xe90] sm:$0xff]
  %v481 = vld [vmem:[%s0 + $0xe98] sm:$0xff]
  %v482 = vld [vmem:[%s0 + $0xea0] sm:$0xff]
  %v483 = vld [vmem:[%s0 + $0xea8] sm:$0xff]
  %v484 = vld [vmem:[%s0 + $0xeb0] sm:$0xff]
  %v485 = vld [vmem:[%s0 + $0xeb8] sm:$0xff]
  %v486 = vld [vmem:[%s0 + $0xec0] sm:$0xff]
  %v487 = vld [vmem:[%s0 + $0xec8] sm:$0xff]
  %v488 = vld [vmem:[%s0 + $0xed0] sm:$0xff]
  %v489 = vld [vmem:[%s0 + $0xed8] sm:$0xff]
  %v490 = vld [vmem:[%s0 + $0xee0] sm:$0xff]
  %v491 = vld [vmem:[%s0 + $0xee8] sm:$0xff]
  %v492 = vld [vmem:[%s0 + $0xef0] sm:$0xff]
  %v493 = vld [vmem:[%s0 + $0xef8] sm:$0xff]
  %v494 = vld [vmem:[%s0 + $0xf00] sm:$0xff]
  %v495 = vld [vmem:[%s0 + $0xf08] sm:$0xff]
  %v496 = vld [vmem:[%s0 + $0xf10] sm:$0xff]
  %v497 = vld [vmem:[%s0 + $0xf18] sm:$0xff]
  %v498 = vld [vmem:[%s0 + $0xf20] sm:$0xff]
  %v499 = vld [vmem:[%s0 + $0xf28] sm:$0xff]
  %v500 = vld [vmem:[%s0 + $0xf30] sm:$0xff]
  %v501 = vld [vmem:[%s0 + $0xf38] sm:$0xff]
  %v502 = vld [vmem:[%s0 + $0xf40] sm:$0xff]
  %v503 = vld [vmem:[%s0 + $0xf48] sm:$0xff]
  %v504 = vld [vmem:[%s0 + $0xf50] sm:$0xff]
  %v505 = vld [vmem:[%s0 + $0xf58] sm:$0xff]
  %v506 = vld [vmem:[%s0 + $0xf60] sm:$0xff]
  %v507 = vld [vmem:[%s0 + $0xf68] sm:$0xff]
  %v508 = vld [vmem:[%s0 + $0xf70] sm:$0xff]
  %v509 = vld [vmem:[%s0 + $0xf78] sm:$0xff]
  %v510 = vld [vmem:[%s0 + $0xf80] sm:$0xff]
  %v511 = vld [vmem:[%s0 + $0xf88] sm:$0xff]
  %v512 = vld [vmem:[%s0 + $0xf90] sm:$0xff]
  %v513 = vld [vmem:[%s0 + $0xf98] sm:$0xff]
  %v514 = vld [vmem:[%s0 + $0xfa0] sm:$0xff]
  %v515 = vld [vmem:[%s0 + $0xfa8] sm:$0xff]
  %v516 = vld [vmem:[%s0 + $0xfb0] sm:$0xff]
  %v517 = vld [vmem:[%s0 + $0xfb8] sm:$0xff]
  %v518 = vld [vmem:[%s0 + $0xfc0] sm:$0xff]
  %v519 = vld [vmem:[%s0 + $0xfc8] sm:$0xff]
  %v520 = vld [vmem:[%s0 + $0xfd0] sm:$0xff]
  %v521 = vld [vmem:[%s0 + $0xfd8] sm:$0xff]
  %v522 = vld [vmem:[%s0 + $0xfe0] sm:$0xff]
  %v523 = vld [vmem:[%s0 + $0xfe8] sm:$0xff]
  %v524 = vld [vmem:[%s0 + $0xff0] sm:$0xff]
  %v525 = vld [vmem:[%s0 + $0xff8] sm:$0xff]
  %v526 = vld [vmem:[%s0 + $0x1000] sm:$0xff]
  %v527 = vld [vmem:[%s0 + $0x1008] sm:$0xff]
  %v528 = vld [vmem:[%s0 + $0x1010] sm:$0xff]
  %v529 = vld [vmem:[%s0 + $0x1018] sm:$0xff]
  %v530 = vld [vmem:[%s0 + $0x1020] sm:$0xff]
  %v531 = vld [vmem:[%s0 + $0x1028] sm:$0xff]
  %v532 = vld [vmem:[%s0 + $0x1030] sm:$0xff]
  %v533 = vld [vmem:[%s0 + $0x1038] sm:$0xff]
  %v534 = vld [vmem:[%s0 + $0x1040] sm:$0xff]
  %v535 = vld [vmem:[%s0 + $0x1048] sm:$0xff]
  %v536 = vld [vmem:[%s0 + $0x1050] sm:$0xff]
  %v537 = vld [vmem:[%s0 + $0x1058] sm:$0xff]
  %v538 = vld [vmem:[%s0 + $0x1060] sm:$0xff]
  %v539 = vld [vmem:[%s0 + $0x1068] sm:$0xff]
  %v540 = vld [vmem:[%s0 + $0x1070] sm:$0xff]
  %v541 = vld [vmem:[%s0 + $0x1078] sm:$0xff]
  %v542 = vld [vmem:[%s0 + $0x1080] sm:$0xff]
  %v543 = vld [vmem:[%s0 + $0x1088] sm:$0xff]
  %v544 = vld [vmem:[%s0 + $0x1090] sm:$0xff]
  %v545 = vld [vmem:[%s0 + $0x1098] sm:$0xff]
  %v546 = vld [vmem:[%s0 + $0x10a0] sm:$0xff]
  %v547 = vld [vmem:[%s0 + $0x10a8] sm:$0xff]
  %v548 = vld [vmem:[%s0 + $0x10b0] sm:$0xff]
  %v549 = vld [vmem:[%s0 + $0x10b8] sm:$0xff]
  %v550 = vld [vmem:[%s0 + $0x10c0] sm:$0xff]
  %v551 = vld [vmem:[%s0 + $0x10c8] sm:$0xff]
  %v552 = vld [vmem:[%s0 + $0x10d0] sm:$0xff]
  %v553 = vld [vmem:[%s0 + $0x10d8] sm:$0xff]
  %v554 = vld [vmem:[%s0 + $0x10e0] sm:$0xff]
  %v555 = vld [vmem:[%s0 + $0x10e8] sm:$0xff]
  %v556 = vld [vmem:[%s0 + $0x10f0] sm:$0xff]
  %v557 = vld [vmem:[%s0 + $0x10f8] sm:$0xff]
  %v558 = vld [vmem:[%s0 + $0x1100] sm:$0xff]
  %v559 = vld [vmem:[%s0 + $0x1108] sm:$0xff]
  %v560 = vld [vmem:[%s0 + $0x1110] sm:$0xff]
  %v561 = vld [vmem:[%s0 + $0x1118] sm:$0xff]
  %v562 = vld [vmem:[%s0 + $0x1120] sm:$0xff]
  %v563 = vld [vmem:[%s0 + $0x1128] sm:$0xff]
  %v564 = vld [vmem:[%s0 + $0x1130] sm:$0xff]
  %v565 = vld [vmem:[%s0 + $0x1138] sm:$0xff]
  %v566 = vld [vmem:[%s0 + $0x1140] sm:$0xff]
  %v567 = vld [vmem:[%s0 + $0x1148] sm:$0xff]
  %v568 = vld [vmem:[%s0 + $0x1150] sm:$0xff]
  %v569 = vld [vmem:[%s0 + $0x1158] sm:$0xff]
  %v570 = vld [vmem:[%s0 + $0x1160] sm:$0xff]
  %v571 = vld [vmem:[%s0 + $0x1168] sm:$0xff]
  %v572 = vld [vmem:[%s0 + $0x1170] sm:$0xff]
  %v573 = vld [vmem:[%s0 + $0x1178] sm:$0xff]
  %v574 = vld [vmem:[%s0 + $0x1180] sm:$0xff]
  %v575 = vld [vmem:[%s0 + $0x1188] sm:$0xff]
  %v576 = vld [vmem:[%s0 + $0x1190] sm:$0xff]
  %v577 = vld [vmem:[%s0 + $0x1198] sm:$0xff]
  %v578 = vld [vmem:[%s0 + $0x11a0] sm:$0xff]
  %v579 = vld [vmem:[%s0 + $0x11a8] sm:$0xff]
  %v580 = vld [vmem:[%s0 + $0x11b0] sm:$0xff]
  %v581 = vld [vmem:[%s0 + $0x11b8] sm:$0xff]
  %v582 = vld [vmem:[%s0 + $0x11c0] sm:$0xff]
  %v583 = vld [vmem:[%s0 + $0x11c8] sm:$0xff]
  %v584 = vld [vmem:[%s0 + $0x11d0] sm:$0xff]
  %v585 = vld [vmem:[%s0 + $0x11d8] sm:$0xff]
  %v586 = vld [vmem:[%s0 + $0x11e0] sm:$0xff]
  %v587 = vld [vmem:[%s0 + $0x11e8] sm:$0xff]
  %v588 = vld [vmem:[%s0 + $0x11f0] sm:$0xff]
  %v589 = vld [vmem:[%s0 + $0x11f8] sm:$0xff]
  %v590 = vld [vmem:[%s0 + $0x1200] sm:$0xff]
  %v591 = vld [vmem:[%s0 + $0x1208] sm:$0xff]
  %v592 = vld [vmem:[%s0 + $0x1210] sm:$0xff]
  %v593 = vld [vmem:[%s0 + $0x1218] sm:$0xff]
  %v594 = vld [vmem:[%s0 + $0x1220] sm:$0xff]
  %v595 = vld [vmem:[%s0 + $0x1228] sm:$0xff]
  %v596 = vld [vmem:[%s0 + $0x1230] sm:$0xff]
  %v597 = vld [vmem:[%s0 + $0x1238] sm:$0xff]
  %v598 = vld [vmem:[%s0 + $0x1240] sm:$0xff]
  %v599 = vld [vmem:[%s0 + $0x1248] sm:$0xff]
  %v600 = vld [vmem:[%s0 + $0x1250] sm:$0xff]
  %v601 = vld [vmem:[%s0 + $0x1258] sm:$0xff]
  %v602 = vld [vmem:[%s0 + $0x1260] sm:$0xff]
  %v603 = vld [vmem:[%s0 + $0x1268] sm:$0xff]
  %v604 = vld [vmem:[%s0 + $0x1270] sm:$0xff]
  %v605 = vld [vmem:[%s0 + $0x1278] sm:$0xff]
  %v606 = vld [vmem:[%s0 + $0x1280] sm:$0xff]
  %v607 = vld [vmem:[%s0 + $0x1288] sm:$0xff]
  %v608 = vld [vmem:[%s0 + $0x1290] sm:$0xff]
  %v609 = vld [vmem:[%s0 + $0x1298] sm:$0xff]
  %v610 = vld [vmem:[%s0 + $0x12a0] sm:$0xff]
  %v611 = vld [vmem:[%s0 + $0x12a8] sm:$0xff]
  %v612 = vld [vmem:[%s0 + $0x12b0] sm:$0xff]
  %v613 = vld [vmem:[%s0 + $0x12b8] sm:$0xff]
  %v614 = vld [vmem:[%s0 + $0x12c0] sm:$0xff]
  %v615 = vld [vmem:[%s0 + $0x12c8] sm:$0xff]
  %v616 = vld [vmem:[%s0 + $0x12d0] sm:$0xff]
  %v617 = vld [vmem:[%s0 + $0x12d8] sm:$0xff]
  %v618 = vld [vmem:[%s0 + $0x12e0] sm:$0xff]
  %v619 = vld [vmem:[%s0 + $0x12e8] sm:$0xff]
  %v620 = vld [vmem:[%s0 + $0x12f0] sm:$0xff]
  %v621 = vld [vmem:[%s0 + $0x12f8] sm:$0xff]
  %v622 = vld [vmem:[%s0 + $0x1300] sm:$0xff]
  %v623 = vld [vmem:[%s0 + $0x1308] sm:$0xff]
  %v624 = vld [vmem:[%s0 + $0x1310] sm:$0xff]
  %v625 = vld [vmem:[%s0 + $0x1318] sm:$0xff]
  %v626 = vld [vmem:[%s0 + $0x1320] sm:$0xff]
  %v627 = vld [vmem:[%s0 + $0x1328] sm:$0xff]
  %v628 = vld [vmem:[%s0 + $0x1330] sm:$0xff]
  %v629 = vld [vmem:[%s0 + $0x1338] sm:$0xff]
  %v630 = vld [vmem:[%s0 + $0x1340] sm:$0xff]
  %v631 = vld [vmem:[%s0 + $0x1348] sm:$0xff]
  %v632 = vld [vmem:[%s0 + $0x1350] sm:$0xff]
  %v633 = vld [vmem:[%s0 + $0x1358] sm:$0xff]
  %v634 = vld [vmem:[%s0 + $0x1360] sm:$0xff]
  %v635 = vld [vmem:[%s0 + $0x1368] sm:$0xff]
  %v636 = vld [vmem:[%s0 + $0x1370] sm:$0xff]
  %v637 = vld [vmem:[%s0 + $0x1378] sm:$0xff]
  %v638 = vld [vmem:[%s0 + $0x1380] sm:$0xff]
  %v639 = vld [vmem:[%s0 + $0x1388] sm:$0xff]
  %v640 = vld [vmem:[%s0 + $0x1390] sm:$0xff]
  %v641 = vld [vmem:[%s0 + $0x1398] sm:$0xff]
  %v642 = vld [vmem:[%s0 + $0x13a0] sm:$0xff]
  %v643 = vld [vmem:[%s0 + $0x13a8] sm:$0xff]
  %v644 = vld [vmem:[%s0 + $0x13b0] sm:$0xff]
  %v645 = vld [vmem:[%s0 + $0x13b8] sm:$0xff]
  %v646 = vld [vmem:[%s0 + $0x13c0] sm:$0xff]
  %v647 = vld [vmem:[%s0 + $0x13c8] sm:$0xff]
  %v648 = vld [vmem:[%s0 + $0x13d0] sm:$0xff]
  %v649 = vld [vmem:[%s0 + $0x13d8] sm:$0xff]
  %v650 = vld [vmem:[%s0 + $0x13e0] sm:$0xff]
  %v651 = vld [vmem:[%s0 + $0x13e8] sm:$0xff]
  %v652 = vld [vmem:[%s0 + $0x13f0] sm:$0xff]
  %v653 = vld [vmem:[%s0 + $0x13f8] sm:$0xff]
  %v654 = vld [vmem:[%s0 + $0x1400] sm:$0xff]
  %v655 = vld [vmem:[%s0 + $0x1408] sm:$0xff]
  %v656 = vld [vmem:[%s0 + $0x1410] sm:$0xff]
  %v657 = vld [vmem:[%s0 + $0x1418] sm:$0xff]
  %v658 = vld [vmem:[%s0 + $0x1420] sm:$0xff]
  %v659 = vld [vmem:[%s0 + $0x1428] sm:$0xff]
  %v660 = vld [vmem:[%s0 + $0x1430] sm:$0xff]
  %v661 = vld [vmem:[%s0 + $0x1438] sm:$0xff]
  %v662 = vld [vmem:[%s0 + $0x1440] sm:$0xff]
  %v663 = vld [vmem:[%s0 + $0x1448] sm:$0xff]
  %v664 = vld [vmem:[%s0 + $0x1450] sm:$0xff]
  %v665 = vld [vmem:[%s0 + $0x1458] sm:$0xff]
  %v666 = vld [vmem:[%s0 + $0x1460] sm:$0xff]
  %v667 = vld [vmem:[%s0 + $0x1468] sm:$0xff]
  %v668 = vld [vmem:[%s0 + $0x1470] sm:$0xff]
  %v669 = vld [vmem:[%s0 + $0x1478] sm:$0xff]
  %v670 = vld [vmem:[%s0 + $0x1480] sm:$0xff]
  %v671 = vld [vmem:[%s0 + $0x1488] sm:$0xff]
  %v672 = vld [vmem:[%s0 + $0x1490] sm:$0xff]
  %v673 = vld [vmem:[%s0 + $0x1498] sm:$0xff]
  %v674 = vld [vmem:[%s0 + $0x14a0] sm:$0xff]
  %v675 = vld [vmem:[%s0 + $0x14a8] sm:$0xff]
  %v676 = vld [vmem:[%s0 + $0x14b0] sm:$0xff]
  %v677 = vld [vmem:[%s0 + $0x14b8] sm:$0xff]
  %v678 = vld [vmem:[%s0 + $0x14c0] sm:$0xff]
  %v679 = vld [vmem:[%s0 + $0x14c8] sm:$0xff]
  %v680 = vld [vmem:[%s0 + $0x14d0] sm:$0xff]
  %v681 = vld [vmem:[%s0 + $0x14d8] sm:$0xff]
  %v682 = vld [vmem:[%s0 + $0x14e0] sm:$0xff]
  %v683 = vld [vmem:[%s0 + $0x14e8] sm:$0xff]
  %v684 = vld [vmem:[%s0 + $0x14f0] sm:$0xff]
  %v685 = vld [vmem:[%s0 + $0x14f8] sm:$0xff]
  %v686 = vld [vmem:[%s0 + $0x1500] sm:$0xff]
  %v687 = vld [vmem:[%s0 + $0x1508] sm:$0xff]
  %v688 = vld [vmem:[%s0 + $0x1510] sm:$0xff]
  %v689 = vld [vmem:[%s0 + $0x1518] sm:$0xff]
  %v690 = vld [vmem:[%s0 + $0x1520] sm:$0xff]
  %v691 = vld [vmem:[%s0 + $0x1528] sm:$0xff]
  %v692 = vld [vmem:[%s0 + $0x1530] sm:$0xff]
  %v693 = vld [vmem:[%s0 + $0x1538] sm:$0xff]
  %v694 = vld [vmem:[%s0 + $0x1540] sm:$0xff]
  %v695 = vld [vmem:[%s0 + $0x1548] sm:$0xff]
  %v696 = vld [vmem:[%s0 + $0x1550] sm:$0xff]
  %v697 = vld [vmem:[%s0 + $0x1558] sm:$0xff]
  %v698 = vld [vmem:[%s0 + $0x1560] sm:$0xff]
  %v699 = vld [vmem:[%s0 + $0x1568] sm:$0xff]
  %v700 = vld [vmem:[%s0 + $0x1570] sm:$0xff]
  %v701 = vld [vmem:[%s0 + $0x1578] sm:$0xff]
  %v702 = vld [vmem:[%s0 + $0x1580] sm:$0xff]
  %v703 = vld [vmem:[%s0 + $0x1588] sm:$0xff]
  %v704 = vld [vmem:[%s0 + $0x1590] sm:$0xff]
  %v705 = vld [vmem:[%s0 + $0x1598] sm:$0xff]
  %v706 = vld [vmem:[%s0 + $0x15a0] sm:$0xff]
  %v707 = vld [vmem:[%s0 + $0x15a8] sm:$0xff]
  %v708 = vld [vmem:[%s0 + $0x15b0] sm:$0xff]
  %v709 = vld [vmem:[%s0 + $0x15b8] sm:$0xff]
  %v710 = vld [vmem:[%s0 + $0x15c0] sm:$0xff]
  %v711 = vld [vmem:[%s0 + $0x15c8] sm:$0xff]
  %v712 = vld [vmem:[%s0 + $0x15d0] sm:$0xff]
  %v713 = vld [vmem:[%s0 + $0x15d8] sm:$0xff]
  %v714 = vld [vmem:[%s0 + $0x15e0] sm:$0xff]
  %v715 = vld [vmem:[%s0 + $0x15e8] sm:$0xff]
  %v716 = vld [vmem:[%s0 + $0x15f0] sm:$0xff]
  %v717 = vld [vmem:[%s0 + $0x15f8] sm:$0xff]
  %v718 = vld [vmem:[%s0 + $0x1600] sm:$0xff]
  %v719 = vld [vmem:[%s0 + $0x1608] sm:$0xff]
  %v720 = vld [vmem:[%s0 + $0x1610] sm:$0xff]
  %v721 = vld [vmem:[%s0 + $0x1618] sm:$0xff]
  %v722 = vld [vmem:[%s0 + $0x1620] sm:$0xff]
  %v723 = vld [vmem:[%s0 + $0x1628] sm:$0xff]
  %v724 = vld [vmem:[%s0 + $0x1630] sm:$0xff]
  %v725 = vld [vmem:[%s0 + $0x1638] sm:$0xff]
  %v726 = vld [vmem:[%s0 + $0x1640] sm:$0xff]
  %v727 = vld [vmem:[%s0 + $0x1648] sm:$0xff]
  %v728 = vld [vmem:[%s0 + $0x1650] sm:$0xff]
  %v729 = vld [vmem:[%s0 + $0x1658] sm:$0xff]
  %v730 = vld [vmem:[%s0 + $0x1660] sm:$0xff]
  %v731 = vld [vmem:[%s0 + $0x1668] sm:$0xff]
  %v732 = vld [vmem:[%s0 + $0x1670] sm:$0xff]
  %v733 = vld [vmem:[%s0 + $0x1678] sm:$0xff]
  %v734 = vld [vmem:[%s0 + $0x1680] sm:$0xff]
  %v735 = vld [vmem:[%s0 + $0x1688] sm:$0xff]
  %v736 = vld [vmem:[%s0 + $0x1690] sm:$0xff]
  %v737 = vld [vmem:[%s0 + $0x1698] sm:$0xff]
  %v738 = vld [vmem:[%s0 + $0x16a0] sm:$0xff]
  %v739 = vld [vmem:[%s0 + $0x16a8] sm:$0xff]
  %v740 = vld [vmem:[%s0 + $0x16b0] sm:$0xff]
  %v741 = vld [vmem:[%s0 + $0x16b8] sm:$0xff]
  %v742 = vld [vmem:[%s0 + $0x16c0] sm:$0xff]
  %v743 = vld [vmem:[%s0 + $0x16c8] sm:$0xff]
  %v744 = vld [vmem:[%s0 + $0x16d0] sm:$0xff]
  %v745 = vld [vmem:[%s0 + $0x16d8] sm:$0xff]
  %v746 = vld [vmem:[%s0 + $0x16e0] sm:$0xff]
  %v747 = vld [vmem:[%s0 + $0x16e8] sm:$0xff]
  %v748 = vld [vmem:[%s0 + $0x16f0] sm:$0xff]
  %v749 = vld [vmem:[%s0 + $0x16f8] sm:$0xff]
  %v750 = vld [vmem:[%s0 + $0x1700] sm:$0xff]
  %v751 = vld [vmem:[%s0 + $0x1708] sm:$0xff]
  %v752 = vld [vmem:[%s0 + $0x1710] sm:$0xff]
  %v753 = vld [vmem:[%s0 + $0x1718] sm:$0xff]
  %v754 = vld [vmem:[%s0 + $0x1720] sm:$0xff]
  %v755 = vld [vmem:[%s0 + $0x1728] sm:$0xff]
  %v756 = vld [vmem:[%s0 + $0x1730] sm:$0xff]
  %v757 = vld [vmem:[%s0 + $0x1738] sm:$0xff]
  %v758 = vld [vmem:[%s0 + $0x1740] sm:$0xff]
  %v759 = vld [vmem:[%s0 + $0x1748] sm:$0xff]
  %v760 = vld [vmem:[%s0 + $0x1750] sm:$0xff]
  %v761 = vld [vmem:[%s0 + $0x1758] sm:$0xff]
  %v762 = vld [vmem:[%s0 + $0x1760] sm:$0xff]
  %v763 = vld [vmem:[%s0 + $0x1768] sm:$0xff]
  %v764 = vld [vmem:[%s0 + $0x1770] sm:$0xff]
  %v765 = vld [vmem:[%s0 + $0x1778] sm:$0xff]
  %v766 = vld [vmem:[%s0 + $0x1780] sm:$0xff]
  %v767 = vld [vmem:[%s0 + $0x1788] sm:$0xff]
  %v768 = vld [vmem:[%s0 + $0x1790] sm:$0xff]
  %v769 = vld [vmem:[%s0 + $0x1798] sm:$0xff]
  %v770 = vld [vmem:[%s0 + $0x17a0] sm:$0xff]
  %v771 = vld [vmem:[%s0 + $0x17a8] sm:$0xff]
  %v772 = vld [vmem:[%s0 + $0x17b0] sm:$0xff]
  %v773 = vld [vmem:[%s0 + $0x17b8] sm:$0xff]
  %v774 = vld [vmem:[%s0 + $0x17c0] sm:$0xff]
  %v775 = vld [vmem:[%s0 + $0x17c8] sm:$0xff]
  %v776 = vld [vmem:[%s0 + $0x17d0] sm:$0xff]
  %v777 = vld [vmem:[%s0 + $0x17d8] sm:$0xff]
  %v778 = vld [vmem:[%s0 + $0x17e0] sm:$0xff]
  %v779 = vld [vmem:[%s0 + $0x17e8] sm:$0xff]
  %v780 = vld [vmem:[%s0 + $0x17f0] sm:$0xff]
  %v781 = vld [vmem:[%s0 + $0x17f8] sm:$0xff]
  %v782 = vld [vmem:[%s0 + $0x1800] sm:$0xff]
  %v783 = vld [vmem:[%s0 + $0x1808] sm:$0xff]
  %v784 = vld [vmem:[%s0 + $0x1810] sm:$0xff]
  %v785 = vld [vmem:[%s0 + $0x1818] sm:$0xff]
  %v786 = vld [vmem:[%s0 + $0x1820] sm:$0xff]
  %v787 = vld [vmem:[%s0 + $0x1828] sm:$0xff]
  %v788 = vld [vmem:[%s0 + $0x1830] sm:$0xff]
  %v789 = vld [vmem:[%s0 + $0x1838] sm:$0xff]
  %v790 = vld [vmem:[%s0 + $0x1840] sm:$0xff]
  %v791 = vld [vmem:[%s0 + $0x1848] sm:$0xff]
  %v792 = vld [vmem:[%s0 + $0x1850] sm:$0xff]
  %v793 = vld [vmem:[%s0 + $0x1858] sm:$0xff]
  %v794 = vld [vmem:[%s0 + $0x1860] sm:$0xff]
  %v795 = vld [vmem:[%s0 + $0x1868] sm:$0xff]
  %v796 = vld [vmem:[%s0 + $0x1870] sm:$0xff]
  %v797 = vld [vmem:[%s0 + $0x1878] sm:$0xff]
  %v798 = vld [vmem:[%s0 + $0x1880] sm:$0xff]
  %v799 = vld [vmem:[%s0 + $0x1888] sm:$0xff]
  %v800 = vld [vmem:[%s0 + $0x1890] sm:$0xff]
  %v801 = vld [vmem:[%s0 + $0x1898] sm:$0xff]
  %v802 = vld [vmem:[%s0 + $0x18a0] sm:$0xff]
  %v803 = vld [vmem:[%s0 + $0x18a8] sm:$0xff]
  %v804 = vld [vmem:[%s0 + $0x18b0] sm:$0xff]
  %v805 = vld [vmem:[%s0 + $0x18b8] sm:$0xff]
  %v806 = vld [vmem:[%s0 + $0x18c0] sm:$0xff]
  %v807 = vld [vmem:[%s0 + $0x18c8] sm:$0xff]
  %v808 = vld [vmem:[%s0 + $0x18d0] sm:$0xff]
  %v809 = vld [vmem:[%s0 + $0x18d8] sm:$0xff]
  %v810 = vld [vmem:[%s0 + $0x18e0] sm:$0xff]
  %v811 = vld [vmem:[%s0 + $0x18e8] sm:$0xff]
  %v812 = vld [vmem:[%s0 + $0x18f0] sm:$0xff]
  %v813 = vld [vmem:[%s0 + $0x18f8] sm:$0xff]
  %v814 = vld [vmem:[%s0 + $0x1900] sm:$0xff]
  %v815 = vld [vmem:[%s0 + $0x1908] sm:$0xff]
  %v816 = vld [vmem:[%s0 + $0x1910] sm:$0xff]
  %v817 = vld [vmem:[%s0 + $0x1918] sm:$0xff]
  %v818 = vld [vmem:[%s0 + $0x1920] sm:$0xff]
  %v819 = vld [vmem:[%s0 + $0x1928] sm:$0xff]
  %v820 = vld [vmem:[%s0 + $0x1930] sm:$0xff]
  %v821 = vld [vmem:[%s0 + $0x1938] sm:$0xff]
  %v822 = vld [vmem:[%s0 + $0x1940] sm:$0xff]
  %v823 = vld [vmem:[%s0 + $0x1948] sm:$0xff]
  %v824 = vld [vmem:[%s0 + $0x1950] sm:$0xff]
  %v825 = vld [vmem:[%s0 + $0x1958] sm:$0xff]
  %v826 = vld [vmem:[%s0 + $0x1960] sm:$0xff]
  %v827 = vld [vmem:[%s0 + $0x1968] sm:$0xff]
  %v828 = vld [vmem:[%s0 + $0x1970] sm:$0xff]
  %v829 = vld [vmem:[%s0 + $0x1978] sm:$0xff]
  %v830 = vld [vmem:[%s0 + $0x1980] sm:$0xff]
  %v831 = vld [vmem:[%s0 + $0x1988] sm:$0xff]
  %v832 = vld [vmem:[%s0 + $0x1990] sm:$0xff]
  %v833 = vld [vmem:[%s0 + $0x1998] sm:$0xff]
  %v834 = vld [vmem:[%s0 + $0x19a0] sm:$0xff]
  %v835 = vld [vmem:[%s0 + $0x19a8] sm:$0xff]
  %v836 = vld [vmem:[%s0 + $0x19b0] sm:$0xff]
  %v837 = vld [vmem:[%s0 + $0x19b8] sm:$0xff]
  %v838 = vld [vmem:[%s0 + $0x19c0] sm:$0xff]
  %v839 = vld [vmem:[%s0 + $0x19c8] sm:$0xff]
  %v840 = vld [vmem:[%s0 + $0x19d0] sm:$0xff]
  %v841 = vld [vmem:[%s0 + $0x19d8] sm:$0xff]
  %v842 = vld [vmem:[%s0 + $0x19e0] sm:$0xff]
  %v843 = vld [vmem:[%s0 + $0x19e8] sm:$0xff]
  %v844 = vld [vmem:[%s0 + $0x19f0] sm:$0xff]
  %v845 = vld [vmem:[%s0 + $0x19f8] sm:$0xff]
  %v846 = vld [vmem:[%s0 + $0x1a00] sm:$0xff]
  %v847 = vld [vmem:[%s0 + $0x1a08] sm:$0xff]
  %v848 = vld [vmem:[%s0 + $0x1a10] sm:$0xff]
  %v849 = vld [vmem:[%s0 + $0x1a18] sm:$0xff]
  %v850 = vld [vmem:[%s0 + $0x1a20] sm:$0xff]
  %v851 = vld [vmem:[%s0 + $0x1a28] sm:$0xff]
  %v852 = vld [vmem:[%s0 + $0x1a30] sm:$0xff]
  %v853 = vld [vmem:[%s0 + $0x1a38] sm:$0xff]
  %v854 = vld [vmem:[%s0 + $0x1a40] sm:$0xff]
  %v855 = vld [vmem:[%s0 + $0x1a48] sm:$0xff]
  %v856 = vld [vmem:[%s0 + $0x1a50] sm:$0xff]
  %v857 = vld [vmem:[%s0 + $0x1a58] sm:$0xff]
  %v858 = vld [vmem:[%s0 + $0x1a60] sm:$0xff]
  %v859 = vld [vmem:[%s0 + $0x1a68] sm:$0xff]
  %v860 = vld [vmem:[%s0 + $0x1a70] sm:$0xff]
  %v861 = vld [vmem:[%s0 + $0x1a78] sm:$0xff]
  %v862 = vld [vmem:[%s0 + $0x1a80] sm:$0xff]
  %v863 = vld [vmem:[%s0 + $0x1a88] sm:$0xff]
  %v864 = vld [vmem:[%s0 + $0x1a90] sm:$0xff]
  %v865 = vld [vmem:[%s0 + $0x1a98] sm:$0xff]
  %v866 = vld [vmem:[%s0 + $0x1aa0] sm:$0xff]
  %v867 = vld [vmem:[%s0 + $0x1aa8] sm:$0xff]
  %v868 = vld [vmem:[%s0 + $0x1ab0] sm:$0xff]
  %v869 = vld [vmem:[%s0 + $0x1ab8] sm:$0xff]
  %v870 = vld [vmem:[%s0 + $0x1ac0] sm:$0xff]
  %v871 = vld [vmem:[%s0 + $0x1ac8] sm:$0xff]
  %v872 = vld [vmem:[%s0 + $0x1ad0] sm:$0xff]
  %v873 = vld [vmem:[%s0 + $0x1ad8] sm:$0xff]
  %v874 = vld [vmem:[%s0 + $0x1ae0] sm:$0xff]
  %v875 = vld [vmem:[%s0 + $0x1ae8] sm:$0xff]
  %v876 = vld [vmem:[%s0 + $0x1af0] sm:$0xff]
  %v877 = vld [vmem:[%s0 + $0x1af8] sm:$0xff]
  %v878 = vld [vmem:[%s0 + $0x1b00] sm:$0xff]
  %v879 = vld [vmem:[%s0 + $0x1b08] sm:$0xff]
  %v880 = vld [vmem:[%s0 + $0x1b10] sm:$0xff]
  %v881 = vld [vmem:[%s0 + $0x1b18] sm:$0xff]
  %v882 = vld [vmem:[%s0 + $0x1b20] sm:$0xff]
  %v883 = vld [vmem:[%s0 + $0x1b28] sm:$0xff]
  %v884 = vld [vmem:[%s0 + $0x1b30] sm:$0xff]
  %v885 = vld [vmem:[%s0 + $0x1b38] sm:$0xff]
  %v886 = vld [vmem:[%s0 + $0x1b40] sm:$0xff]
  %v887 = vld [vmem:[%s0 + $0x1b48] sm:$0xff]
  %v888 = vld [vmem:[%s0 + $0x1b50] sm:$0xff]
  %v889 = vld [vmem:[%s0 + $0x1b58] sm:$0xff]
  %v890 = vld [vmem:[%s0 + $0x1b60] sm:$0xff]
  %v891 = vld [vmem:[%s0 + $0x1b68] sm:$0xff]
  %v892 = vld [vmem:[%s0 + $0x1b70] sm:$0xff]
  %v893 = vld [vmem:[%s0 + $0x1b78] sm:$0xff]
  %v894 = vld [vmem:[%s0 + $0x1b80] sm:$0xff]
  %v895 = vld [vmem:[%s0 + $0x1b88] sm:$0xff]
  %v896 = vld [vmem:[%s0 + $0x1b90] sm:$0xff]
  %v897 = vld [vmem:[%s0 + $0x1b98] sm:$0xff]
  %v898 = vld [vmem:[%s0 + $0x1ba0] sm:$0xff]
  %v899 = vld [vmem:[%s0 + $0x1ba8] sm:$0xff]
  %v900 = vld [vmem:[%s0 + $0x1bb0] sm:$0xff]
  %v901 = vld [vmem:[%s0 + $0x1bb8] sm:$0xff]
  %v902 = vld [vmem:[%s0 + $0x1bc0] sm:$0xff]
  %v903 = vld [vmem:[%s0 + $0x1bc8] sm:$0xff]
  %v904 = vld [vmem:[%s0 + $0x1bd0] sm:$0xff]
  %v905 = vld [vmem:[%s0 + $0x1bd8] sm:$0xff]
  %v906 = vld [vmem:[%s0 + $0x1be0] sm:$0xff]
  %v907 = vld [vmem:[%s0 + $0x1be8] sm:$0xff]
  %v908 = vld [vmem:[%s0 + $0x1bf0] sm:$0xff]
  %v909 = vld [vmem:[%s0 + $0x1bf8] sm:$0xff]
  %v910 = vld [vmem:[%s0 + $0x1c00] sm:$0xff]
  %v911 = vld [vmem:[%s0 + $0x1c08] sm:$0xff]
  %v912 = vld [vmem:[%s0 + $0x1c10] sm:$0xff]
  %v913 = vld [vmem:[%s0 + $0x1c18] sm:$0xff]
  %v914 = vld [vmem:[%s0 + $0x1c20] sm:$0xff]
  %v915 = vld [vmem:[%s0 + $0x1c28] sm:$0xff]
  %v916 = vld [vmem:[%s0 + $0x1c30] sm:$0xff]
  %v917 = vld [vmem:[%s0 + $0x1c38] sm:$0xff]
  %v918 = vld [vmem:[%s0 + $0x1c40] sm:$0xff]
  %v919 = vld [vmem:[%s0 + $0x1c48] sm:$0xff]
  %v920 = vld [vmem:[%s0 + $0x1c50] sm:$0xff]
  %v921 = vld [vmem:[%s0 + $0x1c58] sm:$0xff]
  %v922 = vld [vmem:[%s0 + $0x1c60] sm:$0xff]
  %v923 = vld [vmem:[%s0 + $0x1c68] sm:$0xff]
  %v924 = vld [vmem:[%s0 + $0x1c70] sm:$0xff]
  %v925 = vld [vmem:[%s0 + $0x1c78] sm:$0xff]
  %v926 = vld [vmem:[%s0 + $0x1c80] sm:$0xff]
  %v927 = vld [vmem:[%s0 + $0x1c88] sm:$0xff]
  %v928 = vld [vmem:[%s0 + $0x1c90] sm:$0xff]
  %v929 = vld [vmem:[%s0 + $0x1c98] sm:$0xff]
  %v930 = vld [vmem:[%s0 + $0x1ca0] sm:$0xff]
  %v931 = vld [vmem:[%s0 + $0x1ca8] sm:$0xff]
  %v932 = vld [vmem:[%s0 + $0x1cb0] sm:$0xff]
  %v933 = vld [vmem:[%s0 + $0x1cb8] sm:$0xff]
  %v934 = vld [vmem:[%s0 + $0x1cc0] sm:$0xff]
  %v935 = vld [vmem:[%s0 + $0x1cc8] sm:$0xff]
  %v936 = vld [vmem:[%s0 + $0x1cd0] sm:$0xff]
  %v937 = vld [vmem:[%s0 + $0x1cd8] sm:$0xff]
  %v938 = vld [vmem:[%s0 + $0x1ce0] sm:$0xff]
  %v939 = vld [vmem:[%s0 + $0x1ce8] sm:$0xff]
  %v940 = vld [vmem:[%s0 + $0x1cf0] sm:$0xff]
  %v941 = vld [vmem:[%s0 + $0x1cf8] sm:$0xff]
  %v942 = vld [vmem:[%s0 + $0x1d00] sm:$0xff]
  %v943 = vld [vmem:[%s0 + $0x1d08] sm:$0xff]
  %v944 = vld [vmem:[%s0 + $0x1d10] sm:$0xff]
  %v945 = vld [vmem:[%s0 + $0x1d18] sm:$0xff]
  %v946 = vld [vmem:[%s0 + $0x1d20] sm:$0xff]
  %v947 = vld [vmem:[%s0 + $0x1d28] sm:$0xff]
  %v948 = vld [vmem:[%s0 + $0x1d30] sm:$0xff]
  %v949 = vld [vmem:[%s0 + $0x1d38] sm:$0xff]
  %v950 = vld [vmem:[%s0 + $0x1d40] sm:$0xff]
  %v951 = vld [vmem:[%s0 + $0x1d48] sm:$0xff]
  %v952 = vld [vmem:[%s0 + $0x1d50] sm:$0xff]
  %v953 = vld [vmem:[%s0 + $0x1d58] sm:$0xff]
  %v954 = vld [vmem:[%s0 + $0x1d60] sm:$0xff]
  %v955 = vld [vmem:[%s0 + $0x1d68] sm:$0xff]
  %v956 = vld [vmem:[%s0 + $0x1d70] sm:$0xff]
  %v957 = vld [vmem:[%s0 + $0x1d78] sm:$0xff]
  %v958 = vld [vmem:[%s0 + $0x1d80] sm:$0xff]
  %v959 = vld [vmem:[%s0 + $0x1d88] sm:$0xff]
  %v960 = vld [vmem:[%s0 + $0x1d90] sm:$0xff]
  %v961 = vld [vmem:[%s0 + $0x1d98] sm:$0xff]
  %v962 = vld [vmem:[%s0 + $0x1da0] sm:$0xff]
  %v963 = vld [vmem:[%s0 + $0x1da8] sm:$0xff]
  %v964 = vld [vmem:[%s0 + $0x1db0] sm:$0xff]
  %v965 = vld [vmem:[%s0 + $0x1db8] sm:$0xff]
  %v966 = vld [vmem:[%s0 + $0x1dc0] sm:$0xff]
  %v967 = vld [vmem:[%s0 + $0x1dc8] sm:$0xff]
  %v968 = vld [vmem:[%s0 + $0x1dd0] sm:$0xff]
  %v969 = vld [vmem:[%s0 + $0x1dd8] sm:$0xff]
  %v970 = vld [vmem:[%s0 + $0x1de0] sm:$0xff]
  %v971 = vld [vmem:[%s0 + $0x1de8] sm:$0xff]
  %v972 = vld [vmem:[%s0 + $0x1df0] sm:$0xff]
  %v973 = vld [vmem:[%s0 + $0x1df8] sm:$0xff]
  %v974 = vld [vmem:[%s0 + $0x1e00] sm:$0xff]
  %v975 = vld [vmem:[%s0 + $0x1e08] sm:$0xff]
  %v976 = vld [vmem:[%s0 + $0x1e10] sm:$0xff]
  %v977 = vld [vmem:[%s0 + $0x1e18] sm:$0xff]
  %v978 = vld [vmem:[%s0 + $0x1e20] sm:$0xff]
  %v979 = vld [vmem:[%s0 + $0x1e28] sm:$0xff]
  %v980 = vld [vmem:[%s0 + $0x1e30] sm:$0xff]
  %v981 = vld [vmem:[%s0 + $0x1e38] sm:$0xff]
  %v982 = vld [vmem:[%s0 + $0x1e40] sm:$0xff]
  %v983 = vld [vmem:[%s0 + $0x1e48] sm:$0xff]
  %v984 = vld [vmem:[%s0 + $0x1e50] sm:$0xff]
  %v985 = vld [vmem:[%s0 + $0x1e58] sm:$0xff]
  %v986 = vld [vmem:[%s0 + $0x1e60] sm:$0xff]
  %v987 = vld [vmem:[%s0 + $0x1e68] sm:$0xff]
  %v988 = vld [vmem:[%s0 + $0x1e70] sm:$0xff]
  %v989 = vld [vmem:[%s0 + $0x1e78] sm:$0xff]
  %v990 = vld [vmem:[%s0 + $0x1e80] sm:$0xff]
  %v991 = vld [vmem:[%s0 + $0x1e88] sm:$0xff]
  %v992 = vld [vmem:[%s0 + $0x1e90] sm:$0xff]
  %v993 = vld [vmem:[%s0 + $0x1e98] sm:$0xff]
  %v994 = vld [vmem:[%s0 + $0x1ea0] sm:$0xff]
  %v995 = vld [vmem:[%s0 + $0x1ea8] sm:$0xff]
  %v996 = vld [vmem:[%s0 + $0x1eb0] sm:$0xff]
  %v997 = vld [vmem:[%s0 + $0x1eb8] sm:$0xff]
  %v998 = vld [vmem:[%s0 + $0x1ec0] sm:$0xff]
  %v999 = vld [vmem:[%s0 + $0x1ec8] sm:$0xff]
  %v1000 = vld [vmem:[%s0 + $0x1ed0] sm:$0xff]
  %v1001 = vld [vmem:[%s0 + $0x1ed8] sm:$0xff]
  %v1002 = vld [vmem:[%s0 + $0x1ee0] sm:$0xff]
  %v1003 = vld [vmem:[%s0 + $0x1ee8] sm:$0xff]
  %v1004 = vld [vmem:[%s0 + $0x1ef0] sm:$0xff]
  %v1005 = vld [vmem:[%s0 + $0x1ef8] sm:$0xff]
  %v1006 = vld [vmem:[%s0 + $0x1f00] sm:$0xff]
  %v1007 = vld [vmem:[%s0 + $0x1f08] sm:$0xff]
  %v1008 = vld [vmem:[%s0 + $0x1f10] sm:$0xff]
  %v1009 = vld [vmem:[%s0 + $0x1f18] sm:$0xff]
  %v1010 = vld [vmem:[%s0 + $0x1f20] sm:$0xff]
  %v1011 = vld [vmem:[%s0 + $0x1f28] sm:$0xff]
  %v1012 = vld [vmem:[%s0 + $0x1f30] sm:$0xff]
  %v1013 = vld [vmem:[%s0 + $0x1f38] sm:$0xff]
  %v1014 = vld [vmem:[%s0 + $0x1f40] sm:$0xff]
  %v1015 = vld [vmem:[%s0 + $0x1f48] sm:$0xff]
  %v1016 = vld [vmem:[%s0 + $0x1f50] sm:$0xff]
  %v1017 = vld [vmem:[%s0 + $0x1f58] sm:$0xff]
  %v1018 = vld [vmem:[%s0 + $0x1f60] sm:$0xff]
  %v1019 = vld [vmem:[%s0 + $0x1f68] sm:$0xff]
  %v1020 = vld [vmem:[%s0 + $0x1f70] sm:$0xff]
  %v1021 = vld [vmem:[%s0 + $0x1f78] sm:$0xff]
  %v1022 = vld [vmem:[%s0 + $0x1f80] sm:$0xff]
  %v1023 = vld [vmem:[%s0 + $0x1f88] sm:$0xff]
  %v1024 = vld [vmem:[%s0 + $0x1f90] sm:$0xff]
  %v1025 = vld [vmem:[%s0 + $0x1f98] sm:$0xff]
  %v1026 = vld [vmem:[%s0 + $0x1fa0] sm:$0xff]
  %v1027 = vld [vmem:[%s0 + $0x1fa8] sm:$0xff]
  %v1028 = vld [vmem:[%s0 + $0x1fb0] sm:$0xff]
  %v1029 = vld [vmem:[%s0 + $0x1fb8] sm:$0xff]
  %v1030 = vld [vmem:[%s0 + $0x1fc0] sm:$0xff]
  %v1031 = vld [vmem:[%s0 + $0x1fc8] sm:$0xff]
  %v1032 = vld [vmem:[%s0 + $0x1fd0] sm:$0xff]
  %v1033 = vld [vmem:[%s0 + $0x1fd8] sm:$0xff]
  %v1034 = vld [vmem:[%s0 + $0x1fe0] sm:$0xff]
  %v1035 = vld [vmem:[%s0 + $0x1fe8] sm:$0xff]
  %v1036 = vld [vmem:[%s0 + $0x1ff0] sm:$0xff]
  %v1037 = vld [vmem:[%s0 + $0x1ff8] sm:$0xff]
  %v1038 = vunpack.c.l.bf16 %v14
  %v1039 = vunpack.c.h.bf16 %v14
  %v1040 = vunpack.c.l.bf16 %v15
  %v1041 = vunpack.c.h.bf16 %v15
  %v1042 = vunpack.c.l.bf16 %v16
  %v1043 = vunpack.c.h.bf16 %v16
  %v1044 = vunpack.c.l.bf16 %v17
  %v1045 = vunpack.c.h.bf16 %v17
  %v1046 = vunpack.c.l.bf16 %v18
  %v1047 = vunpack.c.h.bf16 %v18
  %v1048 = vunpack.c.l.bf16 %v19
  %v1049 = vunpack.c.h.bf16 %v19
  %v1050 = vunpack.c.l.bf16 %v20
  %v1051 = vunpack.c.h.bf16 %v20
  %v1052 = vunpack.c.l.bf16 %v21
  %v1053 = vunpack.c.h.bf16 %v21
  %v1054 = vunpack.c.l.bf16 %v22
  %v1055 = vunpack.c.h.bf16 %v22
  %v1056 = vunpack.c.l.bf16 %v23
  %v1057 = vunpack.c.h.bf16 %v23
  %v1058 = vunpack.c.l.bf16 %v24
  %v1059 = vunpack.c.h.bf16 %v24
  %v1060 = vunpack.c.l.bf16 %v25
  %v1061 = vunpack.c.h.bf16 %v25
  %v1062 = vunpack.c.l.bf16 %v26
  %v1063 = vunpack.c.h.bf16 %v26
  %v1064 = vunpack.c.l.bf16 %v27
  %v1065 = vunpack.c.h.bf16 %v27
  %v1066 = vunpack.c.l.bf16 %v28
  %v1067 = vunpack.c.h.bf16 %v28
  %v1068 = vunpack.c.l.bf16 %v29
  %v1069 = vunpack.c.h.bf16 %v29
  %v1070 = vunpack.c.l.bf16 %v30
  %v1071 = vunpack.c.h.bf16 %v30
  %v1072 = vunpack.c.l.bf16 %v31
  %v1073 = vunpack.c.h.bf16 %v31
  %v1074 = vunpack.c.l.bf16 %v32
  %v1075 = vunpack.c.h.bf16 %v32
  %v1076 = vunpack.c.l.bf16 %v33
  %v1077 = vunpack.c.h.bf16 %v33
  %v1078 = vunpack.c.l.bf16 %v34
  %v1079 = vunpack.c.h.bf16 %v34
  %v1080 = vunpack.c.l.bf16 %v35
  %v1081 = vunpack.c.h.bf16 %v35
  %v1082 = vunpack.c.l.bf16 %v36
  %v1083 = vunpack.c.h.bf16 %v36
  %v1084 = vunpack.c.l.bf16 %v37
  %v1085 = vunpack.c.h.bf16 %v37
  %v1086 = vunpack.c.l.bf16 %v38
  %v1087 = vunpack.c.h.bf16 %v38
  %v1088 = vunpack.c.l.bf16 %v39
  %v1089 = vunpack.c.h.bf16 %v39
  %v1090 = vunpack.c.l.bf16 %v40
  %v1091 = vunpack.c.h.bf16 %v40
  %v1092 = vunpack.c.l.bf16 %v41
  %v1093 = vunpack.c.h.bf16 %v41
  %v1094 = vunpack.c.l.bf16 %v42
  %v1095 = vunpack.c.h.bf16 %v42
  %v1096 = vunpack.c.l.bf16 %v43
  %v1097 = vunpack.c.h.bf16 %v43
  %v1098 = vunpack.c.l.bf16 %v44
  %v1099 = vunpack.c.h.bf16 %v44
  %v1100 = vunpack.c.l.bf16 %v45
  %v1101 = vunpack.c.h.bf16 %v45
  %v1102 = vunpack.c.l.bf16 %v46
  %v1103 = vunpack.c.h.bf16 %v46
  %v1104 = vunpack.c.l.bf16 %v47
  %v1105 = vunpack.c.h.bf16 %v47
  %v1106 = vunpack.c.l.bf16 %v48
  %v1107 = vunpack.c.h.bf16 %v48
  %v1108 = vunpack.c.l.bf16 %v49
  %v1109 = vunpack.c.h.bf16 %v49
  %v1110 = vunpack.c.l.bf16 %v50
  %v1111 = vunpack.c.h.bf16 %v50
  %v1112 = vunpack.c.l.bf16 %v51
  %v1113 = vunpack.c.h.bf16 %v51
  %v1114 = vunpack.c.l.bf16 %v52
  %v1115 = vunpack.c.h.bf16 %v52
  %v1116 = vunpack.c.l.bf16 %v53
  %v1117 = vunpack.c.h.bf16 %v53
  %v1118 = vunpack.c.l.bf16 %v54
  %v1119 = vunpack.c.h.bf16 %v54
  %v1120 = vunpack.c.l.bf16 %v55
  %v1121 = vunpack.c.h.bf16 %v55
  %v1122 = vunpack.c.l.bf16 %v56
  %v1123 = vunpack.c.h.bf16 %v56
  %v1124 = vunpack.c.l.bf16 %v57
  %v1125 = vunpack.c.h.bf16 %v57
  %v1126 = vunpack.c.l.bf16 %v58
  %v1127 = vunpack.c.h.bf16 %v58
  %v1128 = vunpack.c.l.bf16 %v59
  %v1129 = vunpack.c.h.bf16 %v59
  %v1130 = vunpack.c.l.bf16 %v60
  %v1131 = vunpack.c.h.bf16 %v60
  %v1132 = vunpack.c.l.bf16 %v61
  %v1133 = vunpack.c.h.bf16 %v61
  %v1134 = vunpack.c.l.bf16 %v62
  %v1135 = vunpack.c.h.bf16 %v62
  %v1136 = vunpack.c.l.bf16 %v63
  %v1137 = vunpack.c.h.bf16 %v63
  %v1138 = vunpack.c.l.bf16 %v64
  %v1139 = vunpack.c.h.bf16 %v64
  %v1140 = vunpack.c.l.bf16 %v65
  %v1141 = vunpack.c.h.bf16 %v65
  %v1142 = vunpack.c.l.bf16 %v66
  %v1143 = vunpack.c.h.bf16 %v66
  %v1144 = vunpack.c.l.bf16 %v67
  %v1145 = vunpack.c.h.bf16 %v67
  %v1146 = vunpack.c.l.bf16 %v68
  %v1147 = vunpack.c.h.bf16 %v68
  %v1148 = vunpack.c.l.bf16 %v69
  %v1149 = vunpack.c.h.bf16 %v69
  %v1150 = vunpack.c.l.bf16 %v70
  %v1151 = vunpack.c.h.bf16 %v70
  %v1152 = vunpack.c.l.bf16 %v71
  %v1153 = vunpack.c.h.bf16 %v71
  %v1154 = vunpack.c.l.bf16 %v72
  %v1155 = vunpack.c.h.bf16 %v72
  %v1156 = vunpack.c.l.bf16 %v73
  %v1157 = vunpack.c.h.bf16 %v73
  %v1158 = vunpack.c.l.bf16 %v74
  %v1159 = vunpack.c.h.bf16 %v74
  %v1160 = vunpack.c.l.bf16 %v75
  %v1161 = vunpack.c.h.bf16 %v75
  %v1162 = vunpack.c.l.bf16 %v76
  %v1163 = vunpack.c.h.bf16 %v76
  %v1164 = vunpack.c.l.bf16 %v77
  %v1165 = vunpack.c.h.bf16 %v77
  %v1166 = vunpack.c.l.bf16 %v78
  %v1167 = vunpack.c.h.bf16 %v78
  %v1168 = vunpack.c.l.bf16 %v79
  %v1169 = vunpack.c.h.bf16 %v79
  %v1170 = vunpack.c.l.bf16 %v80
  %v1171 = vunpack.c.h.bf16 %v80
  %v1172 = vunpack.c.l.bf16 %v81
  %v1173 = vunpack.c.h.bf16 %v81
  %v1174 = vunpack.c.l.bf16 %v82
  %v1175 = vunpack.c.h.bf16 %v82
  %v1176 = vunpack.c.l.bf16 %v83
  %v1177 = vunpack.c.h.bf16 %v83
  %v1178 = vunpack.c.l.bf16 %v84
  %v1179 = vunpack.c.h.bf16 %v84
  %v1180 = vunpack.c.l.bf16 %v85
  %v1181 = vunpack.c.h.bf16 %v85
  %v1182 = vunpack.c.l.bf16 %v86
  %v1183 = vunpack.c.h.bf16 %v86
  %v1184 = vunpack.c.l.bf16 %v87
  %v1185 = vunpack.c.h.bf16 %v87
  %v1186 = vunpack.c.l.bf16 %v88
  %v1187 = vunpack.c.h.bf16 %v88
  %v1188 = vunpack.c.l.bf16 %v89
  %v1189 = vunpack.c.h.bf16 %v89
  %v1190 = vunpack.c.l.bf16 %v90
  %v1191 = vunpack.c.h.bf16 %v90
  %v1192 = vunpack.c.l.bf16 %v91
  %v1193 = vunpack.c.h.bf16 %v91
  %v1194 = vunpack.c.l.bf16 %v92
  %v1195 = vunpack.c.h.bf16 %v92
  %v1196 = vunpack.c.l.bf16 %v93
  %v1197 = vunpack.c.h.bf16 %v93
  %v1198 = vunpack.c.l.bf16 %v94
  %v1199 = vunpack.c.h.bf16 %v94
  %v1200 = vunpack.c.l.bf16 %v95
  %v1201 = vunpack.c.h.bf16 %v95
  %v1202 = vunpack.c.l.bf16 %v96
  %v1203 = vunpack.c.h.bf16 %v96
  %v1204 = vunpack.c.l.bf16 %v97
  %v1205 = vunpack.c.h.bf16 %v97
  %v1206 = vunpack.c.l.bf16 %v98
  %v1207 = vunpack.c.h.bf16 %v98
  %v1208 = vunpack.c.l.bf16 %v99
  %v1209 = vunpack.c.h.bf16 %v99
  %v1210 = vunpack.c.l.bf16 %v100
  %v1211 = vunpack.c.h.bf16 %v100
  %v1212 = vunpack.c.l.bf16 %v101
  %v1213 = vunpack.c.h.bf16 %v101
  %v1214 = vunpack.c.l.bf16 %v102
  %v1215 = vunpack.c.h.bf16 %v102
  %v1216 = vunpack.c.l.bf16 %v103
  %v1217 = vunpack.c.h.bf16 %v103
  %v1218 = vunpack.c.l.bf16 %v104
  %v1219 = vunpack.c.h.bf16 %v104
  %v1220 = vunpack.c.l.bf16 %v105
  %v1221 = vunpack.c.h.bf16 %v105
  %v1222 = vunpack.c.l.bf16 %v106
  %v1223 = vunpack.c.h.bf16 %v106
  %v1224 = vunpack.c.l.bf16 %v107
  %v1225 = vunpack.c.h.bf16 %v107
  %v1226 = vunpack.c.l.bf16 %v108
  %v1227 = vunpack.c.h.bf16 %v108
  %v1228 = vunpack.c.l.bf16 %v109
  %v1229 = vunpack.c.h.bf16 %v109
  %v1230 = vunpack.c.l.bf16 %v110
  %v1231 = vunpack.c.h.bf16 %v110
  %v1232 = vunpack.c.l.bf16 %v111
  %v1233 = vunpack.c.h.bf16 %v111
  %v1234 = vunpack.c.l.bf16 %v112
  %v1235 = vunpack.c.h.bf16 %v112
  %v1236 = vunpack.c.l.bf16 %v113
  %v1237 = vunpack.c.h.bf16 %v113
  %v1238 = vunpack.c.l.bf16 %v114
  %v1239 = vunpack.c.h.bf16 %v114
  %v1240 = vunpack.c.l.bf16 %v115
  %v1241 = vunpack.c.h.bf16 %v115
  %v1242 = vunpack.c.l.bf16 %v116
  %v1243 = vunpack.c.h.bf16 %v116
  %v1244 = vunpack.c.l.bf16 %v117
  %v1245 = vunpack.c.h.bf16 %v117
  %v1246 = vunpack.c.l.bf16 %v118
  %v1247 = vunpack.c.h.bf16 %v118
  %v1248 = vunpack.c.l.bf16 %v119
  %v1249 = vunpack.c.h.bf16 %v119
  %v1250 = vunpack.c.l.bf16 %v120
  %v1251 = vunpack.c.h.bf16 %v120
  %v1252 = vunpack.c.l.bf16 %v121
  %v1253 = vunpack.c.h.bf16 %v121
  %v1254 = vunpack.c.l.bf16 %v122
  %v1255 = vunpack.c.h.bf16 %v122
  %v1256 = vunpack.c.l.bf16 %v123
  %v1257 = vunpack.c.h.bf16 %v123
  %v1258 = vunpack.c.l.bf16 %v124
  %v1259 = vunpack.c.h.bf16 %v124
  %v1260 = vunpack.c.l.bf16 %v125
  %v1261 = vunpack.c.h.bf16 %v125
  %v1262 = vunpack.c.l.bf16 %v126
  %v1263 = vunpack.c.h.bf16 %v126
  %v1264 = vunpack.c.l.bf16 %v127
  %v1265 = vunpack.c.h.bf16 %v127
  %v1266 = vunpack.c.l.bf16 %v128
  %v1267 = vunpack.c.h.bf16 %v128
  %v1268 = vunpack.c.l.bf16 %v129
  %v1269 = vunpack.c.h.bf16 %v129
  %v1270 = vunpack.c.l.bf16 %v130
  %v1271 = vunpack.c.h.bf16 %v130
  %v1272 = vunpack.c.l.bf16 %v131
  %v1273 = vunpack.c.h.bf16 %v131
  %v1274 = vunpack.c.l.bf16 %v132
  %v1275 = vunpack.c.h.bf16 %v132
  %v1276 = vunpack.c.l.bf16 %v133
  %v1277 = vunpack.c.h.bf16 %v133
  %v1278 = vunpack.c.l.bf16 %v134
  %v1279 = vunpack.c.h.bf16 %v134
  %v1280 = vunpack.c.l.bf16 %v135
  %v1281 = vunpack.c.h.bf16 %v135
  %v1282 = vunpack.c.l.bf16 %v136
  %v1283 = vunpack.c.h.bf16 %v136
  %v1284 = vunpack.c.l.bf16 %v137
  %v1285 = vunpack.c.h.bf16 %v137
  %v1286 = vunpack.c.l.bf16 %v138
  %v1287 = vunpack.c.h.bf16 %v138
  %v1288 = vunpack.c.l.bf16 %v139
  %v1289 = vunpack.c.h.bf16 %v139
  %v1290 = vunpack.c.l.bf16 %v140
  %v1291 = vunpack.c.h.bf16 %v140
  %v1292 = vunpack.c.l.bf16 %v141
  %v1293 = vunpack.c.h.bf16 %v141
  %v1294 = vunpack.c.l.bf16 %v142
  %v1295 = vunpack.c.h.bf16 %v142
  %v1296 = vunpack.c.l.bf16 %v143
  %v1297 = vunpack.c.h.bf16 %v143
  %v1298 = vunpack.c.l.bf16 %v144
  %v1299 = vunpack.c.h.bf16 %v144
  %v1300 = vunpack.c.l.bf16 %v145
  %v1301 = vunpack.c.h.bf16 %v145
  %v1302 = vunpack.c.l.bf16 %v146
  %v1303 = vunpack.c.h.bf16 %v146
  %v1304 = vunpack.c.l.bf16 %v147
  %v1305 = vunpack.c.h.bf16 %v147
  %v1306 = vunpack.c.l.bf16 %v148
  %v1307 = vunpack.c.h.bf16 %v148
  %v1308 = vunpack.c.l.bf16 %v149
  %v1309 = vunpack.c.h.bf16 %v149
  %v1310 = vunpack.c.l.bf16 %v150
  %v1311 = vunpack.c.h.bf16 %v150
  %v1312 = vunpack.c.l.bf16 %v151
  %v1313 = vunpack.c.h.bf16 %v151
  %v1314 = vunpack.c.l.bf16 %v152
  %v1315 = vunpack.c.h.bf16 %v152
  %v1316 = vunpack.c.l.bf16 %v153
  %v1317 = vunpack.c.h.bf16 %v153
  %v1318 = vunpack.c.l.bf16 %v154
  %v1319 = vunpack.c.h.bf16 %v154
  %v1320 = vunpack.c.l.bf16 %v155
  %v1321 = vunpack.c.h.bf16 %v155
  %v1322 = vunpack.c.l.bf16 %v156
  %v1323 = vunpack.c.h.bf16 %v156
  %v1324 = vunpack.c.l.bf16 %v157
  %v1325 = vunpack.c.h.bf16 %v157
  %v1326 = vunpack.c.l.bf16 %v158
  %v1327 = vunpack.c.h.bf16 %v158
  %v1328 = vunpack.c.l.bf16 %v159
  %v1329 = vunpack.c.h.bf16 %v159
  %v1330 = vunpack.c.l.bf16 %v160
  %v1331 = vunpack.c.h.bf16 %v160
  %v1332 = vunpack.c.l.bf16 %v161
  %v1333 = vunpack.c.h.bf16 %v161
  %v1334 = vunpack.c.l.bf16 %v162
  %v1335 = vunpack.c.h.bf16 %v162
  %v1336 = vunpack.c.l.bf16 %v163
  %v1337 = vunpack.c.h.bf16 %v163
  %v1338 = vunpack.c.l.bf16 %v164
  %v1339 = vunpack.c.h.bf16 %v164
  %v1340 = vunpack.c.l.bf16 %v165
  %v1341 = vunpack.c.h.bf16 %v165
  %v1342 = vunpack.c.l.bf16 %v166
  %v1343 = vunpack.c.h.bf16 %v166
  %v1344 = vunpack.c.l.bf16 %v167
  %v1345 = vunpack.c.h.bf16 %v167
  %v1346 = vunpack.c.l.bf16 %v168
  %v1347 = vunpack.c.h.bf16 %v168
  %v1348 = vunpack.c.l.bf16 %v169
  %v1349 = vunpack.c.h.bf16 %v169
  %v1350 = vunpack.c.l.bf16 %v170
  %v1351 = vunpack.c.h.bf16 %v170
  %v1352 = vunpack.c.l.bf16 %v171
  %v1353 = vunpack.c.h.bf16 %v171
  %v1354 = vunpack.c.l.bf16 %v172
  %v1355 = vunpack.c.h.bf16 %v172
  %v1356 = vunpack.c.l.bf16 %v173
  %v1357 = vunpack.c.h.bf16 %v173
  %v1358 = vunpack.c.l.bf16 %v174
  %v1359 = vunpack.c.h.bf16 %v174
  %v1360 = vunpack.c.l.bf16 %v175
  %v1361 = vunpack.c.h.bf16 %v175
  %v1362 = vunpack.c.l.bf16 %v176
  %v1363 = vunpack.c.h.bf16 %v176
  %v1364 = vunpack.c.l.bf16 %v177
  %v1365 = vunpack.c.h.bf16 %v177
  %v1366 = vunpack.c.l.bf16 %v178
  %v1367 = vunpack.c.h.bf16 %v178
  %v1368 = vunpack.c.l.bf16 %v179
  %v1369 = vunpack.c.h.bf16 %v179
  %v1370 = vunpack.c.l.bf16 %v180
  %v1371 = vunpack.c.h.bf16 %v180
  %v1372 = vunpack.c.l.bf16 %v181
  %v1373 = vunpack.c.h.bf16 %v181
  %v1374 = vunpack.c.l.bf16 %v182
  %v1375 = vunpack.c.h.bf16 %v182
  %v1376 = vunpack.c.l.bf16 %v183
  %v1377 = vunpack.c.h.bf16 %v183
  %v1378 = vunpack.c.l.bf16 %v184
  %v1379 = vunpack.c.h.bf16 %v184
  %v1380 = vunpack.c.l.bf16 %v185
  %v1381 = vunpack.c.h.bf16 %v185
  %v1382 = vunpack.c.l.bf16 %v186
  %v1383 = vunpack.c.h.bf16 %v186
  %v1384 = vunpack.c.l.bf16 %v187
  %v1385 = vunpack.c.h.bf16 %v187
  %v1386 = vunpack.c.l.bf16 %v188
  %v1387 = vunpack.c.h.bf16 %v188
  %v1388 = vunpack.c.l.bf16 %v189
  %v1389 = vunpack.c.h.bf16 %v189
  %v1390 = vunpack.c.l.bf16 %v190
  %v1391 = vunpack.c.h.bf16 %v190
  %v1392 = vunpack.c.l.bf16 %v191
  %v1393 = vunpack.c.h.bf16 %v191
  %v1394 = vunpack.c.l.bf16 %v192
  %v1395 = vunpack.c.h.bf16 %v192
  %v1396 = vunpack.c.l.bf16 %v193
  %v1397 = vunpack.c.h.bf16 %v193
  %v1398 = vunpack.c.l.bf16 %v194
  %v1399 = vunpack.c.h.bf16 %v194
  %v1400 = vunpack.c.l.bf16 %v195
  %v1401 = vunpack.c.h.bf16 %v195
  %v1402 = vunpack.c.l.bf16 %v196
  %v1403 = vunpack.c.h.bf16 %v196
  %v1404 = vunpack.c.l.bf16 %v197
  %v1405 = vunpack.c.h.bf16 %v197
  %v1406 = vunpack.c.l.bf16 %v198
  %v1407 = vunpack.c.h.bf16 %v198
  %v1408 = vunpack.c.l.bf16 %v199
  %v1409 = vunpack.c.h.bf16 %v199
  %v1410 = vunpack.c.l.bf16 %v200
  %v1411 = vunpack.c.h.bf16 %v200
  %v1412 = vunpack.c.l.bf16 %v201
  %v1413 = vunpack.c.h.bf16 %v201
  %v1414 = vunpack.c.l.bf16 %v202
  %v1415 = vunpack.c.h.bf16 %v202
  %v1416 = vunpack.c.l.bf16 %v203
  %v1417 = vunpack.c.h.bf16 %v203
  %v1418 = vunpack.c.l.bf16 %v204
  %v1419 = vunpack.c.h.bf16 %v204
  %v1420 = vunpack.c.l.bf16 %v205
  %v1421 = vunpack.c.h.bf16 %v205
  %v1422 = vunpack.c.l.bf16 %v206
  %v1423 = vunpack.c.h.bf16 %v206
  %v1424 = vunpack.c.l.bf16 %v207
  %v1425 = vunpack.c.h.bf16 %v207
  %v1426 = vunpack.c.l.bf16 %v208
  %v1427 = vunpack.c.h.bf16 %v208
  %v1428 = vunpack.c.l.bf16 %v209
  %v1429 = vunpack.c.h.bf16 %v209
  %v1430 = vunpack.c.l.bf16 %v210
  %v1431 = vunpack.c.h.bf16 %v210
  %v1432 = vunpack.c.l.bf16 %v211
  %v1433 = vunpack.c.h.bf16 %v211
  %v1434 = vunpack.c.l.bf16 %v212
  %v1435 = vunpack.c.h.bf16 %v212
  %v1436 = vunpack.c.l.bf16 %v213
  %v1437 = vunpack.c.h.bf16 %v213
  %v1438 = vunpack.c.l.bf16 %v214
  %v1439 = vunpack.c.h.bf16 %v214
  %v1440 = vunpack.c.l.bf16 %v215
  %v1441 = vunpack.c.h.bf16 %v215
  %v1442 = vunpack.c.l.bf16 %v216
  %v1443 = vunpack.c.h.bf16 %v216
  %v1444 = vunpack.c.l.bf16 %v217
  %v1445 = vunpack.c.h.bf16 %v217
  %v1446 = vunpack.c.l.bf16 %v218
  %v1447 = vunpack.c.h.bf16 %v218
  %v1448 = vunpack.c.l.bf16 %v219
  %v1449 = vunpack.c.h.bf16 %v219
  %v1450 = vunpack.c.l.bf16 %v220
  %v1451 = vunpack.c.h.bf16 %v220
  %v1452 = vunpack.c.l.bf16 %v221
  %v1453 = vunpack.c.h.bf16 %v221
  %v1454 = vunpack.c.l.bf16 %v222
  %v1455 = vunpack.c.h.bf16 %v222
  %v1456 = vunpack.c.l.bf16 %v223
  %v1457 = vunpack.c.h.bf16 %v223
  %v1458 = vunpack.c.l.bf16 %v224
  %v1459 = vunpack.c.h.bf16 %v224
  %v1460 = vunpack.c.l.bf16 %v225
  %v1461 = vunpack.c.h.bf16 %v225
  %v1462 = vunpack.c.l.bf16 %v226
  %v1463 = vunpack.c.h.bf16 %v226
  %v1464 = vunpack.c.l.bf16 %v227
  %v1465 = vunpack.c.h.bf16 %v227
  %v1466 = vunpack.c.l.bf16 %v228
  %v1467 = vunpack.c.h.bf16 %v228
  %v1468 = vunpack.c.l.bf16 %v229
  %v1469 = vunpack.c.h.bf16 %v229
  %v1470 = vunpack.c.l.bf16 %v230
  %v1471 = vunpack.c.h.bf16 %v230
  %v1472 = vunpack.c.l.bf16 %v231
  %v1473 = vunpack.c.h.bf16 %v231
  %v1474 = vunpack.c.l.bf16 %v232
  %v1475 = vunpack.c.h.bf16 %v232
  %v1476 = vunpack.c.l.bf16 %v233
  %v1477 = vunpack.c.h.bf16 %v233
  %v1478 = vunpack.c.l.bf16 %v234
  %v1479 = vunpack.c.h.bf16 %v234
  %v1480 = vunpack.c.l.bf16 %v235
  %v1481 = vunpack.c.h.bf16 %v235
  %v1482 = vunpack.c.l.bf16 %v236
  %v1483 = vunpack.c.h.bf16 %v236
  %v1484 = vunpack.c.l.bf16 %v237
  %v1485 = vunpack.c.h.bf16 %v237
  %v1486 = vunpack.c.l.bf16 %v238
  %v1487 = vunpack.c.h.bf16 %v238
  %v1488 = vunpack.c.l.bf16 %v239
  %v1489 = vunpack.c.h.bf16 %v239
  %v1490 = vunpack.c.l.bf16 %v240
  %v1491 = vunpack.c.h.bf16 %v240
  %v1492 = vunpack.c.l.bf16 %v241
  %v1493 = vunpack.c.h.bf16 %v241
  %v1494 = vunpack.c.l.bf16 %v242
  %v1495 = vunpack.c.h.bf16 %v242
  %v1496 = vunpack.c.l.bf16 %v243
  %v1497 = vunpack.c.h.bf16 %v243
  %v1498 = vunpack.c.l.bf16 %v244
  %v1499 = vunpack.c.h.bf16 %v244
  %v1500 = vunpack.c.l.bf16 %v245
  %v1501 = vunpack.c.h.bf16 %v245
  %v1502 = vunpack.c.l.bf16 %v246
  %v1503 = vunpack.c.h.bf16 %v246
  %v1504 = vunpack.c.l.bf16 %v247
  %v1505 = vunpack.c.h.bf16 %v247
  %v1506 = vunpack.c.l.bf16 %v248
  %v1507 = vunpack.c.h.bf16 %v248
  %v1508 = vunpack.c.l.bf16 %v249
  %v1509 = vunpack.c.h.bf16 %v249
  %v1510 = vunpack.c.l.bf16 %v250
  %v1511 = vunpack.c.h.bf16 %v250
  %v1512 = vunpack.c.l.bf16 %v251
  %v1513 = vunpack.c.h.bf16 %v251
  %v1514 = vunpack.c.l.bf16 %v252
  %v1515 = vunpack.c.h.bf16 %v252
  %v1516 = vunpack.c.l.bf16 %v253
  %v1517 = vunpack.c.h.bf16 %v253
  %v1518 = vunpack.c.l.bf16 %v254
  %v1519 = vunpack.c.h.bf16 %v254
  %v1520 = vunpack.c.l.bf16 %v255
  %v1521 = vunpack.c.h.bf16 %v255
  %v1522 = vunpack.c.l.bf16 %v256
  %v1523 = vunpack.c.h.bf16 %v256
  %v1524 = vunpack.c.l.bf16 %v257
  %v1525 = vunpack.c.h.bf16 %v257
  %v1526 = vunpack.c.l.bf16 %v258
  %v1527 = vunpack.c.h.bf16 %v258
  %v1528 = vunpack.c.l.bf16 %v259
  %v1529 = vunpack.c.h.bf16 %v259
  %v1530 = vunpack.c.l.bf16 %v260
  %v1531 = vunpack.c.h.bf16 %v260
  %v1532 = vunpack.c.l.bf16 %v261
  %v1533 = vunpack.c.h.bf16 %v261
  %v1534 = vunpack.c.l.bf16 %v262
  %v1535 = vunpack.c.h.bf16 %v262
  %v1536 = vunpack.c.l.bf16 %v263
  %v1537 = vunpack.c.h.bf16 %v263
  %v1538 = vunpack.c.l.bf16 %v264
  %v1539 = vunpack.c.h.bf16 %v264
  %v1540 = vunpack.c.l.bf16 %v265
  %v1541 = vunpack.c.h.bf16 %v265
  %v1542 = vunpack.c.l.bf16 %v266
  %v1543 = vunpack.c.h.bf16 %v266
  %v1544 = vunpack.c.l.bf16 %v267
  %v1545 = vunpack.c.h.bf16 %v267
  %v1546 = vunpack.c.l.bf16 %v268
  %v1547 = vunpack.c.h.bf16 %v268
  %v1548 = vunpack.c.l.bf16 %v269
  %v1549 = vunpack.c.h.bf16 %v269
  %v1550 = vunpack.c.l.bf16 %v270
  %v1551 = vunpack.c.h.bf16 %v270
  %v1552 = vunpack.c.l.bf16 %v271
  %v1553 = vunpack.c.h.bf16 %v271
  %v1554 = vunpack.c.l.bf16 %v272
  %v1555 = vunpack.c.h.bf16 %v272
  %v1556 = vunpack.c.l.bf16 %v273
  %v1557 = vunpack.c.h.bf16 %v273
  %v1558 = vunpack.c.l.bf16 %v274
  %v1559 = vunpack.c.h.bf16 %v274
  %v1560 = vunpack.c.l.bf16 %v275
  %v1561 = vunpack.c.h.bf16 %v275
  %v1562 = vunpack.c.l.bf16 %v276
  %v1563 = vunpack.c.h.bf16 %v276
  %v1564 = vunpack.c.l.bf16 %v277
  %v1565 = vunpack.c.h.bf16 %v277
  %v1566 = vunpack.c.l.bf16 %v278
  %v1567 = vunpack.c.h.bf16 %v278
  %v1568 = vunpack.c.l.bf16 %v279
  %v1569 = vunpack.c.h.bf16 %v279
  %v1570 = vunpack.c.l.bf16 %v280
  %v1571 = vunpack.c.h.bf16 %v280
  %v1572 = vunpack.c.l.bf16 %v281
  %v1573 = vunpack.c.h.bf16 %v281
  %v1574 = vunpack.c.l.bf16 %v282
  %v1575 = vunpack.c.h.bf16 %v282
  %v1576 = vunpack.c.l.bf16 %v283
  %v1577 = vunpack.c.h.bf16 %v283
  %v1578 = vunpack.c.l.bf16 %v284
  %v1579 = vunpack.c.h.bf16 %v284
  %v1580 = vunpack.c.l.bf16 %v285
  %v1581 = vunpack.c.h.bf16 %v285
  %v1582 = vunpack.c.l.bf16 %v286
  %v1583 = vunpack.c.h.bf16 %v286
  %v1584 = vunpack.c.l.bf16 %v287
  %v1585 = vunpack.c.h.bf16 %v287
  %v1586 = vunpack.c.l.bf16 %v288
  %v1587 = vunpack.c.h.bf16 %v288
  %v1588 = vunpack.c.l.bf16 %v289
  %v1589 = vunpack.c.h.bf16 %v289
  %v1590 = vunpack.c.l.bf16 %v290
  %v1591 = vunpack.c.h.bf16 %v290
  %v1592 = vunpack.c.l.bf16 %v291
  %v1593 = vunpack.c.h.bf16 %v291
  %v1594 = vunpack.c.l.bf16 %v292
  %v1595 = vunpack.c.h.bf16 %v292
  %v1596 = vunpack.c.l.bf16 %v293
  %v1597 = vunpack.c.h.bf16 %v293
  %v1598 = vunpack.c.l.bf16 %v294
  %v1599 = vunpack.c.h.bf16 %v294
  %v1600 = vunpack.c.l.bf16 %v295
  %v1601 = vunpack.c.h.bf16 %v295
  %v1602 = vunpack.c.l.bf16 %v296
  %v1603 = vunpack.c.h.bf16 %v296
  %v1604 = vunpack.c.l.bf16 %v297
  %v1605 = vunpack.c.h.bf16 %v297
  %v1606 = vunpack.c.l.bf16 %v298
  %v1607 = vunpack.c.h.bf16 %v298
  %v1608 = vunpack.c.l.bf16 %v299
  %v1609 = vunpack.c.h.bf16 %v299
  %v1610 = vunpack.c.l.bf16 %v300
  %v1611 = vunpack.c.h.bf16 %v300
  %v1612 = vunpack.c.l.bf16 %v301
  %v1613 = vunpack.c.h.bf16 %v301
  %v1614 = vunpack.c.l.bf16 %v302
  %v1615 = vunpack.c.h.bf16 %v302
  %v1616 = vunpack.c.l.bf16 %v303
  %v1617 = vunpack.c.h.bf16 %v303
  %v1618 = vunpack.c.l.bf16 %v304
  %v1619 = vunpack.c.h.bf16 %v304
  %v1620 = vunpack.c.l.bf16 %v305
  %v1621 = vunpack.c.h.bf16 %v305
  %v1622 = vunpack.c.l.bf16 %v306
  %v1623 = vunpack.c.h.bf16 %v306
  %v1624 = vunpack.c.l.bf16 %v307
  %v1625 = vunpack.c.h.bf16 %v307
  %v1626 = vunpack.c.l.bf16 %v308
  %v1627 = vunpack.c.h.bf16 %v308
  %v1628 = vunpack.c.l.bf16 %v309
  %v1629 = vunpack.c.h.bf16 %v309
  %v1630 = vunpack.c.l.bf16 %v310
  %v1631 = vunpack.c.h.bf16 %v310
  %v1632 = vunpack.c.l.bf16 %v311
  %v1633 = vunpack.c.h.bf16 %v311
  %v1634 = vunpack.c.l.bf16 %v312
  %v1635 = vunpack.c.h.bf16 %v312
  %v1636 = vunpack.c.l.bf16 %v313
  %v1637 = vunpack.c.h.bf16 %v313
  %v1638 = vunpack.c.l.bf16 %v314
  %v1639 = vunpack.c.h.bf16 %v314
  %v1640 = vunpack.c.l.bf16 %v315
  %v1641 = vunpack.c.h.bf16 %v315
  %v1642 = vunpack.c.l.bf16 %v316
  %v1643 = vunpack.c.h.bf16 %v316
  %v1644 = vunpack.c.l.bf16 %v317
  %v1645 = vunpack.c.h.bf16 %v317
  %v1646 = vunpack.c.l.bf16 %v318
  %v1647 = vunpack.c.h.bf16 %v318
  %v1648 = vunpack.c.l.bf16 %v319
  %v1649 = vunpack.c.h.bf16 %v319
  %v1650 = vunpack.c.l.bf16 %v320
  %v1651 = vunpack.c.h.bf16 %v320
  %v1652 = vunpack.c.l.bf16 %v321
  %v1653 = vunpack.c.h.bf16 %v321
  %v1654 = vunpack.c.l.bf16 %v322
  %v1655 = vunpack.c.h.bf16 %v322
  %v1656 = vunpack.c.l.bf16 %v323
  %v1657 = vunpack.c.h.bf16 %v323
  %v1658 = vunpack.c.l.bf16 %v324
  %v1659 = vunpack.c.h.bf16 %v324
  %v1660 = vunpack.c.l.bf16 %v325
  %v1661 = vunpack.c.h.bf16 %v325
  %v1662 = vunpack.c.l.bf16 %v326
  %v1663 = vunpack.c.h.bf16 %v326
  %v1664 = vunpack.c.l.bf16 %v327
  %v1665 = vunpack.c.h.bf16 %v327
  %v1666 = vunpack.c.l.bf16 %v328
  %v1667 = vunpack.c.h.bf16 %v328
  %v1668 = vunpack.c.l.bf16 %v329
  %v1669 = vunpack.c.h.bf16 %v329
  %v1670 = vunpack.c.l.bf16 %v330
  %v1671 = vunpack.c.h.bf16 %v330
  %v1672 = vunpack.c.l.bf16 %v331
  %v1673 = vunpack.c.h.bf16 %v331
  %v1674 = vunpack.c.l.bf16 %v332
  %v1675 = vunpack.c.h.bf16 %v332
  %v1676 = vunpack.c.l.bf16 %v333
  %v1677 = vunpack.c.h.bf16 %v333
  %v1678 = vunpack.c.l.bf16 %v334
  %v1679 = vunpack.c.h.bf16 %v334
  %v1680 = vunpack.c.l.bf16 %v335
  %v1681 = vunpack.c.h.bf16 %v335
  %v1682 = vunpack.c.l.bf16 %v336
  %v1683 = vunpack.c.h.bf16 %v336
  %v1684 = vunpack.c.l.bf16 %v337
  %v1685 = vunpack.c.h.bf16 %v337
  %v1686 = vunpack.c.l.bf16 %v338
  %v1687 = vunpack.c.h.bf16 %v338
  %v1688 = vunpack.c.l.bf16 %v339
  %v1689 = vunpack.c.h.bf16 %v339
  %v1690 = vunpack.c.l.bf16 %v340
  %v1691 = vunpack.c.h.bf16 %v340
  %v1692 = vunpack.c.l.bf16 %v341
  %v1693 = vunpack.c.h.bf16 %v341
  %v1694 = vunpack.c.l.bf16 %v342
  %v1695 = vunpack.c.h.bf16 %v342
  %v1696 = vunpack.c.l.bf16 %v343
  %v1697 = vunpack.c.h.bf16 %v343
  %v1698 = vunpack.c.l.bf16 %v344
  %v1699 = vunpack.c.h.bf16 %v344
  %v1700 = vunpack.c.l.bf16 %v345
  %v1701 = vunpack.c.h.bf16 %v345
  %v1702 = vunpack.c.l.bf16 %v346
  %v1703 = vunpack.c.h.bf16 %v346
  %v1704 = vunpack.c.l.bf16 %v347
  %v1705 = vunpack.c.h.bf16 %v347
  %v1706 = vunpack.c.l.bf16 %v348
  %v1707 = vunpack.c.h.bf16 %v348
  %v1708 = vunpack.c.l.bf16 %v349
  %v1709 = vunpack.c.h.bf16 %v349
  %v1710 = vunpack.c.l.bf16 %v350
  %v1711 = vunpack.c.h.bf16 %v350
  %v1712 = vunpack.c.l.bf16 %v351
  %v1713 = vunpack.c.h.bf16 %v351
  %v1714 = vunpack.c.l.bf16 %v352
  %v1715 = vunpack.c.h.bf16 %v352
  %v1716 = vunpack.c.l.bf16 %v353
  %v1717 = vunpack.c.h.bf16 %v353
  %v1718 = vunpack.c.l.bf16 %v354
  %v1719 = vunpack.c.h.bf16 %v354
  %v1720 = vunpack.c.l.bf16 %v355
  %v1721 = vunpack.c.h.bf16 %v355
  %v1722 = vunpack.c.l.bf16 %v356
  %v1723 = vunpack.c.h.bf16 %v356
  %v1724 = vunpack.c.l.bf16 %v357
  %v1725 = vunpack.c.h.bf16 %v357
  %v1726 = vunpack.c.l.bf16 %v358
  %v1727 = vunpack.c.h.bf16 %v358
  %v1728 = vunpack.c.l.bf16 %v359
  %v1729 = vunpack.c.h.bf16 %v359
  %v1730 = vunpack.c.l.bf16 %v360
  %v1731 = vunpack.c.h.bf16 %v360
  %v1732 = vunpack.c.l.bf16 %v361
  %v1733 = vunpack.c.h.bf16 %v361
  %v1734 = vunpack.c.l.bf16 %v362
  %v1735 = vunpack.c.h.bf16 %v362
  %v1736 = vunpack.c.l.bf16 %v363
  %v1737 = vunpack.c.h.bf16 %v363
  %v1738 = vunpack.c.l.bf16 %v364
  %v1739 = vunpack.c.h.bf16 %v364
  %v1740 = vunpack.c.l.bf16 %v365
  %v1741 = vunpack.c.h.bf16 %v365
  %v1742 = vunpack.c.l.bf16 %v366
  %v1743 = vunpack.c.h.bf16 %v366
  %v1744 = vunpack.c.l.bf16 %v367
  %v1745 = vunpack.c.h.bf16 %v367
  %v1746 = vunpack.c.l.bf16 %v368
  %v1747 = vunpack.c.h.bf16 %v368
  %v1748 = vunpack.c.l.bf16 %v369
  %v1749 = vunpack.c.h.bf16 %v369
  %v1750 = vunpack.c.l.bf16 %v370
  %v1751 = vunpack.c.h.bf16 %v370
  %v1752 = vunpack.c.l.bf16 %v371
  %v1753 = vunpack.c.h.bf16 %v371
  %v1754 = vunpack.c.l.bf16 %v372
  %v1755 = vunpack.c.h.bf16 %v372
  %v1756 = vunpack.c.l.bf16 %v373
  %v1757 = vunpack.c.h.bf16 %v373
  %v1758 = vunpack.c.l.bf16 %v374
  %v1759 = vunpack.c.h.bf16 %v374
  %v1760 = vunpack.c.l.bf16 %v375
  %v1761 = vunpack.c.h.bf16 %v375
  %v1762 = vunpack.c.l.bf16 %v376
  %v1763 = vunpack.c.h.bf16 %v376
  %v1764 = vunpack.c.l.bf16 %v377
  %v1765 = vunpack.c.h.bf16 %v377
  %v1766 = vunpack.c.l.bf16 %v378
  %v1767 = vunpack.c.h.bf16 %v378
  %v1768 = vunpack.c.l.bf16 %v379
  %v1769 = vunpack.c.h.bf16 %v379
  %v1770 = vunpack.c.l.bf16 %v380
  %v1771 = vunpack.c.h.bf16 %v380
  %v1772 = vunpack.c.l.bf16 %v381
  %v1773 = vunpack.c.h.bf16 %v381
  %v1774 = vunpack.c.l.bf16 %v382
  %v1775 = vunpack.c.h.bf16 %v382
  %v1776 = vunpack.c.l.bf16 %v383
  %v1777 = vunpack.c.h.bf16 %v383
  %v1778 = vunpack.c.l.bf16 %v384
  %v1779 = vunpack.c.h.bf16 %v384
  %v1780 = vunpack.c.l.bf16 %v385
  %v1781 = vunpack.c.h.bf16 %v385
  %v1782 = vunpack.c.l.bf16 %v386
  %v1783 = vunpack.c.h.bf16 %v386
  %v1784 = vunpack.c.l.bf16 %v387
  %v1785 = vunpack.c.h.bf16 %v387
  %v1786 = vunpack.c.l.bf16 %v388
  %v1787 = vunpack.c.h.bf16 %v388
  %v1788 = vunpack.c.l.bf16 %v389
  %v1789 = vunpack.c.h.bf16 %v389
  %v1790 = vunpack.c.l.bf16 %v390
  %v1791 = vunpack.c.h.bf16 %v390
  %v1792 = vunpack.c.l.bf16 %v391
  %v1793 = vunpack.c.h.bf16 %v391
  %v1794 = vunpack.c.l.bf16 %v392
  %v1795 = vunpack.c.h.bf16 %v392
  %v1796 = vunpack.c.l.bf16 %v393
  %v1797 = vunpack.c.h.bf16 %v393
  %v1798 = vunpack.c.l.bf16 %v394
  %v1799 = vunpack.c.h.bf16 %v394
  %v1800 = vunpack.c.l.bf16 %v395
  %v1801 = vunpack.c.h.bf16 %v395
  %v1802 = vunpack.c.l.bf16 %v396
  %v1803 = vunpack.c.h.bf16 %v396
  %v1804 = vunpack.c.l.bf16 %v397
  %v1805 = vunpack.c.h.bf16 %v397
  %v1806 = vunpack.c.l.bf16 %v398
  %v1807 = vunpack.c.h.bf16 %v398
  %v1808 = vunpack.c.l.bf16 %v399
  %v1809 = vunpack.c.h.bf16 %v399
  %v1810 = vunpack.c.l.bf16 %v400
  %v1811 = vunpack.c.h.bf16 %v400
  %v1812 = vunpack.c.l.bf16 %v401
  %v1813 = vunpack.c.h.bf16 %v401
  %v1814 = vunpack.c.l.bf16 %v402
  %v1815 = vunpack.c.h.bf16 %v402
  %v1816 = vunpack.c.l.bf16 %v403
  %v1817 = vunpack.c.h.bf16 %v403
  %v1818 = vunpack.c.l.bf16 %v404
  %v1819 = vunpack.c.h.bf16 %v404
  %v1820 = vunpack.c.l.bf16 %v405
  %v1821 = vunpack.c.h.bf16 %v405
  %v1822 = vunpack.c.l.bf16 %v406
  %v1823 = vunpack.c.h.bf16 %v406
  %v1824 = vunpack.c.l.bf16 %v407
  %v1825 = vunpack.c.h.bf16 %v407
  %v1826 = vunpack.c.l.bf16 %v408
  %v1827 = vunpack.c.h.bf16 %v408
  %v1828 = vunpack.c.l.bf16 %v409
  %v1829 = vunpack.c.h.bf16 %v409
  %v1830 = vunpack.c.l.bf16 %v410
  %v1831 = vunpack.c.h.bf16 %v410
  %v1832 = vunpack.c.l.bf16 %v411
  %v1833 = vunpack.c.h.bf16 %v411
  %v1834 = vunpack.c.l.bf16 %v412
  %v1835 = vunpack.c.h.bf16 %v412
  %v1836 = vunpack.c.l.bf16 %v413
  %v1837 = vunpack.c.h.bf16 %v413
  %v1838 = vunpack.c.l.bf16 %v414
  %v1839 = vunpack.c.h.bf16 %v414
  %v1840 = vunpack.c.l.bf16 %v415
  %v1841 = vunpack.c.h.bf16 %v415
  %v1842 = vunpack.c.l.bf16 %v416
  %v1843 = vunpack.c.h.bf16 %v416
  %v1844 = vunpack.c.l.bf16 %v417
  %v1845 = vunpack.c.h.bf16 %v417
  %v1846 = vunpack.c.l.bf16 %v418
  %v1847 = vunpack.c.h.bf16 %v418
  %v1848 = vunpack.c.l.bf16 %v419
  %v1849 = vunpack.c.h.bf16 %v419
  %v1850 = vunpack.c.l.bf16 %v420
  %v1851 = vunpack.c.h.bf16 %v420
  %v1852 = vunpack.c.l.bf16 %v421
  %v1853 = vunpack.c.h.bf16 %v421
  %v1854 = vunpack.c.l.bf16 %v422
  %v1855 = vunpack.c.h.bf16 %v422
  %v1856 = vunpack.c.l.bf16 %v423
  %v1857 = vunpack.c.h.bf16 %v423
  %v1858 = vunpack.c.l.bf16 %v424
  %v1859 = vunpack.c.h.bf16 %v424
  %v1860 = vunpack.c.l.bf16 %v425
  %v1861 = vunpack.c.h.bf16 %v425
  %v1862 = vunpack.c.l.bf16 %v426
  %v1863 = vunpack.c.h.bf16 %v426
  %v1864 = vunpack.c.l.bf16 %v427
  %v1865 = vunpack.c.h.bf16 %v427
  %v1866 = vunpack.c.l.bf16 %v428
  %v1867 = vunpack.c.h.bf16 %v428
  %v1868 = vunpack.c.l.bf16 %v429
  %v1869 = vunpack.c.h.bf16 %v429
  %v1870 = vunpack.c.l.bf16 %v430
  %v1871 = vunpack.c.h.bf16 %v430
  %v1872 = vunpack.c.l.bf16 %v431
  %v1873 = vunpack.c.h.bf16 %v431
  %v1874 = vunpack.c.l.bf16 %v432
  %v1875 = vunpack.c.h.bf16 %v432
  %v1876 = vunpack.c.l.bf16 %v433
  %v1877 = vunpack.c.h.bf16 %v433
  %v1878 = vunpack.c.l.bf16 %v434
  %v1879 = vunpack.c.h.bf16 %v434
  %v1880 = vunpack.c.l.bf16 %v435
  %v1881 = vunpack.c.h.bf16 %v435
  %v1882 = vunpack.c.l.bf16 %v436
  %v1883 = vunpack.c.h.bf16 %v436
  %v1884 = vunpack.c.l.bf16 %v437
  %v1885 = vunpack.c.h.bf16 %v437
  %v1886 = vunpack.c.l.bf16 %v438
  %v1887 = vunpack.c.h.bf16 %v438
  %v1888 = vunpack.c.l.bf16 %v439
  %v1889 = vunpack.c.h.bf16 %v439
  %v1890 = vunpack.c.l.bf16 %v440
  %v1891 = vunpack.c.h.bf16 %v440
  %v1892 = vunpack.c.l.bf16 %v441
  %v1893 = vunpack.c.h.bf16 %v441
  %v1894 = vunpack.c.l.bf16 %v442
  %v1895 = vunpack.c.h.bf16 %v442
  %v1896 = vunpack.c.l.bf16 %v443
  %v1897 = vunpack.c.h.bf16 %v443
  %v1898 = vunpack.c.l.bf16 %v444
  %v1899 = vunpack.c.h.bf16 %v444
  %v1900 = vunpack.c.l.bf16 %v445
  %v1901 = vunpack.c.h.bf16 %v445
  %v1902 = vunpack.c.l.bf16 %v446
  %v1903 = vunpack.c.h.bf16 %v446
  %v1904 = vunpack.c.l.bf16 %v447
  %v1905 = vunpack.c.h.bf16 %v447
  %v1906 = vunpack.c.l.bf16 %v448
  %v1907 = vunpack.c.h.bf16 %v448
  %v1908 = vunpack.c.l.bf16 %v449
  %v1909 = vunpack.c.h.bf16 %v449
  %v1910 = vunpack.c.l.bf16 %v450
  %v1911 = vunpack.c.h.bf16 %v450
  %v1912 = vunpack.c.l.bf16 %v451
  %v1913 = vunpack.c.h.bf16 %v451
  %v1914 = vunpack.c.l.bf16 %v452
  %v1915 = vunpack.c.h.bf16 %v452
  %v1916 = vunpack.c.l.bf16 %v453
  %v1917 = vunpack.c.h.bf16 %v453
  %v1918 = vunpack.c.l.bf16 %v454
  %v1919 = vunpack.c.h.bf16 %v454
  %v1920 = vunpack.c.l.bf16 %v455
  %v1921 = vunpack.c.h.bf16 %v455
  %v1922 = vunpack.c.l.bf16 %v456
  %v1923 = vunpack.c.h.bf16 %v456
  %v1924 = vunpack.c.l.bf16 %v457
  %v1925 = vunpack.c.h.bf16 %v457
  %v1926 = vunpack.c.l.bf16 %v458
  %v1927 = vunpack.c.h.bf16 %v458
  %v1928 = vunpack.c.l.bf16 %v459
  %v1929 = vunpack.c.h.bf16 %v459
  %v1930 = vunpack.c.l.bf16 %v460
  %v1931 = vunpack.c.h.bf16 %v460
  %v1932 = vunpack.c.l.bf16 %v461
  %v1933 = vunpack.c.h.bf16 %v461
  %v1934 = vunpack.c.l.bf16 %v462
  %v1935 = vunpack.c.h.bf16 %v462
  %v1936 = vunpack.c.l.bf16 %v463
  %v1937 = vunpack.c.h.bf16 %v463
  %v1938 = vunpack.c.l.bf16 %v464
  %v1939 = vunpack.c.h.bf16 %v464
  %v1940 = vunpack.c.l.bf16 %v465
  %v1941 = vunpack.c.h.bf16 %v465
  %v1942 = vunpack.c.l.bf16 %v466
  %v1943 = vunpack.c.h.bf16 %v466
  %v1944 = vunpack.c.l.bf16 %v467
  %v1945 = vunpack.c.h.bf16 %v467
  %v1946 = vunpack.c.l.bf16 %v468
  %v1947 = vunpack.c.h.bf16 %v468
  %v1948 = vunpack.c.l.bf16 %v469
  %v1949 = vunpack.c.h.bf16 %v469
  %v1950 = vunpack.c.l.bf16 %v470
  %v1951 = vunpack.c.h.bf16 %v470
  %v1952 = vunpack.c.l.bf16 %v471
  %v1953 = vunpack.c.h.bf16 %v471
  %v1954 = vunpack.c.l.bf16 %v472
  %v1955 = vunpack.c.h.bf16 %v472
  %v1956 = vunpack.c.l.bf16 %v473
  %v1957 = vunpack.c.h.bf16 %v473
  %v1958 = vunpack.c.l.bf16 %v474
  %v1959 = vunpack.c.h.bf16 %v474
  %v1960 = vunpack.c.l.bf16 %v475
  %v1961 = vunpack.c.h.bf16 %v475
  %v1962 = vunpack.c.l.bf16 %v476
  %v1963 = vunpack.c.h.bf16 %v476
  %v1964 = vunpack.c.l.bf16 %v477
  %v1965 = vunpack.c.h.bf16 %v477
  %v1966 = vunpack.c.l.bf16 %v478
  %v1967 = vunpack.c.h.bf16 %v478
  %v1968 = vunpack.c.l.bf16 %v479
  %v1969 = vunpack.c.h.bf16 %v479
  %v1970 = vunpack.c.l.bf16 %v480
  %v1971 = vunpack.c.h.bf16 %v480
  %v1972 = vunpack.c.l.bf16 %v481
  %v1973 = vunpack.c.h.bf16 %v481
  %v1974 = vunpack.c.l.bf16 %v482
  %v1975 = vunpack.c.h.bf16 %v482
  %v1976 = vunpack.c.l.bf16 %v483
  %v1977 = vunpack.c.h.bf16 %v483
  %v1978 = vunpack.c.l.bf16 %v484
  %v1979 = vunpack.c.h.bf16 %v484
  %v1980 = vunpack.c.l.bf16 %v485
  %v1981 = vunpack.c.h.bf16 %v485
  %v1982 = vunpack.c.l.bf16 %v486
  %v1983 = vunpack.c.h.bf16 %v486
  %v1984 = vunpack.c.l.bf16 %v487
  %v1985 = vunpack.c.h.bf16 %v487
  %v1986 = vunpack.c.l.bf16 %v488
  %v1987 = vunpack.c.h.bf16 %v488
  %v1988 = vunpack.c.l.bf16 %v489
  %v1989 = vunpack.c.h.bf16 %v489
  %v1990 = vunpack.c.l.bf16 %v490
  %v1991 = vunpack.c.h.bf16 %v490
  %v1992 = vunpack.c.l.bf16 %v491
  %v1993 = vunpack.c.h.bf16 %v491
  %v1994 = vunpack.c.l.bf16 %v492
  %v1995 = vunpack.c.h.bf16 %v492
  %v1996 = vunpack.c.l.bf16 %v493
  %v1997 = vunpack.c.h.bf16 %v493
  %v1998 = vunpack.c.l.bf16 %v494
  %v1999 = vunpack.c.h.bf16 %v494
  %v2000 = vunpack.c.l.bf16 %v495
  %v2001 = vunpack.c.h.bf16 %v495
  %v2002 = vunpack.c.l.bf16 %v496
  %v2003 = vunpack.c.h.bf16 %v496
  %v2004 = vunpack.c.l.bf16 %v497
  %v2005 = vunpack.c.h.bf16 %v497
  %v2006 = vunpack.c.l.bf16 %v498
  %v2007 = vunpack.c.h.bf16 %v498
  %v2008 = vunpack.c.l.bf16 %v499
  %v2009 = vunpack.c.h.bf16 %v499
  %v2010 = vunpack.c.l.bf16 %v500
  %v2011 = vunpack.c.h.bf16 %v500
  %v2012 = vunpack.c.l.bf16 %v501
  %v2013 = vunpack.c.h.bf16 %v501
  %v2014 = vunpack.c.l.bf16 %v502
  %v2015 = vunpack.c.h.bf16 %v502
  %v2016 = vunpack.c.l.bf16 %v503
  %v2017 = vunpack.c.h.bf16 %v503
  %v2018 = vunpack.c.l.bf16 %v504
  %v2019 = vunpack.c.h.bf16 %v504
  %v2020 = vunpack.c.l.bf16 %v505
  %v2021 = vunpack.c.h.bf16 %v505
  %v2022 = vunpack.c.l.bf16 %v506
  %v2023 = vunpack.c.h.bf16 %v506
  %v2024 = vunpack.c.l.bf16 %v507
  %v2025 = vunpack.c.h.bf16 %v507
  %v2026 = vunpack.c.l.bf16 %v508
  %v2027 = vunpack.c.h.bf16 %v508
  %v2028 = vunpack.c.l.bf16 %v509
  %v2029 = vunpack.c.h.bf16 %v509
  %v2030 = vunpack.c.l.bf16 %v510
  %v2031 = vunpack.c.h.bf16 %v510
  %v2032 = vunpack.c.l.bf16 %v511
  %v2033 = vunpack.c.h.bf16 %v511
  %v2034 = vunpack.c.l.bf16 %v512
  %v2035 = vunpack.c.h.bf16 %v512
  %v2036 = vunpack.c.l.bf16 %v513
  %v2037 = vunpack.c.h.bf16 %v513
  %v2038 = vunpack.c.l.bf16 %v514
  %v2039 = vunpack.c.h.bf16 %v514
  %v2040 = vunpack.c.l.bf16 %v515
  %v2041 = vunpack.c.h.bf16 %v515
  %v2042 = vunpack.c.l.bf16 %v516
  %v2043 = vunpack.c.h.bf16 %v516
  %v2044 = vunpack.c.l.bf16 %v517
  %v2045 = vunpack.c.h.bf16 %v517
  %v2046 = vunpack.c.l.bf16 %v518
  %v2047 = vunpack.c.h.bf16 %v518
  %v2048 = vunpack.c.l.bf16 %v519
  %v2049 = vunpack.c.h.bf16 %v519
  %v2050 = vunpack.c.l.bf16 %v520
  %v2051 = vunpack.c.h.bf16 %v520
  %v2052 = vunpack.c.l.bf16 %v521
  %v2053 = vunpack.c.h.bf16 %v521
  %v2054 = vunpack.c.l.bf16 %v522
  %v2055 = vunpack.c.h.bf16 %v522
  %v2056 = vunpack.c.l.bf16 %v523
  %v2057 = vunpack.c.h.bf16 %v523
  %v2058 = vunpack.c.l.bf16 %v524
  %v2059 = vunpack.c.h.bf16 %v524
  %v2060 = vunpack.c.l.bf16 %v525
  %v2061 = vunpack.c.h.bf16 %v525
  %v2062 = vunpack.c.l.bf16 %v526
  %v2063 = vunpack.c.h.bf16 %v526
  %v2064 = vunpack.c.l.bf16 %v527
  %v2065 = vunpack.c.h.bf16 %v527
  %v2066 = vunpack.c.l.bf16 %v528
  %v2067 = vunpack.c.h.bf16 %v528
  %v2068 = vunpack.c.l.bf16 %v529
  %v2069 = vunpack.c.h.bf16 %v529
  %v2070 = vunpack.c.l.bf16 %v530
  %v2071 = vunpack.c.h.bf16 %v530
  %v2072 = vunpack.c.l.bf16 %v531
  %v2073 = vunpack.c.h.bf16 %v531
  %v2074 = vunpack.c.l.bf16 %v532
  %v2075 = vunpack.c.h.bf16 %v532
  %v2076 = vunpack.c.l.bf16 %v533
  %v2077 = vunpack.c.h.bf16 %v533
  %v2078 = vunpack.c.l.bf16 %v534
  %v2079 = vunpack.c.h.bf16 %v534
  %v2080 = vunpack.c.l.bf16 %v535
  %v2081 = vunpack.c.h.bf16 %v535
  %v2082 = vunpack.c.l.bf16 %v536
  %v2083 = vunpack.c.h.bf16 %v536
  %v2084 = vunpack.c.l.bf16 %v537
  %v2085 = vunpack.c.h.bf16 %v537
  %v2086 = vunpack.c.l.bf16 %v538
  %v2087 = vunpack.c.h.bf16 %v538
  %v2088 = vunpack.c.l.bf16 %v539
  %v2089 = vunpack.c.h.bf16 %v539
  %v2090 = vunpack.c.l.bf16 %v540
  %v2091 = vunpack.c.h.bf16 %v540
  %v2092 = vunpack.c.l.bf16 %v541
  %v2093 = vunpack.c.h.bf16 %v541
  %v2094 = vunpack.c.l.bf16 %v542
  %v2095 = vunpack.c.h.bf16 %v542
  %v2096 = vunpack.c.l.bf16 %v543
  %v2097 = vunpack.c.h.bf16 %v543
  %v2098 = vunpack.c.l.bf16 %v544
  %v2099 = vunpack.c.h.bf16 %v544
  %v2100 = vunpack.c.l.bf16 %v545
  %v2101 = vunpack.c.h.bf16 %v545
  %v2102 = vunpack.c.l.bf16 %v546
  %v2103 = vunpack.c.h.bf16 %v546
  %v2104 = vunpack.c.l.bf16 %v547
  %v2105 = vunpack.c.h.bf16 %v547
  %v2106 = vunpack.c.l.bf16 %v548
  %v2107 = vunpack.c.h.bf16 %v548
  %v2108 = vunpack.c.l.bf16 %v549
  %v2109 = vunpack.c.h.bf16 %v549
  %v2110 = vunpack.c.l.bf16 %v550
  %v2111 = vunpack.c.h.bf16 %v550
  %v2112 = vunpack.c.l.bf16 %v551
  %v2113 = vunpack.c.h.bf16 %v551
  %v2114 = vunpack.c.l.bf16 %v552
  %v2115 = vunpack.c.h.bf16 %v552
  %v2116 = vunpack.c.l.bf16 %v553
  %v2117 = vunpack.c.h.bf16 %v553
  %v2118 = vunpack.c.l.bf16 %v554
  %v2119 = vunpack.c.h.bf16 %v554
  %v2120 = vunpack.c.l.bf16 %v555
  %v2121 = vunpack.c.h.bf16 %v555
  %v2122 = vunpack.c.l.bf16 %v556
  %v2123 = vunpack.c.h.bf16 %v556
  %v2124 = vunpack.c.l.bf16 %v557
  %v2125 = vunpack.c.h.bf16 %v557
  %v2126 = vunpack.c.l.bf16 %v558
  %v2127 = vunpack.c.h.bf16 %v558
  %v2128 = vunpack.c.l.bf16 %v559
  %v2129 = vunpack.c.h.bf16 %v559
  %v2130 = vunpack.c.l.bf16 %v560
  %v2131 = vunpack.c.h.bf16 %v560
  %v2132 = vunpack.c.l.bf16 %v561
  %v2133 = vunpack.c.h.bf16 %v561
  %v2134 = vunpack.c.l.bf16 %v562
  %v2135 = vunpack.c.h.bf16 %v562
  %v2136 = vunpack.c.l.bf16 %v563
  %v2137 = vunpack.c.h.bf16 %v563
  %v2138 = vunpack.c.l.bf16 %v564
  %v2139 = vunpack.c.h.bf16 %v564
  %v2140 = vunpack.c.l.bf16 %v565
  %v2141 = vunpack.c.h.bf16 %v565
  %v2142 = vunpack.c.l.bf16 %v566
  %v2143 = vunpack.c.h.bf16 %v566
  %v2144 = vunpack.c.l.bf16 %v567
  %v2145 = vunpack.c.h.bf16 %v567
  %v2146 = vunpack.c.l.bf16 %v568
  %v2147 = vunpack.c.h.bf16 %v568
  %v2148 = vunpack.c.l.bf16 %v569
  %v2149 = vunpack.c.h.bf16 %v569
  %v2150 = vunpack.c.l.bf16 %v570
  %v2151 = vunpack.c.h.bf16 %v570
  %v2152 = vunpack.c.l.bf16 %v571
  %v2153 = vunpack.c.h.bf16 %v571
  %v2154 = vunpack.c.l.bf16 %v572
  %v2155 = vunpack.c.h.bf16 %v572
  %v2156 = vunpack.c.l.bf16 %v573
  %v2157 = vunpack.c.h.bf16 %v573
  %v2158 = vunpack.c.l.bf16 %v574
  %v2159 = vunpack.c.h.bf16 %v574
  %v2160 = vunpack.c.l.bf16 %v575
  %v2161 = vunpack.c.h.bf16 %v575
  %v2162 = vunpack.c.l.bf16 %v576
  %v2163 = vunpack.c.h.bf16 %v576
  %v2164 = vunpack.c.l.bf16 %v577
  %v2165 = vunpack.c.h.bf16 %v577
  %v2166 = vunpack.c.l.bf16 %v578
  %v2167 = vunpack.c.h.bf16 %v578
  %v2168 = vunpack.c.l.bf16 %v579
  %v2169 = vunpack.c.h.bf16 %v579
  %v2170 = vunpack.c.l.bf16 %v580
  %v2171 = vunpack.c.h.bf16 %v580
  %v2172 = vunpack.c.l.bf16 %v581
  %v2173 = vunpack.c.h.bf16 %v581
  %v2174 = vunpack.c.l.bf16 %v582
  %v2175 = vunpack.c.h.bf16 %v582
  %v2176 = vunpack.c.l.bf16 %v583
  %v2177 = vunpack.c.h.bf16 %v583
  %v2178 = vunpack.c.l.bf16 %v584
  %v2179 = vunpack.c.h.bf16 %v584
  %v2180 = vunpack.c.l.bf16 %v585
  %v2181 = vunpack.c.h.bf16 %v585
  %v2182 = vunpack.c.l.bf16 %v586
  %v2183 = vunpack.c.h.bf16 %v586
  %v2184 = vunpack.c.l.bf16 %v587
  %v2185 = vunpack.c.h.bf16 %v587
  %v2186 = vunpack.c.l.bf16 %v588
  %v2187 = vunpack.c.h.bf16 %v588
  %v2188 = vunpack.c.l.bf16 %v589
  %v2189 = vunpack.c.h.bf16 %v589
  %v2190 = vunpack.c.l.bf16 %v590
  %v2191 = vunpack.c.h.bf16 %v590
  %v2192 = vunpack.c.l.bf16 %v591
  %v2193 = vunpack.c.h.bf16 %v591
  %v2194 = vunpack.c.l.bf16 %v592
  %v2195 = vunpack.c.h.bf16 %v592
  %v2196 = vunpack.c.l.bf16 %v593
  %v2197 = vunpack.c.h.bf16 %v593
  %v2198 = vunpack.c.l.bf16 %v594
  %v2199 = vunpack.c.h.bf16 %v594
  %v2200 = vunpack.c.l.bf16 %v595
  %v2201 = vunpack.c.h.bf16 %v595
  %v2202 = vunpack.c.l.bf16 %v596
  %v2203 = vunpack.c.h.bf16 %v596
  %v2204 = vunpack.c.l.bf16 %v597
  %v2205 = vunpack.c.h.bf16 %v597
  %v2206 = vunpack.c.l.bf16 %v598
  %v2207 = vunpack.c.h.bf16 %v598
  %v2208 = vunpack.c.l.bf16 %v599
  %v2209 = vunpack.c.h.bf16 %v599
  %v2210 = vunpack.c.l.bf16 %v600
  %v2211 = vunpack.c.h.bf16 %v600
  %v2212 = vunpack.c.l.bf16 %v601
  %v2213 = vunpack.c.h.bf16 %v601
  %v2214 = vunpack.c.l.bf16 %v602
  %v2215 = vunpack.c.h.bf16 %v602
  %v2216 = vunpack.c.l.bf16 %v603
  %v2217 = vunpack.c.h.bf16 %v603
  %v2218 = vunpack.c.l.bf16 %v604
  %v2219 = vunpack.c.h.bf16 %v604
  %v2220 = vunpack.c.l.bf16 %v605
  %v2221 = vunpack.c.h.bf16 %v605
  %v2222 = vunpack.c.l.bf16 %v606
  %v2223 = vunpack.c.h.bf16 %v606
  %v2224 = vunpack.c.l.bf16 %v607
  %v2225 = vunpack.c.h.bf16 %v607
  %v2226 = vunpack.c.l.bf16 %v608
  %v2227 = vunpack.c.h.bf16 %v608
  %v2228 = vunpack.c.l.bf16 %v609
  %v2229 = vunpack.c.h.bf16 %v609
  %v2230 = vunpack.c.l.bf16 %v610
  %v2231 = vunpack.c.h.bf16 %v610
  %v2232 = vunpack.c.l.bf16 %v611
  %v2233 = vunpack.c.h.bf16 %v611
  %v2234 = vunpack.c.l.bf16 %v612
  %v2235 = vunpack.c.h.bf16 %v612
  %v2236 = vunpack.c.l.bf16 %v613
  %v2237 = vunpack.c.h.bf16 %v613
  %v2238 = vunpack.c.l.bf16 %v614
  %v2239 = vunpack.c.h.bf16 %v614
  %v2240 = vunpack.c.l.bf16 %v615
  %v2241 = vunpack.c.h.bf16 %v615
  %v2242 = vunpack.c.l.bf16 %v616
  %v2243 = vunpack.c.h.bf16 %v616
  %v2244 = vunpack.c.l.bf16 %v617
  %v2245 = vunpack.c.h.bf16 %v617
  %v2246 = vunpack.c.l.bf16 %v618
  %v2247 = vunpack.c.h.bf16 %v618
  %v2248 = vunpack.c.l.bf16 %v619
  %v2249 = vunpack.c.h.bf16 %v619
  %v2250 = vunpack.c.l.bf16 %v620
  %v2251 = vunpack.c.h.bf16 %v620
  %v2252 = vunpack.c.l.bf16 %v621
  %v2253 = vunpack.c.h.bf16 %v621
  %v2254 = vunpack.c.l.bf16 %v622
  %v2255 = vunpack.c.h.bf16 %v622
  %v2256 = vunpack.c.l.bf16 %v623
  %v2257 = vunpack.c.h.bf16 %v623
  %v2258 = vunpack.c.l.bf16 %v624
  %v2259 = vunpack.c.h.bf16 %v624
  %v2260 = vunpack.c.l.bf16 %v625
  %v2261 = vunpack.c.h.bf16 %v625
  %v2262 = vunpack.c.l.bf16 %v626
  %v2263 = vunpack.c.h.bf16 %v626
  %v2264 = vunpack.c.l.bf16 %v627
  %v2265 = vunpack.c.h.bf16 %v627
  %v2266 = vunpack.c.l.bf16 %v628
  %v2267 = vunpack.c.h.bf16 %v628
  %v2268 = vunpack.c.l.bf16 %v629
  %v2269 = vunpack.c.h.bf16 %v629
  %v2270 = vunpack.c.l.bf16 %v630
  %v2271 = vunpack.c.h.bf16 %v630
  %v2272 = vunpack.c.l.bf16 %v631
  %v2273 = vunpack.c.h.bf16 %v631
  %v2274 = vunpack.c.l.bf16 %v632
  %v2275 = vunpack.c.h.bf16 %v632
  %v2276 = vunpack.c.l.bf16 %v633
  %v2277 = vunpack.c.h.bf16 %v633
  %v2278 = vunpack.c.l.bf16 %v634
  %v2279 = vunpack.c.h.bf16 %v634
  %v2280 = vunpack.c.l.bf16 %v635
  %v2281 = vunpack.c.h.bf16 %v635
  %v2282 = vunpack.c.l.bf16 %v636
  %v2283 = vunpack.c.h.bf16 %v636
  %v2284 = vunpack.c.l.bf16 %v637
  %v2285 = vunpack.c.h.bf16 %v637
  %v2286 = vunpack.c.l.bf16 %v638
  %v2287 = vunpack.c.h.bf16 %v638
  %v2288 = vunpack.c.l.bf16 %v639
  %v2289 = vunpack.c.h.bf16 %v639
  %v2290 = vunpack.c.l.bf16 %v640
  %v2291 = vunpack.c.h.bf16 %v640
  %v2292 = vunpack.c.l.bf16 %v641
  %v2293 = vunpack.c.h.bf16 %v641
  %v2294 = vunpack.c.l.bf16 %v642
  %v2295 = vunpack.c.h.bf16 %v642
  %v2296 = vunpack.c.l.bf16 %v643
  %v2297 = vunpack.c.h.bf16 %v643
  %v2298 = vunpack.c.l.bf16 %v644
  %v2299 = vunpack.c.h.bf16 %v644
  %v2300 = vunpack.c.l.bf16 %v645
  %v2301 = vunpack.c.h.bf16 %v645
  %v2302 = vunpack.c.l.bf16 %v646
  %v2303 = vunpack.c.h.bf16 %v646
  %v2304 = vunpack.c.l.bf16 %v647
  %v2305 = vunpack.c.h.bf16 %v647
  %v2306 = vunpack.c.l.bf16 %v648
  %v2307 = vunpack.c.h.bf16 %v648
  %v2308 = vunpack.c.l.bf16 %v649
  %v2309 = vunpack.c.h.bf16 %v649
  %v2310 = vunpack.c.l.bf16 %v650
  %v2311 = vunpack.c.h.bf16 %v650
  %v2312 = vunpack.c.l.bf16 %v651
  %v2313 = vunpack.c.h.bf16 %v651
  %v2314 = vunpack.c.l.bf16 %v652
  %v2315 = vunpack.c.h.bf16 %v652
  %v2316 = vunpack.c.l.bf16 %v653
  %v2317 = vunpack.c.h.bf16 %v653
  %v2318 = vunpack.c.l.bf16 %v654
  %v2319 = vunpack.c.h.bf16 %v654
  %v2320 = vunpack.c.l.bf16 %v655
  %v2321 = vunpack.c.h.bf16 %v655
  %v2322 = vunpack.c.l.bf16 %v656
  %v2323 = vunpack.c.h.bf16 %v656
  %v2324 = vunpack.c.l.bf16 %v657
  %v2325 = vunpack.c.h.bf16 %v657
  %v2326 = vunpack.c.l.bf16 %v658
  %v2327 = vunpack.c.h.bf16 %v658
  %v2328 = vunpack.c.l.bf16 %v659
  %v2329 = vunpack.c.h.bf16 %v659
  %v2330 = vunpack.c.l.bf16 %v660
  %v2331 = vunpack.c.h.bf16 %v660
  %v2332 = vunpack.c.l.bf16 %v661
  %v2333 = vunpack.c.h.bf16 %v661
  %v2334 = vunpack.c.l.bf16 %v662
  %v2335 = vunpack.c.h.bf16 %v662
  %v2336 = vunpack.c.l.bf16 %v663
  %v2337 = vunpack.c.h.bf16 %v663
  %v2338 = vunpack.c.l.bf16 %v664
  %v2339 = vunpack.c.h.bf16 %v664
  %v2340 = vunpack.c.l.bf16 %v665
  %v2341 = vunpack.c.h.bf16 %v665
  %v2342 = vunpack.c.l.bf16 %v666
  %v2343 = vunpack.c.h.bf16 %v666
  %v2344 = vunpack.c.l.bf16 %v667
  %v2345 = vunpack.c.h.bf16 %v667
  %v2346 = vunpack.c.l.bf16 %v668
  %v2347 = vunpack.c.h.bf16 %v668
  %v2348 = vunpack.c.l.bf16 %v669
  %v2349 = vunpack.c.h.bf16 %v669
  %v2350 = vunpack.c.l.bf16 %v670
  %v2351 = vunpack.c.h.bf16 %v670
  %v2352 = vunpack.c.l.bf16 %v671
  %v2353 = vunpack.c.h.bf16 %v671
  %v2354 = vunpack.c.l.bf16 %v672
  %v2355 = vunpack.c.h.bf16 %v672
  %v2356 = vunpack.c.l.bf16 %v673
  %v2357 = vunpack.c.h.bf16 %v673
  %v2358 = vunpack.c.l.bf16 %v674
  %v2359 = vunpack.c.h.bf16 %v674
  %v2360 = vunpack.c.l.bf16 %v675
  %v2361 = vunpack.c.h.bf16 %v675
  %v2362 = vunpack.c.l.bf16 %v676
  %v2363 = vunpack.c.h.bf16 %v676
  %v2364 = vunpack.c.l.bf16 %v677
  %v2365 = vunpack.c.h.bf16 %v677
  %v2366 = vunpack.c.l.bf16 %v678
  %v2367 = vunpack.c.h.bf16 %v678
  %v2368 = vunpack.c.l.bf16 %v679
  %v2369 = vunpack.c.h.bf16 %v679
  %v2370 = vunpack.c.l.bf16 %v680
  %v2371 = vunpack.c.h.bf16 %v680
  %v2372 = vunpack.c.l.bf16 %v681
  %v2373 = vunpack.c.h.bf16 %v681
  %v2374 = vunpack.c.l.bf16 %v682
  %v2375 = vunpack.c.h.bf16 %v682
  %v2376 = vunpack.c.l.bf16 %v683
  %v2377 = vunpack.c.h.bf16 %v683
  %v2378 = vunpack.c.l.bf16 %v684
  %v2379 = vunpack.c.h.bf16 %v684
  %v2380 = vunpack.c.l.bf16 %v685
  %v2381 = vunpack.c.h.bf16 %v685
  %v2382 = vunpack.c.l.bf16 %v686
  %v2383 = vunpack.c.h.bf16 %v686
  %v2384 = vunpack.c.l.bf16 %v687
  %v2385 = vunpack.c.h.bf16 %v687
  %v2386 = vunpack.c.l.bf16 %v688
  %v2387 = vunpack.c.h.bf16 %v688
  %v2388 = vunpack.c.l.bf16 %v689
  %v2389 = vunpack.c.h.bf16 %v689
  %v2390 = vunpack.c.l.bf16 %v690
  %v2391 = vunpack.c.h.bf16 %v690
  %v2392 = vunpack.c.l.bf16 %v691
  %v2393 = vunpack.c.h.bf16 %v691
  %v2394 = vunpack.c.l.bf16 %v692
  %v2395 = vunpack.c.h.bf16 %v692
  %v2396 = vunpack.c.l.bf16 %v693
  %v2397 = vunpack.c.h.bf16 %v693
  %v2398 = vunpack.c.l.bf16 %v694
  %v2399 = vunpack.c.h.bf16 %v694
  %v2400 = vunpack.c.l.bf16 %v695
  %v2401 = vunpack.c.h.bf16 %v695
  %v2402 = vunpack.c.l.bf16 %v696
  %v2403 = vunpack.c.h.bf16 %v696
  %v2404 = vunpack.c.l.bf16 %v697
  %v2405 = vunpack.c.h.bf16 %v697
  %v2406 = vunpack.c.l.bf16 %v698
  %v2407 = vunpack.c.h.bf16 %v698
  %v2408 = vunpack.c.l.bf16 %v699
  %v2409 = vunpack.c.h.bf16 %v699
  %v2410 = vunpack.c.l.bf16 %v700
  %v2411 = vunpack.c.h.bf16 %v700
  %v2412 = vunpack.c.l.bf16 %v701
  %v2413 = vunpack.c.h.bf16 %v701
  %v2414 = vunpack.c.l.bf16 %v702
  %v2415 = vunpack.c.h.bf16 %v702
  %v2416 = vunpack.c.l.bf16 %v703
  %v2417 = vunpack.c.h.bf16 %v703
  %v2418 = vunpack.c.l.bf16 %v704
  %v2419 = vunpack.c.h.bf16 %v704
  %v2420 = vunpack.c.l.bf16 %v705
  %v2421 = vunpack.c.h.bf16 %v705
  %v2422 = vunpack.c.l.bf16 %v706
  %v2423 = vunpack.c.h.bf16 %v706
  %v2424 = vunpack.c.l.bf16 %v707
  %v2425 = vunpack.c.h.bf16 %v707
  %v2426 = vunpack.c.l.bf16 %v708
  %v2427 = vunpack.c.h.bf16 %v708
  %v2428 = vunpack.c.l.bf16 %v709
  %v2429 = vunpack.c.h.bf16 %v709
  %v2430 = vunpack.c.l.bf16 %v710
  %v2431 = vunpack.c.h.bf16 %v710
  %v2432 = vunpack.c.l.bf16 %v711
  %v2433 = vunpack.c.h.bf16 %v711
  %v2434 = vunpack.c.l.bf16 %v712
  %v2435 = vunpack.c.h.bf16 %v712
  %v2436 = vunpack.c.l.bf16 %v713
  %v2437 = vunpack.c.h.bf16 %v713
  %v2438 = vunpack.c.l.bf16 %v714
  %v2439 = vunpack.c.h.bf16 %v714
  %v2440 = vunpack.c.l.bf16 %v715
  %v2441 = vunpack.c.h.bf16 %v715
  %v2442 = vunpack.c.l.bf16 %v716
  %v2443 = vunpack.c.h.bf16 %v716
  %v2444 = vunpack.c.l.bf16 %v717
  %v2445 = vunpack.c.h.bf16 %v717
  %v2446 = vunpack.c.l.bf16 %v718
  %v2447 = vunpack.c.h.bf16 %v718
  %v2448 = vunpack.c.l.bf16 %v719
  %v2449 = vunpack.c.h.bf16 %v719
  %v2450 = vunpack.c.l.bf16 %v720
  %v2451 = vunpack.c.h.bf16 %v720
  %v2452 = vunpack.c.l.bf16 %v721
  %v2453 = vunpack.c.h.bf16 %v721
  %v2454 = vunpack.c.l.bf16 %v722
  %v2455 = vunpack.c.h.bf16 %v722
  %v2456 = vunpack.c.l.bf16 %v723
  %v2457 = vunpack.c.h.bf16 %v723
  %v2458 = vunpack.c.l.bf16 %v724
  %v2459 = vunpack.c.h.bf16 %v724
  %v2460 = vunpack.c.l.bf16 %v725
  %v2461 = vunpack.c.h.bf16 %v725
  %v2462 = vunpack.c.l.bf16 %v726
  %v2463 = vunpack.c.h.bf16 %v726
  %v2464 = vunpack.c.l.bf16 %v727
  %v2465 = vunpack.c.h.bf16 %v727
  %v2466 = vunpack.c.l.bf16 %v728
  %v2467 = vunpack.c.h.bf16 %v728
  %v2468 = vunpack.c.l.bf16 %v729
  %v2469 = vunpack.c.h.bf16 %v729
  %v2470 = vunpack.c.l.bf16 %v730
  %v2471 = vunpack.c.h.bf16 %v730
  %v2472 = vunpack.c.l.bf16 %v731
  %v2473 = vunpack.c.h.bf16 %v731
  %v2474 = vunpack.c.l.bf16 %v732
  %v2475 = vunpack.c.h.bf16 %v732
  %v2476 = vunpack.c.l.bf16 %v733
  %v2477 = vunpack.c.h.bf16 %v733
  %v2478 = vunpack.c.l.bf16 %v734
  %v2479 = vunpack.c.h.bf16 %v734
  %v2480 = vunpack.c.l.bf16 %v735
  %v2481 = vunpack.c.h.bf16 %v735
  %v2482 = vunpack.c.l.bf16 %v736
  %v2483 = vunpack.c.h.bf16 %v736
  %v2484 = vunpack.c.l.bf16 %v737
  %v2485 = vunpack.c.h.bf16 %v737
  %v2486 = vunpack.c.l.bf16 %v738
  %v2487 = vunpack.c.h.bf16 %v738
  %v2488 = vunpack.c.l.bf16 %v739
  %v2489 = vunpack.c.h.bf16 %v739
  %v2490 = vunpack.c.l.bf16 %v740
  %v2491 = vunpack.c.h.bf16 %v740
  %v2492 = vunpack.c.l.bf16 %v741
  %v2493 = vunpack.c.h.bf16 %v741
  %v2494 = vunpack.c.l.bf16 %v742
  %v2495 = vunpack.c.h.bf16 %v742
  %v2496 = vunpack.c.l.bf16 %v743
  %v2497 = vunpack.c.h.bf16 %v743
  %v2498 = vunpack.c.l.bf16 %v744
  %v2499 = vunpack.c.h.bf16 %v744
  %v2500 = vunpack.c.l.bf16 %v745
  %v2501 = vunpack.c.h.bf16 %v745
  %v2502 = vunpack.c.l.bf16 %v746
  %v2503 = vunpack.c.h.bf16 %v746
  %v2504 = vunpack.c.l.bf16 %v747
  %v2505 = vunpack.c.h.bf16 %v747
  %v2506 = vunpack.c.l.bf16 %v748
  %v2507 = vunpack.c.h.bf16 %v748
  %v2508 = vunpack.c.l.bf16 %v749
  %v2509 = vunpack.c.h.bf16 %v749
  %v2510 = vunpack.c.l.bf16 %v750
  %v2511 = vunpack.c.h.bf16 %v750
  %v2512 = vunpack.c.l.bf16 %v751
  %v2513 = vunpack.c.h.bf16 %v751
  %v2514 = vunpack.c.l.bf16 %v752
  %v2515 = vunpack.c.h.bf16 %v752
  %v2516 = vunpack.c.l.bf16 %v753
  %v2517 = vunpack.c.h.bf16 %v753
  %v2518 = vunpack.c.l.bf16 %v754
  %v2519 = vunpack.c.h.bf16 %v754
  %v2520 = vunpack.c.l.bf16 %v755
  %v2521 = vunpack.c.h.bf16 %v755
  %v2522 = vunpack.c.l.bf16 %v756
  %v2523 = vunpack.c.h.bf16 %v756
  %v2524 = vunpack.c.l.bf16 %v757
  %v2525 = vunpack.c.h.bf16 %v757
  %v2526 = vunpack.c.l.bf16 %v758
  %v2527 = vunpack.c.h.bf16 %v758
  %v2528 = vunpack.c.l.bf16 %v759
  %v2529 = vunpack.c.h.bf16 %v759
  %v2530 = vunpack.c.l.bf16 %v760
  %v2531 = vunpack.c.h.bf16 %v760
  %v2532 = vunpack.c.l.bf16 %v761
  %v2533 = vunpack.c.h.bf16 %v761
  %v2534 = vunpack.c.l.bf16 %v762
  %v2535 = vunpack.c.h.bf16 %v762
  %v2536 = vunpack.c.l.bf16 %v763
  %v2537 = vunpack.c.h.bf16 %v763
  %v2538 = vunpack.c.l.bf16 %v764
  %v2539 = vunpack.c.h.bf16 %v764
  %v2540 = vunpack.c.l.bf16 %v765
  %v2541 = vunpack.c.h.bf16 %v765
  %v2542 = vunpack.c.l.bf16 %v766
  %v2543 = vunpack.c.h.bf16 %v766
  %v2544 = vunpack.c.l.bf16 %v767
  %v2545 = vunpack.c.h.bf16 %v767
  %v2546 = vunpack.c.l.bf16 %v768
  %v2547 = vunpack.c.h.bf16 %v768
  %v2548 = vunpack.c.l.bf16 %v769
  %v2549 = vunpack.c.h.bf16 %v769
  %v2550 = vunpack.c.l.bf16 %v770
  %v2551 = vunpack.c.h.bf16 %v770
  %v2552 = vunpack.c.l.bf16 %v771
  %v2553 = vunpack.c.h.bf16 %v771
  %v2554 = vunpack.c.l.bf16 %v772
  %v2555 = vunpack.c.h.bf16 %v772
  %v2556 = vunpack.c.l.bf16 %v773
  %v2557 = vunpack.c.h.bf16 %v773
  %v2558 = vunpack.c.l.bf16 %v774
  %v2559 = vunpack.c.h.bf16 %v774
  %v2560 = vunpack.c.l.bf16 %v775
  %v2561 = vunpack.c.h.bf16 %v775
  %v2562 = vunpack.c.l.bf16 %v776
  %v2563 = vunpack.c.h.bf16 %v776
  %v2564 = vunpack.c.l.bf16 %v777
  %v2565 = vunpack.c.h.bf16 %v777
  %v2566 = vunpack.c.l.bf16 %v778
  %v2567 = vunpack.c.h.bf16 %v778
  %v2568 = vunpack.c.l.bf16 %v779
  %v2569 = vunpack.c.h.bf16 %v779
  %v2570 = vunpack.c.l.bf16 %v780
  %v2571 = vunpack.c.h.bf16 %v780
  %v2572 = vunpack.c.l.bf16 %v781
  %v2573 = vunpack.c.h.bf16 %v781
  %v2574 = vunpack.c.l.bf16 %v782
  %v2575 = vunpack.c.h.bf16 %v782
  %v2576 = vunpack.c.l.bf16 %v783
  %v2577 = vunpack.c.h.bf16 %v783
  %v2578 = vunpack.c.l.bf16 %v784
  %v2579 = vunpack.c.h.bf16 %v784
  %v2580 = vunpack.c.l.bf16 %v785
  %v2581 = vunpack.c.h.bf16 %v785
  %v2582 = vunpack.c.l.bf16 %v786
  %v2583 = vunpack.c.h.bf16 %v786
  %v2584 = vunpack.c.l.bf16 %v787
  %v2585 = vunpack.c.h.bf16 %v787
  %v2586 = vunpack.c.l.bf16 %v788
  %v2587 = vunpack.c.h.bf16 %v788
  %v2588 = vunpack.c.l.bf16 %v789
  %v2589 = vunpack.c.h.bf16 %v789
  %v2590 = vunpack.c.l.bf16 %v790
  %v2591 = vunpack.c.h.bf16 %v790
  %v2592 = vunpack.c.l.bf16 %v791
  %v2593 = vunpack.c.h.bf16 %v791
  %v2594 = vunpack.c.l.bf16 %v792
  %v2595 = vunpack.c.h.bf16 %v792
  %v2596 = vunpack.c.l.bf16 %v793
  %v2597 = vunpack.c.h.bf16 %v793
  %v2598 = vunpack.c.l.bf16 %v794
  %v2599 = vunpack.c.h.bf16 %v794
  %v2600 = vunpack.c.l.bf16 %v795
  %v2601 = vunpack.c.h.bf16 %v795
  %v2602 = vunpack.c.l.bf16 %v796
  %v2603 = vunpack.c.h.bf16 %v796
  %v2604 = vunpack.c.l.bf16 %v797
  %v2605 = vunpack.c.h.bf16 %v797
  %v2606 = vunpack.c.l.bf16 %v798
  %v2607 = vunpack.c.h.bf16 %v798
  %v2608 = vunpack.c.l.bf16 %v799
  %v2609 = vunpack.c.h.bf16 %v799
  %v2610 = vunpack.c.l.bf16 %v800
  %v2611 = vunpack.c.h.bf16 %v800
  %v2612 = vunpack.c.l.bf16 %v801
  %v2613 = vunpack.c.h.bf16 %v801
  %v2614 = vunpack.c.l.bf16 %v802
  %v2615 = vunpack.c.h.bf16 %v802
  %v2616 = vunpack.c.l.bf16 %v803
  %v2617 = vunpack.c.h.bf16 %v803
  %v2618 = vunpack.c.l.bf16 %v804
  %v2619 = vunpack.c.h.bf16 %v804
  %v2620 = vunpack.c.l.bf16 %v805
  %v2621 = vunpack.c.h.bf16 %v805
  %v2622 = vunpack.c.l.bf16 %v806
  %v2623 = vunpack.c.h.bf16 %v806
  %v2624 = vunpack.c.l.bf16 %v807
  %v2625 = vunpack.c.h.bf16 %v807
  %v2626 = vunpack.c.l.bf16 %v808
  %v2627 = vunpack.c.h.bf16 %v808
  %v2628 = vunpack.c.l.bf16 %v809
  %v2629 = vunpack.c.h.bf16 %v809
  %v2630 = vunpack.c.l.bf16 %v810
  %v2631 = vunpack.c.h.bf16 %v810
  %v2632 = vunpack.c.l.bf16 %v811
  %v2633 = vunpack.c.h.bf16 %v811
  %v2634 = vunpack.c.l.bf16 %v812
  %v2635 = vunpack.c.h.bf16 %v812
  %v2636 = vunpack.c.l.bf16 %v813
  %v2637 = vunpack.c.h.bf16 %v813
  %v2638 = vunpack.c.l.bf16 %v814
  %v2639 = vunpack.c.h.bf16 %v814
  %v2640 = vunpack.c.l.bf16 %v815
  %v2641 = vunpack.c.h.bf16 %v815
  %v2642 = vunpack.c.l.bf16 %v816
  %v2643 = vunpack.c.h.bf16 %v816
  %v2644 = vunpack.c.l.bf16 %v817
  %v2645 = vunpack.c.h.bf16 %v817
  %v2646 = vunpack.c.l.bf16 %v818
  %v2647 = vunpack.c.h.bf16 %v818
  %v2648 = vunpack.c.l.bf16 %v819
  %v2649 = vunpack.c.h.bf16 %v819
  %v2650 = vunpack.c.l.bf16 %v820
  %v2651 = vunpack.c.h.bf16 %v820
  %v2652 = vunpack.c.l.bf16 %v821
  %v2653 = vunpack.c.h.bf16 %v821
  %v2654 = vunpack.c.l.bf16 %v822
  %v2655 = vunpack.c.h.bf16 %v822
  %v2656 = vunpack.c.l.bf16 %v823
  %v2657 = vunpack.c.h.bf16 %v823
  %v2658 = vunpack.c.l.bf16 %v824
  %v2659 = vunpack.c.h.bf16 %v824
  %v2660 = vunpack.c.l.bf16 %v825
  %v2661 = vunpack.c.h.bf16 %v825
  %v2662 = vunpack.c.l.bf16 %v826
  %v2663 = vunpack.c.h.bf16 %v826
  %v2664 = vunpack.c.l.bf16 %v827
  %v2665 = vunpack.c.h.bf16 %v827
  %v2666 = vunpack.c.l.bf16 %v828
  %v2667 = vunpack.c.h.bf16 %v828
  %v2668 = vunpack.c.l.bf16 %v829
  %v2669 = vunpack.c.h.bf16 %v829
  %v2670 = vunpack.c.l.bf16 %v830
  %v2671 = vunpack.c.h.bf16 %v830
  %v2672 = vunpack.c.l.bf16 %v831
  %v2673 = vunpack.c.h.bf16 %v831
  %v2674 = vunpack.c.l.bf16 %v832
  %v2675 = vunpack.c.h.bf16 %v832
  %v2676 = vunpack.c.l.bf16 %v833
  %v2677 = vunpack.c.h.bf16 %v833
  %v2678 = vunpack.c.l.bf16 %v834
  %v2679 = vunpack.c.h.bf16 %v834
  %v2680 = vunpack.c.l.bf16 %v835
  %v2681 = vunpack.c.h.bf16 %v835
  %v2682 = vunpack.c.l.bf16 %v836
  %v2683 = vunpack.c.h.bf16 %v836
  %v2684 = vunpack.c.l.bf16 %v837
  %v2685 = vunpack.c.h.bf16 %v837
  %v2686 = vunpack.c.l.bf16 %v838
  %v2687 = vunpack.c.h.bf16 %v838
  %v2688 = vunpack.c.l.bf16 %v839
  %v2689 = vunpack.c.h.bf16 %v839
  %v2690 = vunpack.c.l.bf16 %v840
  %v2691 = vunpack.c.h.bf16 %v840
  %v2692 = vunpack.c.l.bf16 %v841
  %v2693 = vunpack.c.h.bf16 %v841
  %v2694 = vunpack.c.l.bf16 %v842
  %v2695 = vunpack.c.h.bf16 %v842
  %v2696 = vunpack.c.l.bf16 %v843
  %v2697 = vunpack.c.h.bf16 %v843
  %v2698 = vunpack.c.l.bf16 %v844
  %v2699 = vunpack.c.h.bf16 %v844
  %v2700 = vunpack.c.l.bf16 %v845
  %v2701 = vunpack.c.h.bf16 %v845
  %v2702 = vunpack.c.l.bf16 %v846
  %v2703 = vunpack.c.h.bf16 %v846
  %v2704 = vunpack.c.l.bf16 %v847
  %v2705 = vunpack.c.h.bf16 %v847
  %v2706 = vunpack.c.l.bf16 %v848
  %v2707 = vunpack.c.h.bf16 %v848
  %v2708 = vunpack.c.l.bf16 %v849
  %v2709 = vunpack.c.h.bf16 %v849
  %v2710 = vunpack.c.l.bf16 %v850
  %v2711 = vunpack.c.h.bf16 %v850
  %v2712 = vunpack.c.l.bf16 %v851
  %v2713 = vunpack.c.h.bf16 %v851
  %v2714 = vunpack.c.l.bf16 %v852
  %v2715 = vunpack.c.h.bf16 %v852
  %v2716 = vunpack.c.l.bf16 %v853
  %v2717 = vunpack.c.h.bf16 %v853
  %v2718 = vunpack.c.l.bf16 %v854
  %v2719 = vunpack.c.h.bf16 %v854
  %v2720 = vunpack.c.l.bf16 %v855
  %v2721 = vunpack.c.h.bf16 %v855
  %v2722 = vunpack.c.l.bf16 %v856
  %v2723 = vunpack.c.h.bf16 %v856
  %v2724 = vunpack.c.l.bf16 %v857
  %v2725 = vunpack.c.h.bf16 %v857
  %v2726 = vunpack.c.l.bf16 %v858
  %v2727 = vunpack.c.h.bf16 %v858
  %v2728 = vunpack.c.l.bf16 %v859
  %v2729 = vunpack.c.h.bf16 %v859
  %v2730 = vunpack.c.l.bf16 %v860
  %v2731 = vunpack.c.h.bf16 %v860
  %v2732 = vunpack.c.l.bf16 %v861
  %v2733 = vunpack.c.h.bf16 %v861
  %v2734 = vunpack.c.l.bf16 %v862
  %v2735 = vunpack.c.h.bf16 %v862
  %v2736 = vunpack.c.l.bf16 %v863
  %v2737 = vunpack.c.h.bf16 %v863
  %v2738 = vunpack.c.l.bf16 %v864
  %v2739 = vunpack.c.h.bf16 %v864
  %v2740 = vunpack.c.l.bf16 %v865
  %v2741 = vunpack.c.h.bf16 %v865
  %v2742 = vunpack.c.l.bf16 %v866
  %v2743 = vunpack.c.h.bf16 %v866
  %v2744 = vunpack.c.l.bf16 %v867
  %v2745 = vunpack.c.h.bf16 %v867
  %v2746 = vunpack.c.l.bf16 %v868
  %v2747 = vunpack.c.h.bf16 %v868
  %v2748 = vunpack.c.l.bf16 %v869
  %v2749 = vunpack.c.h.bf16 %v869
  %v2750 = vunpack.c.l.bf16 %v870
  %v2751 = vunpack.c.h.bf16 %v870
  %v2752 = vunpack.c.l.bf16 %v871
  %v2753 = vunpack.c.h.bf16 %v871
  %v2754 = vunpack.c.l.bf16 %v872
  %v2755 = vunpack.c.h.bf16 %v872
  %v2756 = vunpack.c.l.bf16 %v873
  %v2757 = vunpack.c.h.bf16 %v873
  %v2758 = vunpack.c.l.bf16 %v874
  %v2759 = vunpack.c.h.bf16 %v874
  %v2760 = vunpack.c.l.bf16 %v875
  %v2761 = vunpack.c.h.bf16 %v875
  %v2762 = vunpack.c.l.bf16 %v876
  %v2763 = vunpack.c.h.bf16 %v876
  %v2764 = vunpack.c.l.bf16 %v877
  %v2765 = vunpack.c.h.bf16 %v877
  %v2766 = vunpack.c.l.bf16 %v878
  %v2767 = vunpack.c.h.bf16 %v878
  %v2768 = vunpack.c.l.bf16 %v879
  %v2769 = vunpack.c.h.bf16 %v879
  %v2770 = vunpack.c.l.bf16 %v880
  %v2771 = vunpack.c.h.bf16 %v880
  %v2772 = vunpack.c.l.bf16 %v881
  %v2773 = vunpack.c.h.bf16 %v881
  %v2774 = vunpack.c.l.bf16 %v882
  %v2775 = vunpack.c.h.bf16 %v882
  %v2776 = vunpack.c.l.bf16 %v883
  %v2777 = vunpack.c.h.bf16 %v883
  %v2778 = vunpack.c.l.bf16 %v884
  %v2779 = vunpack.c.h.bf16 %v884
  %v2780 = vunpack.c.l.bf16 %v885
  %v2781 = vunpack.c.h.bf16 %v885
  %v2782 = vunpack.c.l.bf16 %v886
  %v2783 = vunpack.c.h.bf16 %v886
  %v2784 = vunpack.c.l.bf16 %v887
  %v2785 = vunpack.c.h.bf16 %v887
  %v2786 = vunpack.c.l.bf16 %v888
  %v2787 = vunpack.c.h.bf16 %v888
  %v2788 = vunpack.c.l.bf16 %v889
  %v2789 = vunpack.c.h.bf16 %v889
  %v2790 = vunpack.c.l.bf16 %v890
  %v2791 = vunpack.c.h.bf16 %v890
  %v2792 = vunpack.c.l.bf16 %v891
  %v2793 = vunpack.c.h.bf16 %v891
  %v2794 = vunpack.c.l.bf16 %v892
  %v2795 = vunpack.c.h.bf16 %v892
  %v2796 = vunpack.c.l.bf16 %v893
  %v2797 = vunpack.c.h.bf16 %v893
  %v2798 = vunpack.c.l.bf16 %v894
  %v2799 = vunpack.c.h.bf16 %v894
  %v2800 = vunpack.c.l.bf16 %v895
  %v2801 = vunpack.c.h.bf16 %v895
  %v2802 = vunpack.c.l.bf16 %v896
  %v2803 = vunpack.c.h.bf16 %v896
  %v2804 = vunpack.c.l.bf16 %v897
  %v2805 = vunpack.c.h.bf16 %v897
  %v2806 = vunpack.c.l.bf16 %v898
  %v2807 = vunpack.c.h.bf16 %v898
  %v2808 = vunpack.c.l.bf16 %v899
  %v2809 = vunpack.c.h.bf16 %v899
  %v2810 = vunpack.c.l.bf16 %v900
  %v2811 = vunpack.c.h.bf16 %v900
  %v2812 = vunpack.c.l.bf16 %v901
  %v2813 = vunpack.c.h.bf16 %v901
  %v2814 = vunpack.c.l.bf16 %v902
  %v2815 = vunpack.c.h.bf16 %v902
  %v2816 = vunpack.c.l.bf16 %v903
  %v2817 = vunpack.c.h.bf16 %v903
  %v2818 = vunpack.c.l.bf16 %v904
  %v2819 = vunpack.c.h.bf16 %v904
  %v2820 = vunpack.c.l.bf16 %v905
  %v2821 = vunpack.c.h.bf16 %v905
  %v2822 = vunpack.c.l.bf16 %v906
  %v2823 = vunpack.c.h.bf16 %v906
  %v2824 = vunpack.c.l.bf16 %v907
  %v2825 = vunpack.c.h.bf16 %v907
  %v2826 = vunpack.c.l.bf16 %v908
  %v2827 = vunpack.c.h.bf16 %v908
  %v2828 = vunpack.c.l.bf16 %v909
  %v2829 = vunpack.c.h.bf16 %v909
  %v2830 = vunpack.c.l.bf16 %v910
  %v2831 = vunpack.c.h.bf16 %v910
  %v2832 = vunpack.c.l.bf16 %v911
  %v2833 = vunpack.c.h.bf16 %v911
  %v2834 = vunpack.c.l.bf16 %v912
  %v2835 = vunpack.c.h.bf16 %v912
  %v2836 = vunpack.c.l.bf16 %v913
  %v2837 = vunpack.c.h.bf16 %v913
  %v2838 = vunpack.c.l.bf16 %v914
  %v2839 = vunpack.c.h.bf16 %v914
  %v2840 = vunpack.c.l.bf16 %v915
  %v2841 = vunpack.c.h.bf16 %v915
  %v2842 = vunpack.c.l.bf16 %v916
  %v2843 = vunpack.c.h.bf16 %v916
  %v2844 = vunpack.c.l.bf16 %v917
  %v2845 = vunpack.c.h.bf16 %v917
  %v2846 = vunpack.c.l.bf16 %v918
  %v2847 = vunpack.c.h.bf16 %v918
  %v2848 = vunpack.c.l.bf16 %v919
  %v2849 = vunpack.c.h.bf16 %v919
  %v2850 = vunpack.c.l.bf16 %v920
  %v2851 = vunpack.c.h.bf16 %v920
  %v2852 = vunpack.c.l.bf16 %v921
  %v2853 = vunpack.c.h.bf16 %v921
  %v2854 = vunpack.c.l.bf16 %v922
  %v2855 = vunpack.c.h.bf16 %v922
  %v2856 = vunpack.c.l.bf16 %v923
  %v2857 = vunpack.c.h.bf16 %v923
  %v2858 = vunpack.c.l.bf16 %v924
  %v2859 = vunpack.c.h.bf16 %v924
  %v2860 = vunpack.c.l.bf16 %v925
  %v2861 = vunpack.c.h.bf16 %v925
  %v2862 = vunpack.c.l.bf16 %v926
  %v2863 = vunpack.c.h.bf16 %v926
  %v2864 = vunpack.c.l.bf16 %v927
  %v2865 = vunpack.c.h.bf16 %v927
  %v2866 = vunpack.c.l.bf16 %v928
  %v2867 = vunpack.c.h.bf16 %v928
  %v2868 = vunpack.c.l.bf16 %v929
  %v2869 = vunpack.c.h.bf16 %v929
  %v2870 = vunpack.c.l.bf16 %v930
  %v2871 = vunpack.c.h.bf16 %v930
  %v2872 = vunpack.c.l.bf16 %v931
  %v2873 = vunpack.c.h.bf16 %v931
  %v2874 = vunpack.c.l.bf16 %v932
  %v2875 = vunpack.c.h.bf16 %v932
  %v2876 = vunpack.c.l.bf16 %v933
  %v2877 = vunpack.c.h.bf16 %v933
  %v2878 = vunpack.c.l.bf16 %v934
  %v2879 = vunpack.c.h.bf16 %v934
  %v2880 = vunpack.c.l.bf16 %v935
  %v2881 = vunpack.c.h.bf16 %v935
  %v2882 = vunpack.c.l.bf16 %v936
  %v2883 = vunpack.c.h.bf16 %v936
  %v2884 = vunpack.c.l.bf16 %v937
  %v2885 = vunpack.c.h.bf16 %v937
  %v2886 = vunpack.c.l.bf16 %v938
  %v2887 = vunpack.c.h.bf16 %v938
  %v2888 = vunpack.c.l.bf16 %v939
  %v2889 = vunpack.c.h.bf16 %v939
  %v2890 = vunpack.c.l.bf16 %v940
  %v2891 = vunpack.c.h.bf16 %v940
  %v2892 = vunpack.c.l.bf16 %v941
  %v2893 = vunpack.c.h.bf16 %v941
  %v2894 = vunpack.c.l.bf16 %v942
  %v2895 = vunpack.c.h.bf16 %v942
  %v2896 = vunpack.c.l.bf16 %v943
  %v2897 = vunpack.c.h.bf16 %v943
  %v2898 = vunpack.c.l.bf16 %v944
  %v2899 = vunpack.c.h.bf16 %v944
  %v2900 = vunpack.c.l.bf16 %v945
  %v2901 = vunpack.c.h.bf16 %v945
  %v2902 = vunpack.c.l.bf16 %v946
  %v2903 = vunpack.c.h.bf16 %v946
  %v2904 = vunpack.c.l.bf16 %v947
  %v2905 = vunpack.c.h.bf16 %v947
  %v2906 = vunpack.c.l.bf16 %v948
  %v2907 = vunpack.c.h.bf16 %v948
  %v2908 = vunpack.c.l.bf16 %v949
  %v2909 = vunpack.c.h.bf16 %v949
  %v2910 = vunpack.c.l.bf16 %v950
  %v2911 = vunpack.c.h.bf16 %v950
  %v2912 = vunpack.c.l.bf16 %v951
  %v2913 = vunpack.c.h.bf16 %v951
  %v2914 = vunpack.c.l.bf16 %v952
  %v2915 = vunpack.c.h.bf16 %v952
  %v2916 = vunpack.c.l.bf16 %v953
  %v2917 = vunpack.c.h.bf16 %v953
  %v2918 = vunpack.c.l.bf16 %v954
  %v2919 = vunpack.c.h.bf16 %v954
  %v2920 = vunpack.c.l.bf16 %v955
  %v2921 = vunpack.c.h.bf16 %v955
  %v2922 = vunpack.c.l.bf16 %v956
  %v2923 = vunpack.c.h.bf16 %v956
  %v2924 = vunpack.c.l.bf16 %v957
  %v2925 = vunpack.c.h.bf16 %v957
  %v2926 = vunpack.c.l.bf16 %v958
  %v2927 = vunpack.c.h.bf16 %v958
  %v2928 = vunpack.c.l.bf16 %v959
  %v2929 = vunpack.c.h.bf16 %v959
  %v2930 = vunpack.c.l.bf16 %v960
  %v2931 = vunpack.c.h.bf16 %v960
  %v2932 = vunpack.c.l.bf16 %v961
  %v2933 = vunpack.c.h.bf16 %v961
  %v2934 = vunpack.c.l.bf16 %v962
  %v2935 = vunpack.c.h.bf16 %v962
  %v2936 = vunpack.c.l.bf16 %v963
  %v2937 = vunpack.c.h.bf16 %v963
  %v2938 = vunpack.c.l.bf16 %v964
  %v2939 = vunpack.c.h.bf16 %v964
  %v2940 = vunpack.c.l.bf16 %v965
  %v2941 = vunpack.c.h.bf16 %v965
  %v2942 = vunpack.c.l.bf16 %v966
  %v2943 = vunpack.c.h.bf16 %v966
  %v2944 = vunpack.c.l.bf16 %v967
  %v2945 = vunpack.c.h.bf16 %v967
  %v2946 = vunpack.c.l.bf16 %v968
  %v2947 = vunpack.c.h.bf16 %v968
  %v2948 = vunpack.c.l.bf16 %v969
  %v2949 = vunpack.c.h.bf16 %v969
  %v2950 = vunpack.c.l.bf16 %v970
  %v2951 = vunpack.c.h.bf16 %v970
  %v2952 = vunpack.c.l.bf16 %v971
  %v2953 = vunpack.c.h.bf16 %v971
  %v2954 = vunpack.c.l.bf16 %v972
  %v2955 = vunpack.c.h.bf16 %v972
  %v2956 = vunpack.c.l.bf16 %v973
  %v2957 = vunpack.c.h.bf16 %v973
  %v2958 = vunpack.c.l.bf16 %v974
  %v2959 = vunpack.c.h.bf16 %v974
  %v2960 = vunpack.c.l.bf16 %v975
  %v2961 = vunpack.c.h.bf16 %v975
  %v2962 = vunpack.c.l.bf16 %v976
  %v2963 = vunpack.c.h.bf16 %v976
  %v2964 = vunpack.c.l.bf16 %v977
  %v2965 = vunpack.c.h.bf16 %v977
  %v2966 = vunpack.c.l.bf16 %v978
  %v2967 = vunpack.c.h.bf16 %v978
  %v2968 = vunpack.c.l.bf16 %v979
  %v2969 = vunpack.c.h.bf16 %v979
  %v2970 = vunpack.c.l.bf16 %v980
  %v2971 = vunpack.c.h.bf16 %v980
  %v2972 = vunpack.c.l.bf16 %v981
  %v2973 = vunpack.c.h.bf16 %v981
  %v2974 = vunpack.c.l.bf16 %v982
  %v2975 = vunpack.c.h.bf16 %v982
  %v2976 = vunpack.c.l.bf16 %v983
  %v2977 = vunpack.c.h.bf16 %v983
  %v2978 = vunpack.c.l.bf16 %v984
  %v2979 = vunpack.c.h.bf16 %v984
  %v2980 = vunpack.c.l.bf16 %v985
  %v2981 = vunpack.c.h.bf16 %v985
  %v2982 = vunpack.c.l.bf16 %v986
  %v2983 = vunpack.c.h.bf16 %v986
  %v2984 = vunpack.c.l.bf16 %v987
  %v2985 = vunpack.c.h.bf16 %v987
  %v2986 = vunpack.c.l.bf16 %v988
  %v2987 = vunpack.c.h.bf16 %v988
  %v2988 = vunpack.c.l.bf16 %v989
  %v2989 = vunpack.c.h.bf16 %v989
  %v2990 = vunpack.c.l.bf16 %v990
  %v2991 = vunpack.c.h.bf16 %v990
  %v2992 = vunpack.c.l.bf16 %v991
  %v2993 = vunpack.c.h.bf16 %v991
  %v2994 = vunpack.c.l.bf16 %v992
  %v2995 = vunpack.c.h.bf16 %v992
  %v2996 = vunpack.c.l.bf16 %v993
  %v2997 = vunpack.c.h.bf16 %v993
  %v2998 = vunpack.c.l.bf16 %v994
  %v2999 = vunpack.c.h.bf16 %v994
  %v3000 = vunpack.c.l.bf16 %v995
  %v3001 = vunpack.c.h.bf16 %v995
  %v3002 = vunpack.c.l.bf16 %v996
  %v3003 = vunpack.c.h.bf16 %v996
  %v3004 = vunpack.c.l.bf16 %v997
  %v3005 = vunpack.c.h.bf16 %v997
  %v3006 = vunpack.c.l.bf16 %v998
  %v3007 = vunpack.c.h.bf16 %v998
  %v3008 = vunpack.c.l.bf16 %v999
  %v3009 = vunpack.c.h.bf16 %v999
  %v3010 = vunpack.c.l.bf16 %v1000
  %v3011 = vunpack.c.h.bf16 %v1000
  %v3012 = vunpack.c.l.bf16 %v1001
  %v3013 = vunpack.c.h.bf16 %v1001
  %v3014 = vunpack.c.l.bf16 %v1002
  %v3015 = vunpack.c.h.bf16 %v1002
  %v3016 = vunpack.c.l.bf16 %v1003
  %v3017 = vunpack.c.h.bf16 %v1003
  %v3018 = vunpack.c.l.bf16 %v1004
  %v3019 = vunpack.c.h.bf16 %v1004
  %v3020 = vunpack.c.l.bf16 %v1005
  %v3021 = vunpack.c.h.bf16 %v1005
  %v3022 = vunpack.c.l.bf16 %v1006
  %v3023 = vunpack.c.h.bf16 %v1006
  %v3024 = vunpack.c.l.bf16 %v1007
  %v3025 = vunpack.c.h.bf16 %v1007
  %v3026 = vunpack.c.l.bf16 %v1008
  %v3027 = vunpack.c.h.bf16 %v1008
  %v3028 = vunpack.c.l.bf16 %v1009
  %v3029 = vunpack.c.h.bf16 %v1009
  %v3030 = vunpack.c.l.bf16 %v1010
  %v3031 = vunpack.c.h.bf16 %v1010
  %v3032 = vunpack.c.l.bf16 %v1011
  %v3033 = vunpack.c.h.bf16 %v1011
  %v3034 = vunpack.c.l.bf16 %v1012
  %v3035 = vunpack.c.h.bf16 %v1012
  %v3036 = vunpack.c.l.bf16 %v1013
  %v3037 = vunpack.c.h.bf16 %v1013
  %v3038 = vunpack.c.l.bf16 %v1014
  %v3039 = vunpack.c.h.bf16 %v1014
  %v3040 = vunpack.c.l.bf16 %v1015
  %v3041 = vunpack.c.h.bf16 %v1015
  %v3042 = vunpack.c.l.bf16 %v1016
  %v3043 = vunpack.c.h.bf16 %v1016
  %v3044 = vunpack.c.l.bf16 %v1017
  %v3045 = vunpack.c.h.bf16 %v1017
  %v3046 = vunpack.c.l.bf16 %v1018
  %v3047 = vunpack.c.h.bf16 %v1018
  %v3048 = vunpack.c.l.bf16 %v1019
  %v3049 = vunpack.c.h.bf16 %v1019
  %v3050 = vunpack.c.l.bf16 %v1020
  %v3051 = vunpack.c.h.bf16 %v1020
  %v3052 = vunpack.c.l.bf16 %v1021
  %v3053 = vunpack.c.h.bf16 %v1021
  %v3054 = vunpack.c.l.bf16 %v1022
  %v3055 = vunpack.c.h.bf16 %v1022
  %v3056 = vunpack.c.l.bf16 %v1023
  %v3057 = vunpack.c.h.bf16 %v1023
  %v3058 = vunpack.c.l.bf16 %v1024
  %v3059 = vunpack.c.h.bf16 %v1024
  %v3060 = vunpack.c.l.bf16 %v1025
  %v3061 = vunpack.c.h.bf16 %v1025
  %v3062 = vunpack.c.l.bf16 %v1026
  %v3063 = vunpack.c.h.bf16 %v1026
  %v3064 = vunpack.c.l.bf16 %v1027
  %v3065 = vunpack.c.h.bf16 %v1027
  %v3066 = vunpack.c.l.bf16 %v1028
  %v3067 = vunpack.c.h.bf16 %v1028
  %v3068 = vunpack.c.l.bf16 %v1029
  %v3069 = vunpack.c.h.bf16 %v1029
  %v3070 = vunpack.c.l.bf16 %v1030
  %v3071 = vunpack.c.h.bf16 %v1030
  %v3072 = vunpack.c.l.bf16 %v1031
  %v3073 = vunpack.c.h.bf16 %v1031
  %v3074 = vunpack.c.l.bf16 %v1032
  %v3075 = vunpack.c.h.bf16 %v1032
  %v3076 = vunpack.c.l.bf16 %v1033
  %v3077 = vunpack.c.h.bf16 %v1033
  %v3078 = vunpack.c.l.bf16 %v1034
  %v3079 = vunpack.c.h.bf16 %v1034
  %v3080 = vunpack.c.l.bf16 %v1035
  %v3081 = vunpack.c.h.bf16 %v1035
  %v3082 = vunpack.c.l.bf16 %v1036
  %v3083 = vunpack.c.h.bf16 %v1036
  %v3084 = vunpack.c.l.bf16 %v1037
  %v3085 = vunpack.c.h.bf16 %v1037
  %v3086 = vadd.f32 %v1038, %v1054
  %v3087 = vadd.f32 %v3086, %v1070
  %v3088 = vadd.f32 %v3087, %v1086
  %v3089 = vadd.f32 %v3088, %v1102
  %v3090 = vadd.f32 %v3089, %v1118
  %v3091 = vadd.f32 %v3090, %v1134
  %v3092 = vadd.f32 %v3091, %v1150
  %v3093 = vrot.slane %v3092, 4
  %v3094 = vadd.f32 %v3092, %v3093
  %v3095 = vrot.slane %v3094, 2
  %v3096 = vadd.f32 %v3094, %v3095
  %v3097 = vrot.slane %v3096, 1
  %v3098 = vadd.f32 %v3096, %v3097
  %v3099 = vadd.f32 %v1039, %v1055
  %v3100 = vadd.f32 %v3099, %v1071
  %v3101 = vadd.f32 %v3100, %v1087
  %v3102 = vadd.f32 %v3101, %v1103
  %v3103 = vadd.f32 %v3102, %v1119
  %v3104 = vadd.f32 %v3103, %v1135
  %v3105 = vadd.f32 %v3104, %v1151
  %v3106 = vrot.slane %v3105, 4
  %v3107 = vadd.f32 %v3105, %v3106
  %v3108 = vrot.slane %v3107, 2
  %v3109 = vadd.f32 %v3107, %v3108
  %v3110 = vrot.slane %v3109, 1
  %v3111 = vadd.f32 %v3109, %v3110
  %v3112 = vadd.f32 %v1040, %v1056
  %v3113 = vadd.f32 %v3112, %v1072
  %v3114 = vadd.f32 %v3113, %v1088
  %v3115 = vadd.f32 %v3114, %v1104
  %v3116 = vadd.f32 %v3115, %v1120
  %v3117 = vadd.f32 %v3116, %v1136
  %v3118 = vadd.f32 %v3117, %v1152
  %v3119 = vrot.slane %v3118, 4
  %v3120 = vadd.f32 %v3118, %v3119
  %v3121 = vrot.slane %v3120, 2
  %v3122 = vadd.f32 %v3120, %v3121
  %v3123 = vrot.slane %v3122, 1
  %v3124 = vadd.f32 %v3122, %v3123
  %v3125 = vadd.f32 %v1041, %v1057
  %v3126 = vadd.f32 %v3125, %v1073
  %v3127 = vadd.f32 %v3126, %v1089
  %v3128 = vadd.f32 %v3127, %v1105
  %v3129 = vadd.f32 %v3128, %v1121
  %v3130 = vadd.f32 %v3129, %v1137
  %v3131 = vadd.f32 %v3130, %v1153
  %v3132 = vrot.slane %v3131, 4
  %v3133 = vadd.f32 %v3131, %v3132
  %v3134 = vrot.slane %v3133, 2
  %v3135 = vadd.f32 %v3133, %v3134
  %v3136 = vrot.slane %v3135, 1
  %v3137 = vadd.f32 %v3135, %v3136
  %v3138 = vadd.f32 %v1042, %v1058
  %v3139 = vadd.f32 %v3138, %v1074
  %v3140 = vadd.f32 %v3139, %v1090
  %v3141 = vadd.f32 %v3140, %v1106
  %v3142 = vadd.f32 %v3141, %v1122
  %v3143 = vadd.f32 %v3142, %v1138
  %v3144 = vadd.f32 %v3143, %v1154
  %v3145 = vrot.slane %v3144, 4
  %v3146 = vadd.f32 %v3144, %v3145
  %v3147 = vrot.slane %v3146, 2
  %v3148 = vadd.f32 %v3146, %v3147
  %v3149 = vrot.slane %v3148, 1
  %v3150 = vadd.f32 %v3148, %v3149
  %v3151 = vadd.f32 %v1043, %v1059
  %v3152 = vadd.f32 %v3151, %v1075
  %v3153 = vadd.f32 %v3152, %v1091
  %v3154 = vadd.f32 %v3153, %v1107
  %v3155 = vadd.f32 %v3154, %v1123
  %v3156 = vadd.f32 %v3155, %v1139
  %v3157 = vadd.f32 %v3156, %v1155
  %v3158 = vrot.slane %v3157, 4
  %v3159 = vadd.f32 %v3157, %v3158
  %v3160 = vrot.slane %v3159, 2
  %v3161 = vadd.f32 %v3159, %v3160
  %v3162 = vrot.slane %v3161, 1
  %v3163 = vadd.f32 %v3161, %v3162
  %v3164 = vadd.f32 %v1044, %v1060
  %v3165 = vadd.f32 %v3164, %v1076
  %v3166 = vadd.f32 %v3165, %v1092
  %v3167 = vadd.f32 %v3166, %v1108
  %v3168 = vadd.f32 %v3167, %v1124
  %v3169 = vadd.f32 %v3168, %v1140
  %v3170 = vadd.f32 %v3169, %v1156
  %v3171 = vrot.slane %v3170, 4
  %v3172 = vadd.f32 %v3170, %v3171
  %v3173 = vrot.slane %v3172, 2
  %v3174 = vadd.f32 %v3172, %v3173
  %v3175 = vrot.slane %v3174, 1
  %v3176 = vadd.f32 %v3174, %v3175
  %v3177 = vadd.f32 %v1045, %v1061
  %v3178 = vadd.f32 %v3177, %v1077
  %v3179 = vadd.f32 %v3178, %v1093
  %v3180 = vadd.f32 %v3179, %v1109
  %v3181 = vadd.f32 %v3180, %v1125
  %v3182 = vadd.f32 %v3181, %v1141
  %v3183 = vadd.f32 %v3182, %v1157
  %v3184 = vrot.slane %v3183, 4
  %v3185 = vadd.f32 %v3183, %v3184
  %v3186 = vrot.slane %v3185, 2
  %v3187 = vadd.f32 %v3185, %v3186
  %v3188 = vrot.slane %v3187, 1
  %v3189 = vadd.f32 %v3187, %v3188
  %v3190 = vadd.f32 %v1046, %v1062
  %v3191 = vadd.f32 %v3190, %v1078
  %v3192 = vadd.f32 %v3191, %v1094
  %v3193 = vadd.f32 %v3192, %v1110
  %v3194 = vadd.f32 %v3193, %v1126
  %v3195 = vadd.f32 %v3194, %v1142
  %v3196 = vadd.f32 %v3195, %v1158
  %v3197 = vrot.slane %v3196, 4
  %v3198 = vadd.f32 %v3196, %v3197
  %v3199 = vrot.slane %v3198, 2
  %v3200 = vadd.f32 %v3198, %v3199
  %v3201 = vrot.slane %v3200, 1
  %v3202 = vadd.f32 %v3200, %v3201
  %v3203 = vadd.f32 %v1047, %v1063
  %v3204 = vadd.f32 %v3203, %v1079
  %v3205 = vadd.f32 %v3204, %v1095
  %v3206 = vadd.f32 %v3205, %v1111
  %v3207 = vadd.f32 %v3206, %v1127
  %v3208 = vadd.f32 %v3207, %v1143
  %v3209 = vadd.f32 %v3208, %v1159
  %v3210 = vrot.slane %v3209, 4
  %v3211 = vadd.f32 %v3209, %v3210
  %v3212 = vrot.slane %v3211, 2
  %v3213 = vadd.f32 %v3211, %v3212
  %v3214 = vrot.slane %v3213, 1
  %v3215 = vadd.f32 %v3213, %v3214
  %v3216 = vadd.f32 %v1048, %v1064
  %v3217 = vadd.f32 %v3216, %v1080
  %v3218 = vadd.f32 %v3217, %v1096
  %v3219 = vadd.f32 %v3218, %v1112
  %v3220 = vadd.f32 %v3219, %v1128
  %v3221 = vadd.f32 %v3220, %v1144
  %v3222 = vadd.f32 %v3221, %v1160
  %v3223 = vrot.slane %v3222, 4
  %v3224 = vadd.f32 %v3222, %v3223
  %v3225 = vrot.slane %v3224, 2
  %v3226 = vadd.f32 %v3224, %v3225
  %v3227 = vrot.slane %v3226, 1
  %v3228 = vadd.f32 %v3226, %v3227
  %v3229 = vadd.f32 %v1049, %v1065
  %v3230 = vadd.f32 %v3229, %v1081
  %v3231 = vadd.f32 %v3230, %v1097
  %v3232 = vadd.f32 %v3231, %v1113
  %v3233 = vadd.f32 %v3232, %v1129
  %v3234 = vadd.f32 %v3233, %v1145
  %v3235 = vadd.f32 %v3234, %v1161
  %v3236 = vrot.slane %v3235, 4
  %v3237 = vadd.f32 %v3235, %v3236
  %v3238 = vrot.slane %v3237, 2
  %v3239 = vadd.f32 %v3237, %v3238
  %v3240 = vrot.slane %v3239, 1
  %v3241 = vadd.f32 %v3239, %v3240
  %v3242 = vadd.f32 %v1050, %v1066
  %v3243 = vadd.f32 %v3242, %v1082
  %v3244 = vadd.f32 %v3243, %v1098
  %v3245 = vadd.f32 %v3244, %v1114
  %v3246 = vadd.f32 %v3245, %v1130
  %v3247 = vadd.f32 %v3246, %v1146
  %v3248 = vadd.f32 %v3247, %v1162
  %v3249 = vrot.slane %v3248, 4
  %v3250 = vadd.f32 %v3248, %v3249
  %v3251 = vrot.slane %v3250, 2
  %v3252 = vadd.f32 %v3250, %v3251
  %v3253 = vrot.slane %v3252, 1
  %v3254 = vadd.f32 %v3252, %v3253
  %v3255 = vadd.f32 %v1051, %v1067
  %v3256 = vadd.f32 %v3255, %v1083
  %v3257 = vadd.f32 %v3256, %v1099
  %v3258 = vadd.f32 %v3257, %v1115
  %v3259 = vadd.f32 %v3258, %v1131
  %v3260 = vadd.f32 %v3259, %v1147
  %v3261 = vadd.f32 %v3260, %v1163
  %v3262 = vrot.slane %v3261, 4
  %v3263 = vadd.f32 %v3261, %v3262
  %v3264 = vrot.slane %v3263, 2
  %v3265 = vadd.f32 %v3263, %v3264
  %v3266 = vrot.slane %v3265, 1
  %v3267 = vadd.f32 %v3265, %v3266
  %v3268 = vadd.f32 %v1052, %v1068
  %v3269 = vadd.f32 %v3268, %v1084
  %v3270 = vadd.f32 %v3269, %v1100
  %v3271 = vadd.f32 %v3270, %v1116
  %v3272 = vadd.f32 %v3271, %v1132
  %v3273 = vadd.f32 %v3272, %v1148
  %v3274 = vadd.f32 %v3273, %v1164
  %v3275 = vrot.slane %v3274, 4
  %v3276 = vadd.f32 %v3274, %v3275
  %v3277 = vrot.slane %v3276, 2
  %v3278 = vadd.f32 %v3276, %v3277
  %v3279 = vrot.slane %v3278, 1
  %v3280 = vadd.f32 %v3278, %v3279
  %v3281 = vadd.f32 %v1053, %v1069
  %v3282 = vadd.f32 %v3281, %v1085
  %v3283 = vadd.f32 %v3282, %v1101
  %v3284 = vadd.f32 %v3283, %v1117
  %v3285 = vadd.f32 %v3284, %v1133
  %v3286 = vadd.f32 %v3285, %v1149
  %v3287 = vadd.f32 %v3286, %v1165
  %v3288 = vrot.slane %v3287, 4
  %v3289 = vadd.f32 %v3287, %v3288
  %v3290 = vrot.slane %v3289, 2
  %v3291 = vadd.f32 %v3289, %v3290
  %v3292 = vrot.slane %v3291, 1
  %v3293 = vadd.f32 %v3291, %v3292
  %v3294 = vadd.f32 %v1166, %v1182
  %v3295 = vadd.f32 %v3294, %v1198
  %v3296 = vadd.f32 %v3295, %v1214
  %v3297 = vadd.f32 %v3296, %v1230
  %v3298 = vadd.f32 %v3297, %v1246
  %v3299 = vadd.f32 %v3298, %v1262
  %v3300 = vadd.f32 %v3299, %v1278
  %v3301 = vrot.slane %v3300, 4
  %v3302 = vadd.f32 %v3300, %v3301
  %v3303 = vrot.slane %v3302, 2
  %v3304 = vadd.f32 %v3302, %v3303
  %v3305 = vrot.slane %v3304, 1
  %v3306 = vadd.f32 %v3304, %v3305
  %v3307 = vadd.f32 %v1167, %v1183
  %v3308 = vadd.f32 %v3307, %v1199
  %v3309 = vadd.f32 %v3308, %v1215
  %v3310 = vadd.f32 %v3309, %v1231
  %v3311 = vadd.f32 %v3310, %v1247
  %v3312 = vadd.f32 %v3311, %v1263
  %v3313 = vadd.f32 %v3312, %v1279
  %v3314 = vrot.slane %v3313, 4
  %v3315 = vadd.f32 %v3313, %v3314
  %v3316 = vrot.slane %v3315, 2
  %v3317 = vadd.f32 %v3315, %v3316
  %v3318 = vrot.slane %v3317, 1
  %v3319 = vadd.f32 %v3317, %v3318
  %v3320 = vadd.f32 %v1168, %v1184
  %v3321 = vadd.f32 %v3320, %v1200
  %v3322 = vadd.f32 %v3321, %v1216
  %v3323 = vadd.f32 %v3322, %v1232
  %v3324 = vadd.f32 %v3323, %v1248
  %v3325 = vadd.f32 %v3324, %v1264
  %v3326 = vadd.f32 %v3325, %v1280
  %v3327 = vrot.slane %v3326, 4
  %v3328 = vadd.f32 %v3326, %v3327
  %v3329 = vrot.slane %v3328, 2
  %v3330 = vadd.f32 %v3328, %v3329
  %v3331 = vrot.slane %v3330, 1
  %v3332 = vadd.f32 %v3330, %v3331
  %v3333 = vadd.f32 %v1169, %v1185
  %v3334 = vadd.f32 %v3333, %v1201
  %v3335 = vadd.f32 %v3334, %v1217
  %v3336 = vadd.f32 %v3335, %v1233
  %v3337 = vadd.f32 %v3336, %v1249
  %v3338 = vadd.f32 %v3337, %v1265
  %v3339 = vadd.f32 %v3338, %v1281
  %v3340 = vrot.slane %v3339, 4
  %v3341 = vadd.f32 %v3339, %v3340
  %v3342 = vrot.slane %v3341, 2
  %v3343 = vadd.f32 %v3341, %v3342
  %v3344 = vrot.slane %v3343, 1
  %v3345 = vadd.f32 %v3343, %v3344
  %v3346 = vadd.f32 %v1170, %v1186
  %v3347 = vadd.f32 %v3346, %v1202
  %v3348 = vadd.f32 %v3347, %v1218
  %v3349 = vadd.f32 %v3348, %v1234
  %v3350 = vadd.f32 %v3349, %v1250
  %v3351 = vadd.f32 %v3350, %v1266
  %v3352 = vadd.f32 %v3351, %v1282
  %v3353 = vrot.slane %v3352, 4
  %v3354 = vadd.f32 %v3352, %v3353
  %v3355 = vrot.slane %v3354, 2
  %v3356 = vadd.f32 %v3354, %v3355
  %v3357 = vrot.slane %v3356, 1
  %v3358 = vadd.f32 %v3356, %v3357
  %v3359 = vadd.f32 %v1171, %v1187
  %v3360 = vadd.f32 %v3359, %v1203
  %v3361 = vadd.f32 %v3360, %v1219
  %v3362 = vadd.f32 %v3361, %v1235
  %v3363 = vadd.f32 %v3362, %v1251
  %v3364 = vadd.f32 %v3363, %v1267
  %v3365 = vadd.f32 %v3364, %v1283
  %v3366 = vrot.slane %v3365, 4
  %v3367 = vadd.f32 %v3365, %v3366
  %v3368 = vrot.slane %v3367, 2
  %v3369 = vadd.f32 %v3367, %v3368
  %v3370 = vrot.slane %v3369, 1
  %v3371 = vadd.f32 %v3369, %v3370
  %v3372 = vadd.f32 %v1172, %v1188
  %v3373 = vadd.f32 %v3372, %v1204
  %v3374 = vadd.f32 %v3373, %v1220
  %v3375 = vadd.f32 %v3374, %v1236
  %v3376 = vadd.f32 %v3375, %v1252
  %v3377 = vadd.f32 %v3376, %v1268
  %v3378 = vadd.f32 %v3377, %v1284
  %v3379 = vrot.slane %v3378, 4
  %v3380 = vadd.f32 %v3378, %v3379
  %v3381 = vrot.slane %v3380, 2
  %v3382 = vadd.f32 %v3380, %v3381
  %v3383 = vrot.slane %v3382, 1
  %v3384 = vadd.f32 %v3382, %v3383
  %v3385 = vadd.f32 %v1173, %v1189
  %v3386 = vadd.f32 %v3385, %v1205
  %v3387 = vadd.f32 %v3386, %v1221
  %v3388 = vadd.f32 %v3387, %v1237
  %v3389 = vadd.f32 %v3388, %v1253
  %v3390 = vadd.f32 %v3389, %v1269
  %v3391 = vadd.f32 %v3390, %v1285
  %v3392 = vrot.slane %v3391, 4
  %v3393 = vadd.f32 %v3391, %v3392
  %v3394 = vrot.slane %v3393, 2
  %v3395 = vadd.f32 %v3393, %v3394
  %v3396 = vrot.slane %v3395, 1
  %v3397 = vadd.f32 %v3395, %v3396
  %v3398 = vadd.f32 %v1174, %v1190
  %v3399 = vadd.f32 %v3398, %v1206
  %v3400 = vadd.f32 %v3399, %v1222
  %v3401 = vadd.f32 %v3400, %v1238
  %v3402 = vadd.f32 %v3401, %v1254
  %v3403 = vadd.f32 %v3402, %v1270
  %v3404 = vadd.f32 %v3403, %v1286
  %v3405 = vrot.slane %v3404, 4
  %v3406 = vadd.f32 %v3404, %v3405
  %v3407 = vrot.slane %v3406, 2
  %v3408 = vadd.f32 %v3406, %v3407
  %v3409 = vrot.slane %v3408, 1
  %v3410 = vadd.f32 %v3408, %v3409
  %v3411 = vadd.f32 %v1175, %v1191
  %v3412 = vadd.f32 %v3411, %v1207
  %v3413 = vadd.f32 %v3412, %v1223
  %v3414 = vadd.f32 %v3413, %v1239
  %v3415 = vadd.f32 %v3414, %v1255
  %v3416 = vadd.f32 %v3415, %v1271
  %v3417 = vadd.f32 %v3416, %v1287
  %v3418 = vrot.slane %v3417, 4
  %v3419 = vadd.f32 %v3417, %v3418
  %v3420 = vrot.slane %v3419, 2
  %v3421 = vadd.f32 %v3419, %v3420
  %v3422 = vrot.slane %v3421, 1
  %v3423 = vadd.f32 %v3421, %v3422
  %v3424 = vadd.f32 %v1176, %v1192
  %v3425 = vadd.f32 %v3424, %v1208
  %v3426 = vadd.f32 %v3425, %v1224
  %v3427 = vadd.f32 %v3426, %v1240
  %v3428 = vadd.f32 %v3427, %v1256
  %v3429 = vadd.f32 %v3428, %v1272
  %v3430 = vadd.f32 %v3429, %v1288
  %v3431 = vrot.slane %v3430, 4
  %v3432 = vadd.f32 %v3430, %v3431
  %v3433 = vrot.slane %v3432, 2
  %v3434 = vadd.f32 %v3432, %v3433
  %v3435 = vrot.slane %v3434, 1
  %v3436 = vadd.f32 %v3434, %v3435
  %v3437 = vadd.f32 %v1177, %v1193
  %v3438 = vadd.f32 %v3437, %v1209
  %v3439 = vadd.f32 %v3438, %v1225
  %v3440 = vadd.f32 %v3439, %v1241
  %v3441 = vadd.f32 %v3440, %v1257
  %v3442 = vadd.f32 %v3441, %v1273
  %v3443 = vadd.f32 %v3442, %v1289
  %v3444 = vrot.slane %v3443, 4
  %v3445 = vadd.f32 %v3443, %v3444
  %v3446 = vrot.slane %v3445, 2
  %v3447 = vadd.f32 %v3445, %v3446
  %v3448 = vrot.slane %v3447, 1
  %v3449 = vadd.f32 %v3447, %v3448
  %v3450 = vadd.f32 %v1178, %v1194
  %v3451 = vadd.f32 %v3450, %v1210
  %v3452 = vadd.f32 %v3451, %v1226
  %v3453 = vadd.f32 %v3452, %v1242
  %v3454 = vadd.f32 %v3453, %v1258
  %v3455 = vadd.f32 %v3454, %v1274
  %v3456 = vadd.f32 %v3455, %v1290
  %v3457 = vrot.slane %v3456, 4
  %v3458 = vadd.f32 %v3456, %v3457
  %v3459 = vrot.slane %v3458, 2
  %v3460 = vadd.f32 %v3458, %v3459
  %v3461 = vrot.slane %v3460, 1
  %v3462 = vadd.f32 %v3460, %v3461
  %v3463 = vadd.f32 %v1179, %v1195
  %v3464 = vadd.f32 %v3463, %v1211
  %v3465 = vadd.f32 %v3464, %v1227
  %v3466 = vadd.f32 %v3465, %v1243
  %v3467 = vadd.f32 %v3466, %v1259
  %v3468 = vadd.f32 %v3467, %v1275
  %v3469 = vadd.f32 %v3468, %v1291
  %v3470 = vrot.slane %v3469, 4
  %v3471 = vadd.f32 %v3469, %v3470
  %v3472 = vrot.slane %v3471, 2
  %v3473 = vadd.f32 %v3471, %v3472
  %v3474 = vrot.slane %v3473, 1
  %v3475 = vadd.f32 %v3473, %v3474
  %v3476 = vadd.f32 %v1180, %v1196
  %v3477 = vadd.f32 %v3476, %v1212
  %v3478 = vadd.f32 %v3477, %v1228
  %v3479 = vadd.f32 %v3478, %v1244
  %v3480 = vadd.f32 %v3479, %v1260
  %v3481 = vadd.f32 %v3480, %v1276
  %v3482 = vadd.f32 %v3481, %v1292
  %v3483 = vrot.slane %v3482, 4
  %v3484 = vadd.f32 %v3482, %v3483
  %v3485 = vrot.slane %v3484, 2
  %v3486 = vadd.f32 %v3484, %v3485
  %v3487 = vrot.slane %v3486, 1
  %v3488 = vadd.f32 %v3486, %v3487
  %v3489 = vadd.f32 %v1181, %v1197
  %v3490 = vadd.f32 %v3489, %v1213
  %v3491 = vadd.f32 %v3490, %v1229
  %v3492 = vadd.f32 %v3491, %v1245
  %v3493 = vadd.f32 %v3492, %v1261
  %v3494 = vadd.f32 %v3493, %v1277
  %v3495 = vadd.f32 %v3494, %v1293
  %v3496 = vrot.slane %v3495, 4
  %v3497 = vadd.f32 %v3495, %v3496
  %v3498 = vrot.slane %v3497, 2
  %v3499 = vadd.f32 %v3497, %v3498
  %v3500 = vrot.slane %v3499, 1
  %v3501 = vadd.f32 %v3499, %v3500
  %v3502 = vadd.f32 %v1294, %v1310
  %v3503 = vadd.f32 %v3502, %v1326
  %v3504 = vadd.f32 %v3503, %v1342
  %v3505 = vadd.f32 %v3504, %v1358
  %v3506 = vadd.f32 %v3505, %v1374
  %v3507 = vadd.f32 %v3506, %v1390
  %v3508 = vadd.f32 %v3507, %v1406
  %v3509 = vrot.slane %v3508, 4
  %v3510 = vadd.f32 %v3508, %v3509
  %v3511 = vrot.slane %v3510, 2
  %v3512 = vadd.f32 %v3510, %v3511
  %v3513 = vrot.slane %v3512, 1
  %v3514 = vadd.f32 %v3512, %v3513
  %v3515 = vadd.f32 %v1295, %v1311
  %v3516 = vadd.f32 %v3515, %v1327
  %v3517 = vadd.f32 %v3516, %v1343
  %v3518 = vadd.f32 %v3517, %v1359
  %v3519 = vadd.f32 %v3518, %v1375
  %v3520 = vadd.f32 %v3519, %v1391
  %v3521 = vadd.f32 %v3520, %v1407
  %v3522 = vrot.slane %v3521, 4
  %v3523 = vadd.f32 %v3521, %v3522
  %v3524 = vrot.slane %v3523, 2
  %v3525 = vadd.f32 %v3523, %v3524
  %v3526 = vrot.slane %v3525, 1
  %v3527 = vadd.f32 %v3525, %v3526
  %v3528 = vadd.f32 %v1296, %v1312
  %v3529 = vadd.f32 %v3528, %v1328
  %v3530 = vadd.f32 %v3529, %v1344
  %v3531 = vadd.f32 %v3530, %v1360
  %v3532 = vadd.f32 %v3531, %v1376
  %v3533 = vadd.f32 %v3532, %v1392
  %v3534 = vadd.f32 %v3533, %v1408
  %v3535 = vrot.slane %v3534, 4
  %v3536 = vadd.f32 %v3534, %v3535
  %v3537 = vrot.slane %v3536, 2
  %v3538 = vadd.f32 %v3536, %v3537
  %v3539 = vrot.slane %v3538, 1
  %v3540 = vadd.f32 %v3538, %v3539
  %v3541 = vadd.f32 %v1297, %v1313
  %v3542 = vadd.f32 %v3541, %v1329
  %v3543 = vadd.f32 %v3542, %v1345
  %v3544 = vadd.f32 %v3543, %v1361
  %v3545 = vadd.f32 %v3544, %v1377
  %v3546 = vadd.f32 %v3545, %v1393
  %v3547 = vadd.f32 %v3546, %v1409
  %v3548 = vrot.slane %v3547, 4
  %v3549 = vadd.f32 %v3547, %v3548
  %v3550 = vrot.slane %v3549, 2
  %v3551 = vadd.f32 %v3549, %v3550
  %v3552 = vrot.slane %v3551, 1
  %v3553 = vadd.f32 %v3551, %v3552
  %v3554 = vadd.f32 %v1298, %v1314
  %v3555 = vadd.f32 %v3554, %v1330
  %v3556 = vadd.f32 %v3555, %v1346
  %v3557 = vadd.f32 %v3556, %v1362
  %v3558 = vadd.f32 %v3557, %v1378
  %v3559 = vadd.f32 %v3558, %v1394
  %v3560 = vadd.f32 %v3559, %v1410
  %v3561 = vrot.slane %v3560, 4
  %v3562 = vadd.f32 %v3560, %v3561
  %v3563 = vrot.slane %v3562, 2
  %v3564 = vadd.f32 %v3562, %v3563
  %v3565 = vrot.slane %v3564, 1
  %v3566 = vadd.f32 %v3564, %v3565
  %v3567 = vadd.f32 %v1299, %v1315
  %v3568 = vadd.f32 %v3567, %v1331
  %v3569 = vadd.f32 %v3568, %v1347
  %v3570 = vadd.f32 %v3569, %v1363
  %v3571 = vadd.f32 %v3570, %v1379
  %v3572 = vadd.f32 %v3571, %v1395
  %v3573 = vadd.f32 %v3572, %v1411
  %v3574 = vrot.slane %v3573, 4
  %v3575 = vadd.f32 %v3573, %v3574
  %v3576 = vrot.slane %v3575, 2
  %v3577 = vadd.f32 %v3575, %v3576
  %v3578 = vrot.slane %v3577, 1
  %v3579 = vadd.f32 %v3577, %v3578
  %v3580 = vadd.f32 %v1300, %v1316
  %v3581 = vadd.f32 %v3580, %v1332
  %v3582 = vadd.f32 %v3581, %v1348
  %v3583 = vadd.f32 %v3582, %v1364
  %v3584 = vadd.f32 %v3583, %v1380
  %v3585 = vadd.f32 %v3584, %v1396
  %v3586 = vadd.f32 %v3585, %v1412
  %v3587 = vrot.slane %v3586, 4
  %v3588 = vadd.f32 %v3586, %v3587
  %v3589 = vrot.slane %v3588, 2
  %v3590 = vadd.f32 %v3588, %v3589
  %v3591 = vrot.slane %v3590, 1
  %v3592 = vadd.f32 %v3590, %v3591
  %v3593 = vadd.f32 %v1301, %v1317
  %v3594 = vadd.f32 %v3593, %v1333
  %v3595 = vadd.f32 %v3594, %v1349
  %v3596 = vadd.f32 %v3595, %v1365
  %v3597 = vadd.f32 %v3596, %v1381
  %v3598 = vadd.f32 %v3597, %v1397
  %v3599 = vadd.f32 %v3598, %v1413
  %v3600 = vrot.slane %v3599, 4
  %v3601 = vadd.f32 %v3599, %v3600
  %v3602 = vrot.slane %v3601, 2
  %v3603 = vadd.f32 %v3601, %v3602
  %v3604 = vrot.slane %v3603, 1
  %v3605 = vadd.f32 %v3603, %v3604
  %v3606 = vadd.f32 %v1302, %v1318
  %v3607 = vadd.f32 %v3606, %v1334
  %v3608 = vadd.f32 %v3607, %v1350
  %v3609 = vadd.f32 %v3608, %v1366
  %v3610 = vadd.f32 %v3609, %v1382
  %v3611 = vadd.f32 %v3610, %v1398
  %v3612 = vadd.f32 %v3611, %v1414
  %v3613 = vrot.slane %v3612, 4
  %v3614 = vadd.f32 %v3612, %v3613
  %v3615 = vrot.slane %v3614, 2
  %v3616 = vadd.f32 %v3614, %v3615
  %v3617 = vrot.slane %v3616, 1
  %v3618 = vadd.f32 %v3616, %v3617
  %v3619 = vadd.f32 %v1303, %v1319
  %v3620 = vadd.f32 %v3619, %v1335
  %v3621 = vadd.f32 %v3620, %v1351
  %v3622 = vadd.f32 %v3621, %v1367
  %v3623 = vadd.f32 %v3622, %v1383
  %v3624 = vadd.f32 %v3623, %v1399
  %v3625 = vadd.f32 %v3624, %v1415
  %v3626 = vrot.slane %v3625, 4
  %v3627 = vadd.f32 %v3625, %v3626
  %v3628 = vrot.slane %v3627, 2
  %v3629 = vadd.f32 %v3627, %v3628
  %v3630 = vrot.slane %v3629, 1
  %v3631 = vadd.f32 %v3629, %v3630
  %v3632 = vadd.f32 %v1304, %v1320
  %v3633 = vadd.f32 %v3632, %v1336
  %v3634 = vadd.f32 %v3633, %v1352
  %v3635 = vadd.f32 %v3634, %v1368
  %v3636 = vadd.f32 %v3635, %v1384
  %v3637 = vadd.f32 %v3636, %v1400
  %v3638 = vadd.f32 %v3637, %v1416
  %v3639 = vrot.slane %v3638, 4
  %v3640 = vadd.f32 %v3638, %v3639
  %v3641 = vrot.slane %v3640, 2
  %v3642 = vadd.f32 %v3640, %v3641
  %v3643 = vrot.slane %v3642, 1
  %v3644 = vadd.f32 %v3642, %v3643
  %v3645 = vadd.f32 %v1305, %v1321
  %v3646 = vadd.f32 %v3645, %v1337
  %v3647 = vadd.f32 %v3646, %v1353
  %v3648 = vadd.f32 %v3647, %v1369
  %v3649 = vadd.f32 %v3648, %v1385
  %v3650 = vadd.f32 %v3649, %v1401
  %v3651 = vadd.f32 %v3650, %v1417
  %v3652 = vrot.slane %v3651, 4
  %v3653 = vadd.f32 %v3651, %v3652
  %v3654 = vrot.slane %v3653, 2
  %v3655 = vadd.f32 %v3653, %v3654
  %v3656 = vrot.slane %v3655, 1
  %v3657 = vadd.f32 %v3655, %v3656
  %v3658 = vadd.f32 %v1306, %v1322
  %v3659 = vadd.f32 %v3658, %v1338
  %v3660 = vadd.f32 %v3659, %v1354
  %v3661 = vadd.f32 %v3660, %v1370
  %v3662 = vadd.f32 %v3661, %v1386
  %v3663 = vadd.f32 %v3662, %v1402
  %v3664 = vadd.f32 %v3663, %v1418
  %v3665 = vrot.slane %v3664, 4
  %v3666 = vadd.f32 %v3664, %v3665
  %v3667 = vrot.slane %v3666, 2
  %v3668 = vadd.f32 %v3666, %v3667
  %v3669 = vrot.slane %v3668, 1
  %v3670 = vadd.f32 %v3668, %v3669
  %v3671 = vadd.f32 %v1307, %v1323
  %v3672 = vadd.f32 %v3671, %v1339
  %v3673 = vadd.f32 %v3672, %v1355
  %v3674 = vadd.f32 %v3673, %v1371
  %v3675 = vadd.f32 %v3674, %v1387
  %v3676 = vadd.f32 %v3675, %v1403
  %v3677 = vadd.f32 %v3676, %v1419
  %v3678 = vrot.slane %v3677, 4
  %v3679 = vadd.f32 %v3677, %v3678
  %v3680 = vrot.slane %v3679, 2
  %v3681 = vadd.f32 %v3679, %v3680
  %v3682 = vrot.slane %v3681, 1
  %v3683 = vadd.f32 %v3681, %v3682
  %v3684 = vadd.f32 %v1308, %v1324
  %v3685 = vadd.f32 %v3684, %v1340
  %v3686 = vadd.f32 %v3685, %v1356
  %v3687 = vadd.f32 %v3686, %v1372
  %v3688 = vadd.f32 %v3687, %v1388
  %v3689 = vadd.f32 %v3688, %v1404
  %v3690 = vadd.f32 %v3689, %v1420
  %v3691 = vrot.slane %v3690, 4
  %v3692 = vadd.f32 %v3690, %v3691
  %v3693 = vrot.slane %v3692, 2
  %v3694 = vadd.f32 %v3692, %v3693
  %v3695 = vrot.slane %v3694, 1
  %v3696 = vadd.f32 %v3694, %v3695
  %v3697 = vadd.f32 %v1309, %v1325
  %v3698 = vadd.f32 %v3697, %v1341
  %v3699 = vadd.f32 %v3698, %v1357
  %v3700 = vadd.f32 %v3699, %v1373
  %v3701 = vadd.f32 %v3700, %v1389
  %v3702 = vadd.f32 %v3701, %v1405
  %v3703 = vadd.f32 %v3702, %v1421
  %v3704 = vrot.slane %v3703, 4
  %v3705 = vadd.f32 %v3703, %v3704
  %v3706 = vrot.slane %v3705, 2
  %v3707 = vadd.f32 %v3705, %v3706
  %v3708 = vrot.slane %v3707, 1
  %v3709 = vadd.f32 %v3707, %v3708
  %v3710 = vadd.f32 %v1422, %v1438
  %v3711 = vadd.f32 %v3710, %v1454
  %v3712 = vadd.f32 %v3711, %v1470
  %v3713 = vadd.f32 %v3712, %v1486
  %v3714 = vadd.f32 %v3713, %v1502
  %v3715 = vadd.f32 %v3714, %v1518
  %v3716 = vadd.f32 %v3715, %v1534
  %v3717 = vrot.slane %v3716, 4
  %v3718 = vadd.f32 %v3716, %v3717
  %v3719 = vrot.slane %v3718, 2
  %v3720 = vadd.f32 %v3718, %v3719
  %v3721 = vrot.slane %v3720, 1
  %v3722 = vadd.f32 %v3720, %v3721
  %v3723 = vadd.f32 %v1423, %v1439
  %v3724 = vadd.f32 %v3723, %v1455
  %v3725 = vadd.f32 %v3724, %v1471
  %v3726 = vadd.f32 %v3725, %v1487
  %v3727 = vadd.f32 %v3726, %v1503
  %v3728 = vadd.f32 %v3727, %v1519
  %v3729 = vadd.f32 %v3728, %v1535
  %v3730 = vrot.slane %v3729, 4
  %v3731 = vadd.f32 %v3729, %v3730
  %v3732 = vrot.slane %v3731, 2
  %v3733 = vadd.f32 %v3731, %v3732
  %v3734 = vrot.slane %v3733, 1
  %v3735 = vadd.f32 %v3733, %v3734
  %v3736 = vadd.f32 %v1424, %v1440
  %v3737 = vadd.f32 %v3736, %v1456
  %v3738 = vadd.f32 %v3737, %v1472
  %v3739 = vadd.f32 %v3738, %v1488
  %v3740 = vadd.f32 %v3739, %v1504
  %v3741 = vadd.f32 %v3740, %v1520
  %v3742 = vadd.f32 %v3741, %v1536
  %v3743 = vrot.slane %v3742, 4
  %v3744 = vadd.f32 %v3742, %v3743
  %v3745 = vrot.slane %v3744, 2
  %v3746 = vadd.f32 %v3744, %v3745
  %v3747 = vrot.slane %v3746, 1
  %v3748 = vadd.f32 %v3746, %v3747
  %v3749 = vadd.f32 %v1425, %v1441
  %v3750 = vadd.f32 %v3749, %v1457
  %v3751 = vadd.f32 %v3750, %v1473
  %v3752 = vadd.f32 %v3751, %v1489
  %v3753 = vadd.f32 %v3752, %v1505
  %v3754 = vadd.f32 %v3753, %v1521
  %v3755 = vadd.f32 %v3754, %v1537
  %v3756 = vrot.slane %v3755, 4
  %v3757 = vadd.f32 %v3755, %v3756
  %v3758 = vrot.slane %v3757, 2
  %v3759 = vadd.f32 %v3757, %v3758
  %v3760 = vrot.slane %v3759, 1
  %v3761 = vadd.f32 %v3759, %v3760
  %v3762 = vadd.f32 %v1426, %v1442
  %v3763 = vadd.f32 %v3762, %v1458
  %v3764 = vadd.f32 %v3763, %v1474
  %v3765 = vadd.f32 %v3764, %v1490
  %v3766 = vadd.f32 %v3765, %v1506
  %v3767 = vadd.f32 %v3766, %v1522
  %v3768 = vadd.f32 %v3767, %v1538
  %v3769 = vrot.slane %v3768, 4
  %v3770 = vadd.f32 %v3768, %v3769
  %v3771 = vrot.slane %v3770, 2
  %v3772 = vadd.f32 %v3770, %v3771
  %v3773 = vrot.slane %v3772, 1
  %v3774 = vadd.f32 %v3772, %v3773
  %v3775 = vadd.f32 %v1427, %v1443
  %v3776 = vadd.f32 %v3775, %v1459
  %v3777 = vadd.f32 %v3776, %v1475
  %v3778 = vadd.f32 %v3777, %v1491
  %v3779 = vadd.f32 %v3778, %v1507
  %v3780 = vadd.f32 %v3779, %v1523
  %v3781 = vadd.f32 %v3780, %v1539
  %v3782 = vrot.slane %v3781, 4
  %v3783 = vadd.f32 %v3781, %v3782
  %v3784 = vrot.slane %v3783, 2
  %v3785 = vadd.f32 %v3783, %v3784
  %v3786 = vrot.slane %v3785, 1
  %v3787 = vadd.f32 %v3785, %v3786
  %v3788 = vadd.f32 %v1428, %v1444
  %v3789 = vadd.f32 %v3788, %v1460
  %v3790 = vadd.f32 %v3789, %v1476
  %v3791 = vadd.f32 %v3790, %v1492
  %v3792 = vadd.f32 %v3791, %v1508
  %v3793 = vadd.f32 %v3792, %v1524
  %v3794 = vadd.f32 %v3793, %v1540
  %v3795 = vrot.slane %v3794, 4
  %v3796 = vadd.f32 %v3794, %v3795
  %v3797 = vrot.slane %v3796, 2
  %v3798 = vadd.f32 %v3796, %v3797
  %v3799 = vrot.slane %v3798, 1
  %v3800 = vadd.f32 %v3798, %v3799
  %v3801 = vadd.f32 %v1429, %v1445
  %v3802 = vadd.f32 %v3801, %v1461
  %v3803 = vadd.f32 %v3802, %v1477
  %v3804 = vadd.f32 %v3803, %v1493
  %v3805 = vadd.f32 %v3804, %v1509
  %v3806 = vadd.f32 %v3805, %v1525
  %v3807 = vadd.f32 %v3806, %v1541
  %v3808 = vrot.slane %v3807, 4
  %v3809 = vadd.f32 %v3807, %v3808
  %v3810 = vrot.slane %v3809, 2
  %v3811 = vadd.f32 %v3809, %v3810
  %v3812 = vrot.slane %v3811, 1
  %v3813 = vadd.f32 %v3811, %v3812
  %v3814 = vadd.f32 %v1430, %v1446
  %v3815 = vadd.f32 %v3814, %v1462
  %v3816 = vadd.f32 %v3815, %v1478
  %v3817 = vadd.f32 %v3816, %v1494
  %v3818 = vadd.f32 %v3817, %v1510
  %v3819 = vadd.f32 %v3818, %v1526
  %v3820 = vadd.f32 %v3819, %v1542
  %v3821 = vrot.slane %v3820, 4
  %v3822 = vadd.f32 %v3820, %v3821
  %v3823 = vrot.slane %v3822, 2
  %v3824 = vadd.f32 %v3822, %v3823
  %v3825 = vrot.slane %v3824, 1
  %v3826 = vadd.f32 %v3824, %v3825
  %v3827 = vadd.f32 %v1431, %v1447
  %v3828 = vadd.f32 %v3827, %v1463
  %v3829 = vadd.f32 %v3828, %v1479
  %v3830 = vadd.f32 %v3829, %v1495
  %v3831 = vadd.f32 %v3830, %v1511
  %v3832 = vadd.f32 %v3831, %v1527
  %v3833 = vadd.f32 %v3832, %v1543
  %v3834 = vrot.slane %v3833, 4
  %v3835 = vadd.f32 %v3833, %v3834
  %v3836 = vrot.slane %v3835, 2
  %v3837 = vadd.f32 %v3835, %v3836
  %v3838 = vrot.slane %v3837, 1
  %v3839 = vadd.f32 %v3837, %v3838
  %v3840 = vadd.f32 %v1432, %v1448
  %v3841 = vadd.f32 %v3840, %v1464
  %v3842 = vadd.f32 %v3841, %v1480
  %v3843 = vadd.f32 %v3842, %v1496
  %v3844 = vadd.f32 %v3843, %v1512
  %v3845 = vadd.f32 %v3844, %v1528
  %v3846 = vadd.f32 %v3845, %v1544
  %v3847 = vrot.slane %v3846, 4
  %v3848 = vadd.f32 %v3846, %v3847
  %v3849 = vrot.slane %v3848, 2
  %v3850 = vadd.f32 %v3848, %v3849
  %v3851 = vrot.slane %v3850, 1
  %v3852 = vadd.f32 %v3850, %v3851
  %v3853 = vadd.f32 %v1433, %v1449
  %v3854 = vadd.f32 %v3853, %v1465
  %v3855 = vadd.f32 %v3854, %v1481
  %v3856 = vadd.f32 %v3855, %v1497
  %v3857 = vadd.f32 %v3856, %v1513
  %v3858 = vadd.f32 %v3857, %v1529
  %v3859 = vadd.f32 %v3858, %v1545
  %v3860 = vrot.slane %v3859, 4
  %v3861 = vadd.f32 %v3859, %v3860
  %v3862 = vrot.slane %v3861, 2
  %v3863 = vadd.f32 %v3861, %v3862
  %v3864 = vrot.slane %v3863, 1
  %v3865 = vadd.f32 %v3863, %v3864
  %v3866 = vadd.f32 %v1434, %v1450
  %v3867 = vadd.f32 %v3866, %v1466
  %v3868 = vadd.f32 %v3867, %v1482
  %v3869 = vadd.f32 %v3868, %v1498
  %v3870 = vadd.f32 %v3869, %v1514
  %v3871 = vadd.f32 %v3870, %v1530
  %v3872 = vadd.f32 %v3871, %v1546
  %v3873 = vrot.slane %v3872, 4
  %v3874 = vadd.f32 %v3872, %v3873
  %v3875 = vrot.slane %v3874, 2
  %v3876 = vadd.f32 %v3874, %v3875
  %v3877 = vrot.slane %v3876, 1
  %v3878 = vadd.f32 %v3876, %v3877
  %v3879 = vadd.f32 %v1435, %v1451
  %v3880 = vadd.f32 %v3879, %v1467
  %v3881 = vadd.f32 %v3880, %v1483
  %v3882 = vadd.f32 %v3881, %v1499
  %v3883 = vadd.f32 %v3882, %v1515
  %v3884 = vadd.f32 %v3883, %v1531
  %v3885 = vadd.f32 %v3884, %v1547
  %v3886 = vrot.slane %v3885, 4
  %v3887 = vadd.f32 %v3885, %v3886
  %v3888 = vrot.slane %v3887, 2
  %v3889 = vadd.f32 %v3887, %v3888
  %v3890 = vrot.slane %v3889, 1
  %v3891 = vadd.f32 %v3889, %v3890
  %v3892 = vadd.f32 %v1436, %v1452
  %v3893 = vadd.f32 %v3892, %v1468
  %v3894 = vadd.f32 %v3893, %v1484
  %v3895 = vadd.f32 %v3894, %v1500
  %v3896 = vadd.f32 %v3895, %v1516
  %v3897 = vadd.f32 %v3896, %v1532
  %v3898 = vadd.f32 %v3897, %v1548
  %v3899 = vrot.slane %v3898, 4
  %v3900 = vadd.f32 %v3898, %v3899
  %v3901 = vrot.slane %v3900, 2
  %v3902 = vadd.f32 %v3900, %v3901
  %v3903 = vrot.slane %v3902, 1
  %v3904 = vadd.f32 %v3902, %v3903
  %v3905 = vadd.f32 %v1437, %v1453
  %v3906 = vadd.f32 %v3905, %v1469
  %v3907 = vadd.f32 %v3906, %v1485
  %v3908 = vadd.f32 %v3907, %v1501
  %v3909 = vadd.f32 %v3908, %v1517
  %v3910 = vadd.f32 %v3909, %v1533
  %v3911 = vadd.f32 %v3910, %v1549
  %v3912 = vrot.slane %v3911, 4
  %v3913 = vadd.f32 %v3911, %v3912
  %v3914 = vrot.slane %v3913, 2
  %v3915 = vadd.f32 %v3913, %v3914
  %v3916 = vrot.slane %v3915, 1
  %v3917 = vadd.f32 %v3915, %v3916
  %v3918 = vadd.f32 %v1550, %v1566
  %v3919 = vadd.f32 %v3918, %v1582
  %v3920 = vadd.f32 %v3919, %v1598
  %v3921 = vadd.f32 %v3920, %v1614
  %v3922 = vadd.f32 %v3921, %v1630
  %v3923 = vadd.f32 %v3922, %v1646
  %v3924 = vadd.f32 %v3923, %v1662
  %v3925 = vrot.slane %v3924, 4
  %v3926 = vadd.f32 %v3924, %v3925
  %v3927 = vrot.slane %v3926, 2
  %v3928 = vadd.f32 %v3926, %v3927
  %v3929 = vrot.slane %v3928, 1
  %v3930 = vadd.f32 %v3928, %v3929
  %v3931 = vadd.f32 %v1551, %v1567
  %v3932 = vadd.f32 %v3931, %v1583
  %v3933 = vadd.f32 %v3932, %v1599
  %v3934 = vadd.f32 %v3933, %v1615
  %v3935 = vadd.f32 %v3934, %v1631
  %v3936 = vadd.f32 %v3935, %v1647
  %v3937 = vadd.f32 %v3936, %v1663
  %v3938 = vrot.slane %v3937, 4
  %v3939 = vadd.f32 %v3937, %v3938
  %v3940 = vrot.slane %v3939, 2
  %v3941 = vadd.f32 %v3939, %v3940
  %v3942 = vrot.slane %v3941, 1
  %v3943 = vadd.f32 %v3941, %v3942
  %v3944 = vadd.f32 %v1552, %v1568
  %v3945 = vadd.f32 %v3944, %v1584
  %v3946 = vadd.f32 %v3945, %v1600
  %v3947 = vadd.f32 %v3946, %v1616
  %v3948 = vadd.f32 %v3947, %v1632
  %v3949 = vadd.f32 %v3948, %v1648
  %v3950 = vadd.f32 %v3949, %v1664
  %v3951 = vrot.slane %v3950, 4
  %v3952 = vadd.f32 %v3950, %v3951
  %v3953 = vrot.slane %v3952, 2
  %v3954 = vadd.f32 %v3952, %v3953
  %v3955 = vrot.slane %v3954, 1
  %v3956 = vadd.f32 %v3954, %v3955
  %v3957 = vadd.f32 %v1553, %v1569
  %v3958 = vadd.f32 %v3957, %v1585
  %v3959 = vadd.f32 %v3958, %v1601
  %v3960 = vadd.f32 %v3959, %v1617
  %v3961 = vadd.f32 %v3960, %v1633
  %v3962 = vadd.f32 %v3961, %v1649
  %v3963 = vadd.f32 %v3962, %v1665
  %v3964 = vrot.slane %v3963, 4
  %v3965 = vadd.f32 %v3963, %v3964
  %v3966 = vrot.slane %v3965, 2
  %v3967 = vadd.f32 %v3965, %v3966
  %v3968 = vrot.slane %v3967, 1
  %v3969 = vadd.f32 %v3967, %v3968
  %v3970 = vadd.f32 %v1554, %v1570
  %v3971 = vadd.f32 %v3970, %v1586
  %v3972 = vadd.f32 %v3971, %v1602
  %v3973 = vadd.f32 %v3972, %v1618
  %v3974 = vadd.f32 %v3973, %v1634
  %v3975 = vadd.f32 %v3974, %v1650
  %v3976 = vadd.f32 %v3975, %v1666
  %v3977 = vrot.slane %v3976, 4
  %v3978 = vadd.f32 %v3976, %v3977
  %v3979 = vrot.slane %v3978, 2
  %v3980 = vadd.f32 %v3978, %v3979
  %v3981 = vrot.slane %v3980, 1
  %v3982 = vadd.f32 %v3980, %v3981
  %v3983 = vadd.f32 %v1555, %v1571
  %v3984 = vadd.f32 %v3983, %v1587
  %v3985 = vadd.f32 %v3984, %v1603
  %v3986 = vadd.f32 %v3985, %v1619
  %v3987 = vadd.f32 %v3986, %v1635
  %v3988 = vadd.f32 %v3987, %v1651
  %v3989 = vadd.f32 %v3988, %v1667
  %v3990 = vrot.slane %v3989, 4
  %v3991 = vadd.f32 %v3989, %v3990
  %v3992 = vrot.slane %v3991, 2
  %v3993 = vadd.f32 %v3991, %v3992
  %v3994 = vrot.slane %v3993, 1
  %v3995 = vadd.f32 %v3993, %v3994
  %v3996 = vadd.f32 %v1556, %v1572
  %v3997 = vadd.f32 %v3996, %v1588
  %v3998 = vadd.f32 %v3997, %v1604
  %v3999 = vadd.f32 %v3998, %v1620
  %v4000 = vadd.f32 %v3999, %v1636
  %v4001 = vadd.f32 %v4000, %v1652
  %v4002 = vadd.f32 %v4001, %v1668
  %v4003 = vrot.slane %v4002, 4
  %v4004 = vadd.f32 %v4002, %v4003
  %v4005 = vrot.slane %v4004, 2
  %v4006 = vadd.f32 %v4004, %v4005
  %v4007 = vrot.slane %v4006, 1
  %v4008 = vadd.f32 %v4006, %v4007
  %v4009 = vadd.f32 %v1557, %v1573
  %v4010 = vadd.f32 %v4009, %v1589
  %v4011 = vadd.f32 %v4010, %v1605
  %v4012 = vadd.f32 %v4011, %v1621
  %v4013 = vadd.f32 %v4012, %v1637
  %v4014 = vadd.f32 %v4013, %v1653
  %v4015 = vadd.f32 %v4014, %v1669
  %v4016 = vrot.slane %v4015, 4
  %v4017 = vadd.f32 %v4015, %v4016
  %v4018 = vrot.slane %v4017, 2
  %v4019 = vadd.f32 %v4017, %v4018
  %v4020 = vrot.slane %v4019, 1
  %v4021 = vadd.f32 %v4019, %v4020
  %v4022 = vadd.f32 %v1558, %v1574
  %v4023 = vadd.f32 %v4022, %v1590
  %v4024 = vadd.f32 %v4023, %v1606
  %v4025 = vadd.f32 %v4024, %v1622
  %v4026 = vadd.f32 %v4025, %v1638
  %v4027 = vadd.f32 %v4026, %v1654
  %v4028 = vadd.f32 %v4027, %v1670
  %v4029 = vrot.slane %v4028, 4
  %v4030 = vadd.f32 %v4028, %v4029
  %v4031 = vrot.slane %v4030, 2
  %v4032 = vadd.f32 %v4030, %v4031
  %v4033 = vrot.slane %v4032, 1
  %v4034 = vadd.f32 %v4032, %v4033
  %v4035 = vadd.f32 %v1559, %v1575
  %v4036 = vadd.f32 %v4035, %v1591
  %v4037 = vadd.f32 %v4036, %v1607
  %v4038 = vadd.f32 %v4037, %v1623
  %v4039 = vadd.f32 %v4038, %v1639
  %v4040 = vadd.f32 %v4039, %v1655
  %v4041 = vadd.f32 %v4040, %v1671
  %v4042 = vrot.slane %v4041, 4
  %v4043 = vadd.f32 %v4041, %v4042
  %v4044 = vrot.slane %v4043, 2
  %v4045 = vadd.f32 %v4043, %v4044
  %v4046 = vrot.slane %v4045, 1
  %v4047 = vadd.f32 %v4045, %v4046
  %v4048 = vadd.f32 %v1560, %v1576
  %v4049 = vadd.f32 %v4048, %v1592
  %v4050 = vadd.f32 %v4049, %v1608
  %v4051 = vadd.f32 %v4050, %v1624
  %v4052 = vadd.f32 %v4051, %v1640
  %v4053 = vadd.f32 %v4052, %v1656
  %v4054 = vadd.f32 %v4053, %v1672
  %v4055 = vrot.slane %v4054, 4
  %v4056 = vadd.f32 %v4054, %v4055
  %v4057 = vrot.slane %v4056, 2
  %v4058 = vadd.f32 %v4056, %v4057
  %v4059 = vrot.slane %v4058, 1
  %v4060 = vadd.f32 %v4058, %v4059
  %v4061 = vadd.f32 %v1561, %v1577
  %v4062 = vadd.f32 %v4061, %v1593
  %v4063 = vadd.f32 %v4062, %v1609
  %v4064 = vadd.f32 %v4063, %v1625
  %v4065 = vadd.f32 %v4064, %v1641
  %v4066 = vadd.f32 %v4065, %v1657
  %v4067 = vadd.f32 %v4066, %v1673
  %v4068 = vrot.slane %v4067, 4
  %v4069 = vadd.f32 %v4067, %v4068
  %v4070 = vrot.slane %v4069, 2
  %v4071 = vadd.f32 %v4069, %v4070
  %v4072 = vrot.slane %v4071, 1
  %v4073 = vadd.f32 %v4071, %v4072
  %v4074 = vadd.f32 %v1562, %v1578
  %v4075 = vadd.f32 %v4074, %v1594
  %v4076 = vadd.f32 %v4075, %v1610
  %v4077 = vadd.f32 %v4076, %v1626
  %v4078 = vadd.f32 %v4077, %v1642
  %v4079 = vadd.f32 %v4078, %v1658
  %v4080 = vadd.f32 %v4079, %v1674
  %v4081 = vrot.slane %v4080, 4
  %v4082 = vadd.f32 %v4080, %v4081
  %v4083 = vrot.slane %v4082, 2
  %v4084 = vadd.f32 %v4082, %v4083
  %v4085 = vrot.slane %v4084, 1
  %v4086 = vadd.f32 %v4084, %v4085
  %v4087 = vadd.f32 %v1563, %v1579
  %v4088 = vadd.f32 %v4087, %v1595
  %v4089 = vadd.f32 %v4088, %v1611
  %v4090 = vadd.f32 %v4089, %v1627
  %v4091 = vadd.f32 %v4090, %v1643
  %v4092 = vadd.f32 %v4091, %v1659
  %v4093 = vadd.f32 %v4092, %v1675
  %v4094 = vrot.slane %v4093, 4
  %v4095 = vadd.f32 %v4093, %v4094
  %v4096 = vrot.slane %v4095, 2
  %v4097 = vadd.f32 %v4095, %v4096
  %v4098 = vrot.slane %v4097, 1
  %v4099 = vadd.f32 %v4097, %v4098
  %v4100 = vadd.f32 %v1564, %v1580
  %v4101 = vadd.f32 %v4100, %v1596
  %v4102 = vadd.f32 %v4101, %v1612
  %v4103 = vadd.f32 %v4102, %v1628
  %v4104 = vadd.f32 %v4103, %v1644
  %v4105 = vadd.f32 %v4104, %v1660
  %v4106 = vadd.f32 %v4105, %v1676
  %v4107 = vrot.slane %v4106, 4
  %v4108 = vadd.f32 %v4106, %v4107
  %v4109 = vrot.slane %v4108, 2
  %v4110 = vadd.f32 %v4108, %v4109
  %v4111 = vrot.slane %v4110, 1
  %v4112 = vadd.f32 %v4110, %v4111
  %v4113 = vadd.f32 %v1565, %v1581
  %v4114 = vadd.f32 %v4113, %v1597
  %v4115 = vadd.f32 %v4114, %v1613
  %v4116 = vadd.f32 %v4115, %v1629
  %v4117 = vadd.f32 %v4116, %v1645
  %v4118 = vadd.f32 %v4117, %v1661
  %v4119 = vadd.f32 %v4118, %v1677
  %v4120 = vrot.slane %v4119, 4
  %v4121 = vadd.f32 %v4119, %v4120
  %v4122 = vrot.slane %v4121, 2
  %v4123 = vadd.f32 %v4121, %v4122
  %v4124 = vrot.slane %v4123, 1
  %v4125 = vadd.f32 %v4123, %v4124
  %v4126 = vadd.f32 %v1678, %v1694
  %v4127 = vadd.f32 %v4126, %v1710
  %v4128 = vadd.f32 %v4127, %v1726
  %v4129 = vadd.f32 %v4128, %v1742
  %v4130 = vadd.f32 %v4129, %v1758
  %v4131 = vadd.f32 %v4130, %v1774
  %v4132 = vadd.f32 %v4131, %v1790
  %v4133 = vrot.slane %v4132, 4
  %v4134 = vadd.f32 %v4132, %v4133
  %v4135 = vrot.slane %v4134, 2
  %v4136 = vadd.f32 %v4134, %v4135
  %v4137 = vrot.slane %v4136, 1
  %v4138 = vadd.f32 %v4136, %v4137
  %v4139 = vadd.f32 %v1679, %v1695
  %v4140 = vadd.f32 %v4139, %v1711
  %v4141 = vadd.f32 %v4140, %v1727
  %v4142 = vadd.f32 %v4141, %v1743
  %v4143 = vadd.f32 %v4142, %v1759
  %v4144 = vadd.f32 %v4143, %v1775
  %v4145 = vadd.f32 %v4144, %v1791
  %v4146 = vrot.slane %v4145, 4
  %v4147 = vadd.f32 %v4145, %v4146
  %v4148 = vrot.slane %v4147, 2
  %v4149 = vadd.f32 %v4147, %v4148
  %v4150 = vrot.slane %v4149, 1
  %v4151 = vadd.f32 %v4149, %v4150
  %v4152 = vadd.f32 %v1680, %v1696
  %v4153 = vadd.f32 %v4152, %v1712
  %v4154 = vadd.f32 %v4153, %v1728
  %v4155 = vadd.f32 %v4154, %v1744
  %v4156 = vadd.f32 %v4155, %v1760
  %v4157 = vadd.f32 %v4156, %v1776
  %v4158 = vadd.f32 %v4157, %v1792
  %v4159 = vrot.slane %v4158, 4
  %v4160 = vadd.f32 %v4158, %v4159
  %v4161 = vrot.slane %v4160, 2
  %v4162 = vadd.f32 %v4160, %v4161
  %v4163 = vrot.slane %v4162, 1
  %v4164 = vadd.f32 %v4162, %v4163
  %v4165 = vadd.f32 %v1681, %v1697
  %v4166 = vadd.f32 %v4165, %v1713
  %v4167 = vadd.f32 %v4166, %v1729
  %v4168 = vadd.f32 %v4167, %v1745
  %v4169 = vadd.f32 %v4168, %v1761
  %v4170 = vadd.f32 %v4169, %v1777
  %v4171 = vadd.f32 %v4170, %v1793
  %v4172 = vrot.slane %v4171, 4
  %v4173 = vadd.f32 %v4171, %v4172
  %v4174 = vrot.slane %v4173, 2
  %v4175 = vadd.f32 %v4173, %v4174
  %v4176 = vrot.slane %v4175, 1
  %v4177 = vadd.f32 %v4175, %v4176
  %v4178 = vadd.f32 %v1682, %v1698
  %v4179 = vadd.f32 %v4178, %v1714
  %v4180 = vadd.f32 %v4179, %v1730
  %v4181 = vadd.f32 %v4180, %v1746
  %v4182 = vadd.f32 %v4181, %v1762
  %v4183 = vadd.f32 %v4182, %v1778
  %v4184 = vadd.f32 %v4183, %v1794
  %v4185 = vrot.slane %v4184, 4
  %v4186 = vadd.f32 %v4184, %v4185
  %v4187 = vrot.slane %v4186, 2
  %v4188 = vadd.f32 %v4186, %v4187
  %v4189 = vrot.slane %v4188, 1
  %v4190 = vadd.f32 %v4188, %v4189
  %v4191 = vadd.f32 %v1683, %v1699
  %v4192 = vadd.f32 %v4191, %v1715
  %v4193 = vadd.f32 %v4192, %v1731
  %v4194 = vadd.f32 %v4193, %v1747
  %v4195 = vadd.f32 %v4194, %v1763
  %v4196 = vadd.f32 %v4195, %v1779
  %v4197 = vadd.f32 %v4196, %v1795
  %v4198 = vrot.slane %v4197, 4
  %v4199 = vadd.f32 %v4197, %v4198
  %v4200 = vrot.slane %v4199, 2
  %v4201 = vadd.f32 %v4199, %v4200
  %v4202 = vrot.slane %v4201, 1
  %v4203 = vadd.f32 %v4201, %v4202
  %v4204 = vadd.f32 %v1684, %v1700
  %v4205 = vadd.f32 %v4204, %v1716
  %v4206 = vadd.f32 %v4205, %v1732
  %v4207 = vadd.f32 %v4206, %v1748
  %v4208 = vadd.f32 %v4207, %v1764
  %v4209 = vadd.f32 %v4208, %v1780
  %v4210 = vadd.f32 %v4209, %v1796
  %v4211 = vrot.slane %v4210, 4
  %v4212 = vadd.f32 %v4210, %v4211
  %v4213 = vrot.slane %v4212, 2
  %v4214 = vadd.f32 %v4212, %v4213
  %v4215 = vrot.slane %v4214, 1
  %v4216 = vadd.f32 %v4214, %v4215
  %v4217 = vadd.f32 %v1685, %v1701
  %v4218 = vadd.f32 %v4217, %v1717
  %v4219 = vadd.f32 %v4218, %v1733
  %v4220 = vadd.f32 %v4219, %v1749
  %v4221 = vadd.f32 %v4220, %v1765
  %v4222 = vadd.f32 %v4221, %v1781
  %v4223 = vadd.f32 %v4222, %v1797
  %v4224 = vrot.slane %v4223, 4
  %v4225 = vadd.f32 %v4223, %v4224
  %v4226 = vrot.slane %v4225, 2
  %v4227 = vadd.f32 %v4225, %v4226
  %v4228 = vrot.slane %v4227, 1
  %v4229 = vadd.f32 %v4227, %v4228
  %v4230 = vadd.f32 %v1686, %v1702
  %v4231 = vadd.f32 %v4230, %v1718
  %v4232 = vadd.f32 %v4231, %v1734
  %v4233 = vadd.f32 %v4232, %v1750
  %v4234 = vadd.f32 %v4233, %v1766
  %v4235 = vadd.f32 %v4234, %v1782
  %v4236 = vadd.f32 %v4235, %v1798
  %v4237 = vrot.slane %v4236, 4
  %v4238 = vadd.f32 %v4236, %v4237
  %v4239 = vrot.slane %v4238, 2
  %v4240 = vadd.f32 %v4238, %v4239
  %v4241 = vrot.slane %v4240, 1
  %v4242 = vadd.f32 %v4240, %v4241
  %v4243 = vadd.f32 %v1687, %v1703
  %v4244 = vadd.f32 %v4243, %v1719
  %v4245 = vadd.f32 %v4244, %v1735
  %v4246 = vadd.f32 %v4245, %v1751
  %v4247 = vadd.f32 %v4246, %v1767
  %v4248 = vadd.f32 %v4247, %v1783
  %v4249 = vadd.f32 %v4248, %v1799
  %v4250 = vrot.slane %v4249, 4
  %v4251 = vadd.f32 %v4249, %v4250
  %v4252 = vrot.slane %v4251, 2
  %v4253 = vadd.f32 %v4251, %v4252
  %v4254 = vrot.slane %v4253, 1
  %v4255 = vadd.f32 %v4253, %v4254
  %v4256 = vadd.f32 %v1688, %v1704
  %v4257 = vadd.f32 %v4256, %v1720
  %v4258 = vadd.f32 %v4257, %v1736
  %v4259 = vadd.f32 %v4258, %v1752
  %v4260 = vadd.f32 %v4259, %v1768
  %v4261 = vadd.f32 %v4260, %v1784
  %v4262 = vadd.f32 %v4261, %v1800
  %v4263 = vrot.slane %v4262, 4
  %v4264 = vadd.f32 %v4262, %v4263
  %v4265 = vrot.slane %v4264, 2
  %v4266 = vadd.f32 %v4264, %v4265
  %v4267 = vrot.slane %v4266, 1
  %v4268 = vadd.f32 %v4266, %v4267
  %v4269 = vadd.f32 %v1689, %v1705
  %v4270 = vadd.f32 %v4269, %v1721
  %v4271 = vadd.f32 %v4270, %v1737
  %v4272 = vadd.f32 %v4271, %v1753
  %v4273 = vadd.f32 %v4272, %v1769
  %v4274 = vadd.f32 %v4273, %v1785
  %v4275 = vadd.f32 %v4274, %v1801
  %v4276 = vrot.slane %v4275, 4
  %v4277 = vadd.f32 %v4275, %v4276
  %v4278 = vrot.slane %v4277, 2
  %v4279 = vadd.f32 %v4277, %v4278
  %v4280 = vrot.slane %v4279, 1
  %v4281 = vadd.f32 %v4279, %v4280
  %v4282 = vadd.f32 %v1690, %v1706
  %v4283 = vadd.f32 %v4282, %v1722
  %v4284 = vadd.f32 %v4283, %v1738
  %v4285 = vadd.f32 %v4284, %v1754
  %v4286 = vadd.f32 %v4285, %v1770
  %v4287 = vadd.f32 %v4286, %v1786
  %v4288 = vadd.f32 %v4287, %v1802
  %v4289 = vrot.slane %v4288, 4
  %v4290 = vadd.f32 %v4288, %v4289
  %v4291 = vrot.slane %v4290, 2
  %v4292 = vadd.f32 %v4290, %v4291
  %v4293 = vrot.slane %v4292, 1
  %v4294 = vadd.f32 %v4292, %v4293
  %v4295 = vadd.f32 %v1691, %v1707
  %v4296 = vadd.f32 %v4295, %v1723
  %v4297 = vadd.f32 %v4296, %v1739
  %v4298 = vadd.f32 %v4297, %v1755
  %v4299 = vadd.f32 %v4298, %v1771
  %v4300 = vadd.f32 %v4299, %v1787
  %v4301 = vadd.f32 %v4300, %v1803
  %v4302 = vrot.slane %v4301, 4
  %v4303 = vadd.f32 %v4301, %v4302
  %v4304 = vrot.slane %v4303, 2
  %v4305 = vadd.f32 %v4303, %v4304
  %v4306 = vrot.slane %v4305, 1
  %v4307 = vadd.f32 %v4305, %v4306
  %v4308 = vadd.f32 %v1692, %v1708
  %v4309 = vadd.f32 %v4308, %v1724
  %v4310 = vadd.f32 %v4309, %v1740
  %v4311 = vadd.f32 %v4310, %v1756
  %v4312 = vadd.f32 %v4311, %v1772
  %v4313 = vadd.f32 %v4312, %v1788
  %v4314 = vadd.f32 %v4313, %v1804
  %v4315 = vrot.slane %v4314, 4
  %v4316 = vadd.f32 %v4314, %v4315
  %v4317 = vrot.slane %v4316, 2
  %v4318 = vadd.f32 %v4316, %v4317
  %v4319 = vrot.slane %v4318, 1
  %v4320 = vadd.f32 %v4318, %v4319
  %v4321 = vadd.f32 %v1693, %v1709
  %v4322 = vadd.f32 %v4321, %v1725
  %v4323 = vadd.f32 %v4322, %v1741
  %v4324 = vadd.f32 %v4323, %v1757
  %v4325 = vadd.f32 %v4324, %v1773
  %v4326 = vadd.f32 %v4325, %v1789
  %v4327 = vadd.f32 %v4326, %v1805
  %v4328 = vrot.slane %v4327, 4
  %v4329 = vadd.f32 %v4327, %v4328
  %v4330 = vrot.slane %v4329, 2
  %v4331 = vadd.f32 %v4329, %v4330
  %v4332 = vrot.slane %v4331, 1
  %v4333 = vadd.f32 %v4331, %v4332
  %v4334 = vadd.f32 %v1806, %v1822
  %v4335 = vadd.f32 %v4334, %v1838
  %v4336 = vadd.f32 %v4335, %v1854
  %v4337 = vadd.f32 %v4336, %v1870
  %v4338 = vadd.f32 %v4337, %v1886
  %v4339 = vadd.f32 %v4338, %v1902
  %v4340 = vadd.f32 %v4339, %v1918
  %v4341 = vrot.slane %v4340, 4
  %v4342 = vadd.f32 %v4340, %v4341
  %v4343 = vrot.slane %v4342, 2
  %v4344 = vadd.f32 %v4342, %v4343
  %v4345 = vrot.slane %v4344, 1
  %v4346 = vadd.f32 %v4344, %v4345
  %v4347 = vadd.f32 %v1807, %v1823
  %v4348 = vadd.f32 %v4347, %v1839
  %v4349 = vadd.f32 %v4348, %v1855
  %v4350 = vadd.f32 %v4349, %v1871
  %v4351 = vadd.f32 %v4350, %v1887
  %v4352 = vadd.f32 %v4351, %v1903
  %v4353 = vadd.f32 %v4352, %v1919
  %v4354 = vrot.slane %v4353, 4
  %v4355 = vadd.f32 %v4353, %v4354
  %v4356 = vrot.slane %v4355, 2
  %v4357 = vadd.f32 %v4355, %v4356
  %v4358 = vrot.slane %v4357, 1
  %v4359 = vadd.f32 %v4357, %v4358
  %v4360 = vadd.f32 %v1808, %v1824
  %v4361 = vadd.f32 %v4360, %v1840
  %v4362 = vadd.f32 %v4361, %v1856
  %v4363 = vadd.f32 %v4362, %v1872
  %v4364 = vadd.f32 %v4363, %v1888
  %v4365 = vadd.f32 %v4364, %v1904
  %v4366 = vadd.f32 %v4365, %v1920
  %v4367 = vrot.slane %v4366, 4
  %v4368 = vadd.f32 %v4366, %v4367
  %v4369 = vrot.slane %v4368, 2
  %v4370 = vadd.f32 %v4368, %v4369
  %v4371 = vrot.slane %v4370, 1
  %v4372 = vadd.f32 %v4370, %v4371
  %v4373 = vadd.f32 %v1809, %v1825
  %v4374 = vadd.f32 %v4373, %v1841
  %v4375 = vadd.f32 %v4374, %v1857
  %v4376 = vadd.f32 %v4375, %v1873
  %v4377 = vadd.f32 %v4376, %v1889
  %v4378 = vadd.f32 %v4377, %v1905
  %v4379 = vadd.f32 %v4378, %v1921
  %v4380 = vrot.slane %v4379, 4
  %v4381 = vadd.f32 %v4379, %v4380
  %v4382 = vrot.slane %v4381, 2
  %v4383 = vadd.f32 %v4381, %v4382
  %v4384 = vrot.slane %v4383, 1
  %v4385 = vadd.f32 %v4383, %v4384
  %v4386 = vadd.f32 %v1810, %v1826
  %v4387 = vadd.f32 %v4386, %v1842
  %v4388 = vadd.f32 %v4387, %v1858
  %v4389 = vadd.f32 %v4388, %v1874
  %v4390 = vadd.f32 %v4389, %v1890
  %v4391 = vadd.f32 %v4390, %v1906
  %v4392 = vadd.f32 %v4391, %v1922
  %v4393 = vrot.slane %v4392, 4
  %v4394 = vadd.f32 %v4392, %v4393
  %v4395 = vrot.slane %v4394, 2
  %v4396 = vadd.f32 %v4394, %v4395
  %v4397 = vrot.slane %v4396, 1
  %v4398 = vadd.f32 %v4396, %v4397
  %v4399 = vadd.f32 %v1811, %v1827
  %v4400 = vadd.f32 %v4399, %v1843
  %v4401 = vadd.f32 %v4400, %v1859
  %v4402 = vadd.f32 %v4401, %v1875
  %v4403 = vadd.f32 %v4402, %v1891
  %v4404 = vadd.f32 %v4403, %v1907
  %v4405 = vadd.f32 %v4404, %v1923
  %v4406 = vrot.slane %v4405, 4
  %v4407 = vadd.f32 %v4405, %v4406
  %v4408 = vrot.slane %v4407, 2
  %v4409 = vadd.f32 %v4407, %v4408
  %v4410 = vrot.slane %v4409, 1
  %v4411 = vadd.f32 %v4409, %v4410
  %v4412 = vadd.f32 %v1812, %v1828
  %v4413 = vadd.f32 %v4412, %v1844
  %v4414 = vadd.f32 %v4413, %v1860
  %v4415 = vadd.f32 %v4414, %v1876
  %v4416 = vadd.f32 %v4415, %v1892
  %v4417 = vadd.f32 %v4416, %v1908
  %v4418 = vadd.f32 %v4417, %v1924
  %v4419 = vrot.slane %v4418, 4
  %v4420 = vadd.f32 %v4418, %v4419
  %v4421 = vrot.slane %v4420, 2
  %v4422 = vadd.f32 %v4420, %v4421
  %v4423 = vrot.slane %v4422, 1
  %v4424 = vadd.f32 %v4422, %v4423
  %v4425 = vadd.f32 %v1813, %v1829
  %v4426 = vadd.f32 %v4425, %v1845
  %v4427 = vadd.f32 %v4426, %v1861
  %v4428 = vadd.f32 %v4427, %v1877
  %v4429 = vadd.f32 %v4428, %v1893
  %v4430 = vadd.f32 %v4429, %v1909
  %v4431 = vadd.f32 %v4430, %v1925
  %v4432 = vrot.slane %v4431, 4
  %v4433 = vadd.f32 %v4431, %v4432
  %v4434 = vrot.slane %v4433, 2
  %v4435 = vadd.f32 %v4433, %v4434
  %v4436 = vrot.slane %v4435, 1
  %v4437 = vadd.f32 %v4435, %v4436
  %v4438 = vadd.f32 %v1814, %v1830
  %v4439 = vadd.f32 %v4438, %v1846
  %v4440 = vadd.f32 %v4439, %v1862
  %v4441 = vadd.f32 %v4440, %v1878
  %v4442 = vadd.f32 %v4441, %v1894
  %v4443 = vadd.f32 %v4442, %v1910
  %v4444 = vadd.f32 %v4443, %v1926
  %v4445 = vrot.slane %v4444, 4
  %v4446 = vadd.f32 %v4444, %v4445
  %v4447 = vrot.slane %v4446, 2
  %v4448 = vadd.f32 %v4446, %v4447
  %v4449 = vrot.slane %v4448, 1
  %v4450 = vadd.f32 %v4448, %v4449
  %v4451 = vadd.f32 %v1815, %v1831
  %v4452 = vadd.f32 %v4451, %v1847
  %v4453 = vadd.f32 %v4452, %v1863
  %v4454 = vadd.f32 %v4453, %v1879
  %v4455 = vadd.f32 %v4454, %v1895
  %v4456 = vadd.f32 %v4455, %v1911
  %v4457 = vadd.f32 %v4456, %v1927
  %v4458 = vrot.slane %v4457, 4
  %v4459 = vadd.f32 %v4457, %v4458
  %v4460 = vrot.slane %v4459, 2
  %v4461 = vadd.f32 %v4459, %v4460
  %v4462 = vrot.slane %v4461, 1
  %v4463 = vadd.f32 %v4461, %v4462
  %v4464 = vadd.f32 %v1816, %v1832
  %v4465 = vadd.f32 %v4464, %v1848
  %v4466 = vadd.f32 %v4465, %v1864
  %v4467 = vadd.f32 %v4466, %v1880
  %v4468 = vadd.f32 %v4467, %v1896
  %v4469 = vadd.f32 %v4468, %v1912
  %v4470 = vadd.f32 %v4469, %v1928
  %v4471 = vrot.slane %v4470, 4
  %v4472 = vadd.f32 %v4470, %v4471
  %v4473 = vrot.slane %v4472, 2
  %v4474 = vadd.f32 %v4472, %v4473
  %v4475 = vrot.slane %v4474, 1
  %v4476 = vadd.f32 %v4474, %v4475
  %v4477 = vadd.f32 %v1817, %v1833
  %v4478 = vadd.f32 %v4477, %v1849
  %v4479 = vadd.f32 %v4478, %v1865
  %v4480 = vadd.f32 %v4479, %v1881
  %v4481 = vadd.f32 %v4480, %v1897
  %v4482 = vadd.f32 %v4481, %v1913
  %v4483 = vadd.f32 %v4482, %v1929
  %v4484 = vrot.slane %v4483, 4
  %v4485 = vadd.f32 %v4483, %v4484
  %v4486 = vrot.slane %v4485, 2
  %v4487 = vadd.f32 %v4485, %v4486
  %v4488 = vrot.slane %v4487, 1
  %v4489 = vadd.f32 %v4487, %v4488
  %v4490 = vadd.f32 %v1818, %v1834
  %v4491 = vadd.f32 %v4490, %v1850
  %v4492 = vadd.f32 %v4491, %v1866
  %v4493 = vadd.f32 %v4492, %v1882
  %v4494 = vadd.f32 %v4493, %v1898
  %v4495 = vadd.f32 %v4494, %v1914
  %v4496 = vadd.f32 %v4495, %v1930
  %v4497 = vrot.slane %v4496, 4
  %v4498 = vadd.f32 %v4496, %v4497
  %v4499 = vrot.slane %v4498, 2
  %v4500 = vadd.f32 %v4498, %v4499
  %v4501 = vrot.slane %v4500, 1
  %v4502 = vadd.f32 %v4500, %v4501
  %v4503 = vadd.f32 %v1819, %v1835
  %v4504 = vadd.f32 %v4503, %v1851
  %v4505 = vadd.f32 %v4504, %v1867
  %v4506 = vadd.f32 %v4505, %v1883
  %v4507 = vadd.f32 %v4506, %v1899
  %v4508 = vadd.f32 %v4507, %v1915
  %v4509 = vadd.f32 %v4508, %v1931
  %v4510 = vrot.slane %v4509, 4
  %v4511 = vadd.f32 %v4509, %v4510
  %v4512 = vrot.slane %v4511, 2
  %v4513 = vadd.f32 %v4511, %v4512
  %v4514 = vrot.slane %v4513, 1
  %v4515 = vadd.f32 %v4513, %v4514
  %v4516 = vadd.f32 %v1820, %v1836
  %v4517 = vadd.f32 %v4516, %v1852
  %v4518 = vadd.f32 %v4517, %v1868
  %v4519 = vadd.f32 %v4518, %v1884
  %v4520 = vadd.f32 %v4519, %v1900
  %v4521 = vadd.f32 %v4520, %v1916
  %v4522 = vadd.f32 %v4521, %v1932
  %v4523 = vrot.slane %v4522, 4
  %v4524 = vadd.f32 %v4522, %v4523
  %v4525 = vrot.slane %v4524, 2
  %v4526 = vadd.f32 %v4524, %v4525
  %v4527 = vrot.slane %v4526, 1
  %v4528 = vadd.f32 %v4526, %v4527
  %v4529 = vadd.f32 %v1821, %v1837
  %v4530 = vadd.f32 %v4529, %v1853
  %v4531 = vadd.f32 %v4530, %v1869
  %v4532 = vadd.f32 %v4531, %v1885
  %v4533 = vadd.f32 %v4532, %v1901
  %v4534 = vadd.f32 %v4533, %v1917
  %v4535 = vadd.f32 %v4534, %v1933
  %v4536 = vrot.slane %v4535, 4
  %v4537 = vadd.f32 %v4535, %v4536
  %v4538 = vrot.slane %v4537, 2
  %v4539 = vadd.f32 %v4537, %v4538
  %v4540 = vrot.slane %v4539, 1
  %v4541 = vadd.f32 %v4539, %v4540
  %v4542 = vadd.f32 %v1934, %v1950
  %v4543 = vadd.f32 %v4542, %v1966
  %v4544 = vadd.f32 %v4543, %v1982
  %v4545 = vadd.f32 %v4544, %v1998
  %v4546 = vadd.f32 %v4545, %v2014
  %v4547 = vadd.f32 %v4546, %v2030
  %v4548 = vadd.f32 %v4547, %v2046
  %v4549 = vrot.slane %v4548, 4
  %v4550 = vadd.f32 %v4548, %v4549
  %v4551 = vrot.slane %v4550, 2
  %v4552 = vadd.f32 %v4550, %v4551
  %v4553 = vrot.slane %v4552, 1
  %v4554 = vadd.f32 %v4552, %v4553
  %v4555 = vadd.f32 %v1935, %v1951
  %v4556 = vadd.f32 %v4555, %v1967
  %v4557 = vadd.f32 %v4556, %v1983
  %v4558 = vadd.f32 %v4557, %v1999
  %v4559 = vadd.f32 %v4558, %v2015
  %v4560 = vadd.f32 %v4559, %v2031
  %v4561 = vadd.f32 %v4560, %v2047
  %v4562 = vrot.slane %v4561, 4
  %v4563 = vadd.f32 %v4561, %v4562
  %v4564 = vrot.slane %v4563, 2
  %v4565 = vadd.f32 %v4563, %v4564
  %v4566 = vrot.slane %v4565, 1
  %v4567 = vadd.f32 %v4565, %v4566
  %v4568 = vadd.f32 %v1936, %v1952
  %v4569 = vadd.f32 %v4568, %v1968
  %v4570 = vadd.f32 %v4569, %v1984
  %v4571 = vadd.f32 %v4570, %v2000
  %v4572 = vadd.f32 %v4571, %v2016
  %v4573 = vadd.f32 %v4572, %v2032
  %v4574 = vadd.f32 %v4573, %v2048
  %v4575 = vrot.slane %v4574, 4
  %v4576 = vadd.f32 %v4574, %v4575
  %v4577 = vrot.slane %v4576, 2
  %v4578 = vadd.f32 %v4576, %v4577
  %v4579 = vrot.slane %v4578, 1
  %v4580 = vadd.f32 %v4578, %v4579
  %v4581 = vadd.f32 %v1937, %v1953
  %v4582 = vadd.f32 %v4581, %v1969
  %v4583 = vadd.f32 %v4582, %v1985
  %v4584 = vadd.f32 %v4583, %v2001
  %v4585 = vadd.f32 %v4584, %v2017
  %v4586 = vadd.f32 %v4585, %v2033
  %v4587 = vadd.f32 %v4586, %v2049
  %v4588 = vrot.slane %v4587, 4
  %v4589 = vadd.f32 %v4587, %v4588
  %v4590 = vrot.slane %v4589, 2
  %v4591 = vadd.f32 %v4589, %v4590
  %v4592 = vrot.slane %v4591, 1
  %v4593 = vadd.f32 %v4591, %v4592
  %v4594 = vadd.f32 %v1938, %v1954
  %v4595 = vadd.f32 %v4594, %v1970
  %v4596 = vadd.f32 %v4595, %v1986
  %v4597 = vadd.f32 %v4596, %v2002
  %v4598 = vadd.f32 %v4597, %v2018
  %v4599 = vadd.f32 %v4598, %v2034
  %v4600 = vadd.f32 %v4599, %v2050
  %v4601 = vrot.slane %v4600, 4
  %v4602 = vadd.f32 %v4600, %v4601
  %v4603 = vrot.slane %v4602, 2
  %v4604 = vadd.f32 %v4602, %v4603
  %v4605 = vrot.slane %v4604, 1
  %v4606 = vadd.f32 %v4604, %v4605
  %v4607 = vadd.f32 %v1939, %v1955
  %v4608 = vadd.f32 %v4607, %v1971
  %v4609 = vadd.f32 %v4608, %v1987
  %v4610 = vadd.f32 %v4609, %v2003
  %v4611 = vadd.f32 %v4610, %v2019
  %v4612 = vadd.f32 %v4611, %v2035
  %v4613 = vadd.f32 %v4612, %v2051
  %v4614 = vrot.slane %v4613, 4
  %v4615 = vadd.f32 %v4613, %v4614
  %v4616 = vrot.slane %v4615, 2
  %v4617 = vadd.f32 %v4615, %v4616
  %v4618 = vrot.slane %v4617, 1
  %v4619 = vadd.f32 %v4617, %v4618
  %v4620 = vadd.f32 %v1940, %v1956
  %v4621 = vadd.f32 %v4620, %v1972
  %v4622 = vadd.f32 %v4621, %v1988
  %v4623 = vadd.f32 %v4622, %v2004
  %v4624 = vadd.f32 %v4623, %v2020
  %v4625 = vadd.f32 %v4624, %v2036
  %v4626 = vadd.f32 %v4625, %v2052
  %v4627 = vrot.slane %v4626, 4
  %v4628 = vadd.f32 %v4626, %v4627
  %v4629 = vrot.slane %v4628, 2
  %v4630 = vadd.f32 %v4628, %v4629
  %v4631 = vrot.slane %v4630, 1
  %v4632 = vadd.f32 %v4630, %v4631
  %v4633 = vadd.f32 %v1941, %v1957
  %v4634 = vadd.f32 %v4633, %v1973
  %v4635 = vadd.f32 %v4634, %v1989
  %v4636 = vadd.f32 %v4635, %v2005
  %v4637 = vadd.f32 %v4636, %v2021
  %v4638 = vadd.f32 %v4637, %v2037
  %v4639 = vadd.f32 %v4638, %v2053
  %v4640 = vrot.slane %v4639, 4
  %v4641 = vadd.f32 %v4639, %v4640
  %v4642 = vrot.slane %v4641, 2
  %v4643 = vadd.f32 %v4641, %v4642
  %v4644 = vrot.slane %v4643, 1
  %v4645 = vadd.f32 %v4643, %v4644
  %v4646 = vadd.f32 %v1942, %v1958
  %v4647 = vadd.f32 %v4646, %v1974
  %v4648 = vadd.f32 %v4647, %v1990
  %v4649 = vadd.f32 %v4648, %v2006
  %v4650 = vadd.f32 %v4649, %v2022
  %v4651 = vadd.f32 %v4650, %v2038
  %v4652 = vadd.f32 %v4651, %v2054
  %v4653 = vrot.slane %v4652, 4
  %v4654 = vadd.f32 %v4652, %v4653
  %v4655 = vrot.slane %v4654, 2
  %v4656 = vadd.f32 %v4654, %v4655
  %v4657 = vrot.slane %v4656, 1
  %v4658 = vadd.f32 %v4656, %v4657
  %v4659 = vadd.f32 %v1943, %v1959
  %v4660 = vadd.f32 %v4659, %v1975
  %v4661 = vadd.f32 %v4660, %v1991
  %v4662 = vadd.f32 %v4661, %v2007
  %v4663 = vadd.f32 %v4662, %v2023
  %v4664 = vadd.f32 %v4663, %v2039
  %v4665 = vadd.f32 %v4664, %v2055
  %v4666 = vrot.slane %v4665, 4
  %v4667 = vadd.f32 %v4665, %v4666
  %v4668 = vrot.slane %v4667, 2
  %v4669 = vadd.f32 %v4667, %v4668
  %v4670 = vrot.slane %v4669, 1
  %v4671 = vadd.f32 %v4669, %v4670
  %v4672 = vadd.f32 %v1944, %v1960
  %v4673 = vadd.f32 %v4672, %v1976
  %v4674 = vadd.f32 %v4673, %v1992
  %v4675 = vadd.f32 %v4674, %v2008
  %v4676 = vadd.f32 %v4675, %v2024
  %v4677 = vadd.f32 %v4676, %v2040
  %v4678 = vadd.f32 %v4677, %v2056
  %v4679 = vrot.slane %v4678, 4
  %v4680 = vadd.f32 %v4678, %v4679
  %v4681 = vrot.slane %v4680, 2
  %v4682 = vadd.f32 %v4680, %v4681
  %v4683 = vrot.slane %v4682, 1
  %v4684 = vadd.f32 %v4682, %v4683
  %v4685 = vadd.f32 %v1945, %v1961
  %v4686 = vadd.f32 %v4685, %v1977
  %v4687 = vadd.f32 %v4686, %v1993
  %v4688 = vadd.f32 %v4687, %v2009
  %v4689 = vadd.f32 %v4688, %v2025
  %v4690 = vadd.f32 %v4689, %v2041
  %v4691 = vadd.f32 %v4690, %v2057
  %v4692 = vrot.slane %v4691, 4
  %v4693 = vadd.f32 %v4691, %v4692
  %v4694 = vrot.slane %v4693, 2
  %v4695 = vadd.f32 %v4693, %v4694
  %v4696 = vrot.slane %v4695, 1
  %v4697 = vadd.f32 %v4695, %v4696
  %v4698 = vadd.f32 %v1946, %v1962
  %v4699 = vadd.f32 %v4698, %v1978
  %v4700 = vadd.f32 %v4699, %v1994
  %v4701 = vadd.f32 %v4700, %v2010
  %v4702 = vadd.f32 %v4701, %v2026
  %v4703 = vadd.f32 %v4702, %v2042
  %v4704 = vadd.f32 %v4703, %v2058
  %v4705 = vrot.slane %v4704, 4
  %v4706 = vadd.f32 %v4704, %v4705
  %v4707 = vrot.slane %v4706, 2
  %v4708 = vadd.f32 %v4706, %v4707
  %v4709 = vrot.slane %v4708, 1
  %v4710 = vadd.f32 %v4708, %v4709
  %v4711 = vadd.f32 %v1947, %v1963
  %v4712 = vadd.f32 %v4711, %v1979
  %v4713 = vadd.f32 %v4712, %v1995
  %v4714 = vadd.f32 %v4713, %v2011
  %v4715 = vadd.f32 %v4714, %v2027
  %v4716 = vadd.f32 %v4715, %v2043
  %v4717 = vadd.f32 %v4716, %v2059
  %v4718 = vrot.slane %v4717, 4
  %v4719 = vadd.f32 %v4717, %v4718
  %v4720 = vrot.slane %v4719, 2
  %v4721 = vadd.f32 %v4719, %v4720
  %v4722 = vrot.slane %v4721, 1
  %v4723 = vadd.f32 %v4721, %v4722
  %v4724 = vadd.f32 %v1948, %v1964
  %v4725 = vadd.f32 %v4724, %v1980
  %v4726 = vadd.f32 %v4725, %v1996
  %v4727 = vadd.f32 %v4726, %v2012
  %v4728 = vadd.f32 %v4727, %v2028
  %v4729 = vadd.f32 %v4728, %v2044
  %v4730 = vadd.f32 %v4729, %v2060
  %v4731 = vrot.slane %v4730, 4
  %v4732 = vadd.f32 %v4730, %v4731
  %v4733 = vrot.slane %v4732, 2
  %v4734 = vadd.f32 %v4732, %v4733
  %v4735 = vrot.slane %v4734, 1
  %v4736 = vadd.f32 %v4734, %v4735
  %v4737 = vadd.f32 %v1949, %v1965
  %v4738 = vadd.f32 %v4737, %v1981
  %v4739 = vadd.f32 %v4738, %v1997
  %v4740 = vadd.f32 %v4739, %v2013
  %v4741 = vadd.f32 %v4740, %v2029
  %v4742 = vadd.f32 %v4741, %v2045
  %v4743 = vadd.f32 %v4742, %v2061
  %v4744 = vrot.slane %v4743, 4
  %v4745 = vadd.f32 %v4743, %v4744
  %v4746 = vrot.slane %v4745, 2
  %v4747 = vadd.f32 %v4745, %v4746
  %v4748 = vrot.slane %v4747, 1
  %v4749 = vadd.f32 %v4747, %v4748
  %v4750 = vadd.f32 %v2062, %v2078
  %v4751 = vadd.f32 %v4750, %v2094
  %v4752 = vadd.f32 %v4751, %v2110
  %v4753 = vadd.f32 %v4752, %v2126
  %v4754 = vadd.f32 %v4753, %v2142
  %v4755 = vadd.f32 %v4754, %v2158
  %v4756 = vadd.f32 %v4755, %v2174
  %v4757 = vrot.slane %v4756, 4
  %v4758 = vadd.f32 %v4756, %v4757
  %v4759 = vrot.slane %v4758, 2
  %v4760 = vadd.f32 %v4758, %v4759
  %v4761 = vrot.slane %v4760, 1
  %v4762 = vadd.f32 %v4760, %v4761
  %v4763 = vadd.f32 %v2063, %v2079
  %v4764 = vadd.f32 %v4763, %v2095
  %v4765 = vadd.f32 %v4764, %v2111
  %v4766 = vadd.f32 %v4765, %v2127
  %v4767 = vadd.f32 %v4766, %v2143
  %v4768 = vadd.f32 %v4767, %v2159
  %v4769 = vadd.f32 %v4768, %v2175
  %v4770 = vrot.slane %v4769, 4
  %v4771 = vadd.f32 %v4769, %v4770
  %v4772 = vrot.slane %v4771, 2
  %v4773 = vadd.f32 %v4771, %v4772
  %v4774 = vrot.slane %v4773, 1
  %v4775 = vadd.f32 %v4773, %v4774
  %v4776 = vadd.f32 %v2064, %v2080
  %v4777 = vadd.f32 %v4776, %v2096
  %v4778 = vadd.f32 %v4777, %v2112
  %v4779 = vadd.f32 %v4778, %v2128
  %v4780 = vadd.f32 %v4779, %v2144
  %v4781 = vadd.f32 %v4780, %v2160
  %v4782 = vadd.f32 %v4781, %v2176
  %v4783 = vrot.slane %v4782, 4
  %v4784 = vadd.f32 %v4782, %v4783
  %v4785 = vrot.slane %v4784, 2
  %v4786 = vadd.f32 %v4784, %v4785
  %v4787 = vrot.slane %v4786, 1
  %v4788 = vadd.f32 %v4786, %v4787
  %v4789 = vadd.f32 %v2065, %v2081
  %v4790 = vadd.f32 %v4789, %v2097
  %v4791 = vadd.f32 %v4790, %v2113
  %v4792 = vadd.f32 %v4791, %v2129
  %v4793 = vadd.f32 %v4792, %v2145
  %v4794 = vadd.f32 %v4793, %v2161
  %v4795 = vadd.f32 %v4794, %v2177
  %v4796 = vrot.slane %v4795, 4
  %v4797 = vadd.f32 %v4795, %v4796
  %v4798 = vrot.slane %v4797, 2
  %v4799 = vadd.f32 %v4797, %v4798
  %v4800 = vrot.slane %v4799, 1
  %v4801 = vadd.f32 %v4799, %v4800
  %v4802 = vadd.f32 %v2066, %v2082
  %v4803 = vadd.f32 %v4802, %v2098
  %v4804 = vadd.f32 %v4803, %v2114
  %v4805 = vadd.f32 %v4804, %v2130
  %v4806 = vadd.f32 %v4805, %v2146
  %v4807 = vadd.f32 %v4806, %v2162
  %v4808 = vadd.f32 %v4807, %v2178
  %v4809 = vrot.slane %v4808, 4
  %v4810 = vadd.f32 %v4808, %v4809
  %v4811 = vrot.slane %v4810, 2
  %v4812 = vadd.f32 %v4810, %v4811
  %v4813 = vrot.slane %v4812, 1
  %v4814 = vadd.f32 %v4812, %v4813
  %v4815 = vadd.f32 %v2067, %v2083
  %v4816 = vadd.f32 %v4815, %v2099
  %v4817 = vadd.f32 %v4816, %v2115
  %v4818 = vadd.f32 %v4817, %v2131
  %v4819 = vadd.f32 %v4818, %v2147
  %v4820 = vadd.f32 %v4819, %v2163
  %v4821 = vadd.f32 %v4820, %v2179
  %v4822 = vrot.slane %v4821, 4
  %v4823 = vadd.f32 %v4821, %v4822
  %v4824 = vrot.slane %v4823, 2
  %v4825 = vadd.f32 %v4823, %v4824
  %v4826 = vrot.slane %v4825, 1
  %v4827 = vadd.f32 %v4825, %v4826
  %v4828 = vadd.f32 %v2068, %v2084
  %v4829 = vadd.f32 %v4828, %v2100
  %v4830 = vadd.f32 %v4829, %v2116
  %v4831 = vadd.f32 %v4830, %v2132
  %v4832 = vadd.f32 %v4831, %v2148
  %v4833 = vadd.f32 %v4832, %v2164
  %v4834 = vadd.f32 %v4833, %v2180
  %v4835 = vrot.slane %v4834, 4
  %v4836 = vadd.f32 %v4834, %v4835
  %v4837 = vrot.slane %v4836, 2
  %v4838 = vadd.f32 %v4836, %v4837
  %v4839 = vrot.slane %v4838, 1
  %v4840 = vadd.f32 %v4838, %v4839
  %v4841 = vadd.f32 %v2069, %v2085
  %v4842 = vadd.f32 %v4841, %v2101
  %v4843 = vadd.f32 %v4842, %v2117
  %v4844 = vadd.f32 %v4843, %v2133
  %v4845 = vadd.f32 %v4844, %v2149
  %v4846 = vadd.f32 %v4845, %v2165
  %v4847 = vadd.f32 %v4846, %v2181
  %v4848 = vrot.slane %v4847, 4
  %v4849 = vadd.f32 %v4847, %v4848
  %v4850 = vrot.slane %v4849, 2
  %v4851 = vadd.f32 %v4849, %v4850
  %v4852 = vrot.slane %v4851, 1
  %v4853 = vadd.f32 %v4851, %v4852
  %v4854 = vadd.f32 %v2070, %v2086
  %v4855 = vadd.f32 %v4854, %v2102
  %v4856 = vadd.f32 %v4855, %v2118
  %v4857 = vadd.f32 %v4856, %v2134
  %v4858 = vadd.f32 %v4857, %v2150
  %v4859 = vadd.f32 %v4858, %v2166
  %v4860 = vadd.f32 %v4859, %v2182
  %v4861 = vrot.slane %v4860, 4
  %v4862 = vadd.f32 %v4860, %v4861
  %v4863 = vrot.slane %v4862, 2
  %v4864 = vadd.f32 %v4862, %v4863
  %v4865 = vrot.slane %v4864, 1
  %v4866 = vadd.f32 %v4864, %v4865
  %v4867 = vadd.f32 %v2071, %v2087
  %v4868 = vadd.f32 %v4867, %v2103
  %v4869 = vadd.f32 %v4868, %v2119
  %v4870 = vadd.f32 %v4869, %v2135
  %v4871 = vadd.f32 %v4870, %v2151
  %v4872 = vadd.f32 %v4871, %v2167
  %v4873 = vadd.f32 %v4872, %v2183
  %v4874 = vrot.slane %v4873, 4
  %v4875 = vadd.f32 %v4873, %v4874
  %v4876 = vrot.slane %v4875, 2
  %v4877 = vadd.f32 %v4875, %v4876
  %v4878 = vrot.slane %v4877, 1
  %v4879 = vadd.f32 %v4877, %v4878
  %v4880 = vadd.f32 %v2072, %v2088
  %v4881 = vadd.f32 %v4880, %v2104
  %v4882 = vadd.f32 %v4881, %v2120
  %v4883 = vadd.f32 %v4882, %v2136
  %v4884 = vadd.f32 %v4883, %v2152
  %v4885 = vadd.f32 %v4884, %v2168
  %v4886 = vadd.f32 %v4885, %v2184
  %v4887 = vrot.slane %v4886, 4
  %v4888 = vadd.f32 %v4886, %v4887
  %v4889 = vrot.slane %v4888, 2
  %v4890 = vadd.f32 %v4888, %v4889
  %v4891 = vrot.slane %v4890, 1
  %v4892 = vadd.f32 %v4890, %v4891
  %v4893 = vadd.f32 %v2073, %v2089
  %v4894 = vadd.f32 %v4893, %v2105
  %v4895 = vadd.f32 %v4894, %v2121
  %v4896 = vadd.f32 %v4895, %v2137
  %v4897 = vadd.f32 %v4896, %v2153
  %v4898 = vadd.f32 %v4897, %v2169
  %v4899 = vadd.f32 %v4898, %v2185
  %v4900 = vrot.slane %v4899, 4
  %v4901 = vadd.f32 %v4899, %v4900
  %v4902 = vrot.slane %v4901, 2
  %v4903 = vadd.f32 %v4901, %v4902
  %v4904 = vrot.slane %v4903, 1
  %v4905 = vadd.f32 %v4903, %v4904
  %v4906 = vadd.f32 %v2074, %v2090
  %v4907 = vadd.f32 %v4906, %v2106
  %v4908 = vadd.f32 %v4907, %v2122
  %v4909 = vadd.f32 %v4908, %v2138
  %v4910 = vadd.f32 %v4909, %v2154
  %v4911 = vadd.f32 %v4910, %v2170
  %v4912 = vadd.f32 %v4911, %v2186
  %v4913 = vrot.slane %v4912, 4
  %v4914 = vadd.f32 %v4912, %v4913
  %v4915 = vrot.slane %v4914, 2
  %v4916 = vadd.f32 %v4914, %v4915
  %v4917 = vrot.slane %v4916, 1
  %v4918 = vadd.f32 %v4916, %v4917
  %v4919 = vadd.f32 %v2075, %v2091
  %v4920 = vadd.f32 %v4919, %v2107
  %v4921 = vadd.f32 %v4920, %v2123
  %v4922 = vadd.f32 %v4921, %v2139
  %v4923 = vadd.f32 %v4922, %v2155
  %v4924 = vadd.f32 %v4923, %v2171
  %v4925 = vadd.f32 %v4924, %v2187
  %v4926 = vrot.slane %v4925, 4
  %v4927 = vadd.f32 %v4925, %v4926
  %v4928 = vrot.slane %v4927, 2
  %v4929 = vadd.f32 %v4927, %v4928
  %v4930 = vrot.slane %v4929, 1
  %v4931 = vadd.f32 %v4929, %v4930
  %v4932 = vadd.f32 %v2076, %v2092
  %v4933 = vadd.f32 %v4932, %v2108
  %v4934 = vadd.f32 %v4933, %v2124
  %v4935 = vadd.f32 %v4934, %v2140
  %v4936 = vadd.f32 %v4935, %v2156
  %v4937 = vadd.f32 %v4936, %v2172
  %v4938 = vadd.f32 %v4937, %v2188
  %v4939 = vrot.slane %v4938, 4
  %v4940 = vadd.f32 %v4938, %v4939
  %v4941 = vrot.slane %v4940, 2
  %v4942 = vadd.f32 %v4940, %v4941
  %v4943 = vrot.slane %v4942, 1
  %v4944 = vadd.f32 %v4942, %v4943
  %v4945 = vadd.f32 %v2077, %v2093
  %v4946 = vadd.f32 %v4945, %v2109
  %v4947 = vadd.f32 %v4946, %v2125
  %v4948 = vadd.f32 %v4947, %v2141
  %v4949 = vadd.f32 %v4948, %v2157
  %v4950 = vadd.f32 %v4949, %v2173
  %v4951 = vadd.f32 %v4950, %v2189
  %v4952 = vrot.slane %v4951, 4
  %v4953 = vadd.f32 %v4951, %v4952
  %v4954 = vrot.slane %v4953, 2
  %v4955 = vadd.f32 %v4953, %v4954
  %v4956 = vrot.slane %v4955, 1
  %v4957 = vadd.f32 %v4955, %v4956
  %v4958 = vadd.f32 %v2190, %v2206
  %v4959 = vadd.f32 %v4958, %v2222
  %v4960 = vadd.f32 %v4959, %v2238
  %v4961 = vadd.f32 %v4960, %v2254
  %v4962 = vadd.f32 %v4961, %v2270
  %v4963 = vadd.f32 %v4962, %v2286
  %v4964 = vadd.f32 %v4963, %v2302
  %v4965 = vrot.slane %v4964, 4
  %v4966 = vadd.f32 %v4964, %v4965
  %v4967 = vrot.slane %v4966, 2
  %v4968 = vadd.f32 %v4966, %v4967
  %v4969 = vrot.slane %v4968, 1
  %v4970 = vadd.f32 %v4968, %v4969
  %v4971 = vadd.f32 %v2191, %v2207
  %v4972 = vadd.f32 %v4971, %v2223
  %v4973 = vadd.f32 %v4972, %v2239
  %v4974 = vadd.f32 %v4973, %v2255
  %v4975 = vadd.f32 %v4974, %v2271
  %v4976 = vadd.f32 %v4975, %v2287
  %v4977 = vadd.f32 %v4976, %v2303
  %v4978 = vrot.slane %v4977, 4
  %v4979 = vadd.f32 %v4977, %v4978
  %v4980 = vrot.slane %v4979, 2
  %v4981 = vadd.f32 %v4979, %v4980
  %v4982 = vrot.slane %v4981, 1
  %v4983 = vadd.f32 %v4981, %v4982
  %v4984 = vadd.f32 %v2192, %v2208
  %v4985 = vadd.f32 %v4984, %v2224
  %v4986 = vadd.f32 %v4985, %v2240
  %v4987 = vadd.f32 %v4986, %v2256
  %v4988 = vadd.f32 %v4987, %v2272
  %v4989 = vadd.f32 %v4988, %v2288
  %v4990 = vadd.f32 %v4989, %v2304
  %v4991 = vrot.slane %v4990, 4
  %v4992 = vadd.f32 %v4990, %v4991
  %v4993 = vrot.slane %v4992, 2
  %v4994 = vadd.f32 %v4992, %v4993
  %v4995 = vrot.slane %v4994, 1
  %v4996 = vadd.f32 %v4994, %v4995
  %v4997 = vadd.f32 %v2193, %v2209
  %v4998 = vadd.f32 %v4997, %v2225
  %v4999 = vadd.f32 %v4998, %v2241
  %v5000 = vadd.f32 %v4999, %v2257
  %v5001 = vadd.f32 %v5000, %v2273
  %v5002 = vadd.f32 %v5001, %v2289
  %v5003 = vadd.f32 %v5002, %v2305
  %v5004 = vrot.slane %v5003, 4
  %v5005 = vadd.f32 %v5003, %v5004
  %v5006 = vrot.slane %v5005, 2
  %v5007 = vadd.f32 %v5005, %v5006
  %v5008 = vrot.slane %v5007, 1
  %v5009 = vadd.f32 %v5007, %v5008
  %v5010 = vadd.f32 %v2194, %v2210
  %v5011 = vadd.f32 %v5010, %v2226
  %v5012 = vadd.f32 %v5011, %v2242
  %v5013 = vadd.f32 %v5012, %v2258
  %v5014 = vadd.f32 %v5013, %v2274
  %v5015 = vadd.f32 %v5014, %v2290
  %v5016 = vadd.f32 %v5015, %v2306
  %v5017 = vrot.slane %v5016, 4
  %v5018 = vadd.f32 %v5016, %v5017
  %v5019 = vrot.slane %v5018, 2
  %v5020 = vadd.f32 %v5018, %v5019
  %v5021 = vrot.slane %v5020, 1
  %v5022 = vadd.f32 %v5020, %v5021
  %v5023 = vadd.f32 %v2195, %v2211
  %v5024 = vadd.f32 %v5023, %v2227
  %v5025 = vadd.f32 %v5024, %v2243
  %v5026 = vadd.f32 %v5025, %v2259
  %v5027 = vadd.f32 %v5026, %v2275
  %v5028 = vadd.f32 %v5027, %v2291
  %v5029 = vadd.f32 %v5028, %v2307
  %v5030 = vrot.slane %v5029, 4
  %v5031 = vadd.f32 %v5029, %v5030
  %v5032 = vrot.slane %v5031, 2
  %v5033 = vadd.f32 %v5031, %v5032
  %v5034 = vrot.slane %v5033, 1
  %v5035 = vadd.f32 %v5033, %v5034
  %v5036 = vadd.f32 %v2196, %v2212
  %v5037 = vadd.f32 %v5036, %v2228
  %v5038 = vadd.f32 %v5037, %v2244
  %v5039 = vadd.f32 %v5038, %v2260
  %v5040 = vadd.f32 %v5039, %v2276
  %v5041 = vadd.f32 %v5040, %v2292
  %v5042 = vadd.f32 %v5041, %v2308
  %v5043 = vrot.slane %v5042, 4
  %v5044 = vadd.f32 %v5042, %v5043
  %v5045 = vrot.slane %v5044, 2
  %v5046 = vadd.f32 %v5044, %v5045
  %v5047 = vrot.slane %v5046, 1
  %v5048 = vadd.f32 %v5046, %v5047
  %v5049 = vadd.f32 %v2197, %v2213
  %v5050 = vadd.f32 %v5049, %v2229
  %v5051 = vadd.f32 %v5050, %v2245
  %v5052 = vadd.f32 %v5051, %v2261
  %v5053 = vadd.f32 %v5052, %v2277
  %v5054 = vadd.f32 %v5053, %v2293
  %v5055 = vadd.f32 %v5054, %v2309
  %v5056 = vrot.slane %v5055, 4
  %v5057 = vadd.f32 %v5055, %v5056
  %v5058 = vrot.slane %v5057, 2
  %v5059 = vadd.f32 %v5057, %v5058
  %v5060 = vrot.slane %v5059, 1
  %v5061 = vadd.f32 %v5059, %v5060
  %v5062 = vadd.f32 %v2198, %v2214
  %v5063 = vadd.f32 %v5062, %v2230
  %v5064 = vadd.f32 %v5063, %v2246
  %v5065 = vadd.f32 %v5064, %v2262
  %v5066 = vadd.f32 %v5065, %v2278
  %v5067 = vadd.f32 %v5066, %v2294
  %v5068 = vadd.f32 %v5067, %v2310
  %v5069 = vrot.slane %v5068, 4
  %v5070 = vadd.f32 %v5068, %v5069
  %v5071 = vrot.slane %v5070, 2
  %v5072 = vadd.f32 %v5070, %v5071
  %v5073 = vrot.slane %v5072, 1
  %v5074 = vadd.f32 %v5072, %v5073
  %v5075 = vadd.f32 %v2199, %v2215
  %v5076 = vadd.f32 %v5075, %v2231
  %v5077 = vadd.f32 %v5076, %v2247
  %v5078 = vadd.f32 %v5077, %v2263
  %v5079 = vadd.f32 %v5078, %v2279
  %v5080 = vadd.f32 %v5079, %v2295
  %v5081 = vadd.f32 %v5080, %v2311
  %v5082 = vrot.slane %v5081, 4
  %v5083 = vadd.f32 %v5081, %v5082
  %v5084 = vrot.slane %v5083, 2
  %v5085 = vadd.f32 %v5083, %v5084
  %v5086 = vrot.slane %v5085, 1
  %v5087 = vadd.f32 %v5085, %v5086
  %v5088 = vadd.f32 %v2200, %v2216
  %v5089 = vadd.f32 %v5088, %v2232
  %v5090 = vadd.f32 %v5089, %v2248
  %v5091 = vadd.f32 %v5090, %v2264
  %v5092 = vadd.f32 %v5091, %v2280
  %v5093 = vadd.f32 %v5092, %v2296
  %v5094 = vadd.f32 %v5093, %v2312
  %v5095 = vrot.slane %v5094, 4
  %v5096 = vadd.f32 %v5094, %v5095
  %v5097 = vrot.slane %v5096, 2
  %v5098 = vadd.f32 %v5096, %v5097
  %v5099 = vrot.slane %v5098, 1
  %v5100 = vadd.f32 %v5098, %v5099
  %v5101 = vadd.f32 %v2201, %v2217
  %v5102 = vadd.f32 %v5101, %v2233
  %v5103 = vadd.f32 %v5102, %v2249
  %v5104 = vadd.f32 %v5103, %v2265
  %v5105 = vadd.f32 %v5104, %v2281
  %v5106 = vadd.f32 %v5105, %v2297
  %v5107 = vadd.f32 %v5106, %v2313
  %v5108 = vrot.slane %v5107, 4
  %v5109 = vadd.f32 %v5107, %v5108
  %v5110 = vrot.slane %v5109, 2
  %v5111 = vadd.f32 %v5109, %v5110
  %v5112 = vrot.slane %v5111, 1
  %v5113 = vadd.f32 %v5111, %v5112
  %v5114 = vadd.f32 %v2202, %v2218
  %v5115 = vadd.f32 %v5114, %v2234
  %v5116 = vadd.f32 %v5115, %v2250
  %v5117 = vadd.f32 %v5116, %v2266
  %v5118 = vadd.f32 %v5117, %v2282
  %v5119 = vadd.f32 %v5118, %v2298
  %v5120 = vadd.f32 %v5119, %v2314
  %v5121 = vrot.slane %v5120, 4
  %v5122 = vadd.f32 %v5120, %v5121
  %v5123 = vrot.slane %v5122, 2
  %v5124 = vadd.f32 %v5122, %v5123
  %v5125 = vrot.slane %v5124, 1
  %v5126 = vadd.f32 %v5124, %v5125
  %v5127 = vadd.f32 %v2203, %v2219
  %v5128 = vadd.f32 %v5127, %v2235
  %v5129 = vadd.f32 %v5128, %v2251
  %v5130 = vadd.f32 %v5129, %v2267
  %v5131 = vadd.f32 %v5130, %v2283
  %v5132 = vadd.f32 %v5131, %v2299
  %v5133 = vadd.f32 %v5132, %v2315
  %v5134 = vrot.slane %v5133, 4
  %v5135 = vadd.f32 %v5133, %v5134
  %v5136 = vrot.slane %v5135, 2
  %v5137 = vadd.f32 %v5135, %v5136
  %v5138 = vrot.slane %v5137, 1
  %v5139 = vadd.f32 %v5137, %v5138
  %v5140 = vadd.f32 %v2204, %v2220
  %v5141 = vadd.f32 %v5140, %v2236
  %v5142 = vadd.f32 %v5141, %v2252
  %v5143 = vadd.f32 %v5142, %v2268
  %v5144 = vadd.f32 %v5143, %v2284
  %v5145 = vadd.f32 %v5144, %v2300
  %v5146 = vadd.f32 %v5145, %v2316
  %v5147 = vrot.slane %v5146, 4
  %v5148 = vadd.f32 %v5146, %v5147
  %v5149 = vrot.slane %v5148, 2
  %v5150 = vadd.f32 %v5148, %v5149
  %v5151 = vrot.slane %v5150, 1
  %v5152 = vadd.f32 %v5150, %v5151
  %v5153 = vadd.f32 %v2205, %v2221
  %v5154 = vadd.f32 %v5153, %v2237
  %v5155 = vadd.f32 %v5154, %v2253
  %v5156 = vadd.f32 %v5155, %v2269
  %v5157 = vadd.f32 %v5156, %v2285
  %v5158 = vadd.f32 %v5157, %v2301
  %v5159 = vadd.f32 %v5158, %v2317
  %v5160 = vrot.slane %v5159, 4
  %v5161 = vadd.f32 %v5159, %v5160
  %v5162 = vrot.slane %v5161, 2
  %v5163 = vadd.f32 %v5161, %v5162
  %v5164 = vrot.slane %v5163, 1
  %v5165 = vadd.f32 %v5163, %v5164
  %v5166 = vadd.f32 %v2318, %v2334
  %v5167 = vadd.f32 %v5166, %v2350
  %v5168 = vadd.f32 %v5167, %v2366
  %v5169 = vadd.f32 %v5168, %v2382
  %v5170 = vadd.f32 %v5169, %v2398
  %v5171 = vadd.f32 %v5170, %v2414
  %v5172 = vadd.f32 %v5171, %v2430
  %v5173 = vrot.slane %v5172, 4
  %v5174 = vadd.f32 %v5172, %v5173
  %v5175 = vrot.slane %v5174, 2
  %v5176 = vadd.f32 %v5174, %v5175
  %v5177 = vrot.slane %v5176, 1
  %v5178 = vadd.f32 %v5176, %v5177
  %v5179 = vadd.f32 %v2319, %v2335
  %v5180 = vadd.f32 %v5179, %v2351
  %v5181 = vadd.f32 %v5180, %v2367
  %v5182 = vadd.f32 %v5181, %v2383
  %v5183 = vadd.f32 %v5182, %v2399
  %v5184 = vadd.f32 %v5183, %v2415
  %v5185 = vadd.f32 %v5184, %v2431
  %v5186 = vrot.slane %v5185, 4
  %v5187 = vadd.f32 %v5185, %v5186
  %v5188 = vrot.slane %v5187, 2
  %v5189 = vadd.f32 %v5187, %v5188
  %v5190 = vrot.slane %v5189, 1
  %v5191 = vadd.f32 %v5189, %v5190
  %v5192 = vadd.f32 %v2320, %v2336
  %v5193 = vadd.f32 %v5192, %v2352
  %v5194 = vadd.f32 %v5193, %v2368
  %v5195 = vadd.f32 %v5194, %v2384
  %v5196 = vadd.f32 %v5195, %v2400
  %v5197 = vadd.f32 %v5196, %v2416
  %v5198 = vadd.f32 %v5197, %v2432
  %v5199 = vrot.slane %v5198, 4
  %v5200 = vadd.f32 %v5198, %v5199
  %v5201 = vrot.slane %v5200, 2
  %v5202 = vadd.f32 %v5200, %v5201
  %v5203 = vrot.slane %v5202, 1
  %v5204 = vadd.f32 %v5202, %v5203
  %v5205 = vadd.f32 %v2321, %v2337
  %v5206 = vadd.f32 %v5205, %v2353
  %v5207 = vadd.f32 %v5206, %v2369
  %v5208 = vadd.f32 %v5207, %v2385
  %v5209 = vadd.f32 %v5208, %v2401
  %v5210 = vadd.f32 %v5209, %v2417
  %v5211 = vadd.f32 %v5210, %v2433
  %v5212 = vrot.slane %v5211, 4
  %v5213 = vadd.f32 %v5211, %v5212
  %v5214 = vrot.slane %v5213, 2
  %v5215 = vadd.f32 %v5213, %v5214
  %v5216 = vrot.slane %v5215, 1
  %v5217 = vadd.f32 %v5215, %v5216
  %v5218 = vadd.f32 %v2322, %v2338
  %v5219 = vadd.f32 %v5218, %v2354
  %v5220 = vadd.f32 %v5219, %v2370
  %v5221 = vadd.f32 %v5220, %v2386
  %v5222 = vadd.f32 %v5221, %v2402
  %v5223 = vadd.f32 %v5222, %v2418
  %v5224 = vadd.f32 %v5223, %v2434
  %v5225 = vrot.slane %v5224, 4
  %v5226 = vadd.f32 %v5224, %v5225
  %v5227 = vrot.slane %v5226, 2
  %v5228 = vadd.f32 %v5226, %v5227
  %v5229 = vrot.slane %v5228, 1
  %v5230 = vadd.f32 %v5228, %v5229
  %v5231 = vadd.f32 %v2323, %v2339
  %v5232 = vadd.f32 %v5231, %v2355
  %v5233 = vadd.f32 %v5232, %v2371
  %v5234 = vadd.f32 %v5233, %v2387
  %v5235 = vadd.f32 %v5234, %v2403
  %v5236 = vadd.f32 %v5235, %v2419
  %v5237 = vadd.f32 %v5236, %v2435
  %v5238 = vrot.slane %v5237, 4
  %v5239 = vadd.f32 %v5237, %v5238
  %v5240 = vrot.slane %v5239, 2
  %v5241 = vadd.f32 %v5239, %v5240
  %v5242 = vrot.slane %v5241, 1
  %v5243 = vadd.f32 %v5241, %v5242
  %v5244 = vadd.f32 %v2324, %v2340
  %v5245 = vadd.f32 %v5244, %v2356
  %v5246 = vadd.f32 %v5245, %v2372
  %v5247 = vadd.f32 %v5246, %v2388
  %v5248 = vadd.f32 %v5247, %v2404
  %v5249 = vadd.f32 %v5248, %v2420
  %v5250 = vadd.f32 %v5249, %v2436
  %v5251 = vrot.slane %v5250, 4
  %v5252 = vadd.f32 %v5250, %v5251
  %v5253 = vrot.slane %v5252, 2
  %v5254 = vadd.f32 %v5252, %v5253
  %v5255 = vrot.slane %v5254, 1
  %v5256 = vadd.f32 %v5254, %v5255
  %v5257 = vadd.f32 %v2325, %v2341
  %v5258 = vadd.f32 %v5257, %v2357
  %v5259 = vadd.f32 %v5258, %v2373
  %v5260 = vadd.f32 %v5259, %v2389
  %v5261 = vadd.f32 %v5260, %v2405
  %v5262 = vadd.f32 %v5261, %v2421
  %v5263 = vadd.f32 %v5262, %v2437
  %v5264 = vrot.slane %v5263, 4
  %v5265 = vadd.f32 %v5263, %v5264
  %v5266 = vrot.slane %v5265, 2
  %v5267 = vadd.f32 %v5265, %v5266
  %v5268 = vrot.slane %v5267, 1
  %v5269 = vadd.f32 %v5267, %v5268
  %v5270 = vadd.f32 %v2326, %v2342
  %v5271 = vadd.f32 %v5270, %v2358
  %v5272 = vadd.f32 %v5271, %v2374
  %v5273 = vadd.f32 %v5272, %v2390
  %v5274 = vadd.f32 %v5273, %v2406
  %v5275 = vadd.f32 %v5274, %v2422
  %v5276 = vadd.f32 %v5275, %v2438
  %v5277 = vrot.slane %v5276, 4
  %v5278 = vadd.f32 %v5276, %v5277
  %v5279 = vrot.slane %v5278, 2
  %v5280 = vadd.f32 %v5278, %v5279
  %v5281 = vrot.slane %v5280, 1
  %v5282 = vadd.f32 %v5280, %v5281
  %v5283 = vadd.f32 %v2327, %v2343
  %v5284 = vadd.f32 %v5283, %v2359
  %v5285 = vadd.f32 %v5284, %v2375
  %v5286 = vadd.f32 %v5285, %v2391
  %v5287 = vadd.f32 %v5286, %v2407
  %v5288 = vadd.f32 %v5287, %v2423
  %v5289 = vadd.f32 %v5288, %v2439
  %v5290 = vrot.slane %v5289, 4
  %v5291 = vadd.f32 %v5289, %v5290
  %v5292 = vrot.slane %v5291, 2
  %v5293 = vadd.f32 %v5291, %v5292
  %v5294 = vrot.slane %v5293, 1
  %v5295 = vadd.f32 %v5293, %v5294
  %v5296 = vadd.f32 %v2328, %v2344
  %v5297 = vadd.f32 %v5296, %v2360
  %v5298 = vadd.f32 %v5297, %v2376
  %v5299 = vadd.f32 %v5298, %v2392
  %v5300 = vadd.f32 %v5299, %v2408
  %v5301 = vadd.f32 %v5300, %v2424
  %v5302 = vadd.f32 %v5301, %v2440
  %v5303 = vrot.slane %v5302, 4
  %v5304 = vadd.f32 %v5302, %v5303
  %v5305 = vrot.slane %v5304, 2
  %v5306 = vadd.f32 %v5304, %v5305
  %v5307 = vrot.slane %v5306, 1
  %v5308 = vadd.f32 %v5306, %v5307
  %v5309 = vadd.f32 %v2329, %v2345
  %v5310 = vadd.f32 %v5309, %v2361
  %v5311 = vadd.f32 %v5310, %v2377
  %v5312 = vadd.f32 %v5311, %v2393
  %v5313 = vadd.f32 %v5312, %v2409
  %v5314 = vadd.f32 %v5313, %v2425
  %v5315 = vadd.f32 %v5314, %v2441
  %v5316 = vrot.slane %v5315, 4
  %v5317 = vadd.f32 %v5315, %v5316
  %v5318 = vrot.slane %v5317, 2
  %v5319 = vadd.f32 %v5317, %v5318
  %v5320 = vrot.slane %v5319, 1
  %v5321 = vadd.f32 %v5319, %v5320
  %v5322 = vadd.f32 %v2330, %v2346
  %v5323 = vadd.f32 %v5322, %v2362
  %v5324 = vadd.f32 %v5323, %v2378
  %v5325 = vadd.f32 %v5324, %v2394
  %v5326 = vadd.f32 %v5325, %v2410
  %v5327 = vadd.f32 %v5326, %v2426
  %v5328 = vadd.f32 %v5327, %v2442
  %v5329 = vrot.slane %v5328, 4
  %v5330 = vadd.f32 %v5328, %v5329
  %v5331 = vrot.slane %v5330, 2
  %v5332 = vadd.f32 %v5330, %v5331
  %v5333 = vrot.slane %v5332, 1
  %v5334 = vadd.f32 %v5332, %v5333
  %v5335 = vadd.f32 %v2331, %v2347
  %v5336 = vadd.f32 %v5335, %v2363
  %v5337 = vadd.f32 %v5336, %v2379
  %v5338 = vadd.f32 %v5337, %v2395
  %v5339 = vadd.f32 %v5338, %v2411
  %v5340 = vadd.f32 %v5339, %v2427
  %v5341 = vadd.f32 %v5340, %v2443
  %v5342 = vrot.slane %v5341, 4
  %v5343 = vadd.f32 %v5341, %v5342
  %v5344 = vrot.slane %v5343, 2
  %v5345 = vadd.f32 %v5343, %v5344
  %v5346 = vrot.slane %v5345, 1
  %v5347 = vadd.f32 %v5345, %v5346
  %v5348 = vadd.f32 %v2332, %v2348
  %v5349 = vadd.f32 %v5348, %v2364
  %v5350 = vadd.f32 %v5349, %v2380
  %v5351 = vadd.f32 %v5350, %v2396
  %v5352 = vadd.f32 %v5351, %v2412
  %v5353 = vadd.f32 %v5352, %v2428
  %v5354 = vadd.f32 %v5353, %v2444
  %v5355 = vrot.slane %v5354, 4
  %v5356 = vadd.f32 %v5354, %v5355
  %v5357 = vrot.slane %v5356, 2
  %v5358 = vadd.f32 %v5356, %v5357
  %v5359 = vrot.slane %v5358, 1
  %v5360 = vadd.f32 %v5358, %v5359
  %v5361 = vadd.f32 %v2333, %v2349
  %v5362 = vadd.f32 %v5361, %v2365
  %v5363 = vadd.f32 %v5362, %v2381
  %v5364 = vadd.f32 %v5363, %v2397
  %v5365 = vadd.f32 %v5364, %v2413
  %v5366 = vadd.f32 %v5365, %v2429
  %v5367 = vadd.f32 %v5366, %v2445
  %v5368 = vrot.slane %v5367, 4
  %v5369 = vadd.f32 %v5367, %v5368
  %v5370 = vrot.slane %v5369, 2
  %v5371 = vadd.f32 %v5369, %v5370
  %v5372 = vrot.slane %v5371, 1
  %v5373 = vadd.f32 %v5371, %v5372
  %v5374 = vadd.f32 %v2446, %v2462
  %v5375 = vadd.f32 %v5374, %v2478
  %v5376 = vadd.f32 %v5375, %v2494
  %v5377 = vadd.f32 %v5376, %v2510
  %v5378 = vadd.f32 %v5377, %v2526
  %v5379 = vadd.f32 %v5378, %v2542
  %v5380 = vadd.f32 %v5379, %v2558
  %v5381 = vrot.slane %v5380, 4
  %v5382 = vadd.f32 %v5380, %v5381
  %v5383 = vrot.slane %v5382, 2
  %v5384 = vadd.f32 %v5382, %v5383
  %v5385 = vrot.slane %v5384, 1
  %v5386 = vadd.f32 %v5384, %v5385
  %v5387 = vadd.f32 %v2447, %v2463
  %v5388 = vadd.f32 %v5387, %v2479
  %v5389 = vadd.f32 %v5388, %v2495
  %v5390 = vadd.f32 %v5389, %v2511
  %v5391 = vadd.f32 %v5390, %v2527
  %v5392 = vadd.f32 %v5391, %v2543
  %v5393 = vadd.f32 %v5392, %v2559
  %v5394 = vrot.slane %v5393, 4
  %v5395 = vadd.f32 %v5393, %v5394
  %v5396 = vrot.slane %v5395, 2
  %v5397 = vadd.f32 %v5395, %v5396
  %v5398 = vrot.slane %v5397, 1
  %v5399 = vadd.f32 %v5397, %v5398
  %v5400 = vadd.f32 %v2448, %v2464
  %v5401 = vadd.f32 %v5400, %v2480
  %v5402 = vadd.f32 %v5401, %v2496
  %v5403 = vadd.f32 %v5402, %v2512
  %v5404 = vadd.f32 %v5403, %v2528
  %v5405 = vadd.f32 %v5404, %v2544
  %v5406 = vadd.f32 %v5405, %v2560
  %v5407 = vrot.slane %v5406, 4
  %v5408 = vadd.f32 %v5406, %v5407
  %v5409 = vrot.slane %v5408, 2
  %v5410 = vadd.f32 %v5408, %v5409
  %v5411 = vrot.slane %v5410, 1
  %v5412 = vadd.f32 %v5410, %v5411
  %v5413 = vadd.f32 %v2449, %v2465
  %v5414 = vadd.f32 %v5413, %v2481
  %v5415 = vadd.f32 %v5414, %v2497
  %v5416 = vadd.f32 %v5415, %v2513
  %v5417 = vadd.f32 %v5416, %v2529
  %v5418 = vadd.f32 %v5417, %v2545
  %v5419 = vadd.f32 %v5418, %v2561
  %v5420 = vrot.slane %v5419, 4
  %v5421 = vadd.f32 %v5419, %v5420
  %v5422 = vrot.slane %v5421, 2
  %v5423 = vadd.f32 %v5421, %v5422
  %v5424 = vrot.slane %v5423, 1
  %v5425 = vadd.f32 %v5423, %v5424
  %v5426 = vadd.f32 %v2450, %v2466
  %v5427 = vadd.f32 %v5426, %v2482
  %v5428 = vadd.f32 %v5427, %v2498
  %v5429 = vadd.f32 %v5428, %v2514
  %v5430 = vadd.f32 %v5429, %v2530
  %v5431 = vadd.f32 %v5430, %v2546
  %v5432 = vadd.f32 %v5431, %v2562
  %v5433 = vrot.slane %v5432, 4
  %v5434 = vadd.f32 %v5432, %v5433
  %v5435 = vrot.slane %v5434, 2
  %v5436 = vadd.f32 %v5434, %v5435
  %v5437 = vrot.slane %v5436, 1
  %v5438 = vadd.f32 %v5436, %v5437
  %v5439 = vadd.f32 %v2451, %v2467
  %v5440 = vadd.f32 %v5439, %v2483
  %v5441 = vadd.f32 %v5440, %v2499
  %v5442 = vadd.f32 %v5441, %v2515
  %v5443 = vadd.f32 %v5442, %v2531
  %v5444 = vadd.f32 %v5443, %v2547
  %v5445 = vadd.f32 %v5444, %v2563
  %v5446 = vrot.slane %v5445, 4
  %v5447 = vadd.f32 %v5445, %v5446
  %v5448 = vrot.slane %v5447, 2
  %v5449 = vadd.f32 %v5447, %v5448
  %v5450 = vrot.slane %v5449, 1
  %v5451 = vadd.f32 %v5449, %v5450
  %v5452 = vadd.f32 %v2452, %v2468
  %v5453 = vadd.f32 %v5452, %v2484
  %v5454 = vadd.f32 %v5453, %v2500
  %v5455 = vadd.f32 %v5454, %v2516
  %v5456 = vadd.f32 %v5455, %v2532
  %v5457 = vadd.f32 %v5456, %v2548
  %v5458 = vadd.f32 %v5457, %v2564
  %v5459 = vrot.slane %v5458, 4
  %v5460 = vadd.f32 %v5458, %v5459
  %v5461 = vrot.slane %v5460, 2
  %v5462 = vadd.f32 %v5460, %v5461
  %v5463 = vrot.slane %v5462, 1
  %v5464 = vadd.f32 %v5462, %v5463
  %v5465 = vadd.f32 %v2453, %v2469
  %v5466 = vadd.f32 %v5465, %v2485
  %v5467 = vadd.f32 %v5466, %v2501
  %v5468 = vadd.f32 %v5467, %v2517
  %v5469 = vadd.f32 %v5468, %v2533
  %v5470 = vadd.f32 %v5469, %v2549
  %v5471 = vadd.f32 %v5470, %v2565
  %v5472 = vrot.slane %v5471, 4
  %v5473 = vadd.f32 %v5471, %v5472
  %v5474 = vrot.slane %v5473, 2
  %v5475 = vadd.f32 %v5473, %v5474
  %v5476 = vrot.slane %v5475, 1
  %v5477 = vadd.f32 %v5475, %v5476
  %v5478 = vadd.f32 %v2454, %v2470
  %v5479 = vadd.f32 %v5478, %v2486
  %v5480 = vadd.f32 %v5479, %v2502
  %v5481 = vadd.f32 %v5480, %v2518
  %v5482 = vadd.f32 %v5481, %v2534
  %v5483 = vadd.f32 %v5482, %v2550
  %v5484 = vadd.f32 %v5483, %v2566
  %v5485 = vrot.slane %v5484, 4
  %v5486 = vadd.f32 %v5484, %v5485
  %v5487 = vrot.slane %v5486, 2
  %v5488 = vadd.f32 %v5486, %v5487
  %v5489 = vrot.slane %v5488, 1
  %v5490 = vadd.f32 %v5488, %v5489
  %v5491 = vadd.f32 %v2455, %v2471
  %v5492 = vadd.f32 %v5491, %v2487
  %v5493 = vadd.f32 %v5492, %v2503
  %v5494 = vadd.f32 %v5493, %v2519
  %v5495 = vadd.f32 %v5494, %v2535
  %v5496 = vadd.f32 %v5495, %v2551
  %v5497 = vadd.f32 %v5496, %v2567
  %v5498 = vrot.slane %v5497, 4
  %v5499 = vadd.f32 %v5497, %v5498
  %v5500 = vrot.slane %v5499, 2
  %v5501 = vadd.f32 %v5499, %v5500
  %v5502 = vrot.slane %v5501, 1
  %v5503 = vadd.f32 %v5501, %v5502
  %v5504 = vadd.f32 %v2456, %v2472
  %v5505 = vadd.f32 %v5504, %v2488
  %v5506 = vadd.f32 %v5505, %v2504
  %v5507 = vadd.f32 %v5506, %v2520
  %v5508 = vadd.f32 %v5507, %v2536
  %v5509 = vadd.f32 %v5508, %v2552
  %v5510 = vadd.f32 %v5509, %v2568
  %v5511 = vrot.slane %v5510, 4
  %v5512 = vadd.f32 %v5510, %v5511
  %v5513 = vrot.slane %v5512, 2
  %v5514 = vadd.f32 %v5512, %v5513
  %v5515 = vrot.slane %v5514, 1
  %v5516 = vadd.f32 %v5514, %v5515
  %v5517 = vadd.f32 %v2457, %v2473
  %v5518 = vadd.f32 %v5517, %v2489
  %v5519 = vadd.f32 %v5518, %v2505
  %v5520 = vadd.f32 %v5519, %v2521
  %v5521 = vadd.f32 %v5520, %v2537
  %v5522 = vadd.f32 %v5521, %v2553
  %v5523 = vadd.f32 %v5522, %v2569
  %v5524 = vrot.slane %v5523, 4
  %v5525 = vadd.f32 %v5523, %v5524
  %v5526 = vrot.slane %v5525, 2
  %v5527 = vadd.f32 %v5525, %v5526
  %v5528 = vrot.slane %v5527, 1
  %v5529 = vadd.f32 %v5527, %v5528
  %v5530 = vadd.f32 %v2458, %v2474
  %v5531 = vadd.f32 %v5530, %v2490
  %v5532 = vadd.f32 %v5531, %v2506
  %v5533 = vadd.f32 %v5532, %v2522
  %v5534 = vadd.f32 %v5533, %v2538
  %v5535 = vadd.f32 %v5534, %v2554
  %v5536 = vadd.f32 %v5535, %v2570
  %v5537 = vrot.slane %v5536, 4
  %v5538 = vadd.f32 %v5536, %v5537
  %v5539 = vrot.slane %v5538, 2
  %v5540 = vadd.f32 %v5538, %v5539
  %v5541 = vrot.slane %v5540, 1
  %v5542 = vadd.f32 %v5540, %v5541
  %v5543 = vadd.f32 %v2459, %v2475
  %v5544 = vadd.f32 %v5543, %v2491
  %v5545 = vadd.f32 %v5544, %v2507
  %v5546 = vadd.f32 %v5545, %v2523
  %v5547 = vadd.f32 %v5546, %v2539
  %v5548 = vadd.f32 %v5547, %v2555
  %v5549 = vadd.f32 %v5548, %v2571
  %v5550 = vrot.slane %v5549, 4
  %v5551 = vadd.f32 %v5549, %v5550
  %v5552 = vrot.slane %v5551, 2
  %v5553 = vadd.f32 %v5551, %v5552
  %v5554 = vrot.slane %v5553, 1
  %v5555 = vadd.f32 %v5553, %v5554
  %v5556 = vadd.f32 %v2460, %v2476
  %v5557 = vadd.f32 %v5556, %v2492
  %v5558 = vadd.f32 %v5557, %v2508
  %v5559 = vadd.f32 %v5558, %v2524
  %v5560 = vadd.f32 %v5559, %v2540
  %v5561 = vadd.f32 %v5560, %v2556
  %v5562 = vadd.f32 %v5561, %v2572
  %v5563 = vrot.slane %v5562, 4
  %v5564 = vadd.f32 %v5562, %v5563
  %v5565 = vrot.slane %v5564, 2
  %v5566 = vadd.f32 %v5564, %v5565
  %v5567 = vrot.slane %v5566, 1
  %v5568 = vadd.f32 %v5566, %v5567
  %v5569 = vadd.f32 %v2461, %v2477
  %v5570 = vadd.f32 %v5569, %v2493
  %v5571 = vadd.f32 %v5570, %v2509
  %v5572 = vadd.f32 %v5571, %v2525
  %v5573 = vadd.f32 %v5572, %v2541
  %v5574 = vadd.f32 %v5573, %v2557
  %v5575 = vadd.f32 %v5574, %v2573
  %v5576 = vrot.slane %v5575, 4
  %v5577 = vadd.f32 %v5575, %v5576
  %v5578 = vrot.slane %v5577, 2
  %v5579 = vadd.f32 %v5577, %v5578
  %v5580 = vrot.slane %v5579, 1
  %v5581 = vadd.f32 %v5579, %v5580
  %v5582 = vadd.f32 %v2574, %v2590
  %v5583 = vadd.f32 %v5582, %v2606
  %v5584 = vadd.f32 %v5583, %v2622
  %v5585 = vadd.f32 %v5584, %v2638
  %v5586 = vadd.f32 %v5585, %v2654
  %v5587 = vadd.f32 %v5586, %v2670
  %v5588 = vadd.f32 %v5587, %v2686
  %v5589 = vrot.slane %v5588, 4
  %v5590 = vadd.f32 %v5588, %v5589
  %v5591 = vrot.slane %v5590, 2
  %v5592 = vadd.f32 %v5590, %v5591
  %v5593 = vrot.slane %v5592, 1
  %v5594 = vadd.f32 %v5592, %v5593
  %v5595 = vadd.f32 %v2575, %v2591
  %v5596 = vadd.f32 %v5595, %v2607
  %v5597 = vadd.f32 %v5596, %v2623
  %v5598 = vadd.f32 %v5597, %v2639
  %v5599 = vadd.f32 %v5598, %v2655
  %v5600 = vadd.f32 %v5599, %v2671
  %v5601 = vadd.f32 %v5600, %v2687
  %v5602 = vrot.slane %v5601, 4
  %v5603 = vadd.f32 %v5601, %v5602
  %v5604 = vrot.slane %v5603, 2
  %v5605 = vadd.f32 %v5603, %v5604
  %v5606 = vrot.slane %v5605, 1
  %v5607 = vadd.f32 %v5605, %v5606
  %v5608 = vadd.f32 %v2576, %v2592
  %v5609 = vadd.f32 %v5608, %v2608
  %v5610 = vadd.f32 %v5609, %v2624
  %v5611 = vadd.f32 %v5610, %v2640
  %v5612 = vadd.f32 %v5611, %v2656
  %v5613 = vadd.f32 %v5612, %v2672
  %v5614 = vadd.f32 %v5613, %v2688
  %v5615 = vrot.slane %v5614, 4
  %v5616 = vadd.f32 %v5614, %v5615
  %v5617 = vrot.slane %v5616, 2
  %v5618 = vadd.f32 %v5616, %v5617
  %v5619 = vrot.slane %v5618, 1
  %v5620 = vadd.f32 %v5618, %v5619
  %v5621 = vadd.f32 %v2577, %v2593
  %v5622 = vadd.f32 %v5621, %v2609
  %v5623 = vadd.f32 %v5622, %v2625
  %v5624 = vadd.f32 %v5623, %v2641
  %v5625 = vadd.f32 %v5624, %v2657
  %v5626 = vadd.f32 %v5625, %v2673
  %v5627 = vadd.f32 %v5626, %v2689
  %v5628 = vrot.slane %v5627, 4
  %v5629 = vadd.f32 %v5627, %v5628
  %v5630 = vrot.slane %v5629, 2
  %v5631 = vadd.f32 %v5629, %v5630
  %v5632 = vrot.slane %v5631, 1
  %v5633 = vadd.f32 %v5631, %v5632
  %v5634 = vadd.f32 %v2578, %v2594
  %v5635 = vadd.f32 %v5634, %v2610
  %v5636 = vadd.f32 %v5635, %v2626
  %v5637 = vadd.f32 %v5636, %v2642
  %v5638 = vadd.f32 %v5637, %v2658
  %v5639 = vadd.f32 %v5638, %v2674
  %v5640 = vadd.f32 %v5639, %v2690
  %v5641 = vrot.slane %v5640, 4
  %v5642 = vadd.f32 %v5640, %v5641
  %v5643 = vrot.slane %v5642, 2
  %v5644 = vadd.f32 %v5642, %v5643
  %v5645 = vrot.slane %v5644, 1
  %v5646 = vadd.f32 %v5644, %v5645
  %v5647 = vadd.f32 %v2579, %v2595
  %v5648 = vadd.f32 %v5647, %v2611
  %v5649 = vadd.f32 %v5648, %v2627
  %v5650 = vadd.f32 %v5649, %v2643
  %v5651 = vadd.f32 %v5650, %v2659
  %v5652 = vadd.f32 %v5651, %v2675
  %v5653 = vadd.f32 %v5652, %v2691
  %v5654 = vrot.slane %v5653, 4
  %v5655 = vadd.f32 %v5653, %v5654
  %v5656 = vrot.slane %v5655, 2
  %v5657 = vadd.f32 %v5655, %v5656
  %v5658 = vrot.slane %v5657, 1
  %v5659 = vadd.f32 %v5657, %v5658
  %v5660 = vadd.f32 %v2580, %v2596
  %v5661 = vadd.f32 %v5660, %v2612
  %v5662 = vadd.f32 %v5661, %v2628
  %v5663 = vadd.f32 %v5662, %v2644
  %v5664 = vadd.f32 %v5663, %v2660
  %v5665 = vadd.f32 %v5664, %v2676
  %v5666 = vadd.f32 %v5665, %v2692
  %v5667 = vrot.slane %v5666, 4
  %v5668 = vadd.f32 %v5666, %v5667
  %v5669 = vrot.slane %v5668, 2
  %v5670 = vadd.f32 %v5668, %v5669
  %v5671 = vrot.slane %v5670, 1
  %v5672 = vadd.f32 %v5670, %v5671
  %v5673 = vadd.f32 %v2581, %v2597
  %v5674 = vadd.f32 %v5673, %v2613
  %v5675 = vadd.f32 %v5674, %v2629
  %v5676 = vadd.f32 %v5675, %v2645
  %v5677 = vadd.f32 %v5676, %v2661
  %v5678 = vadd.f32 %v5677, %v2677
  %v5679 = vadd.f32 %v5678, %v2693
  %v5680 = vrot.slane %v5679, 4
  %v5681 = vadd.f32 %v5679, %v5680
  %v5682 = vrot.slane %v5681, 2
  %v5683 = vadd.f32 %v5681, %v5682
  %v5684 = vrot.slane %v5683, 1
  %v5685 = vadd.f32 %v5683, %v5684
  %v5686 = vadd.f32 %v2582, %v2598
  %v5687 = vadd.f32 %v5686, %v2614
  %v5688 = vadd.f32 %v5687, %v2630
  %v5689 = vadd.f32 %v5688, %v2646
  %v5690 = vadd.f32 %v5689, %v2662
  %v5691 = vadd.f32 %v5690, %v2678
  %v5692 = vadd.f32 %v5691, %v2694
  %v5693 = vrot.slane %v5692, 4
  %v5694 = vadd.f32 %v5692, %v5693
  %v5695 = vrot.slane %v5694, 2
  %v5696 = vadd.f32 %v5694, %v5695
  %v5697 = vrot.slane %v5696, 1
  %v5698 = vadd.f32 %v5696, %v5697
  %v5699 = vadd.f32 %v2583, %v2599
  %v5700 = vadd.f32 %v5699, %v2615
  %v5701 = vadd.f32 %v5700, %v2631
  %v5702 = vadd.f32 %v5701, %v2647
  %v5703 = vadd.f32 %v5702, %v2663
  %v5704 = vadd.f32 %v5703, %v2679
  %v5705 = vadd.f32 %v5704, %v2695
  %v5706 = vrot.slane %v5705, 4
  %v5707 = vadd.f32 %v5705, %v5706
  %v5708 = vrot.slane %v5707, 2
  %v5709 = vadd.f32 %v5707, %v5708
  %v5710 = vrot.slane %v5709, 1
  %v5711 = vadd.f32 %v5709, %v5710
  %v5712 = vadd.f32 %v2584, %v2600
  %v5713 = vadd.f32 %v5712, %v2616
  %v5714 = vadd.f32 %v5713, %v2632
  %v5715 = vadd.f32 %v5714, %v2648
  %v5716 = vadd.f32 %v5715, %v2664
  %v5717 = vadd.f32 %v5716, %v2680
  %v5718 = vadd.f32 %v5717, %v2696
  %v5719 = vrot.slane %v5718, 4
  %v5720 = vadd.f32 %v5718, %v5719
  %v5721 = vrot.slane %v5720, 2
  %v5722 = vadd.f32 %v5720, %v5721
  %v5723 = vrot.slane %v5722, 1
  %v5724 = vadd.f32 %v5722, %v5723
  %v5725 = vadd.f32 %v2585, %v2601
  %v5726 = vadd.f32 %v5725, %v2617
  %v5727 = vadd.f32 %v5726, %v2633
  %v5728 = vadd.f32 %v5727, %v2649
  %v5729 = vadd.f32 %v5728, %v2665
  %v5730 = vadd.f32 %v5729, %v2681
  %v5731 = vadd.f32 %v5730, %v2697
  %v5732 = vrot.slane %v5731, 4
  %v5733 = vadd.f32 %v5731, %v5732
  %v5734 = vrot.slane %v5733, 2
  %v5735 = vadd.f32 %v5733, %v5734
  %v5736 = vrot.slane %v5735, 1
  %v5737 = vadd.f32 %v5735, %v5736
  %v5738 = vadd.f32 %v2586, %v2602
  %v5739 = vadd.f32 %v5738, %v2618
  %v5740 = vadd.f32 %v5739, %v2634
  %v5741 = vadd.f32 %v5740, %v2650
  %v5742 = vadd.f32 %v5741, %v2666
  %v5743 = vadd.f32 %v5742, %v2682
  %v5744 = vadd.f32 %v5743, %v2698
  %v5745 = vrot.slane %v5744, 4
  %v5746 = vadd.f32 %v5744, %v5745
  %v5747 = vrot.slane %v5746, 2
  %v5748 = vadd.f32 %v5746, %v5747
  %v5749 = vrot.slane %v5748, 1
  %v5750 = vadd.f32 %v5748, %v5749
  %v5751 = vadd.f32 %v2587, %v2603
  %v5752 = vadd.f32 %v5751, %v2619
  %v5753 = vadd.f32 %v5752, %v2635
  %v5754 = vadd.f32 %v5753, %v2651
  %v5755 = vadd.f32 %v5754, %v2667
  %v5756 = vadd.f32 %v5755, %v2683
  %v5757 = vadd.f32 %v5756, %v2699
  %v5758 = vrot.slane %v5757, 4
  %v5759 = vadd.f32 %v5757, %v5758
  %v5760 = vrot.slane %v5759, 2
  %v5761 = vadd.f32 %v5759, %v5760
  %v5762 = vrot.slane %v5761, 1
  %v5763 = vadd.f32 %v5761, %v5762
  %v5764 = vadd.f32 %v2588, %v2604
  %v5765 = vadd.f32 %v5764, %v2620
  %v5766 = vadd.f32 %v5765, %v2636
  %v5767 = vadd.f32 %v5766, %v2652
  %v5768 = vadd.f32 %v5767, %v2668
  %v5769 = vadd.f32 %v5768, %v2684
  %v5770 = vadd.f32 %v5769, %v2700
  %v5771 = vrot.slane %v5770, 4
  %v5772 = vadd.f32 %v5770, %v5771
  %v5773 = vrot.slane %v5772, 2
  %v5774 = vadd.f32 %v5772, %v5773
  %v5775 = vrot.slane %v5774, 1
  %v5776 = vadd.f32 %v5774, %v5775
  %v5777 = vadd.f32 %v2589, %v2605
  %v5778 = vadd.f32 %v5777, %v2621
  %v5779 = vadd.f32 %v5778, %v2637
  %v5780 = vadd.f32 %v5779, %v2653
  %v5781 = vadd.f32 %v5780, %v2669
  %v5782 = vadd.f32 %v5781, %v2685
  %v5783 = vadd.f32 %v5782, %v2701
  %v5784 = vrot.slane %v5783, 4
  %v5785 = vadd.f32 %v5783, %v5784
  %v5786 = vrot.slane %v5785, 2
  %v5787 = vadd.f32 %v5785, %v5786
  %v5788 = vrot.slane %v5787, 1
  %v5789 = vadd.f32 %v5787, %v5788
  %v5790 = vadd.f32 %v2702, %v2718
  %v5791 = vadd.f32 %v5790, %v2734
  %v5792 = vadd.f32 %v5791, %v2750
  %v5793 = vadd.f32 %v5792, %v2766
  %v5794 = vadd.f32 %v5793, %v2782
  %v5795 = vadd.f32 %v5794, %v2798
  %v5796 = vadd.f32 %v5795, %v2814
  %v5797 = vrot.slane %v5796, 4
  %v5798 = vadd.f32 %v5796, %v5797
  %v5799 = vrot.slane %v5798, 2
  %v5800 = vadd.f32 %v5798, %v5799
  %v5801 = vrot.slane %v5800, 1
  %v5802 = vadd.f32 %v5800, %v5801
  %v5803 = vadd.f32 %v2703, %v2719
  %v5804 = vadd.f32 %v5803, %v2735
  %v5805 = vadd.f32 %v5804, %v2751
  %v5806 = vadd.f32 %v5805, %v2767
  %v5807 = vadd.f32 %v5806, %v2783
  %v5808 = vadd.f32 %v5807, %v2799
  %v5809 = vadd.f32 %v5808, %v2815
  %v5810 = vrot.slane %v5809, 4
  %v5811 = vadd.f32 %v5809, %v5810
  %v5812 = vrot.slane %v5811, 2
  %v5813 = vadd.f32 %v5811, %v5812
  %v5814 = vrot.slane %v5813, 1
  %v5815 = vadd.f32 %v5813, %v5814
  %v5816 = vadd.f32 %v2704, %v2720
  %v5817 = vadd.f32 %v5816, %v2736
  %v5818 = vadd.f32 %v5817, %v2752
  %v5819 = vadd.f32 %v5818, %v2768
  %v5820 = vadd.f32 %v5819, %v2784
  %v5821 = vadd.f32 %v5820, %v2800
  %v5822 = vadd.f32 %v5821, %v2816
  %v5823 = vrot.slane %v5822, 4
  %v5824 = vadd.f32 %v5822, %v5823
  %v5825 = vrot.slane %v5824, 2
  %v5826 = vadd.f32 %v5824, %v5825
  %v5827 = vrot.slane %v5826, 1
  %v5828 = vadd.f32 %v5826, %v5827
  %v5829 = vadd.f32 %v2705, %v2721
  %v5830 = vadd.f32 %v5829, %v2737
  %v5831 = vadd.f32 %v5830, %v2753
  %v5832 = vadd.f32 %v5831, %v2769
  %v5833 = vadd.f32 %v5832, %v2785
  %v5834 = vadd.f32 %v5833, %v2801
  %v5835 = vadd.f32 %v5834, %v2817
  %v5836 = vrot.slane %v5835, 4
  %v5837 = vadd.f32 %v5835, %v5836
  %v5838 = vrot.slane %v5837, 2
  %v5839 = vadd.f32 %v5837, %v5838
  %v5840 = vrot.slane %v5839, 1
  %v5841 = vadd.f32 %v5839, %v5840
  %v5842 = vadd.f32 %v2706, %v2722
  %v5843 = vadd.f32 %v5842, %v2738
  %v5844 = vadd.f32 %v5843, %v2754
  %v5845 = vadd.f32 %v5844, %v2770
  %v5846 = vadd.f32 %v5845, %v2786
  %v5847 = vadd.f32 %v5846, %v2802
  %v5848 = vadd.f32 %v5847, %v2818
  %v5849 = vrot.slane %v5848, 4
  %v5850 = vadd.f32 %v5848, %v5849
  %v5851 = vrot.slane %v5850, 2
  %v5852 = vadd.f32 %v5850, %v5851
  %v5853 = vrot.slane %v5852, 1
  %v5854 = vadd.f32 %v5852, %v5853
  %v5855 = vadd.f32 %v2707, %v2723
  %v5856 = vadd.f32 %v5855, %v2739
  %v5857 = vadd.f32 %v5856, %v2755
  %v5858 = vadd.f32 %v5857, %v2771
  %v5859 = vadd.f32 %v5858, %v2787
  %v5860 = vadd.f32 %v5859, %v2803
  %v5861 = vadd.f32 %v5860, %v2819
  %v5862 = vrot.slane %v5861, 4
  %v5863 = vadd.f32 %v5861, %v5862
  %v5864 = vrot.slane %v5863, 2
  %v5865 = vadd.f32 %v5863, %v5864
  %v5866 = vrot.slane %v5865, 1
  %v5867 = vadd.f32 %v5865, %v5866
  %v5868 = vadd.f32 %v2708, %v2724
  %v5869 = vadd.f32 %v5868, %v2740
  %v5870 = vadd.f32 %v5869, %v2756
  %v5871 = vadd.f32 %v5870, %v2772
  %v5872 = vadd.f32 %v5871, %v2788
  %v5873 = vadd.f32 %v5872, %v2804
  %v5874 = vadd.f32 %v5873, %v2820
  %v5875 = vrot.slane %v5874, 4
  %v5876 = vadd.f32 %v5874, %v5875
  %v5877 = vrot.slane %v5876, 2
  %v5878 = vadd.f32 %v5876, %v5877
  %v5879 = vrot.slane %v5878, 1
  %v5880 = vadd.f32 %v5878, %v5879
  %v5881 = vadd.f32 %v2709, %v2725
  %v5882 = vadd.f32 %v5881, %v2741
  %v5883 = vadd.f32 %v5882, %v2757
  %v5884 = vadd.f32 %v5883, %v2773
  %v5885 = vadd.f32 %v5884, %v2789
  %v5886 = vadd.f32 %v5885, %v2805
  %v5887 = vadd.f32 %v5886, %v2821
  %v5888 = vrot.slane %v5887, 4
  %v5889 = vadd.f32 %v5887, %v5888
  %v5890 = vrot.slane %v5889, 2
  %v5891 = vadd.f32 %v5889, %v5890
  %v5892 = vrot.slane %v5891, 1
  %v5893 = vadd.f32 %v5891, %v5892
  %v5894 = vadd.f32 %v2710, %v2726
  %v5895 = vadd.f32 %v5894, %v2742
  %v5896 = vadd.f32 %v5895, %v2758
  %v5897 = vadd.f32 %v5896, %v2774
  %v5898 = vadd.f32 %v5897, %v2790
  %v5899 = vadd.f32 %v5898, %v2806
  %v5900 = vadd.f32 %v5899, %v2822
  %v5901 = vrot.slane %v5900, 4
  %v5902 = vadd.f32 %v5900, %v5901
  %v5903 = vrot.slane %v5902, 2
  %v5904 = vadd.f32 %v5902, %v5903
  %v5905 = vrot.slane %v5904, 1
  %v5906 = vadd.f32 %v5904, %v5905
  %v5907 = vadd.f32 %v2711, %v2727
  %v5908 = vadd.f32 %v5907, %v2743
  %v5909 = vadd.f32 %v5908, %v2759
  %v5910 = vadd.f32 %v5909, %v2775
  %v5911 = vadd.f32 %v5910, %v2791
  %v5912 = vadd.f32 %v5911, %v2807
  %v5913 = vadd.f32 %v5912, %v2823
  %v5914 = vrot.slane %v5913, 4
  %v5915 = vadd.f32 %v5913, %v5914
  %v5916 = vrot.slane %v5915, 2
  %v5917 = vadd.f32 %v5915, %v5916
  %v5918 = vrot.slane %v5917, 1
  %v5919 = vadd.f32 %v5917, %v5918
  %v5920 = vadd.f32 %v2712, %v2728
  %v5921 = vadd.f32 %v5920, %v2744
  %v5922 = vadd.f32 %v5921, %v2760
  %v5923 = vadd.f32 %v5922, %v2776
  %v5924 = vadd.f32 %v5923, %v2792
  %v5925 = vadd.f32 %v5924, %v2808
  %v5926 = vadd.f32 %v5925, %v2824
  %v5927 = vrot.slane %v5926, 4
  %v5928 = vadd.f32 %v5926, %v5927
  %v5929 = vrot.slane %v5928, 2
  %v5930 = vadd.f32 %v5928, %v5929
  %v5931 = vrot.slane %v5930, 1
  %v5932 = vadd.f32 %v5930, %v5931
  %v5933 = vadd.f32 %v2713, %v2729
  %v5934 = vadd.f32 %v5933, %v2745
  %v5935 = vadd.f32 %v5934, %v2761
  %v5936 = vadd.f32 %v5935, %v2777
  %v5937 = vadd.f32 %v5936, %v2793
  %v5938 = vadd.f32 %v5937, %v2809
  %v5939 = vadd.f32 %v5938, %v2825
  %v5940 = vrot.slane %v5939, 4
  %v5941 = vadd.f32 %v5939, %v5940
  %v5942 = vrot.slane %v5941, 2
  %v5943 = vadd.f32 %v5941, %v5942
  %v5944 = vrot.slane %v5943, 1
  %v5945 = vadd.f32 %v5943, %v5944
  %v5946 = vadd.f32 %v2714, %v2730
  %v5947 = vadd.f32 %v5946, %v2746
  %v5948 = vadd.f32 %v5947, %v2762
  %v5949 = vadd.f32 %v5948, %v2778
  %v5950 = vadd.f32 %v5949, %v2794
  %v5951 = vadd.f32 %v5950, %v2810
  %v5952 = vadd.f32 %v5951, %v2826
  %v5953 = vrot.slane %v5952, 4
  %v5954 = vadd.f32 %v5952, %v5953
  %v5955 = vrot.slane %v5954, 2
  %v5956 = vadd.f32 %v5954, %v5955
  %v5957 = vrot.slane %v5956, 1
  %v5958 = vadd.f32 %v5956, %v5957
  %v5959 = vadd.f32 %v2715, %v2731
  %v5960 = vadd.f32 %v5959, %v2747
  %v5961 = vadd.f32 %v5960, %v2763
  %v5962 = vadd.f32 %v5961, %v2779
  %v5963 = vadd.f32 %v5962, %v2795
  %v5964 = vadd.f32 %v5963, %v2811
  %v5965 = vadd.f32 %v5964, %v2827
  %v5966 = vrot.slane %v5965, 4
  %v5967 = vadd.f32 %v5965, %v5966
  %v5968 = vrot.slane %v5967, 2
  %v5969 = vadd.f32 %v5967, %v5968
  %v5970 = vrot.slane %v5969, 1
  %v5971 = vadd.f32 %v5969, %v5970
  %v5972 = vadd.f32 %v2716, %v2732
  %v5973 = vadd.f32 %v5972, %v2748
  %v5974 = vadd.f32 %v5973, %v2764
  %v5975 = vadd.f32 %v5974, %v2780
  %v5976 = vadd.f32 %v5975, %v2796
  %v5977 = vadd.f32 %v5976, %v2812
  %v5978 = vadd.f32 %v5977, %v2828
  %v5979 = vrot.slane %v5978, 4
  %v5980 = vadd.f32 %v5978, %v5979
  %v5981 = vrot.slane %v5980, 2
  %v5982 = vadd.f32 %v5980, %v5981
  %v5983 = vrot.slane %v5982, 1
  %v5984 = vadd.f32 %v5982, %v5983
  %v5985 = vadd.f32 %v2717, %v2733
  %v5986 = vadd.f32 %v5985, %v2749
  %v5987 = vadd.f32 %v5986, %v2765
  %v5988 = vadd.f32 %v5987, %v2781
  %v5989 = vadd.f32 %v5988, %v2797
  %v5990 = vadd.f32 %v5989, %v2813
  %v5991 = vadd.f32 %v5990, %v2829
  %v5992 = vrot.slane %v5991, 4
  %v5993 = vadd.f32 %v5991, %v5992
  %v5994 = vrot.slane %v5993, 2
  %v5995 = vadd.f32 %v5993, %v5994
  %v5996 = vrot.slane %v5995, 1
  %v5997 = vadd.f32 %v5995, %v5996
  %v5998 = vadd.f32 %v2830, %v2846
  %v5999 = vadd.f32 %v5998, %v2862
  %v6000 = vadd.f32 %v5999, %v2878
  %v6001 = vadd.f32 %v6000, %v2894
  %v6002 = vadd.f32 %v6001, %v2910
  %v6003 = vadd.f32 %v6002, %v2926
  %v6004 = vadd.f32 %v6003, %v2942
  %v6005 = vrot.slane %v6004, 4
  %v6006 = vadd.f32 %v6004, %v6005
  %v6007 = vrot.slane %v6006, 2
  %v6008 = vadd.f32 %v6006, %v6007
  %v6009 = vrot.slane %v6008, 1
  %v6010 = vadd.f32 %v6008, %v6009
  %v6011 = vadd.f32 %v2831, %v2847
  %v6012 = vadd.f32 %v6011, %v2863
  %v6013 = vadd.f32 %v6012, %v2879
  %v6014 = vadd.f32 %v6013, %v2895
  %v6015 = vadd.f32 %v6014, %v2911
  %v6016 = vadd.f32 %v6015, %v2927
  %v6017 = vadd.f32 %v6016, %v2943
  %v6018 = vrot.slane %v6017, 4
  %v6019 = vadd.f32 %v6017, %v6018
  %v6020 = vrot.slane %v6019, 2
  %v6021 = vadd.f32 %v6019, %v6020
  %v6022 = vrot.slane %v6021, 1
  %v6023 = vadd.f32 %v6021, %v6022
  %v6024 = vadd.f32 %v2832, %v2848
  %v6025 = vadd.f32 %v6024, %v2864
  %v6026 = vadd.f32 %v6025, %v2880
  %v6027 = vadd.f32 %v6026, %v2896
  %v6028 = vadd.f32 %v6027, %v2912
  %v6029 = vadd.f32 %v6028, %v2928
  %v6030 = vadd.f32 %v6029, %v2944
  %v6031 = vrot.slane %v6030, 4
  %v6032 = vadd.f32 %v6030, %v6031
  %v6033 = vrot.slane %v6032, 2
  %v6034 = vadd.f32 %v6032, %v6033
  %v6035 = vrot.slane %v6034, 1
  %v6036 = vadd.f32 %v6034, %v6035
  %v6037 = vadd.f32 %v2833, %v2849
  %v6038 = vadd.f32 %v6037, %v2865
  %v6039 = vadd.f32 %v6038, %v2881
  %v6040 = vadd.f32 %v6039, %v2897
  %v6041 = vadd.f32 %v6040, %v2913
  %v6042 = vadd.f32 %v6041, %v2929
  %v6043 = vadd.f32 %v6042, %v2945
  %v6044 = vrot.slane %v6043, 4
  %v6045 = vadd.f32 %v6043, %v6044
  %v6046 = vrot.slane %v6045, 2
  %v6047 = vadd.f32 %v6045, %v6046
  %v6048 = vrot.slane %v6047, 1
  %v6049 = vadd.f32 %v6047, %v6048
  %v6050 = vadd.f32 %v2834, %v2850
  %v6051 = vadd.f32 %v6050, %v2866
  %v6052 = vadd.f32 %v6051, %v2882
  %v6053 = vadd.f32 %v6052, %v2898
  %v6054 = vadd.f32 %v6053, %v2914
  %v6055 = vadd.f32 %v6054, %v2930
  %v6056 = vadd.f32 %v6055, %v2946
  %v6057 = vrot.slane %v6056, 4
  %v6058 = vadd.f32 %v6056, %v6057
  %v6059 = vrot.slane %v6058, 2
  %v6060 = vadd.f32 %v6058, %v6059
  %v6061 = vrot.slane %v6060, 1
  %v6062 = vadd.f32 %v6060, %v6061
  %v6063 = vadd.f32 %v2835, %v2851
  %v6064 = vadd.f32 %v6063, %v2867
  %v6065 = vadd.f32 %v6064, %v2883
  %v6066 = vadd.f32 %v6065, %v2899
  %v6067 = vadd.f32 %v6066, %v2915
  %v6068 = vadd.f32 %v6067, %v2931
  %v6069 = vadd.f32 %v6068, %v2947
  %v6070 = vrot.slane %v6069, 4
  %v6071 = vadd.f32 %v6069, %v6070
  %v6072 = vrot.slane %v6071, 2
  %v6073 = vadd.f32 %v6071, %v6072
  %v6074 = vrot.slane %v6073, 1
  %v6075 = vadd.f32 %v6073, %v6074
  %v6076 = vadd.f32 %v2836, %v2852
  %v6077 = vadd.f32 %v6076, %v2868
  %v6078 = vadd.f32 %v6077, %v2884
  %v6079 = vadd.f32 %v6078, %v2900
  %v6080 = vadd.f32 %v6079, %v2916
  %v6081 = vadd.f32 %v6080, %v2932
  %v6082 = vadd.f32 %v6081, %v2948
  %v6083 = vrot.slane %v6082, 4
  %v6084 = vadd.f32 %v6082, %v6083
  %v6085 = vrot.slane %v6084, 2
  %v6086 = vadd.f32 %v6084, %v6085
  %v6087 = vrot.slane %v6086, 1
  %v6088 = vadd.f32 %v6086, %v6087
  %v6089 = vadd.f32 %v2837, %v2853
  %v6090 = vadd.f32 %v6089, %v2869
  %v6091 = vadd.f32 %v6090, %v2885
  %v6092 = vadd.f32 %v6091, %v2901
  %v6093 = vadd.f32 %v6092, %v2917
  %v6094 = vadd.f32 %v6093, %v2933
  %v6095 = vadd.f32 %v6094, %v2949
  %v6096 = vrot.slane %v6095, 4
  %v6097 = vadd.f32 %v6095, %v6096
  %v6098 = vrot.slane %v6097, 2
  %v6099 = vadd.f32 %v6097, %v6098
  %v6100 = vrot.slane %v6099, 1
  %v6101 = vadd.f32 %v6099, %v6100
  %v6102 = vadd.f32 %v2838, %v2854
  %v6103 = vadd.f32 %v6102, %v2870
  %v6104 = vadd.f32 %v6103, %v2886
  %v6105 = vadd.f32 %v6104, %v2902
  %v6106 = vadd.f32 %v6105, %v2918
  %v6107 = vadd.f32 %v6106, %v2934
  %v6108 = vadd.f32 %v6107, %v2950
  %v6109 = vrot.slane %v6108, 4
  %v6110 = vadd.f32 %v6108, %v6109
  %v6111 = vrot.slane %v6110, 2
  %v6112 = vadd.f32 %v6110, %v6111
  %v6113 = vrot.slane %v6112, 1
  %v6114 = vadd.f32 %v6112, %v6113
  %v6115 = vadd.f32 %v2839, %v2855
  %v6116 = vadd.f32 %v6115, %v2871
  %v6117 = vadd.f32 %v6116, %v2887
  %v6118 = vadd.f32 %v6117, %v2903
  %v6119 = vadd.f32 %v6118, %v2919
  %v6120 = vadd.f32 %v6119, %v2935
  %v6121 = vadd.f32 %v6120, %v2951
  %v6122 = vrot.slane %v6121, 4
  %v6123 = vadd.f32 %v6121, %v6122
  %v6124 = vrot.slane %v6123, 2
  %v6125 = vadd.f32 %v6123, %v6124
  %v6126 = vrot.slane %v6125, 1
  %v6127 = vadd.f32 %v6125, %v6126
  %v6128 = vadd.f32 %v2840, %v2856
  %v6129 = vadd.f32 %v6128, %v2872
  %v6130 = vadd.f32 %v6129, %v2888
  %v6131 = vadd.f32 %v6130, %v2904
  %v6132 = vadd.f32 %v6131, %v2920
  %v6133 = vadd.f32 %v6132, %v2936
  %v6134 = vadd.f32 %v6133, %v2952
  %v6135 = vrot.slane %v6134, 4
  %v6136 = vadd.f32 %v6134, %v6135
  %v6137 = vrot.slane %v6136, 2
  %v6138 = vadd.f32 %v6136, %v6137
  %v6139 = vrot.slane %v6138, 1
  %v6140 = vadd.f32 %v6138, %v6139
  %v6141 = vadd.f32 %v2841, %v2857
  %v6142 = vadd.f32 %v6141, %v2873
  %v6143 = vadd.f32 %v6142, %v2889
  %v6144 = vadd.f32 %v6143, %v2905
  %v6145 = vadd.f32 %v6144, %v2921
  %v6146 = vadd.f32 %v6145, %v2937
  %v6147 = vadd.f32 %v6146, %v2953
  %v6148 = vrot.slane %v6147, 4
  %v6149 = vadd.f32 %v6147, %v6148
  %v6150 = vrot.slane %v6149, 2
  %v6151 = vadd.f32 %v6149, %v6150
  %v6152 = vrot.slane %v6151, 1
  %v6153 = vadd.f32 %v6151, %v6152
  %v6154 = vadd.f32 %v2842, %v2858
  %v6155 = vadd.f32 %v6154, %v2874
  %v6156 = vadd.f32 %v6155, %v2890
  %v6157 = vadd.f32 %v6156, %v2906
  %v6158 = vadd.f32 %v6157, %v2922
  %v6159 = vadd.f32 %v6158, %v2938
  %v6160 = vadd.f32 %v6159, %v2954
  %v6161 = vrot.slane %v6160, 4
  %v6162 = vadd.f32 %v6160, %v6161
  %v6163 = vrot.slane %v6162, 2
  %v6164 = vadd.f32 %v6162, %v6163
  %v6165 = vrot.slane %v6164, 1
  %v6166 = vadd.f32 %v6164, %v6165
  %v6167 = vadd.f32 %v2843, %v2859
  %v6168 = vadd.f32 %v6167, %v2875
  %v6169 = vadd.f32 %v6168, %v2891
  %v6170 = vadd.f32 %v6169, %v2907
  %v6171 = vadd.f32 %v6170, %v2923
  %v6172 = vadd.f32 %v6171, %v2939
  %v6173 = vadd.f32 %v6172, %v2955
  %v6174 = vrot.slane %v6173, 4
  %v6175 = vadd.f32 %v6173, %v6174
  %v6176 = vrot.slane %v6175, 2
  %v6177 = vadd.f32 %v6175, %v6176
  %v6178 = vrot.slane %v6177, 1
  %v6179 = vadd.f32 %v6177, %v6178
  %v6180 = vadd.f32 %v2844, %v2860
  %v6181 = vadd.f32 %v6180, %v2876
  %v6182 = vadd.f32 %v6181, %v2892
  %v6183 = vadd.f32 %v6182, %v2908
  %v6184 = vadd.f32 %v6183, %v2924
  %v6185 = vadd.f32 %v6184, %v2940
  %v6186 = vadd.f32 %v6185, %v2956
  %v6187 = vrot.slane %v6186, 4
  %v6188 = vadd.f32 %v6186, %v6187
  %v6189 = vrot.slane %v6188, 2
  %v6190 = vadd.f32 %v6188, %v6189
  %v6191 = vrot.slane %v6190, 1
  %v6192 = vadd.f32 %v6190, %v6191
  %v6193 = vadd.f32 %v2845, %v2861
  %v6194 = vadd.f32 %v6193, %v2877
  %v6195 = vadd.f32 %v6194, %v2893
  %v6196 = vadd.f32 %v6195, %v2909
  %v6197 = vadd.f32 %v6196, %v2925
  %v6198 = vadd.f32 %v6197, %v2941
  %v6199 = vadd.f32 %v6198, %v2957
  %v6200 = vrot.slane %v6199, 4
  %v6201 = vadd.f32 %v6199, %v6200
  %v6202 = vrot.slane %v6201, 2
  %v6203 = vadd.f32 %v6201, %v6202
  %v6204 = vrot.slane %v6203, 1
  %v6205 = vadd.f32 %v6203, %v6204
  %v6206 = vadd.f32 %v2958, %v2974
  %v6207 = vadd.f32 %v6206, %v2990
  %v6208 = vadd.f32 %v6207, %v3006
  %v6209 = vadd.f32 %v6208, %v3022
  %v6210 = vadd.f32 %v6209, %v3038
  %v6211 = vadd.f32 %v6210, %v3054
  %v6212 = vadd.f32 %v6211, %v3070
  %v6213 = vrot.slane %v6212, 4
  %v6214 = vadd.f32 %v6212, %v6213
  %v6215 = vrot.slane %v6214, 2
  %v6216 = vadd.f32 %v6214, %v6215
  %v6217 = vrot.slane %v6216, 1
  %v6218 = vadd.f32 %v6216, %v6217
  %v6219 = vadd.f32 %v2959, %v2975
  %v6220 = vadd.f32 %v6219, %v2991
  %v6221 = vadd.f32 %v6220, %v3007
  %v6222 = vadd.f32 %v6221, %v3023
  %v6223 = vadd.f32 %v6222, %v3039
  %v6224 = vadd.f32 %v6223, %v3055
  %v6225 = vadd.f32 %v6224, %v3071
  %v6226 = vrot.slane %v6225, 4
  %v6227 = vadd.f32 %v6225, %v6226
  %v6228 = vrot.slane %v6227, 2
  %v6229 = vadd.f32 %v6227, %v6228
  %v6230 = vrot.slane %v6229, 1
  %v6231 = vadd.f32 %v6229, %v6230
  %v6232 = vadd.f32 %v2960, %v2976
  %v6233 = vadd.f32 %v6232, %v2992
  %v6234 = vadd.f32 %v6233, %v3008
  %v6235 = vadd.f32 %v6234, %v3024
  %v6236 = vadd.f32 %v6235, %v3040
  %v6237 = vadd.f32 %v6236, %v3056
  %v6238 = vadd.f32 %v6237, %v3072
  %v6239 = vrot.slane %v6238, 4
  %v6240 = vadd.f32 %v6238, %v6239
  %v6241 = vrot.slane %v6240, 2
  %v6242 = vadd.f32 %v6240, %v6241
  %v6243 = vrot.slane %v6242, 1
  %v6244 = vadd.f32 %v6242, %v6243
  %v6245 = vadd.f32 %v2961, %v2977
  %v6246 = vadd.f32 %v6245, %v2993
  %v6247 = vadd.f32 %v6246, %v3009
  %v6248 = vadd.f32 %v6247, %v3025
  %v6249 = vadd.f32 %v6248, %v3041
  %v6250 = vadd.f32 %v6249, %v3057
  %v6251 = vadd.f32 %v6250, %v3073
  %v6252 = vrot.slane %v6251, 4
  %v6253 = vadd.f32 %v6251, %v6252
  %v6254 = vrot.slane %v6253, 2
  %v6255 = vadd.f32 %v6253, %v6254
  %v6256 = vrot.slane %v6255, 1
  %v6257 = vadd.f32 %v6255, %v6256
  %v6258 = vadd.f32 %v2962, %v2978
  %v6259 = vadd.f32 %v6258, %v2994
  %v6260 = vadd.f32 %v6259, %v3010
  %v6261 = vadd.f32 %v6260, %v3026
  %v6262 = vadd.f32 %v6261, %v3042
  %v6263 = vadd.f32 %v6262, %v3058
  %v6264 = vadd.f32 %v6263, %v3074
  %v6265 = vrot.slane %v6264, 4
  %v6266 = vadd.f32 %v6264, %v6265
  %v6267 = vrot.slane %v6266, 2
  %v6268 = vadd.f32 %v6266, %v6267
  %v6269 = vrot.slane %v6268, 1
  %v6270 = vadd.f32 %v6268, %v6269
  %v6271 = vadd.f32 %v2963, %v2979
  %v6272 = vadd.f32 %v6271, %v2995
  %v6273 = vadd.f32 %v6272, %v3011
  %v6274 = vadd.f32 %v6273, %v3027
  %v6275 = vadd.f32 %v6274, %v3043
  %v6276 = vadd.f32 %v6275, %v3059
  %v6277 = vadd.f32 %v6276, %v3075
  %v6278 = vrot.slane %v6277, 4
  %v6279 = vadd.f32 %v6277, %v6278
  %v6280 = vrot.slane %v6279, 2
  %v6281 = vadd.f32 %v6279, %v6280
  %v6282 = vrot.slane %v6281, 1
  %v6283 = vadd.f32 %v6281, %v6282
  %v6284 = vadd.f32 %v2964, %v2980
  %v6285 = vadd.f32 %v6284, %v2996
  %v6286 = vadd.f32 %v6285, %v3012
  %v6287 = vadd.f32 %v6286, %v3028
  %v6288 = vadd.f32 %v6287, %v3044
  %v6289 = vadd.f32 %v6288, %v3060
  %v6290 = vadd.f32 %v6289, %v3076
  %v6291 = vrot.slane %v6290, 4
  %v6292 = vadd.f32 %v6290, %v6291
  %v6293 = vrot.slane %v6292, 2
  %v6294 = vadd.f32 %v6292, %v6293
  %v6295 = vrot.slane %v6294, 1
  %v6296 = vadd.f32 %v6294, %v6295
  %v6297 = vadd.f32 %v2965, %v2981
  %v6298 = vadd.f32 %v6297, %v2997
  %v6299 = vadd.f32 %v6298, %v3013
  %v6300 = vadd.f32 %v6299, %v3029
  %v6301 = vadd.f32 %v6300, %v3045
  %v6302 = vadd.f32 %v6301, %v3061
  %v6303 = vadd.f32 %v6302, %v3077
  %v6304 = vrot.slane %v6303, 4
  %v6305 = vadd.f32 %v6303, %v6304
  %v6306 = vrot.slane %v6305, 2
  %v6307 = vadd.f32 %v6305, %v6306
  %v6308 = vrot.slane %v6307, 1
  %v6309 = vadd.f32 %v6307, %v6308
  %v6310 = vadd.f32 %v2966, %v2982
  %v6311 = vadd.f32 %v6310, %v2998
  %v6312 = vadd.f32 %v6311, %v3014
  %v6313 = vadd.f32 %v6312, %v3030
  %v6314 = vadd.f32 %v6313, %v3046
  %v6315 = vadd.f32 %v6314, %v3062
  %v6316 = vadd.f32 %v6315, %v3078
  %v6317 = vrot.slane %v6316, 4
  %v6318 = vadd.f32 %v6316, %v6317
  %v6319 = vrot.slane %v6318, 2
  %v6320 = vadd.f32 %v6318, %v6319
  %v6321 = vrot.slane %v6320, 1
  %v6322 = vadd.f32 %v6320, %v6321
  %v6323 = vadd.f32 %v2967, %v2983
  %v6324 = vadd.f32 %v6323, %v2999
  %v6325 = vadd.f32 %v6324, %v3015
  %v6326 = vadd.f32 %v6325, %v3031
  %v6327 = vadd.f32 %v6326, %v3047
  %v6328 = vadd.f32 %v6327, %v3063
  %v6329 = vadd.f32 %v6328, %v3079
  %v6330 = vrot.slane %v6329, 4
  %v6331 = vadd.f32 %v6329, %v6330
  %v6332 = vrot.slane %v6331, 2
  %v6333 = vadd.f32 %v6331, %v6332
  %v6334 = vrot.slane %v6333, 1
  %v6335 = vadd.f32 %v6333, %v6334
  %v6336 = vadd.f32 %v2968, %v2984
  %v6337 = vadd.f32 %v6336, %v3000
  %v6338 = vadd.f32 %v6337, %v3016
  %v6339 = vadd.f32 %v6338, %v3032
  %v6340 = vadd.f32 %v6339, %v3048
  %v6341 = vadd.f32 %v6340, %v3064
  %v6342 = vadd.f32 %v6341, %v3080
  %v6343 = vrot.slane %v6342, 4
  %v6344 = vadd.f32 %v6342, %v6343
  %v6345 = vrot.slane %v6344, 2
  %v6346 = vadd.f32 %v6344, %v6345
  %v6347 = vrot.slane %v6346, 1
  %v6348 = vadd.f32 %v6346, %v6347
  %v6349 = vadd.f32 %v2969, %v2985
  %v6350 = vadd.f32 %v6349, %v3001
  %v6351 = vadd.f32 %v6350, %v3017
  %v6352 = vadd.f32 %v6351, %v3033
  %v6353 = vadd.f32 %v6352, %v3049
  %v6354 = vadd.f32 %v6353, %v3065
  %v6355 = vadd.f32 %v6354, %v3081
  %v6356 = vrot.slane %v6355, 4
  %v6357 = vadd.f32 %v6355, %v6356
  %v6358 = vrot.slane %v6357, 2
  %v6359 = vadd.f32 %v6357, %v6358
  %v6360 = vrot.slane %v6359, 1
  %v6361 = vadd.f32 %v6359, %v6360
  %v6362 = vadd.f32 %v2970, %v2986
  %v6363 = vadd.f32 %v6362, %v3002
  %v6364 = vadd.f32 %v6363, %v3018
  %v6365 = vadd.f32 %v6364, %v3034
  %v6366 = vadd.f32 %v6365, %v3050
  %v6367 = vadd.f32 %v6366, %v3066
  %v6368 = vadd.f32 %v6367, %v3082
  %v6369 = vrot.slane %v6368, 4
  %v6370 = vadd.f32 %v6368, %v6369
  %v6371 = vrot.slane %v6370, 2
  %v6372 = vadd.f32 %v6370, %v6371
  %v6373 = vrot.slane %v6372, 1
  %v6374 = vadd.f32 %v6372, %v6373
  %v6375 = vadd.f32 %v2971, %v2987
  %v6376 = vadd.f32 %v6375, %v3003
  %v6377 = vadd.f32 %v6376, %v3019
  %v6378 = vadd.f32 %v6377, %v3035
  %v6379 = vadd.f32 %v6378, %v3051
  %v6380 = vadd.f32 %v6379, %v3067
  %v6381 = vadd.f32 %v6380, %v3083
  %v6382 = vrot.slane %v6381, 4
  %v6383 = vadd.f32 %v6381, %v6382
  %v6384 = vrot.slane %v6383, 2
  %v6385 = vadd.f32 %v6383, %v6384
  %v6386 = vrot.slane %v6385, 1
  %v6387 = vadd.f32 %v6385, %v6386
  %v6388 = vadd.f32 %v2972, %v2988
  %v6389 = vadd.f32 %v6388, %v3004
  %v6390 = vadd.f32 %v6389, %v3020
  %v6391 = vadd.f32 %v6390, %v3036
  %v6392 = vadd.f32 %v6391, %v3052
  %v6393 = vadd.f32 %v6392, %v3068
  %v6394 = vadd.f32 %v6393, %v3084
  %v6395 = vrot.slane %v6394, 4
  %v6396 = vadd.f32 %v6394, %v6395
  %v6397 = vrot.slane %v6396, 2
  %v6398 = vadd.f32 %v6396, %v6397
  %v6399 = vrot.slane %v6398, 1
  %v6400 = vadd.f32 %v6398, %v6399
  %v6401 = vadd.f32 %v2973, %v2989
  %v6402 = vadd.f32 %v6401, %v3005
  %v6403 = vadd.f32 %v6402, %v3021
  %v6404 = vadd.f32 %v6403, %v3037
  %v6405 = vadd.f32 %v6404, %v3053
  %v6406 = vadd.f32 %v6405, %v3069
  %v6407 = vadd.f32 %v6406, %v3085
  %v6408 = vrot.slane %v6407, 4
  %v6409 = vadd.f32 %v6407, %v6408
  %v6410 = vrot.slane %v6409, 2
  %v6411 = vadd.f32 %v6409, %v6410
  %v6412 = vrot.slane %v6411, 1
  %v6413 = vadd.f32 %v6411, %v6412
  %v6414 = vrcp.pop 64.0
  %v6415 = vmul.f32 %v3098, %v6414
  %v6416 = vmul.f32 %v3111, %v6414
  %v6417 = vmul.f32 %v3124, %v6414
  %v6418 = vmul.f32 %v3137, %v6414
  %v6419 = vmul.f32 %v3150, %v6414
  %v6420 = vmul.f32 %v3163, %v6414
  %v6421 = vmul.f32 %v3176, %v6414
  %v6422 = vmul.f32 %v3189, %v6414
  %v6423 = vmul.f32 %v3202, %v6414
  %v6424 = vmul.f32 %v3215, %v6414
  %v6425 = vmul.f32 %v3228, %v6414
  %v6426 = vmul.f32 %v3241, %v6414
  %v6427 = vmul.f32 %v3254, %v6414
  %v6428 = vmul.f32 %v3267, %v6414
  %v6429 = vmul.f32 %v3280, %v6414
  %v6430 = vmul.f32 %v3293, %v6414
  %v6431 = vmul.f32 %v3306, %v6414
  %v6432 = vmul.f32 %v3319, %v6414
  %v6433 = vmul.f32 %v3332, %v6414
  %v6434 = vmul.f32 %v3345, %v6414
  %v6435 = vmul.f32 %v3358, %v6414
  %v6436 = vmul.f32 %v3371, %v6414
  %v6437 = vmul.f32 %v3384, %v6414
  %v6438 = vmul.f32 %v3397, %v6414
  %v6439 = vmul.f32 %v3410, %v6414
  %v6440 = vmul.f32 %v3423, %v6414
  %v6441 = vmul.f32 %v3436, %v6414
  %v6442 = vmul.f32 %v3449, %v6414
  %v6443 = vmul.f32 %v3462, %v6414
  %v6444 = vmul.f32 %v3475, %v6414
  %v6445 = vmul.f32 %v3488, %v6414
  %v6446 = vmul.f32 %v3501, %v6414
  %v6447 = vmul.f32 %v3514, %v6414
  %v6448 = vmul.f32 %v3527, %v6414
  %v6449 = vmul.f32 %v3540, %v6414
  %v6450 = vmul.f32 %v3553, %v6414
  %v6451 = vmul.f32 %v3566, %v6414
  %v6452 = vmul.f32 %v3579, %v6414
  %v6453 = vmul.f32 %v3592, %v6414
  %v6454 = vmul.f32 %v3605, %v6414
  %v6455 = vmul.f32 %v3618, %v6414
  %v6456 = vmul.f32 %v3631, %v6414
  %v6457 = vmul.f32 %v3644, %v6414
  %v6458 = vmul.f32 %v3657, %v6414
  %v6459 = vmul.f32 %v3670, %v6414
  %v6460 = vmul.f32 %v3683, %v6414
  %v6461 = vmul.f32 %v3696, %v6414
  %v6462 = vmul.f32 %v3709, %v6414
  %v6463 = vmul.f32 %v3722, %v6414
  %v6464 = vmul.f32 %v3735, %v6414
  %v6465 = vmul.f32 %v3748, %v6414
  %v6466 = vmul.f32 %v3761, %v6414
  %v6467 = vmul.f32 %v3774, %v6414
  %v6468 = vmul.f32 %v3787, %v6414
  %v6469 = vmul.f32 %v3800, %v6414
  %v6470 = vmul.f32 %v3813, %v6414
  %v6471 = vmul.f32 %v3826, %v6414
  %v6472 = vmul.f32 %v3839, %v6414
  %v6473 = vmul.f32 %v3852, %v6414
  %v6474 = vmul.f32 %v3865, %v6414
  %v6475 = vmul.f32 %v3878, %v6414
  %v6476 = vmul.f32 %v3891, %v6414
  %v6477 = vmul.f32 %v3904, %v6414
  %v6478 = vmul.f32 %v3917, %v6414
  %v6479 = vmul.f32 %v3930, %v6414
  %v6480 = vmul.f32 %v3943, %v6414
  %v6481 = vmul.f32 %v3956, %v6414
  %v6482 = vmul.f32 %v3969, %v6414
  %v6483 = vmul.f32 %v3982, %v6414
  %v6484 = vmul.f32 %v3995, %v6414
  %v6485 = vmul.f32 %v4008, %v6414
  %v6486 = vmul.f32 %v4021, %v6414
  %v6487 = vmul.f32 %v4034, %v6414
  %v6488 = vmul.f32 %v4047, %v6414
  %v6489 = vmul.f32 %v4060, %v6414
  %v6490 = vmul.f32 %v4073, %v6414
  %v6491 = vmul.f32 %v4086, %v6414
  %v6492 = vmul.f32 %v4099, %v6414
  %v6493 = vmul.f32 %v4112, %v6414
  %v6494 = vmul.f32 %v4125, %v6414
  %v6495 = vmul.f32 %v4138, %v6414
  %v6496 = vmul.f32 %v4151, %v6414
  %v6497 = vmul.f32 %v4164, %v6414
  %v6498 = vmul.f32 %v4177, %v6414
  %v6499 = vmul.f32 %v4190, %v6414
  %v6500 = vmul.f32 %v4203, %v6414
  %v6501 = vmul.f32 %v4216, %v6414
  %v6502 = vmul.f32 %v4229, %v6414
  %v6503 = vmul.f32 %v4242, %v6414
  %v6504 = vmul.f32 %v4255, %v6414
  %v6505 = vmul.f32 %v4268, %v6414
  %v6506 = vmul.f32 %v4281, %v6414
  %v6507 = vmul.f32 %v4294, %v6414
  %v6508 = vmul.f32 %v4307, %v6414
  %v6509 = vmul.f32 %v4320, %v6414
  %v6510 = vmul.f32 %v4333, %v6414
  %v6511 = vmul.f32 %v4346, %v6414
  %v6512 = vmul.f32 %v4359, %v6414
  %v6513 = vmul.f32 %v4372, %v6414
  %v6514 = vmul.f32 %v4385, %v6414
  %v6515 = vmul.f32 %v4398, %v6414
  %v6516 = vmul.f32 %v4411, %v6414
  %v6517 = vmul.f32 %v4424, %v6414
  %v6518 = vmul.f32 %v4437, %v6414
  %v6519 = vmul.f32 %v4450, %v6414
  %v6520 = vmul.f32 %v4463, %v6414
  %v6521 = vmul.f32 %v4476, %v6414
  %v6522 = vmul.f32 %v4489, %v6414
  %v6523 = vmul.f32 %v4502, %v6414
  %v6524 = vmul.f32 %v4515, %v6414
  %v6525 = vmul.f32 %v4528, %v6414
  %v6526 = vmul.f32 %v4541, %v6414
  %v6527 = vmul.f32 %v4554, %v6414
  %v6528 = vmul.f32 %v4567, %v6414
  %v6529 = vmul.f32 %v4580, %v6414
  %v6530 = vmul.f32 %v4593, %v6414
  %v6531 = vmul.f32 %v4606, %v6414
  %v6532 = vmul.f32 %v4619, %v6414
  %v6533 = vmul.f32 %v4632, %v6414
  %v6534 = vmul.f32 %v4645, %v6414
  %v6535 = vmul.f32 %v4658, %v6414
  %v6536 = vmul.f32 %v4671, %v6414
  %v6537 = vmul.f32 %v4684, %v6414
  %v6538 = vmul.f32 %v4697, %v6414
  %v6539 = vmul.f32 %v4710, %v6414
  %v6540 = vmul.f32 %v4723, %v6414
  %v6541 = vmul.f32 %v4736, %v6414
  %v6542 = vmul.f32 %v4749, %v6414
  %v6543 = vmul.f32 %v4762, %v6414
  %v6544 = vmul.f32 %v4775, %v6414
  %v6545 = vmul.f32 %v4788, %v6414
  %v6546 = vmul.f32 %v4801, %v6414
  %v6547 = vmul.f32 %v4814, %v6414
  %v6548 = vmul.f32 %v4827, %v6414
  %v6549 = vmul.f32 %v4840, %v6414
  %v6550 = vmul.f32 %v4853, %v6414
  %v6551 = vmul.f32 %v4866, %v6414
  %v6552 = vmul.f32 %v4879, %v6414
  %v6553 = vmul.f32 %v4892, %v6414
  %v6554 = vmul.f32 %v4905, %v6414
  %v6555 = vmul.f32 %v4918, %v6414
  %v6556 = vmul.f32 %v4931, %v6414
  %v6557 = vmul.f32 %v4944, %v6414
  %v6558 = vmul.f32 %v4957, %v6414
  %v6559 = vmul.f32 %v4970, %v6414
  %v6560 = vmul.f32 %v4983, %v6414
  %v6561 = vmul.f32 %v4996, %v6414
  %v6562 = vmul.f32 %v5009, %v6414
  %v6563 = vmul.f32 %v5022, %v6414
  %v6564 = vmul.f32 %v5035, %v6414
  %v6565 = vmul.f32 %v5048, %v6414
  %v6566 = vmul.f32 %v5061, %v6414
  %v6567 = vmul.f32 %v5074, %v6414
  %v6568 = vmul.f32 %v5087, %v6414
  %v6569 = vmul.f32 %v5100, %v6414
  %v6570 = vmul.f32 %v5113, %v6414
  %v6571 = vmul.f32 %v5126, %v6414
  %v6572 = vmul.f32 %v5139, %v6414
  %v6573 = vmul.f32 %v5152, %v6414
  %v6574 = vmul.f32 %v5165, %v6414
  %v6575 = vmul.f32 %v5178, %v6414
  %v6576 = vmul.f32 %v5191, %v6414
  %v6577 = vmul.f32 %v5204, %v6414
  %v6578 = vmul.f32 %v5217, %v6414
  %v6579 = vmul.f32 %v5230, %v6414
  %v6580 = vmul.f32 %v5243, %v6414
  %v6581 = vmul.f32 %v5256, %v6414
  %v6582 = vmul.f32 %v5269, %v6414
  %v6583 = vmul.f32 %v5282, %v6414
  %v6584 = vmul.f32 %v5295, %v6414
  %v6585 = vmul.f32 %v5308, %v6414
  %v6586 = vmul.f32 %v5321, %v6414
  %v6587 = vmul.f32 %v5334, %v6414
  %v6588 = vmul.f32 %v5347, %v6414
  %v6589 = vmul.f32 %v5360, %v6414
  %v6590 = vmul.f32 %v5373, %v6414
  %v6591 = vmul.f32 %v5386, %v6414
  %v6592 = vmul.f32 %v5399, %v6414
  %v6593 = vmul.f32 %v5412, %v6414
  %v6594 = vmul.f32 %v5425, %v6414
  %v6595 = vmul.f32 %v5438, %v6414
  %v6596 = vmul.f32 %v5451, %v6414
  %v6597 = vmul.f32 %v5464, %v6414
  %v6598 = vmul.f32 %v5477, %v6414
  %v6599 = vmul.f32 %v5490, %v6414
  %v6600 = vmul.f32 %v5503, %v6414
  %v6601 = vmul.f32 %v5516, %v6414
  %v6602 = vmul.f32 %v5529, %v6414
  %v6603 = vmul.f32 %v5542, %v6414
  %v6604 = vmul.f32 %v5555, %v6414
  %v6605 = vmul.f32 %v5568, %v6414
  %v6606 = vmul.f32 %v5581, %v6414
  %v6607 = vmul.f32 %v5594, %v6414
  %v6608 = vmul.f32 %v5607, %v6414
  %v6609 = vmul.f32 %v5620, %v6414
  %v6610 = vmul.f32 %v5633, %v6414
  %v6611 = vmul.f32 %v5646, %v6414
  %v6612 = vmul.f32 %v5659, %v6414
  %v6613 = vmul.f32 %v5672, %v6414
  %v6614 = vmul.f32 %v5685, %v6414
  %v6615 = vmul.f32 %v5698, %v6414
  %v6616 = vmul.f32 %v5711, %v6414
  %v6617 = vmul.f32 %v5724, %v6414
  %v6618 = vmul.f32 %v5737, %v6414
  %v6619 = vmul.f32 %v5750, %v6414
  %v6620 = vmul.f32 %v5763, %v6414
  %v6621 = vmul.f32 %v5776, %v6414
  %v6622 = vmul.f32 %v5789, %v6414
  %v6623 = vmul.f32 %v5802, %v6414
  %v6624 = vmul.f32 %v5815, %v6414
  %v6625 = vmul.f32 %v5828, %v6414
  %v6626 = vmul.f32 %v5841, %v6414
  %v6627 = vmul.f32 %v5854, %v6414
  %v6628 = vmul.f32 %v5867, %v6414
  %v6629 = vmul.f32 %v5880, %v6414
  %v6630 = vmul.f32 %v5893, %v6414
  %v6631 = vmul.f32 %v5906, %v6414
  %v6632 = vmul.f32 %v5919, %v6414
  %v6633 = vmul.f32 %v5932, %v6414
  %v6634 = vmul.f32 %v5945, %v6414
  %v6635 = vmul.f32 %v5958, %v6414
  %v6636 = vmul.f32 %v5971, %v6414
  %v6637 = vmul.f32 %v5984, %v6414
  %v6638 = vmul.f32 %v5997, %v6414
  %v6639 = vmul.f32 %v6010, %v6414
  %v6640 = vmul.f32 %v6023, %v6414
  %v6641 = vmul.f32 %v6036, %v6414
  %v6642 = vmul.f32 %v6049, %v6414
  %v6643 = vmul.f32 %v6062, %v6414
  %v6644 = vmul.f32 %v6075, %v6414
  %v6645 = vmul.f32 %v6088, %v6414
  %v6646 = vmul.f32 %v6101, %v6414
  %v6647 = vmul.f32 %v6114, %v6414
  %v6648 = vmul.f32 %v6127, %v6414
  %v6649 = vmul.f32 %v6140, %v6414
  %v6650 = vmul.f32 %v6153, %v6414
  %v6651 = vmul.f32 %v6166, %v6414
  %v6652 = vmul.f32 %v6179, %v6414
  %v6653 = vmul.f32 %v6192, %v6414
  %v6654 = vmul.f32 %v6205, %v6414
  %v6655 = vmul.f32 %v6218, %v6414
  %v6656 = vmul.f32 %v6231, %v6414
  %v6657 = vmul.f32 %v6244, %v6414
  %v6658 = vmul.f32 %v6257, %v6414
  %v6659 = vmul.f32 %v6270, %v6414
  %v6660 = vmul.f32 %v6283, %v6414
  %v6661 = vmul.f32 %v6296, %v6414
  %v6662 = vmul.f32 %v6309, %v6414
  %v6663 = vmul.f32 %v6322, %v6414
  %v6664 = vmul.f32 %v6335, %v6414
  %v6665 = vmul.f32 %v6348, %v6414
  %v6666 = vmul.f32 %v6361, %v6414
  %v6667 = vmul.f32 %v6374, %v6414
  %v6668 = vmul.f32 %v6387, %v6414
  %v6669 = vmul.f32 %v6400, %v6414
  %v6670 = vmul.f32 %v6413, %v6414
  %v6671 = vpack.c.bf16 %v6415, %v6415
  %v6672 = vpack.c.bf16 %v6416, %v6416
  %v6673 = vpack.c.bf16 %v6417, %v6417
  %v6674 = vpack.c.bf16 %v6418, %v6418
  %v6675 = vpack.c.bf16 %v6419, %v6419
  %v6676 = vpack.c.bf16 %v6420, %v6420
  %v6677 = vpack.c.bf16 %v6421, %v6421
  %v6678 = vpack.c.bf16 %v6422, %v6422
  %v6679 = vpack.c.bf16 %v6423, %v6423
  %v6680 = vpack.c.bf16 %v6424, %v6424
  %v6681 = vpack.c.bf16 %v6425, %v6425
  %v6682 = vpack.c.bf16 %v6426, %v6426
  %v6683 = vpack.c.bf16 %v6427, %v6427
  %v6684 = vpack.c.bf16 %v6428, %v6428
  %v6685 = vpack.c.bf16 %v6429, %v6429
  %v6686 = vpack.c.bf16 %v6430, %v6430
  %v6687 = vpack.c.bf16 %v6431, %v6431
  %v6688 = vpack.c.bf16 %v6432, %v6432
  %v6689 = vpack.c.bf16 %v6433, %v6433
  %v6690 = vpack.c.bf16 %v6434, %v6434
  %v6691 = vpack.c.bf16 %v6435, %v6435
  %v6692 = vpack.c.bf16 %v6436, %v6436
  %v6693 = vpack.c.bf16 %v6437, %v6437
  %v6694 = vpack.c.bf16 %v6438, %v6438
  %v6695 = vpack.c.bf16 %v6439, %v6439
  %v6696 = vpack.c.bf16 %v6440, %v6440
  %v6697 = vpack.c.bf16 %v6441, %v6441
  %v6698 = vpack.c.bf16 %v6442, %v6442
  %v6699 = vpack.c.bf16 %v6443, %v6443
  %v6700 = vpack.c.bf16 %v6444, %v6444
  %v6701 = vpack.c.bf16 %v6445, %v6445
  %v6702 = vpack.c.bf16 %v6446, %v6446
  %v6703 = vpack.c.bf16 %v6447, %v6447
  %v6704 = vpack.c.bf16 %v6448, %v6448
  %v6705 = vpack.c.bf16 %v6449, %v6449
  %v6706 = vpack.c.bf16 %v6450, %v6450
  %v6707 = vpack.c.bf16 %v6451, %v6451
  %v6708 = vpack.c.bf16 %v6452, %v6452
  %v6709 = vpack.c.bf16 %v6453, %v6453
  %v6710 = vpack.c.bf16 %v6454, %v6454
  %v6711 = vpack.c.bf16 %v6455, %v6455
  %v6712 = vpack.c.bf16 %v6456, %v6456
  %v6713 = vpack.c.bf16 %v6457, %v6457
  %v6714 = vpack.c.bf16 %v6458, %v6458
  %v6715 = vpack.c.bf16 %v6459, %v6459
  %v6716 = vpack.c.bf16 %v6460, %v6460
  %v6717 = vpack.c.bf16 %v6461, %v6461
  %v6718 = vpack.c.bf16 %v6462, %v6462
  %v6719 = vpack.c.bf16 %v6463, %v6463
  %v6720 = vpack.c.bf16 %v6464, %v6464
  %v6721 = vpack.c.bf16 %v6465, %v6465
  %v6722 = vpack.c.bf16 %v6466, %v6466
  %v6723 = vpack.c.bf16 %v6467, %v6467
  %v6724 = vpack.c.bf16 %v6468, %v6468
  %v6725 = vpack.c.bf16 %v6469, %v6469
  %v6726 = vpack.c.bf16 %v6470, %v6470
  %v6727 = vpack.c.bf16 %v6471, %v6471
  %v6728 = vpack.c.bf16 %v6472, %v6472
  %v6729 = vpack.c.bf16 %v6473, %v6473
  %v6730 = vpack.c.bf16 %v6474, %v6474
  %v6731 = vpack.c.bf16 %v6475, %v6475
  %v6732 = vpack.c.bf16 %v6476, %v6476
  %v6733 = vpack.c.bf16 %v6477, %v6477
  %v6734 = vpack.c.bf16 %v6478, %v6478
  %v6735 = vpack.c.bf16 %v6479, %v6479
  %v6736 = vpack.c.bf16 %v6480, %v6480
  %v6737 = vpack.c.bf16 %v6481, %v6481
  %v6738 = vpack.c.bf16 %v6482, %v6482
  %v6739 = vpack.c.bf16 %v6483, %v6483
  %v6740 = vpack.c.bf16 %v6484, %v6484
  %v6741 = vpack.c.bf16 %v6485, %v6485
  %v6742 = vpack.c.bf16 %v6486, %v6486
  %v6743 = vpack.c.bf16 %v6487, %v6487
  %v6744 = vpack.c.bf16 %v6488, %v6488
  %v6745 = vpack.c.bf16 %v6489, %v6489
  %v6746 = vpack.c.bf16 %v6490, %v6490
  %v6747 = vpack.c.bf16 %v6491, %v6491
  %v6748 = vpack.c.bf16 %v6492, %v6492
  %v6749 = vpack.c.bf16 %v6493, %v6493
  %v6750 = vpack.c.bf16 %v6494, %v6494
  %v6751 = vpack.c.bf16 %v6495, %v6495
  %v6752 = vpack.c.bf16 %v6496, %v6496
  %v6753 = vpack.c.bf16 %v6497, %v6497
  %v6754 = vpack.c.bf16 %v6498, %v6498
  %v6755 = vpack.c.bf16 %v6499, %v6499
  %v6756 = vpack.c.bf16 %v6500, %v6500
  %v6757 = vpack.c.bf16 %v6501, %v6501
  %v6758 = vpack.c.bf16 %v6502, %v6502
  %v6759 = vpack.c.bf16 %v6503, %v6503
  %v6760 = vpack.c.bf16 %v6504, %v6504
  %v6761 = vpack.c.bf16 %v6505, %v6505
  %v6762 = vpack.c.bf16 %v6506, %v6506
  %v6763 = vpack.c.bf16 %v6507, %v6507
  %v6764 = vpack.c.bf16 %v6508, %v6508
  %v6765 = vpack.c.bf16 %v6509, %v6509
  %v6766 = vpack.c.bf16 %v6510, %v6510
  %v6767 = vpack.c.bf16 %v6511, %v6511
  %v6768 = vpack.c.bf16 %v6512, %v6512
  %v6769 = vpack.c.bf16 %v6513, %v6513
  %v6770 = vpack.c.bf16 %v6514, %v6514
  %v6771 = vpack.c.bf16 %v6515, %v6515
  %v6772 = vpack.c.bf16 %v6516, %v6516
  %v6773 = vpack.c.bf16 %v6517, %v6517
  %v6774 = vpack.c.bf16 %v6518, %v6518
  %v6775 = vpack.c.bf16 %v6519, %v6519
  %v6776 = vpack.c.bf16 %v6520, %v6520
  %v6777 = vpack.c.bf16 %v6521, %v6521
  %v6778 = vpack.c.bf16 %v6522, %v6522
  %v6779 = vpack.c.bf16 %v6523, %v6523
  %v6780 = vpack.c.bf16 %v6524, %v6524
  %v6781 = vpack.c.bf16 %v6525, %v6525
  %v6782 = vpack.c.bf16 %v6526, %v6526
  %v6783 = vpack.c.bf16 %v6527, %v6527
  %v6784 = vpack.c.bf16 %v6528, %v6528
  %v6785 = vpack.c.bf16 %v6529, %v6529
  %v6786 = vpack.c.bf16 %v6530, %v6530
  %v6787 = vpack.c.bf16 %v6531, %v6531
  %v6788 = vpack.c.bf16 %v6532, %v6532
  %v6789 = vpack.c.bf16 %v6533, %v6533
  %v6790 = vpack.c.bf16 %v6534, %v6534
  %v6791 = vpack.c.bf16 %v6535, %v6535
  %v6792 = vpack.c.bf16 %v6536, %v6536
  %v6793 = vpack.c.bf16 %v6537, %v6537
  %v6794 = vpack.c.bf16 %v6538, %v6538
  %v6795 = vpack.c.bf16 %v6539, %v6539
  %v6796 = vpack.c.bf16 %v6540, %v6540
  %v6797 = vpack.c.bf16 %v6541, %v6541
  %v6798 = vpack.c.bf16 %v6542, %v6542
  %v6799 = vpack.c.bf16 %v6543, %v6543
  %v6800 = vpack.c.bf16 %v6544, %v6544
  %v6801 = vpack.c.bf16 %v6545, %v6545
  %v6802 = vpack.c.bf16 %v6546, %v6546
  %v6803 = vpack.c.bf16 %v6547, %v6547
  %v6804 = vpack.c.bf16 %v6548, %v6548
  %v6805 = vpack.c.bf16 %v6549, %v6549
  %v6806 = vpack.c.bf16 %v6550, %v6550
  %v6807 = vpack.c.bf16 %v6551, %v6551
  %v6808 = vpack.c.bf16 %v6552, %v6552
  %v6809 = vpack.c.bf16 %v6553, %v6553
  %v6810 = vpack.c.bf16 %v6554, %v6554
  %v6811 = vpack.c.bf16 %v6555, %v6555
  %v6812 = vpack.c.bf16 %v6556, %v6556
  %v6813 = vpack.c.bf16 %v6557, %v6557
  %v6814 = vpack.c.bf16 %v6558, %v6558
  %v6815 = vpack.c.bf16 %v6559, %v6559
  %v6816 = vpack.c.bf16 %v6560, %v6560
  %v6817 = vpack.c.bf16 %v6561, %v6561
  %v6818 = vpack.c.bf16 %v6562, %v6562
  %v6819 = vpack.c.bf16 %v6563, %v6563
  %v6820 = vpack.c.bf16 %v6564, %v6564
  %v6821 = vpack.c.bf16 %v6565, %v6565
  %v6822 = vpack.c.bf16 %v6566, %v6566
  %v6823 = vpack.c.bf16 %v6567, %v6567
  %v6824 = vpack.c.bf16 %v6568, %v6568
  %v6825 = vpack.c.bf16 %v6569, %v6569
  %v6826 = vpack.c.bf16 %v6570, %v6570
  %v6827 = vpack.c.bf16 %v6571, %v6571
  %v6828 = vpack.c.bf16 %v6572, %v6572
  %v6829 = vpack.c.bf16 %v6573, %v6573
  %v6830 = vpack.c.bf16 %v6574, %v6574
  %v6831 = vpack.c.bf16 %v6575, %v6575
  %v6832 = vpack.c.bf16 %v6576, %v6576
  %v6833 = vpack.c.bf16 %v6577, %v6577
  %v6834 = vpack.c.bf16 %v6578, %v6578
  %v6835 = vpack.c.bf16 %v6579, %v6579
  %v6836 = vpack.c.bf16 %v6580, %v6580
  %v6837 = vpack.c.bf16 %v6581, %v6581
  %v6838 = vpack.c.bf16 %v6582, %v6582
  %v6839 = vpack.c.bf16 %v6583, %v6583
  %v6840 = vpack.c.bf16 %v6584, %v6584
  %v6841 = vpack.c.bf16 %v6585, %v6585
  %v6842 = vpack.c.bf16 %v6586, %v6586
  %v6843 = vpack.c.bf16 %v6587, %v6587
  %v6844 = vpack.c.bf16 %v6588, %v6588
  %v6845 = vpack.c.bf16 %v6589, %v6589
  %v6846 = vpack.c.bf16 %v6590, %v6590
  %v6847 = vpack.c.bf16 %v6591, %v6591
  %v6848 = vpack.c.bf16 %v6592, %v6592
  %v6849 = vpack.c.bf16 %v6593, %v6593
  %v6850 = vpack.c.bf16 %v6594, %v6594
  %v6851 = vpack.c.bf16 %v6595, %v6595
  %v6852 = vpack.c.bf16 %v6596, %v6596
  %v6853 = vpack.c.bf16 %v6597, %v6597
  %v6854 = vpack.c.bf16 %v6598, %v6598
  %v6855 = vpack.c.bf16 %v6599, %v6599
  %v6856 = vpack.c.bf16 %v6600, %v6600
  %v6857 = vpack.c.bf16 %v6601, %v6601
  %v6858 = vpack.c.bf16 %v6602, %v6602
  %v6859 = vpack.c.bf16 %v6603, %v6603
  %v6860 = vpack.c.bf16 %v6604, %v6604
  %v6861 = vpack.c.bf16 %v6605, %v6605
  %v6862 = vpack.c.bf16 %v6606, %v6606
  %v6863 = vpack.c.bf16 %v6607, %v6607
  %v6864 = vpack.c.bf16 %v6608, %v6608
  %v6865 = vpack.c.bf16 %v6609, %v6609
  %v6866 = vpack.c.bf16 %v6610, %v6610
  %v6867 = vpack.c.bf16 %v6611, %v6611
  %v6868 = vpack.c.bf16 %v6612, %v6612
  %v6869 = vpack.c.bf16 %v6613, %v6613
  %v6870 = vpack.c.bf16 %v6614, %v6614
  %v6871 = vpack.c.bf16 %v6615, %v6615
  %v6872 = vpack.c.bf16 %v6616, %v6616
  %v6873 = vpack.c.bf16 %v6617, %v6617
  %v6874 = vpack.c.bf16 %v6618, %v6618
  %v6875 = vpack.c.bf16 %v6619, %v6619
  %v6876 = vpack.c.bf16 %v6620, %v6620
  %v6877 = vpack.c.bf16 %v6621, %v6621
  %v6878 = vpack.c.bf16 %v6622, %v6622
  %v6879 = vpack.c.bf16 %v6623, %v6623
  %v6880 = vpack.c.bf16 %v6624, %v6624
  %v6881 = vpack.c.bf16 %v6625, %v6625
  %v6882 = vpack.c.bf16 %v6626, %v6626
  %v6883 = vpack.c.bf16 %v6627, %v6627
  %v6884 = vpack.c.bf16 %v6628, %v6628
  %v6885 = vpack.c.bf16 %v6629, %v6629
  %v6886 = vpack.c.bf16 %v6630, %v6630
  %v6887 = vpack.c.bf16 %v6631, %v6631
  %v6888 = vpack.c.bf16 %v6632, %v6632
  %v6889 = vpack.c.bf16 %v6633, %v6633
  %v6890 = vpack.c.bf16 %v6634, %v6634
  %v6891 = vpack.c.bf16 %v6635, %v6635
  %v6892 = vpack.c.bf16 %v6636, %v6636
  %v6893 = vpack.c.bf16 %v6637, %v6637
  %v6894 = vpack.c.bf16 %v6638, %v6638
  %v6895 = vpack.c.bf16 %v6639, %v6639
  %v6896 = vpack.c.bf16 %v6640, %v6640
  %v6897 = vpack.c.bf16 %v6641, %v6641
  %v6898 = vpack.c.bf16 %v6642, %v6642
  %v6899 = vpack.c.bf16 %v6643, %v6643
  %v6900 = vpack.c.bf16 %v6644, %v6644
  %v6901 = vpack.c.bf16 %v6645, %v6645
  %v6902 = vpack.c.bf16 %v6646, %v6646
  %v6903 = vpack.c.bf16 %v6647, %v6647
  %v6904 = vpack.c.bf16 %v6648, %v6648
  %v6905 = vpack.c.bf16 %v6649, %v6649
  %v6906 = vpack.c.bf16 %v6650, %v6650
  %v6907 = vpack.c.bf16 %v6651, %v6651
  %v6908 = vpack.c.bf16 %v6652, %v6652
  %v6909 = vpack.c.bf16 %v6653, %v6653
  %v6910 = vpack.c.bf16 %v6654, %v6654
  %v6911 = vpack.c.bf16 %v6655, %v6655
  %v6912 = vpack.c.bf16 %v6656, %v6656
  %v6913 = vpack.c.bf16 %v6657, %v6657
  %v6914 = vpack.c.bf16 %v6658, %v6658
  %v6915 = vpack.c.bf16 %v6659, %v6659
  %v6916 = vpack.c.bf16 %v6660, %v6660
  %v6917 = vpack.c.bf16 %v6661, %v6661
  %v6918 = vpack.c.bf16 %v6662, %v6662
  %v6919 = vpack.c.bf16 %v6663, %v6663
  %v6920 = vpack.c.bf16 %v6664, %v6664
  %v6921 = vpack.c.bf16 %v6665, %v6665
  %v6922 = vpack.c.bf16 %v6666, %v6666
  %v6923 = vpack.c.bf16 %v6667, %v6667
  %v6924 = vpack.c.bf16 %v6668, %v6668
  %v6925 = vpack.c.bf16 %v6669, %v6669
  %v6926 = vpack.c.bf16 %v6670, %v6670
  %v6927 = vld [vmem:[%s1] sm:$0xff]
  %v6928 = vld [vmem:[%s1 + $0x8] sm:$0xff]
  %v6929 = vld [vmem:[%s1 + $0x10] sm:$0xff]
  %v6930 = vld [vmem:[%s1 + $0x18] sm:$0xff]
  %v6931 = vld [vmem:[%s1 + $0x20] sm:$0xff]
  %v6932 = vld [vmem:[%s1 + $0x28] sm:$0xff]
  %v6933 = vld [vmem:[%s1 + $0x30] sm:$0xff]
  %v6934 = vld [vmem:[%s1 + $0x38] sm:$0xff]
  %v6935 = vld [vmem:[%s1 + $0x40] sm:$0xff]
  %v6936 = vld [vmem:[%s1 + $0x48] sm:$0xff]
  %v6937 = vld [vmem:[%s1 + $0x50] sm:$0xff]
  %v6938 = vld [vmem:[%s1 + $0x58] sm:$0xff]
  %v6939 = vld [vmem:[%s1 + $0x60] sm:$0xff]
  %v6940 = vld [vmem:[%s1 + $0x68] sm:$0xff]
  %v6941 = vld [vmem:[%s1 + $0x70] sm:$0xff]
  %v6942 = vld [vmem:[%s1 + $0x78] sm:$0xff]
  %v6943 = vld [vmem:[%s1 + $0x80] sm:$0xff]
  %v6944 = vld [vmem:[%s1 + $0x88] sm:$0xff]
  %v6945 = vld [vmem:[%s1 + $0x90] sm:$0xff]
  %v6946 = vld [vmem:[%s1 + $0x98] sm:$0xff]
  %v6947 = vld [vmem:[%s1 + $0xa0] sm:$0xff]
  %v6948 = vld [vmem:[%s1 + $0xa8] sm:$0xff]
  %v6949 = vld [vmem:[%s1 + $0xb0] sm:$0xff]
  %v6950 = vld [vmem:[%s1 + $0xb8] sm:$0xff]
  %v6951 = vld [vmem:[%s1 + $0xc0] sm:$0xff]
  %v6952 = vld [vmem:[%s1 + $0xc8] sm:$0xff]
  %v6953 = vld [vmem:[%s1 + $0xd0] sm:$0xff]
  %v6954 = vld [vmem:[%s1 + $0xd8] sm:$0xff]
  %v6955 = vld [vmem:[%s1 + $0xe0] sm:$0xff]
  %v6956 = vld [vmem:[%s1 + $0xe8] sm:$0xff]
  %v6957 = vld [vmem:[%s1 + $0xf0] sm:$0xff]
  %v6958 = vld [vmem:[%s1 + $0xf8] sm:$0xff]
  %v6959 = vld [vmem:[%s1 + $0x100] sm:$0xff]
  %v6960 = vld [vmem:[%s1 + $0x108] sm:$0xff]
  %v6961 = vld [vmem:[%s1 + $0x110] sm:$0xff]
  %v6962 = vld [vmem:[%s1 + $0x118] sm:$0xff]
  %v6963 = vld [vmem:[%s1 + $0x120] sm:$0xff]
  %v6964 = vld [vmem:[%s1 + $0x128] sm:$0xff]
  %v6965 = vld [vmem:[%s1 + $0x130] sm:$0xff]
  %v6966 = vld [vmem:[%s1 + $0x138] sm:$0xff]
  %v6967 = vld [vmem:[%s1 + $0x140] sm:$0xff]
  %v6968 = vld [vmem:[%s1 + $0x148] sm:$0xff]
  %v6969 = vld [vmem:[%s1 + $0x150] sm:$0xff]
  %v6970 = vld [vmem:[%s1 + $0x158] sm:$0xff]
  %v6971 = vld [vmem:[%s1 + $0x160] sm:$0xff]
  %v6972 = vld [vmem:[%s1 + $0x168] sm:$0xff]
  %v6973 = vld [vmem:[%s1 + $0x170] sm:$0xff]
  %v6974 = vld [vmem:[%s1 + $0x178] sm:$0xff]
  %v6975 = vld [vmem:[%s1 + $0x180] sm:$0xff]
  %v6976 = vld [vmem:[%s1 + $0x188] sm:$0xff]
  %v6977 = vld [vmem:[%s1 + $0x190] sm:$0xff]
  %v6978 = vld [vmem:[%s1 + $0x198] sm:$0xff]
  %v6979 = vld [vmem:[%s1 + $0x1a0] sm:$0xff]
  %v6980 = vld [vmem:[%s1 + $0x1a8] sm:$0xff]
  %v6981 = vld [vmem:[%s1 + $0x1b0] sm:$0xff]
  %v6982 = vld [vmem:[%s1 + $0x1b8] sm:$0xff]
  %v6983 = vld [vmem:[%s1 + $0x1c0] sm:$0xff]
  %v6984 = vld [vmem:[%s1 + $0x1c8] sm:$0xff]
  %v6985 = vld [vmem:[%s1 + $0x1d0] sm:$0xff]
  %v6986 = vld [vmem:[%s1 + $0x1d8] sm:$0xff]
  %v6987 = vld [vmem:[%s1 + $0x1e0] sm:$0xff]
  %v6988 = vld [vmem:[%s1 + $0x1e8] sm:$0xff]
  %v6989 = vld [vmem:[%s1 + $0x1f0] sm:$0xff]
  %v6990 = vld [vmem:[%s1 + $0x1f8] sm:$0xff]
  %v6991 = vld [vmem:[%s1 + $0x200] sm:$0xff]
  %v6992 = vld [vmem:[%s1 + $0x208] sm:$0xff]
  %v6993 = vld [vmem:[%s1 + $0x210] sm:$0xff]
  %v6994 = vld [vmem:[%s1 + $0x218] sm:$0xff]
  %v6995 = vld [vmem:[%s1 + $0x220] sm:$0xff]
  %v6996 = vld [vmem:[%s1 + $0x228] sm:$0xff]
  %v6997 = vld [vmem:[%s1 + $0x230] sm:$0xff]
  %v6998 = vld [vmem:[%s1 + $0x238] sm:$0xff]
  %v6999 = vld [vmem:[%s1 + $0x240] sm:$0xff]
  %v7000 = vld [vmem:[%s1 + $0x248] sm:$0xff]
  %v7001 = vld [vmem:[%s1 + $0x250] sm:$0xff]
  %v7002 = vld [vmem:[%s1 + $0x258] sm:$0xff]
  %v7003 = vld [vmem:[%s1 + $0x260] sm:$0xff]
  %v7004 = vld [vmem:[%s1 + $0x268] sm:$0xff]
  %v7005 = vld [vmem:[%s1 + $0x270] sm:$0xff]
  %v7006 = vld [vmem:[%s1 + $0x278] sm:$0xff]
  %v7007 = vld [vmem:[%s1 + $0x280] sm:$0xff]
  %v7008 = vld [vmem:[%s1 + $0x288] sm:$0xff]
  %v7009 = vld [vmem:[%s1 + $0x290] sm:$0xff]
  %v7010 = vld [vmem:[%s1 + $0x298] sm:$0xff]
  %v7011 = vld [vmem:[%s1 + $0x2a0] sm:$0xff]
  %v7012 = vld [vmem:[%s1 + $0x2a8] sm:$0xff]
  %v7013 = vld [vmem:[%s1 + $0x2b0] sm:$0xff]
  %v7014 = vld [vmem:[%s1 + $0x2b8] sm:$0xff]
  %v7015 = vld [vmem:[%s1 + $0x2c0] sm:$0xff]
  %v7016 = vld [vmem:[%s1 + $0x2c8] sm:$0xff]
  %v7017 = vld [vmem:[%s1 + $0x2d0] sm:$0xff]
  %v7018 = vld [vmem:[%s1 + $0x2d8] sm:$0xff]
  %v7019 = vld [vmem:[%s1 + $0x2e0] sm:$0xff]
  %v7020 = vld [vmem:[%s1 + $0x2e8] sm:$0xff]
  %v7021 = vld [vmem:[%s1 + $0x2f0] sm:$0xff]
  %v7022 = vld [vmem:[%s1 + $0x2f8] sm:$0xff]
  %v7023 = vld [vmem:[%s1 + $0x300] sm:$0xff]
  %v7024 = vld [vmem:[%s1 + $0x308] sm:$0xff]
  %v7025 = vld [vmem:[%s1 + $0x310] sm:$0xff]
  %v7026 = vld [vmem:[%s1 + $0x318] sm:$0xff]
  %v7027 = vld [vmem:[%s1 + $0x320] sm:$0xff]
  %v7028 = vld [vmem:[%s1 + $0x328] sm:$0xff]
  %v7029 = vld [vmem:[%s1 + $0x330] sm:$0xff]
  %v7030 = vld [vmem:[%s1 + $0x338] sm:$0xff]
  %v7031 = vld [vmem:[%s1 + $0x340] sm:$0xff]
  %v7032 = vld [vmem:[%s1 + $0x348] sm:$0xff]
  %v7033 = vld [vmem:[%s1 + $0x350] sm:$0xff]
  %v7034 = vld [vmem:[%s1 + $0x358] sm:$0xff]
  %v7035 = vld [vmem:[%s1 + $0x360] sm:$0xff]
  %v7036 = vld [vmem:[%s1 + $0x368] sm:$0xff]
  %v7037 = vld [vmem:[%s1 + $0x370] sm:$0xff]
  %v7038 = vld [vmem:[%s1 + $0x378] sm:$0xff]
  %v7039 = vld [vmem:[%s1 + $0x380] sm:$0xff]
  %v7040 = vld [vmem:[%s1 + $0x388] sm:$0xff]
  %v7041 = vld [vmem:[%s1 + $0x390] sm:$0xff]
  %v7042 = vld [vmem:[%s1 + $0x398] sm:$0xff]
  %v7043 = vld [vmem:[%s1 + $0x3a0] sm:$0xff]
  %v7044 = vld [vmem:[%s1 + $0x3a8] sm:$0xff]
  %v7045 = vld [vmem:[%s1 + $0x3b0] sm:$0xff]
  %v7046 = vld [vmem:[%s1 + $0x3b8] sm:$0xff]
  %v7047 = vld [vmem:[%s1 + $0x3c0] sm:$0xff]
  %v7048 = vld [vmem:[%s1 + $0x3c8] sm:$0xff]
  %v7049 = vld [vmem:[%s1 + $0x3d0] sm:$0xff]
  %v7050 = vld [vmem:[%s1 + $0x3d8] sm:$0xff]
  %v7051 = vld [vmem:[%s1 + $0x3e0] sm:$0xff]
  %v7052 = vld [vmem:[%s1 + $0x3e8] sm:$0xff]
  %v7053 = vld [vmem:[%s1 + $0x3f0] sm:$0xff]
  %v7054 = vld [vmem:[%s1 + $0x3f8] sm:$0xff]
  %v7055 = vld [vmem:[%s1 + $0x400] sm:$0xff]
  %v7056 = vld [vmem:[%s1 + $0x408] sm:$0xff]
  %v7057 = vld [vmem:[%s1 + $0x410] sm:$0xff]
  %v7058 = vld [vmem:[%s1 + $0x418] sm:$0xff]
  %v7059 = vld [vmem:[%s1 + $0x420] sm:$0xff]
  %v7060 = vld [vmem:[%s1 + $0x428] sm:$0xff]
  %v7061 = vld [vmem:[%s1 + $0x430] sm:$0xff]
  %v7062 = vld [vmem:[%s1 + $0x438] sm:$0xff]
  %v7063 = vld [vmem:[%s1 + $0x440] sm:$0xff]
  %v7064 = vld [vmem:[%s1 + $0x448] sm:$0xff]
  %v7065 = vld [vmem:[%s1 + $0x450] sm:$0xff]
  %v7066 = vld [vmem:[%s1 + $0x458] sm:$0xff]
  %v7067 = vld [vmem:[%s1 + $0x460] sm:$0xff]
  %v7068 = vld [vmem:[%s1 + $0x468] sm:$0xff]
  %v7069 = vld [vmem:[%s1 + $0x470] sm:$0xff]
  %v7070 = vld [vmem:[%s1 + $0x478] sm:$0xff]
  %v7071 = vld [vmem:[%s1 + $0x480] sm:$0xff]
  %v7072 = vld [vmem:[%s1 + $0x488] sm:$0xff]
  %v7073 = vld [vmem:[%s1 + $0x490] sm:$0xff]
  %v7074 = vld [vmem:[%s1 + $0x498] sm:$0xff]
  %v7075 = vld [vmem:[%s1 + $0x4a0] sm:$0xff]
  %v7076 = vld [vmem:[%s1 + $0x4a8] sm:$0xff]
  %v7077 = vld [vmem:[%s1 + $0x4b0] sm:$0xff]
  %v7078 = vld [vmem:[%s1 + $0x4b8] sm:$0xff]
  %v7079 = vld [vmem:[%s1 + $0x4c0] sm:$0xff]
  %v7080 = vld [vmem:[%s1 + $0x4c8] sm:$0xff]
  %v7081 = vld [vmem:[%s1 + $0x4d0] sm:$0xff]
  %v7082 = vld [vmem:[%s1 + $0x4d8] sm:$0xff]
  %v7083 = vld [vmem:[%s1 + $0x4e0] sm:$0xff]
  %v7084 = vld [vmem:[%s1 + $0x4e8] sm:$0xff]
  %v7085 = vld [vmem:[%s1 + $0x4f0] sm:$0xff]
  %v7086 = vld [vmem:[%s1 + $0x4f8] sm:$0xff]
  %v7087 = vld [vmem:[%s1 + $0x500] sm:$0xff]
  %v7088 = vld [vmem:[%s1 + $0x508] sm:$0xff]
  %v7089 = vld [vmem:[%s1 + $0x510] sm:$0xff]
  %v7090 = vld [vmem:[%s1 + $0x518] sm:$0xff]
  %v7091 = vld [vmem:[%s1 + $0x520] sm:$0xff]
  %v7092 = vld [vmem:[%s1 + $0x528] sm:$0xff]
  %v7093 = vld [vmem:[%s1 + $0x530] sm:$0xff]
  %v7094 = vld [vmem:[%s1 + $0x538] sm:$0xff]
  %v7095 = vld [vmem:[%s1 + $0x540] sm:$0xff]
  %v7096 = vld [vmem:[%s1 + $0x548] sm:$0xff]
  %v7097 = vld [vmem:[%s1 + $0x550] sm:$0xff]
  %v7098 = vld [vmem:[%s1 + $0x558] sm:$0xff]
  %v7099 = vld [vmem:[%s1 + $0x560] sm:$0xff]
  %v7100 = vld [vmem:[%s1 + $0x568] sm:$0xff]
  %v7101 = vld [vmem:[%s1 + $0x570] sm:$0xff]
  %v7102 = vld [vmem:[%s1 + $0x578] sm:$0xff]
  %v7103 = vld [vmem:[%s1 + $0x580] sm:$0xff]
  %v7104 = vld [vmem:[%s1 + $0x588] sm:$0xff]
  %v7105 = vld [vmem:[%s1 + $0x590] sm:$0xff]
  %v7106 = vld [vmem:[%s1 + $0x598] sm:$0xff]
  %v7107 = vld [vmem:[%s1 + $0x5a0] sm:$0xff]
  %v7108 = vld [vmem:[%s1 + $0x5a8] sm:$0xff]
  %v7109 = vld [vmem:[%s1 + $0x5b0] sm:$0xff]
  %v7110 = vld [vmem:[%s1 + $0x5b8] sm:$0xff]
  %v7111 = vld [vmem:[%s1 + $0x5c0] sm:$0xff]
  %v7112 = vld [vmem:[%s1 + $0x5c8] sm:$0xff]
  %v7113 = vld [vmem:[%s1 + $0x5d0] sm:$0xff]
  %v7114 = vld [vmem:[%s1 + $0x5d8] sm:$0xff]
  %v7115 = vld [vmem:[%s1 + $0x5e0] sm:$0xff]
  %v7116 = vld [vmem:[%s1 + $0x5e8] sm:$0xff]
  %v7117 = vld [vmem:[%s1 + $0x5f0] sm:$0xff]
  %v7118 = vld [vmem:[%s1 + $0x5f8] sm:$0xff]
  %v7119 = vld [vmem:[%s1 + $0x600] sm:$0xff]
  %v7120 = vld [vmem:[%s1 + $0x608] sm:$0xff]
  %v7121 = vld [vmem:[%s1 + $0x610] sm:$0xff]
  %v7122 = vld [vmem:[%s1 + $0x618] sm:$0xff]
  %v7123 = vld [vmem:[%s1 + $0x620] sm:$0xff]
  %v7124 = vld [vmem:[%s1 + $0x628] sm:$0xff]
  %v7125 = vld [vmem:[%s1 + $0x630] sm:$0xff]
  %v7126 = vld [vmem:[%s1 + $0x638] sm:$0xff]
  %v7127 = vld [vmem:[%s1 + $0x640] sm:$0xff]
  %v7128 = vld [vmem:[%s1 + $0x648] sm:$0xff]
  %v7129 = vld [vmem:[%s1 + $0x650] sm:$0xff]
  %v7130 = vld [vmem:[%s1 + $0x658] sm:$0xff]
  %v7131 = vld [vmem:[%s1 + $0x660] sm:$0xff]
  %v7132 = vld [vmem:[%s1 + $0x668] sm:$0xff]
  %v7133 = vld [vmem:[%s1 + $0x670] sm:$0xff]
  %v7134 = vld [vmem:[%s1 + $0x678] sm:$0xff]
  %v7135 = vld [vmem:[%s1 + $0x680] sm:$0xff]
  %v7136 = vld [vmem:[%s1 + $0x688] sm:$0xff]
  %v7137 = vld [vmem:[%s1 + $0x690] sm:$0xff]
  %v7138 = vld [vmem:[%s1 + $0x698] sm:$0xff]
  %v7139 = vld [vmem:[%s1 + $0x6a0] sm:$0xff]
  %v7140 = vld [vmem:[%s1 + $0x6a8] sm:$0xff]
  %v7141 = vld [vmem:[%s1 + $0x6b0] sm:$0xff]
  %v7142 = vld [vmem:[%s1 + $0x6b8] sm:$0xff]
  %v7143 = vld [vmem:[%s1 + $0x6c0] sm:$0xff]
  %v7144 = vld [vmem:[%s1 + $0x6c8] sm:$0xff]
  %v7145 = vld [vmem:[%s1 + $0x6d0] sm:$0xff]
  %v7146 = vld [vmem:[%s1 + $0x6d8] sm:$0xff]
  %v7147 = vld [vmem:[%s1 + $0x6e0] sm:$0xff]
  %v7148 = vld [vmem:[%s1 + $0x6e8] sm:$0xff]
  %v7149 = vld [vmem:[%s1 + $0x6f0] sm:$0xff]
  %v7150 = vld [vmem:[%s1 + $0x6f8] sm:$0xff]
  %v7151 = vld [vmem:[%s1 + $0x700] sm:$0xff]
  %v7152 = vld [vmem:[%s1 + $0x708] sm:$0xff]
  %v7153 = vld [vmem:[%s1 + $0x710] sm:$0xff]
  %v7154 = vld [vmem:[%s1 + $0x718] sm:$0xff]
  %v7155 = vld [vmem:[%s1 + $0x720] sm:$0xff]
  %v7156 = vld [vmem:[%s1 + $0x728] sm:$0xff]
  %v7157 = vld [vmem:[%s1 + $0x730] sm:$0xff]
  %v7158 = vld [vmem:[%s1 + $0x738] sm:$0xff]
  %v7159 = vld [vmem:[%s1 + $0x740] sm:$0xff]
  %v7160 = vld [vmem:[%s1 + $0x748] sm:$0xff]
  %v7161 = vld [vmem:[%s1 + $0x750] sm:$0xff]
  %v7162 = vld [vmem:[%s1 + $0x758] sm:$0xff]
  %v7163 = vld [vmem:[%s1 + $0x760] sm:$0xff]
  %v7164 = vld [vmem:[%s1 + $0x768] sm:$0xff]
  %v7165 = vld [vmem:[%s1 + $0x770] sm:$0xff]
  %v7166 = vld [vmem:[%s1 + $0x778] sm:$0xff]
  %v7167 = vld [vmem:[%s1 + $0x780] sm:$0xff]
  %v7168 = vld [vmem:[%s1 + $0x788] sm:$0xff]
  %v7169 = vld [vmem:[%s1 + $0x790] sm:$0xff]
  %v7170 = vld [vmem:[%s1 + $0x798] sm:$0xff]
  %v7171 = vld [vmem:[%s1 + $0x7a0] sm:$0xff]
  %v7172 = vld [vmem:[%s1 + $0x7a8] sm:$0xff]
  %v7173 = vld [vmem:[%s1 + $0x7b0] sm:$0xff]
  %v7174 = vld [vmem:[%s1 + $0x7b8] sm:$0xff]
  %v7175 = vld [vmem:[%s1 + $0x7c0] sm:$0xff]
  %v7176 = vld [vmem:[%s1 + $0x7c8] sm:$0xff]
  %v7177 = vld [vmem:[%s1 + $0x7d0] sm:$0xff]
  %v7178 = vld [vmem:[%s1 + $0x7d8] sm:$0xff]
  %v7179 = vld [vmem:[%s1 + $0x7e0] sm:$0xff]
  %v7180 = vld [vmem:[%s1 + $0x7e8] sm:$0xff]
  %v7181 = vld [vmem:[%s1 + $0x7f0] sm:$0xff]
  %v7182 = vld [vmem:[%s1 + $0x7f8] sm:$0xff]
  %v7183 = vld [vmem:[%s2] sm:$0x3]
  %v7185 = vlaneseq
  %v7186 = vshrl.u32 %v7185, 7
  %v7187 = vsub.s32 0, %v7186
  %v7188 = vrot.slane %v7183, %v7187
  %v7189 = vlaneseq
  %v7190 = vshrl.u32 %v7189, 7
  %v7191 = vsub.s32 1, %v7190
  %v7192 = vrot.slane %v7183, %v7191
  %v7451 = vunpack.c.l.b16 %v6671
  %v7452 = vunpack.c.l.b16 %v6672
  %v7453 = vunpack.c.l.b16 %v6673
  %v7454 = vunpack.c.l.b16 %v6674
  %v7455 = vunpack.c.l.b16 %v6675
  %v7456 = vunpack.c.l.b16 %v6676
  %v7457 = vunpack.c.l.b16 %v6677
  %v7458 = vunpack.c.l.b16 %v6678
  %v7459 = vunpack.c.l.b16 %v6679
  %v7460 = vunpack.c.l.b16 %v6680
  %v7461 = vunpack.c.l.b16 %v6681
  %v7462 = vunpack.c.l.b16 %v6682
  %v7463 = vunpack.c.l.b16 %v6683
  %v7464 = vunpack.c.l.b16 %v6684
  %v7465 = vunpack.c.l.b16 %v6685
  %v7466 = vunpack.c.l.b16 %v6686
  %v7467 = vunpack.c.l.b16 %v6687
  %v7468 = vunpack.c.l.b16 %v6688
  %v7469 = vunpack.c.l.b16 %v6689
  %v7470 = vunpack.c.l.b16 %v6690
  %v7471 = vunpack.c.l.b16 %v6691
  %v7472 = vunpack.c.l.b16 %v6692
  %v7473 = vunpack.c.l.b16 %v6693
  %v7474 = vunpack.c.l.b16 %v6694
  %v7475 = vunpack.c.l.b16 %v6695
  %v7476 = vunpack.c.l.b16 %v6696
  %v7477 = vunpack.c.l.b16 %v6697
  %v7478 = vunpack.c.l.b16 %v6698
  %v7479 = vunpack.c.l.b16 %v6699
  %v7480 = vunpack.c.l.b16 %v6700
  %v7481 = vunpack.c.l.b16 %v6701
  %v7482 = vunpack.c.l.b16 %v6702
  %v7483 = vunpack.c.l.b16 %v6703
  %v7484 = vunpack.c.l.b16 %v6704
  %v7485 = vunpack.c.l.b16 %v6705
  %v7486 = vunpack.c.l.b16 %v6706
  %v7487 = vunpack.c.l.b16 %v6707
  %v7488 = vunpack.c.l.b16 %v6708
  %v7489 = vunpack.c.l.b16 %v6709
  %v7490 = vunpack.c.l.b16 %v6710
  %v7491 = vunpack.c.l.b16 %v6711
  %v7492 = vunpack.c.l.b16 %v6712
  %v7493 = vunpack.c.l.b16 %v6713
  %v7494 = vunpack.c.l.b16 %v6714
  %v7495 = vunpack.c.l.b16 %v6715
  %v7496 = vunpack.c.l.b16 %v6716
  %v7497 = vunpack.c.l.b16 %v6717
  %v7498 = vunpack.c.l.b16 %v6718
  %v7499 = vunpack.c.l.b16 %v6719
  %v7500 = vunpack.c.l.b16 %v6720
  %v7501 = vunpack.c.l.b16 %v6721
  %v7502 = vunpack.c.l.b16 %v6722
  %v7503 = vunpack.c.l.b16 %v6723
  %v7504 = vunpack.c.l.b16 %v6724
  %v7505 = vunpack.c.l.b16 %v6725
  %v7506 = vunpack.c.l.b16 %v6726
  %v7507 = vunpack.c.l.b16 %v6727
  %v7508 = vunpack.c.l.b16 %v6728
  %v7509 = vunpack.c.l.b16 %v6729
  %v7510 = vunpack.c.l.b16 %v6730
  %v7511 = vunpack.c.l.b16 %v6731
  %v7512 = vunpack.c.l.b16 %v6732
  %v7513 = vunpack.c.l.b16 %v6733
  %v7514 = vunpack.c.l.b16 %v6734
  %v7515 = vunpack.c.l.b16 %v6735
  %v7516 = vunpack.c.l.b16 %v6736
  %v7517 = vunpack.c.l.b16 %v6737
  %v7518 = vunpack.c.l.b16 %v6738
  %v7519 = vunpack.c.l.b16 %v6739
  %v7520 = vunpack.c.l.b16 %v6740
  %v7521 = vunpack.c.l.b16 %v6741
  %v7522 = vunpack.c.l.b16 %v6742
  %v7523 = vunpack.c.l.b16 %v6743
  %v7524 = vunpack.c.l.b16 %v6744
  %v7525 = vunpack.c.l.b16 %v6745
  %v7526 = vunpack.c.l.b16 %v6746
  %v7527 = vunpack.c.l.b16 %v6747
  %v7528 = vunpack.c.l.b16 %v6748
  %v7529 = vunpack.c.l.b16 %v6749
  %v7530 = vunpack.c.l.b16 %v6750
  %v7531 = vunpack.c.l.b16 %v6751
  %v7532 = vunpack.c.l.b16 %v6752
  %v7533 = vunpack.c.l.b16 %v6753
  %v7534 = vunpack.c.l.b16 %v6754
  %v7535 = vunpack.c.l.b16 %v6755
  %v7536 = vunpack.c.l.b16 %v6756
  %v7537 = vunpack.c.l.b16 %v6757
  %v7538 = vunpack.c.l.b16 %v6758
  %v7539 = vunpack.c.l.b16 %v6759
  %v7540 = vunpack.c.l.b16 %v6760
  %v7541 = vunpack.c.l.b16 %v6761
  %v7542 = vunpack.c.l.b16 %v6762
  %v7543 = vunpack.c.l.b16 %v6763
  %v7544 = vunpack.c.l.b16 %v6764
  %v7545 = vunpack.c.l.b16 %v6765
  %v7546 = vunpack.c.l.b16 %v6766
  %v7547 = vunpack.c.l.b16 %v6767
  %v7548 = vunpack.c.l.b16 %v6768
  %v7549 = vunpack.c.l.b16 %v6769
  %v7550 = vunpack.c.l.b16 %v6770
  %v7551 = vunpack.c.l.b16 %v6771
  %v7552 = vunpack.c.l.b16 %v6772
  %v7553 = vunpack.c.l.b16 %v6773
  %v7554 = vunpack.c.l.b16 %v6774
  %v7555 = vunpack.c.l.b16 %v6775
  %v7556 = vunpack.c.l.b16 %v6776
  %v7557 = vunpack.c.l.b16 %v6777
  %v7558 = vunpack.c.l.b16 %v6778
  %v7559 = vunpack.c.l.b16 %v6779
  %v7560 = vunpack.c.l.b16 %v6780
  %v7561 = vunpack.c.l.b16 %v6781
  %v7562 = vunpack.c.l.b16 %v6782
  %v7563 = vunpack.c.l.b16 %v6783
  %v7564 = vunpack.c.l.b16 %v6784
  %v7565 = vunpack.c.l.b16 %v6785
  %v7566 = vunpack.c.l.b16 %v6786
  %v7567 = vunpack.c.l.b16 %v6787
  %v7568 = vunpack.c.l.b16 %v6788
  %v7569 = vunpack.c.l.b16 %v6789
  %v7570 = vunpack.c.l.b16 %v6790
  %v7571 = vunpack.c.l.b16 %v6791
  %v7572 = vunpack.c.l.b16 %v6792
  %v7573 = vunpack.c.l.b16 %v6793
  %v7574 = vunpack.c.l.b16 %v6794
  %v7575 = vunpack.c.l.b16 %v6795
  %v7576 = vunpack.c.l.b16 %v6796
  %v7577 = vunpack.c.l.b16 %v6797
  %v7578 = vunpack.c.l.b16 %v6798
  %v7579 = vunpack.c.l.b16 %v6799
  %v7580 = vunpack.c.l.b16 %v6800
  %v7581 = vunpack.c.l.b16 %v6801
  %v7582 = vunpack.c.l.b16 %v6802
  %v7583 = vunpack.c.l.b16 %v6803
  %v7584 = vunpack.c.l.b16 %v6804
  %v7585 = vunpack.c.l.b16 %v6805
  %v7586 = vunpack.c.l.b16 %v6806
  %v7587 = vunpack.c.l.b16 %v6807
  %v7588 = vunpack.c.l.b16 %v6808
  %v7589 = vunpack.c.l.b16 %v6809
  %v7590 = vunpack.c.l.b16 %v6810
  %v7591 = vunpack.c.l.b16 %v6811
  %v7592 = vunpack.c.l.b16 %v6812
  %v7593 = vunpack.c.l.b16 %v6813
  %v7594 = vunpack.c.l.b16 %v6814
  %v7595 = vunpack.c.l.b16 %v6815
  %v7596 = vunpack.c.l.b16 %v6816
  %v7597 = vunpack.c.l.b16 %v6817
  %v7598 = vunpack.c.l.b16 %v6818
  %v7599 = vunpack.c.l.b16 %v6819
  %v7600 = vunpack.c.l.b16 %v6820
  %v7601 = vunpack.c.l.b16 %v6821
  %v7602 = vunpack.c.l.b16 %v6822
  %v7603 = vunpack.c.l.b16 %v6823
  %v7604 = vunpack.c.l.b16 %v6824
  %v7605 = vunpack.c.l.b16 %v6825
  %v7606 = vunpack.c.l.b16 %v6826
  %v7607 = vunpack.c.l.b16 %v6827
  %v7608 = vunpack.c.l.b16 %v6828
  %v7609 = vunpack.c.l.b16 %v6829
  %v7610 = vunpack.c.l.b16 %v6830
  %v7611 = vunpack.c.l.b16 %v6831
  %v7612 = vunpack.c.l.b16 %v6832
  %v7613 = vunpack.c.l.b16 %v6833
  %v7614 = vunpack.c.l.b16 %v6834
  %v7615 = vunpack.c.l.b16 %v6835
  %v7616 = vunpack.c.l.b16 %v6836
  %v7617 = vunpack.c.l.b16 %v6837
  %v7618 = vunpack.c.l.b16 %v6838
  %v7619 = vunpack.c.l.b16 %v6839
  %v7620 = vunpack.c.l.b16 %v6840
  %v7621 = vunpack.c.l.b16 %v6841
  %v7622 = vunpack.c.l.b16 %v6842
  %v7623 = vunpack.c.l.b16 %v6843
  %v7624 = vunpack.c.l.b16 %v6844
  %v7625 = vunpack.c.l.b16 %v6845
  %v7626 = vunpack.c.l.b16 %v6846
  %v7627 = vunpack.c.l.b16 %v6847
  %v7628 = vunpack.c.l.b16 %v6848
  %v7629 = vunpack.c.l.b16 %v6849
  %v7630 = vunpack.c.l.b16 %v6850
  %v7631 = vunpack.c.l.b16 %v6851
  %v7632 = vunpack.c.l.b16 %v6852
  %v7633 = vunpack.c.l.b16 %v6853
  %v7634 = vunpack.c.l.b16 %v6854
  %v7635 = vunpack.c.l.b16 %v6855
  %v7636 = vunpack.c.l.b16 %v6856
  %v7637 = vunpack.c.l.b16 %v6857
  %v7638 = vunpack.c.l.b16 %v6858
  %v7639 = vunpack.c.l.b16 %v6859
  %v7640 = vunpack.c.l.b16 %v6860
  %v7641 = vunpack.c.l.b16 %v6861
  %v7642 = vunpack.c.l.b16 %v6862
  %v7643 = vunpack.c.l.b16 %v6863
  %v7644 = vunpack.c.l.b16 %v6864
  %v7645 = vunpack.c.l.b16 %v6865
  %v7646 = vunpack.c.l.b16 %v6866
  %v7647 = vunpack.c.l.b16 %v6867
  %v7648 = vunpack.c.l.b16 %v6868
  %v7649 = vunpack.c.l.b16 %v6869
  %v7650 = vunpack.c.l.b16 %v6870
  %v7651 = vunpack.c.l.b16 %v6871
  %v7652 = vunpack.c.l.b16 %v6872
  %v7653 = vunpack.c.l.b16 %v6873
  %v7654 = vunpack.c.l.b16 %v6874
  %v7655 = vunpack.c.l.b16 %v6875
  %v7656 = vunpack.c.l.b16 %v6876
  %v7657 = vunpack.c.l.b16 %v6877
  %v7658 = vunpack.c.l.b16 %v6878
  %v7659 = vunpack.c.l.b16 %v6879
  %v7660 = vunpack.c.l.b16 %v6880
  %v7661 = vunpack.c.l.b16 %v6881
  %v7662 = vunpack.c.l.b16 %v6882
  %v7663 = vunpack.c.l.b16 %v6883
  %v7664 = vunpack.c.l.b16 %v6884
  %v7665 = vunpack.c.l.b16 %v6885
  %v7666 = vunpack.c.l.b16 %v6886
  %v7667 = vunpack.c.l.b16 %v6887
  %v7668 = vunpack.c.l.b16 %v6888
  %v7669 = vunpack.c.l.b16 %v6889
  %v7670 = vunpack.c.l.b16 %v6890
  %v7671 = vunpack.c.l.b16 %v6891
  %v7672 = vunpack.c.l.b16 %v6892
  %v7673 = vunpack.c.l.b16 %v6893
  %v7674 = vunpack.c.l.b16 %v6894
  %v7675 = vunpack.c.l.b16 %v6895
  %v7676 = vunpack.c.l.b16 %v6896
  %v7677 = vunpack.c.l.b16 %v6897
  %v7678 = vunpack.c.l.b16 %v6898
  %v7679 = vunpack.c.l.b16 %v6899
  %v7680 = vunpack.c.l.b16 %v6900
  %v7681 = vunpack.c.l.b16 %v6901
  %v7682 = vunpack.c.l.b16 %v6902
  %v7683 = vunpack.c.l.b16 %v6903
  %v7684 = vunpack.c.l.b16 %v6904
  %v7685 = vunpack.c.l.b16 %v6905
  %v7686 = vunpack.c.l.b16 %v6906
  %v7687 = vunpack.c.l.b16 %v6907
  %v7688 = vunpack.c.l.b16 %v6908
  %v7689 = vunpack.c.l.b16 %v6909
  %v7690 = vunpack.c.l.b16 %v6910
  %v7691 = vunpack.c.l.b16 %v6911
  %v7692 = vunpack.c.l.b16 %v6912
  %v7693 = vunpack.c.l.b16 %v6913
  %v7694 = vunpack.c.l.b16 %v6914
  %v7695 = vunpack.c.l.b16 %v6915
  %v7696 = vunpack.c.l.b16 %v6916
  %v7697 = vunpack.c.l.b16 %v6917
  %v7698 = vunpack.c.l.b16 %v6918
  %v7699 = vunpack.c.l.b16 %v6919
  %v7700 = vunpack.c.l.b16 %v6920
  %v7701 = vunpack.c.l.b16 %v6921
  %v7702 = vunpack.c.l.b16 %v6922
  %v7703 = vunpack.c.l.b16 %v6923
  %v7704 = vunpack.c.l.b16 %v6924
  %v7705 = vunpack.c.l.b16 %v6925
  %v7706 = vunpack.c.l.b16 %v6926
  %vm7707 = vcmask 1041409
  %v7708 = vsel %vm7707, %v7467, %v7451
  %vm7709 = vcmask 1042434
  %v7710 = vsel %vm7709, %v7483, %v7708
  %vm7711 = vcmask 1043459
  %v7712 = vsel %vm7711, %v7499, %v7710
  %vm7713 = vcmask 1044484
  %v7714 = vsel %vm7713, %v7515, %v7712
  %vm7715 = vcmask 1045509
  %v7716 = vsel %vm7715, %v7531, %v7714
  %vm7717 = vcmask 1046534
  %v7718 = vsel %vm7717, %v7547, %v7716
  %vm7719 = vcmask 1047559
  %v7720 = vsel %vm7719, %v7563, %v7718
  %v7721 = vsel %vm7707, %v7468, %v7452
  %v7722 = vsel %vm7709, %v7484, %v7721
  %v7723 = vsel %vm7711, %v7500, %v7722
  %v7724 = vsel %vm7713, %v7516, %v7723
  %v7725 = vsel %vm7715, %v7532, %v7724
  %v7726 = vsel %vm7717, %v7548, %v7725
  %v7727 = vsel %vm7719, %v7564, %v7726
  %v7728 = vsel %vm7707, %v7469, %v7453
  %v7729 = vsel %vm7709, %v7485, %v7728
  %v7730 = vsel %vm7711, %v7501, %v7729
  %v7731 = vsel %vm7713, %v7517, %v7730
  %v7732 = vsel %vm7715, %v7533, %v7731
  %v7733 = vsel %vm7717, %v7549, %v7732
  %v7734 = vsel %vm7719, %v7565, %v7733
  %v7735 = vsel %vm7707, %v7470, %v7454
  %v7736 = vsel %vm7709, %v7486, %v7735
  %v7737 = vsel %vm7711, %v7502, %v7736
  %v7738 = vsel %vm7713, %v7518, %v7737
  %v7739 = vsel %vm7715, %v7534, %v7738
  %v7740 = vsel %vm7717, %v7550, %v7739
  %v7741 = vsel %vm7719, %v7566, %v7740
  %v7742 = vsel %vm7707, %v7471, %v7455
  %v7743 = vsel %vm7709, %v7487, %v7742
  %v7744 = vsel %vm7711, %v7503, %v7743
  %v7745 = vsel %vm7713, %v7519, %v7744
  %v7746 = vsel %vm7715, %v7535, %v7745
  %v7747 = vsel %vm7717, %v7551, %v7746
  %v7748 = vsel %vm7719, %v7567, %v7747
  %v7749 = vsel %vm7707, %v7472, %v7456
  %v7750 = vsel %vm7709, %v7488, %v7749
  %v7751 = vsel %vm7711, %v7504, %v7750
  %v7752 = vsel %vm7713, %v7520, %v7751
  %v7753 = vsel %vm7715, %v7536, %v7752
  %v7754 = vsel %vm7717, %v7552, %v7753
  %v7755 = vsel %vm7719, %v7568, %v7754
  %v7756 = vsel %vm7707, %v7473, %v7457
  %v7757 = vsel %vm7709, %v7489, %v7756
  %v7758 = vsel %vm7711, %v7505, %v7757
  %v7759 = vsel %vm7713, %v7521, %v7758
  %v7760 = vsel %vm7715, %v7537, %v7759
  %v7761 = vsel %vm7717, %v7553, %v7760
  %v7762 = vsel %vm7719, %v7569, %v7761
  %v7763 = vsel %vm7707, %v7474, %v7458
  %v7764 = vsel %vm7709, %v7490, %v7763
  %v7765 = vsel %vm7711, %v7506, %v7764
  %v7766 = vsel %vm7713, %v7522, %v7765
  %v7767 = vsel %vm7715, %v7538, %v7766
  %v7768 = vsel %vm7717, %v7554, %v7767
  %v7769 = vsel %vm7719, %v7570, %v7768
  %v7770 = vsel %vm7707, %v7475, %v7459
  %v7771 = vsel %vm7709, %v7491, %v7770
  %v7772 = vsel %vm7711, %v7507, %v7771
  %v7773 = vsel %vm7713, %v7523, %v7772
  %v7774 = vsel %vm7715, %v7539, %v7773
  %v7775 = vsel %vm7717, %v7555, %v7774
  %v7776 = vsel %vm7719, %v7571, %v7775
  %v7777 = vsel %vm7707, %v7476, %v7460
  %v7778 = vsel %vm7709, %v7492, %v7777
  %v7779 = vsel %vm7711, %v7508, %v7778
  %v7780 = vsel %vm7713, %v7524, %v7779
  %v7781 = vsel %vm7715, %v7540, %v7780
  %v7782 = vsel %vm7717, %v7556, %v7781
  %v7783 = vsel %vm7719, %v7572, %v7782
  %v7784 = vsel %vm7707, %v7477, %v7461
  %v7785 = vsel %vm7709, %v7493, %v7784
  %v7786 = vsel %vm7711, %v7509, %v7785
  %v7787 = vsel %vm7713, %v7525, %v7786
  %v7788 = vsel %vm7715, %v7541, %v7787
  %v7789 = vsel %vm7717, %v7557, %v7788
  %v7790 = vsel %vm7719, %v7573, %v7789
  %v7791 = vsel %vm7707, %v7478, %v7462
  %v7792 = vsel %vm7709, %v7494, %v7791
  %v7793 = vsel %vm7711, %v7510, %v7792
  %v7794 = vsel %vm7713, %v7526, %v7793
  %v7795 = vsel %vm7715, %v7542, %v7794
  %v7796 = vsel %vm7717, %v7558, %v7795
  %v7797 = vsel %vm7719, %v7574, %v7796
  %v7798 = vsel %vm7707, %v7479, %v7463
  %v7799 = vsel %vm7709, %v7495, %v7798
  %v7800 = vsel %vm7711, %v7511, %v7799
  %v7801 = vsel %vm7713, %v7527, %v7800
  %v7802 = vsel %vm7715, %v7543, %v7801
  %v7803 = vsel %vm7717, %v7559, %v7802
  %v7804 = vsel %vm7719, %v7575, %v7803
  %v7805 = vsel %vm7707, %v7480, %v7464
  %v7806 = vsel %vm7709, %v7496, %v7805
  %v7807 = vsel %vm7711, %v7512, %v7806
  %v7808 = vsel %vm7713, %v7528, %v7807
  %v7809 = vsel %vm7715, %v7544, %v7808
  %v7810 = vsel %vm7717, %v7560, %v7809
  %v7811 = vsel %vm7719, %v7576, %v7810
  %v7812 = vsel %vm7707, %v7481, %v7465
  %v7813 = vsel %vm7709, %v7497, %v7812
  %v7814 = vsel %vm7711, %v7513, %v7813
  %v7815 = vsel %vm7713, %v7529, %v7814
  %v7816 = vsel %vm7715, %v7545, %v7815
  %v7817 = vsel %vm7717, %v7561, %v7816
  %v7818 = vsel %vm7719, %v7577, %v7817
  %v7819 = vsel %vm7707, %v7482, %v7466
  %v7820 = vsel %vm7709, %v7498, %v7819
  %v7821 = vsel %vm7711, %v7514, %v7820
  %v7822 = vsel %vm7713, %v7530, %v7821
  %v7823 = vsel %vm7715, %v7546, %v7822
  %v7824 = vsel %vm7717, %v7562, %v7823
  %v7825 = vsel %vm7719, %v7578, %v7824
  %v7826 = vsel %vm7707, %v7595, %v7579
  %v7827 = vsel %vm7709, %v7611, %v7826
  %v7828 = vsel %vm7711, %v7627, %v7827
  %v7829 = vsel %vm7713, %v7643, %v7828
  %v7830 = vsel %vm7715, %v7659, %v7829
  %v7831 = vsel %vm7717, %v7675, %v7830
  %v7832 = vsel %vm7719, %v7691, %v7831
  %v7833 = vsel %vm7707, %v7596, %v7580
  %v7834 = vsel %vm7709, %v7612, %v7833
  %v7835 = vsel %vm7711, %v7628, %v7834
  %v7836 = vsel %vm7713, %v7644, %v7835
  %v7837 = vsel %vm7715, %v7660, %v7836
  %v7838 = vsel %vm7717, %v7676, %v7837
  %v7839 = vsel %vm7719, %v7692, %v7838
  %v7840 = vsel %vm7707, %v7597, %v7581
  %v7841 = vsel %vm7709, %v7613, %v7840
  %v7842 = vsel %vm7711, %v7629, %v7841
  %v7843 = vsel %vm7713, %v7645, %v7842
  %v7844 = vsel %vm7715, %v7661, %v7843
  %v7845 = vsel %vm7717, %v7677, %v7844
  %v7846 = vsel %vm7719, %v7693, %v7845
  %v7847 = vsel %vm7707, %v7598, %v7582
  %v7848 = vsel %vm7709, %v7614, %v7847
  %v7849 = vsel %vm7711, %v7630, %v7848
  %v7850 = vsel %vm7713, %v7646, %v7849
  %v7851 = vsel %vm7715, %v7662, %v7850
  %v7852 = vsel %vm7717, %v7678, %v7851
  %v7853 = vsel %vm7719, %v7694, %v7852
  %v7854 = vsel %vm7707, %v7599, %v7583
  %v7855 = vsel %vm7709, %v7615, %v7854
  %v7856 = vsel %vm7711, %v7631, %v7855
  %v7857 = vsel %vm7713, %v7647, %v7856
  %v7858 = vsel %vm7715, %v7663, %v7857
  %v7859 = vsel %vm7717, %v7679, %v7858
  %v7860 = vsel %vm7719, %v7695, %v7859
  %v7861 = vsel %vm7707, %v7600, %v7584
  %v7862 = vsel %vm7709, %v7616, %v7861
  %v7863 = vsel %vm7711, %v7632, %v7862
  %v7864 = vsel %vm7713, %v7648, %v7863
  %v7865 = vsel %vm7715, %v7664, %v7864
  %v7866 = vsel %vm7717, %v7680, %v7865
  %v7867 = vsel %vm7719, %v7696, %v7866
  %v7868 = vsel %vm7707, %v7601, %v7585
  %v7869 = vsel %vm7709, %v7617, %v7868
  %v7870 = vsel %vm7711, %v7633, %v7869
  %v7871 = vsel %vm7713, %v7649, %v7870
  %v7872 = vsel %vm7715, %v7665, %v7871
  %v7873 = vsel %vm7717, %v7681, %v7872
  %v7874 = vsel %vm7719, %v7697, %v7873
  %v7875 = vsel %vm7707, %v7602, %v7586
  %v7876 = vsel %vm7709, %v7618, %v7875
  %v7877 = vsel %vm7711, %v7634, %v7876
  %v7878 = vsel %vm7713, %v7650, %v7877
  %v7879 = vsel %vm7715, %v7666, %v7878
  %v7880 = vsel %vm7717, %v7682, %v7879
  %v7881 = vsel %vm7719, %v7698, %v7880
  %v7882 = vsel %vm7707, %v7603, %v7587
  %v7883 = vsel %vm7709, %v7619, %v7882
  %v7884 = vsel %vm7711, %v7635, %v7883
  %v7885 = vsel %vm7713, %v7651, %v7884
  %v7886 = vsel %vm7715, %v7667, %v7885
  %v7887 = vsel %vm7717, %v7683, %v7886
  %v7888 = vsel %vm7719, %v7699, %v7887
  %v7889 = vsel %vm7707, %v7604, %v7588
  %v7890 = vsel %vm7709, %v7620, %v7889
  %v7891 = vsel %vm7711, %v7636, %v7890
  %v7892 = vsel %vm7713, %v7652, %v7891
  %v7893 = vsel %vm7715, %v7668, %v7892
  %v7894 = vsel %vm7717, %v7684, %v7893
  %v7895 = vsel %vm7719, %v7700, %v7894
  %v7896 = vsel %vm7707, %v7605, %v7589
  %v7897 = vsel %vm7709, %v7621, %v7896
  %v7898 = vsel %vm7711, %v7637, %v7897
  %v7899 = vsel %vm7713, %v7653, %v7898
  %v7900 = vsel %vm7715, %v7669, %v7899
  %v7901 = vsel %vm7717, %v7685, %v7900
  %v7902 = vsel %vm7719, %v7701, %v7901
  %v7903 = vsel %vm7707, %v7606, %v7590
  %v7904 = vsel %vm7709, %v7622, %v7903
  %v7905 = vsel %vm7711, %v7638, %v7904
  %v7906 = vsel %vm7713, %v7654, %v7905
  %v7907 = vsel %vm7715, %v7670, %v7906
  %v7908 = vsel %vm7717, %v7686, %v7907
  %v7909 = vsel %vm7719, %v7702, %v7908
  %v7910 = vsel %vm7707, %v7607, %v7591
  %v7911 = vsel %vm7709, %v7623, %v7910
  %v7912 = vsel %vm7711, %v7639, %v7911
  %v7913 = vsel %vm7713, %v7655, %v7912
  %v7914 = vsel %vm7715, %v7671, %v7913
  %v7915 = vsel %vm7717, %v7687, %v7914
  %v7916 = vsel %vm7719, %v7703, %v7915
  %v7917 = vsel %vm7707, %v7608, %v7592
  %v7918 = vsel %vm7709, %v7624, %v7917
  %v7919 = vsel %vm7711, %v7640, %v7918
  %v7920 = vsel %vm7713, %v7656, %v7919
  %v7921 = vsel %vm7715, %v7672, %v7920
  %v7922 = vsel %vm7717, %v7688, %v7921
  %v7923 = vsel %vm7719, %v7704, %v7922
  %v7924 = vsel %vm7707, %v7609, %v7593
  %v7925 = vsel %vm7709, %v7625, %v7924
  %v7926 = vsel %vm7711, %v7641, %v7925
  %v7927 = vsel %vm7713, %v7657, %v7926
  %v7928 = vsel %vm7715, %v7673, %v7927
  %v7929 = vsel %vm7717, %v7689, %v7928
  %v7930 = vsel %vm7719, %v7705, %v7929
  %v7931 = vsel %vm7707, %v7610, %v7594
  %v7932 = vsel %vm7709, %v7626, %v7931
  %v7933 = vsel %vm7711, %v7642, %v7932
  %v7934 = vsel %vm7713, %v7658, %v7933
  %v7935 = vsel %vm7715, %v7674, %v7934
  %v7936 = vsel %vm7717, %v7690, %v7935
  %v7937 = vsel %vm7719, %v7706, %v7936
  %v7938 = vpack.c.b16 %v7832, %v7720
  %v7939 = vpack.c.b16 %v7839, %v7727
  %v7940 = vpack.c.b16 %v7846, %v7734
  %v7941 = vpack.c.b16 %v7853, %v7741
  %v7942 = vpack.c.b16 %v7860, %v7748
  %v7943 = vpack.c.b16 %v7867, %v7755
  %v7944 = vpack.c.b16 %v7874, %v7762
  %v7945 = vpack.c.b16 %v7881, %v7769
  %v7946 = vpack.c.b16 %v7888, %v7776
  %v7947 = vpack.c.b16 %v7895, %v7783
  %v7948 = vpack.c.b16 %v7902, %v7790
  %v7949 = vpack.c.b16 %v7909, %v7797
  %v7950 = vpack.c.b16 %v7916, %v7804
  %v7951 = vpack.c.b16 %v7923, %v7811
  %v7952 = vpack.c.b16 %v7930, %v7818
  %v7953 = vpack.c.b16 %v7937, %v7825
  %v8226 = vunpack.c.l.b16 %v6927
  %v8227 = vunpack.c.h.b16 %v6927
  %v8228 = vunpack.c.l.b16 %v6928
  %v8229 = vunpack.c.h.b16 %v6928
  %v8230 = vunpack.c.l.b16 %v6929
  %v8231 = vunpack.c.h.b16 %v6929
  %v8232 = vunpack.c.l.b16 %v6930
  %v8233 = vunpack.c.h.b16 %v6930
  %v8234 = vunpack.c.l.b16 %v6931
  %v8235 = vunpack.c.h.b16 %v6931
  %v8236 = vunpack.c.l.b16 %v6932
  %v8237 = vunpack.c.h.b16 %v6932
  %v8238 = vunpack.c.l.b16 %v6933
  %v8239 = vunpack.c.h.b16 %v6933
  %v8240 = vunpack.c.l.b16 %v6934
  %v8241 = vunpack.c.h.b16 %v6934
  %v8242 = vunpack.c.l.b16 %v6935
  %v8243 = vunpack.c.h.b16 %v6935
  %v8244 = vunpack.c.l.b16 %v6936
  %v8245 = vunpack.c.h.b16 %v6936
  %v8246 = vunpack.c.l.b16 %v6937
  %v8247 = vunpack.c.h.b16 %v6937
  %v8248 = vunpack.c.l.b16 %v6938
  %v8249 = vunpack.c.h.b16 %v6938
  %v8250 = vunpack.c.l.b16 %v6939
  %v8251 = vunpack.c.h.b16 %v6939
  %v8252 = vunpack.c.l.b16 %v6940
  %v8253 = vunpack.c.h.b16 %v6940
  %v8254 = vunpack.c.l.b16 %v6941
  %v8255 = vunpack.c.h.b16 %v6941
  %v8256 = vunpack.c.l.b16 %v6942
  %v8257 = vunpack.c.h.b16 %v6942
  %v8258 = vunpack.c.l.b16 %v6943
  %v8259 = vunpack.c.h.b16 %v6943
  %v8260 = vunpack.c.l.b16 %v6944
  %v8261 = vunpack.c.h.b16 %v6944
  %v8262 = vunpack.c.l.b16 %v6945
  %v8263 = vunpack.c.h.b16 %v6945
  %v8264 = vunpack.c.l.b16 %v6946
  %v8265 = vunpack.c.h.b16 %v6946
  %v8266 = vunpack.c.l.b16 %v6947
  %v8267 = vunpack.c.h.b16 %v6947
  %v8268 = vunpack.c.l.b16 %v6948
  %v8269 = vunpack.c.h.b16 %v6948
  %v8270 = vunpack.c.l.b16 %v6949
  %v8271 = vunpack.c.h.b16 %v6949
  %v8272 = vunpack.c.l.b16 %v6950
  %v8273 = vunpack.c.h.b16 %v6950
  %v8274 = vunpack.c.l.b16 %v6951
  %v8275 = vunpack.c.h.b16 %v6951
  %v8276 = vunpack.c.l.b16 %v6952
  %v8277 = vunpack.c.h.b16 %v6952
  %v8278 = vunpack.c.l.b16 %v6953
  %v8279 = vunpack.c.h.b16 %v6953
  %v8280 = vunpack.c.l.b16 %v6954
  %v8281 = vunpack.c.h.b16 %v6954
  %v8282 = vunpack.c.l.b16 %v6955
  %v8283 = vunpack.c.h.b16 %v6955
  %v8284 = vunpack.c.l.b16 %v6956
  %v8285 = vunpack.c.h.b16 %v6956
  %v8286 = vunpack.c.l.b16 %v6957
  %v8287 = vunpack.c.h.b16 %v6957
  %v8288 = vunpack.c.l.b16 %v6958
  %v8289 = vunpack.c.h.b16 %v6958
  %v8290 = vunpack.c.l.b16 %v6959
  %v8291 = vunpack.c.h.b16 %v6959
  %v8292 = vunpack.c.l.b16 %v6960
  %v8293 = vunpack.c.h.b16 %v6960
  %v8294 = vunpack.c.l.b16 %v6961
  %v8295 = vunpack.c.h.b16 %v6961
  %v8296 = vunpack.c.l.b16 %v6962
  %v8297 = vunpack.c.h.b16 %v6962
  %v8298 = vunpack.c.l.b16 %v6963
  %v8299 = vunpack.c.h.b16 %v6963
  %v8300 = vunpack.c.l.b16 %v6964
  %v8301 = vunpack.c.h.b16 %v6964
  %v8302 = vunpack.c.l.b16 %v6965
  %v8303 = vunpack.c.h.b16 %v6965
  %v8304 = vunpack.c.l.b16 %v6966
  %v8305 = vunpack.c.h.b16 %v6966
  %v8306 = vunpack.c.l.b16 %v6967
  %v8307 = vunpack.c.h.b16 %v6967
  %v8308 = vunpack.c.l.b16 %v6968
  %v8309 = vunpack.c.h.b16 %v6968
  %v8310 = vunpack.c.l.b16 %v6969
  %v8311 = vunpack.c.h.b16 %v6969
  %v8312 = vunpack.c.l.b16 %v6970
  %v8313 = vunpack.c.h.b16 %v6970
  %v8314 = vunpack.c.l.b16 %v6971
  %v8315 = vunpack.c.h.b16 %v6971
  %v8316 = vunpack.c.l.b16 %v6972
  %v8317 = vunpack.c.h.b16 %v6972
  %v8318 = vunpack.c.l.b16 %v6973
  %v8319 = vunpack.c.h.b16 %v6973
  %v8320 = vunpack.c.l.b16 %v6974
  %v8321 = vunpack.c.h.b16 %v6974
  %v8322 = vunpack.c.l.b16 %v6975
  %v8323 = vunpack.c.h.b16 %v6975
  %v8324 = vunpack.c.l.b16 %v6976
  %v8325 = vunpack.c.h.b16 %v6976
  %v8326 = vunpack.c.l.b16 %v6977
  %v8327 = vunpack.c.h.b16 %v6977
  %v8328 = vunpack.c.l.b16 %v6978
  %v8329 = vunpack.c.h.b16 %v6978
  %v8330 = vunpack.c.l.b16 %v6979
  %v8331 = vunpack.c.h.b16 %v6979
  %v8332 = vunpack.c.l.b16 %v6980
  %v8333 = vunpack.c.h.b16 %v6980
  %v8334 = vunpack.c.l.b16 %v6981
  %v8335 = vunpack.c.h.b16 %v6981
  %v8336 = vunpack.c.l.b16 %v6982
  %v8337 = vunpack.c.h.b16 %v6982
  %v8338 = vunpack.c.l.b16 %v6983
  %v8339 = vunpack.c.h.b16 %v6983
  %v8340 = vunpack.c.l.b16 %v6984
  %v8341 = vunpack.c.h.b16 %v6984
  %v8342 = vunpack.c.l.b16 %v6985
  %v8343 = vunpack.c.h.b16 %v6985
  %v8344 = vunpack.c.l.b16 %v6986
  %v8345 = vunpack.c.h.b16 %v6986
  %v8346 = vunpack.c.l.b16 %v6987
  %v8347 = vunpack.c.h.b16 %v6987
  %v8348 = vunpack.c.l.b16 %v6988
  %v8349 = vunpack.c.h.b16 %v6988
  %v8350 = vunpack.c.l.b16 %v6989
  %v8351 = vunpack.c.h.b16 %v6989
  %v8352 = vunpack.c.l.b16 %v6990
  %v8353 = vunpack.c.h.b16 %v6990
  %v8354 = vunpack.c.l.b16 %v6991
  %v8355 = vunpack.c.h.b16 %v6991
  %v8356 = vunpack.c.l.b16 %v6992
  %v8357 = vunpack.c.h.b16 %v6992
  %v8358 = vunpack.c.l.b16 %v6993
  %v8359 = vunpack.c.h.b16 %v6993
  %v8360 = vunpack.c.l.b16 %v6994
  %v8361 = vunpack.c.h.b16 %v6994
  %v8362 = vunpack.c.l.b16 %v6995
  %v8363 = vunpack.c.h.b16 %v6995
  %v8364 = vunpack.c.l.b16 %v6996
  %v8365 = vunpack.c.h.b16 %v6996
  %v8366 = vunpack.c.l.b16 %v6997
  %v8367 = vunpack.c.h.b16 %v6997
  %v8368 = vunpack.c.l.b16 %v6998
  %v8369 = vunpack.c.h.b16 %v6998
  %v8370 = vunpack.c.l.b16 %v6999
  %v8371 = vunpack.c.h.b16 %v6999
  %v8372 = vunpack.c.l.b16 %v7000
  %v8373 = vunpack.c.h.b16 %v7000
  %v8374 = vunpack.c.l.b16 %v7001
  %v8375 = vunpack.c.h.b16 %v7001
  %v8376 = vunpack.c.l.b16 %v7002
  %v8377 = vunpack.c.h.b16 %v7002
  %v8378 = vunpack.c.l.b16 %v7003
  %v8379 = vunpack.c.h.b16 %v7003
  %v8380 = vunpack.c.l.b16 %v7004
  %v8381 = vunpack.c.h.b16 %v7004
  %v8382 = vunpack.c.l.b16 %v7005
  %v8383 = vunpack.c.h.b16 %v7005
  %v8384 = vunpack.c.l.b16 %v7006
  %v8385 = vunpack.c.h.b16 %v7006
  %v8386 = vunpack.c.l.b16 %v7007
  %v8387 = vunpack.c.h.b16 %v7007
  %v8388 = vunpack.c.l.b16 %v7008
  %v8389 = vunpack.c.h.b16 %v7008
  %v8390 = vunpack.c.l.b16 %v7009
  %v8391 = vunpack.c.h.b16 %v7009
  %v8392 = vunpack.c.l.b16 %v7010
  %v8393 = vunpack.c.h.b16 %v7010
  %v8394 = vunpack.c.l.b16 %v7011
  %v8395 = vunpack.c.h.b16 %v7011
  %v8396 = vunpack.c.l.b16 %v7012
  %v8397 = vunpack.c.h.b16 %v7012
  %v8398 = vunpack.c.l.b16 %v7013
  %v8399 = vunpack.c.h.b16 %v7013
  %v8400 = vunpack.c.l.b16 %v7014
  %v8401 = vunpack.c.h.b16 %v7014
  %v8402 = vunpack.c.l.b16 %v7015
  %v8403 = vunpack.c.h.b16 %v7015
  %v8404 = vunpack.c.l.b16 %v7016
  %v8405 = vunpack.c.h.b16 %v7016
  %v8406 = vunpack.c.l.b16 %v7017
  %v8407 = vunpack.c.h.b16 %v7017
  %v8408 = vunpack.c.l.b16 %v7018
  %v8409 = vunpack.c.h.b16 %v7018
  %v8410 = vunpack.c.l.b16 %v7019
  %v8411 = vunpack.c.h.b16 %v7019
  %v8412 = vunpack.c.l.b16 %v7020
  %v8413 = vunpack.c.h.b16 %v7020
  %v8414 = vunpack.c.l.b16 %v7021
  %v8415 = vunpack.c.h.b16 %v7021
  %v8416 = vunpack.c.l.b16 %v7022
  %v8417 = vunpack.c.h.b16 %v7022
  %v8418 = vunpack.c.l.b16 %v7023
  %v8419 = vunpack.c.h.b16 %v7023
  %v8420 = vunpack.c.l.b16 %v7024
  %v8421 = vunpack.c.h.b16 %v7024
  %v8422 = vunpack.c.l.b16 %v7025
  %v8423 = vunpack.c.h.b16 %v7025
  %v8424 = vunpack.c.l.b16 %v7026
  %v8425 = vunpack.c.h.b16 %v7026
  %v8426 = vunpack.c.l.b16 %v7027
  %v8427 = vunpack.c.h.b16 %v7027
  %v8428 = vunpack.c.l.b16 %v7028
  %v8429 = vunpack.c.h.b16 %v7028
  %v8430 = vunpack.c.l.b16 %v7029
  %v8431 = vunpack.c.h.b16 %v7029
  %v8432 = vunpack.c.l.b16 %v7030
  %v8433 = vunpack.c.h.b16 %v7030
  %v8434 = vunpack.c.l.b16 %v7031
  %v8435 = vunpack.c.h.b16 %v7031
  %v8436 = vunpack.c.l.b16 %v7032
  %v8437 = vunpack.c.h.b16 %v7032
  %v8438 = vunpack.c.l.b16 %v7033
  %v8439 = vunpack.c.h.b16 %v7033
  %v8440 = vunpack.c.l.b16 %v7034
  %v8441 = vunpack.c.h.b16 %v7034
  %v8442 = vunpack.c.l.b16 %v7035
  %v8443 = vunpack.c.h.b16 %v7035
  %v8444 = vunpack.c.l.b16 %v7036
  %v8445 = vunpack.c.h.b16 %v7036
  %v8446 = vunpack.c.l.b16 %v7037
  %v8447 = vunpack.c.h.b16 %v7037
  %v8448 = vunpack.c.l.b16 %v7038
  %v8449 = vunpack.c.h.b16 %v7038
  %v8450 = vunpack.c.l.b16 %v7039
  %v8451 = vunpack.c.h.b16 %v7039
  %v8452 = vunpack.c.l.b16 %v7040
  %v8453 = vunpack.c.h.b16 %v7040
  %v8454 = vunpack.c.l.b16 %v7041
  %v8455 = vunpack.c.h.b16 %v7041
  %v8456 = vunpack.c.l.b16 %v7042
  %v8457 = vunpack.c.h.b16 %v7042
  %v8458 = vunpack.c.l.b16 %v7043
  %v8459 = vunpack.c.h.b16 %v7043
  %v8460 = vunpack.c.l.b16 %v7044
  %v8461 = vunpack.c.h.b16 %v7044
  %v8462 = vunpack.c.l.b16 %v7045
  %v8463 = vunpack.c.h.b16 %v7045
  %v8464 = vunpack.c.l.b16 %v7046
  %v8465 = vunpack.c.h.b16 %v7046
  %v8466 = vunpack.c.l.b16 %v7047
  %v8467 = vunpack.c.h.b16 %v7047
  %v8468 = vunpack.c.l.b16 %v7048
  %v8469 = vunpack.c.h.b16 %v7048
  %v8470 = vunpack.c.l.b16 %v7049
  %v8471 = vunpack.c.h.b16 %v7049
  %v8472 = vunpack.c.l.b16 %v7050
  %v8473 = vunpack.c.h.b16 %v7050
  %v8474 = vunpack.c.l.b16 %v7051
  %v8475 = vunpack.c.h.b16 %v7051
  %v8476 = vunpack.c.l.b16 %v7052
  %v8477 = vunpack.c.h.b16 %v7052
  %v8478 = vunpack.c.l.b16 %v7053
  %v8479 = vunpack.c.h.b16 %v7053
  %v8480 = vunpack.c.l.b16 %v7054
  %v8481 = vunpack.c.h.b16 %v7054
  %v8482 = vunpack.c.l.b16 %v7055
  %v8483 = vunpack.c.h.b16 %v7055
  %v8484 = vunpack.c.l.b16 %v7056
  %v8485 = vunpack.c.h.b16 %v7056
  %v8486 = vunpack.c.l.b16 %v7057
  %v8487 = vunpack.c.h.b16 %v7057
  %v8488 = vunpack.c.l.b16 %v7058
  %v8489 = vunpack.c.h.b16 %v7058
  %v8490 = vunpack.c.l.b16 %v7059
  %v8491 = vunpack.c.h.b16 %v7059
  %v8492 = vunpack.c.l.b16 %v7060
  %v8493 = vunpack.c.h.b16 %v7060
  %v8494 = vunpack.c.l.b16 %v7061
  %v8495 = vunpack.c.h.b16 %v7061
  %v8496 = vunpack.c.l.b16 %v7062
  %v8497 = vunpack.c.h.b16 %v7062
  %v8498 = vunpack.c.l.b16 %v7063
  %v8499 = vunpack.c.h.b16 %v7063
  %v8500 = vunpack.c.l.b16 %v7064
  %v8501 = vunpack.c.h.b16 %v7064
  %v8502 = vunpack.c.l.b16 %v7065
  %v8503 = vunpack.c.h.b16 %v7065
  %v8504 = vunpack.c.l.b16 %v7066
  %v8505 = vunpack.c.h.b16 %v7066
  %v8506 = vunpack.c.l.b16 %v7067
  %v8507 = vunpack.c.h.b16 %v7067
  %v8508 = vunpack.c.l.b16 %v7068
  %v8509 = vunpack.c.h.b16 %v7068
  %v8510 = vunpack.c.l.b16 %v7069
  %v8511 = vunpack.c.h.b16 %v7069
  %v8512 = vunpack.c.l.b16 %v7070
  %v8513 = vunpack.c.h.b16 %v7070
  %v8514 = vunpack.c.l.b16 %v7071
  %v8515 = vunpack.c.h.b16 %v7071
  %v8516 = vunpack.c.l.b16 %v7072
  %v8517 = vunpack.c.h.b16 %v7072
  %v8518 = vunpack.c.l.b16 %v7073
  %v8519 = vunpack.c.h.b16 %v7073
  %v8520 = vunpack.c.l.b16 %v7074
  %v8521 = vunpack.c.h.b16 %v7074
  %v8522 = vunpack.c.l.b16 %v7075
  %v8523 = vunpack.c.h.b16 %v7075
  %v8524 = vunpack.c.l.b16 %v7076
  %v8525 = vunpack.c.h.b16 %v7076
  %v8526 = vunpack.c.l.b16 %v7077
  %v8527 = vunpack.c.h.b16 %v7077
  %v8528 = vunpack.c.l.b16 %v7078
  %v8529 = vunpack.c.h.b16 %v7078
  %v8530 = vunpack.c.l.b16 %v7079
  %v8531 = vunpack.c.h.b16 %v7079
  %v8532 = vunpack.c.l.b16 %v7080
  %v8533 = vunpack.c.h.b16 %v7080
  %v8534 = vunpack.c.l.b16 %v7081
  %v8535 = vunpack.c.h.b16 %v7081
  %v8536 = vunpack.c.l.b16 %v7082
  %v8537 = vunpack.c.h.b16 %v7082
  %v8538 = vunpack.c.l.b16 %v7083
  %v8539 = vunpack.c.h.b16 %v7083
  %v8540 = vunpack.c.l.b16 %v7084
  %v8541 = vunpack.c.h.b16 %v7084
  %v8542 = vunpack.c.l.b16 %v7085
  %v8543 = vunpack.c.h.b16 %v7085
  %v8544 = vunpack.c.l.b16 %v7086
  %v8545 = vunpack.c.h.b16 %v7086
  %v8546 = vunpack.c.l.b16 %v7087
  %v8547 = vunpack.c.h.b16 %v7087
  %v8548 = vunpack.c.l.b16 %v7088
  %v8549 = vunpack.c.h.b16 %v7088
  %v8550 = vunpack.c.l.b16 %v7089
  %v8551 = vunpack.c.h.b16 %v7089
  %v8552 = vunpack.c.l.b16 %v7090
  %v8553 = vunpack.c.h.b16 %v7090
  %v8554 = vunpack.c.l.b16 %v7091
  %v8555 = vunpack.c.h.b16 %v7091
  %v8556 = vunpack.c.l.b16 %v7092
  %v8557 = vunpack.c.h.b16 %v7092
  %v8558 = vunpack.c.l.b16 %v7093
  %v8559 = vunpack.c.h.b16 %v7093
  %v8560 = vunpack.c.l.b16 %v7094
  %v8561 = vunpack.c.h.b16 %v7094
  %v8562 = vunpack.c.l.b16 %v7095
  %v8563 = vunpack.c.h.b16 %v7095
  %v8564 = vunpack.c.l.b16 %v7096
  %v8565 = vunpack.c.h.b16 %v7096
  %v8566 = vunpack.c.l.b16 %v7097
  %v8567 = vunpack.c.h.b16 %v7097
  %v8568 = vunpack.c.l.b16 %v7098
  %v8569 = vunpack.c.h.b16 %v7098
  %v8570 = vunpack.c.l.b16 %v7099
  %v8571 = vunpack.c.h.b16 %v7099
  %v8572 = vunpack.c.l.b16 %v7100
  %v8573 = vunpack.c.h.b16 %v7100
  %v8574 = vunpack.c.l.b16 %v7101
  %v8575 = vunpack.c.h.b16 %v7101
  %v8576 = vunpack.c.l.b16 %v7102
  %v8577 = vunpack.c.h.b16 %v7102
  %v8578 = vunpack.c.l.b16 %v7103
  %v8579 = vunpack.c.h.b16 %v7103
  %v8580 = vunpack.c.l.b16 %v7104
  %v8581 = vunpack.c.h.b16 %v7104
  %v8582 = vunpack.c.l.b16 %v7105
  %v8583 = vunpack.c.h.b16 %v7105
  %v8584 = vunpack.c.l.b16 %v7106
  %v8585 = vunpack.c.h.b16 %v7106
  %v8586 = vunpack.c.l.b16 %v7107
  %v8587 = vunpack.c.h.b16 %v7107
  %v8588 = vunpack.c.l.b16 %v7108
  %v8589 = vunpack.c.h.b16 %v7108
  %v8590 = vunpack.c.l.b16 %v7109
  %v8591 = vunpack.c.h.b16 %v7109
  %v8592 = vunpack.c.l.b16 %v7110
  %v8593 = vunpack.c.h.b16 %v7110
  %v8594 = vunpack.c.l.b16 %v7111
  %v8595 = vunpack.c.h.b16 %v7111
  %v8596 = vunpack.c.l.b16 %v7112
  %v8597 = vunpack.c.h.b16 %v7112
  %v8598 = vunpack.c.l.b16 %v7113
  %v8599 = vunpack.c.h.b16 %v7113
  %v8600 = vunpack.c.l.b16 %v7114
  %v8601 = vunpack.c.h.b16 %v7114
  %v8602 = vunpack.c.l.b16 %v7115
  %v8603 = vunpack.c.h.b16 %v7115
  %v8604 = vunpack.c.l.b16 %v7116
  %v8605 = vunpack.c.h.b16 %v7116
  %v8606 = vunpack.c.l.b16 %v7117
  %v8607 = vunpack.c.h.b16 %v7117
  %v8608 = vunpack.c.l.b16 %v7118
  %v8609 = vunpack.c.h.b16 %v7118
  %v8610 = vunpack.c.l.b16 %v7119
  %v8611 = vunpack.c.h.b16 %v7119
  %v8612 = vunpack.c.l.b16 %v7120
  %v8613 = vunpack.c.h.b16 %v7120
  %v8614 = vunpack.c.l.b16 %v7121
  %v8615 = vunpack.c.h.b16 %v7121
  %v8616 = vunpack.c.l.b16 %v7122
  %v8617 = vunpack.c.h.b16 %v7122
  %v8618 = vunpack.c.l.b16 %v7123
  %v8619 = vunpack.c.h.b16 %v7123
  %v8620 = vunpack.c.l.b16 %v7124
  %v8621 = vunpack.c.h.b16 %v7124
  %v8622 = vunpack.c.l.b16 %v7125
  %v8623 = vunpack.c.h.b16 %v7125
  %v8624 = vunpack.c.l.b16 %v7126
  %v8625 = vunpack.c.h.b16 %v7126
  %v8626 = vunpack.c.l.b16 %v7127
  %v8627 = vunpack.c.h.b16 %v7127
  %v8628 = vunpack.c.l.b16 %v7128
  %v8629 = vunpack.c.h.b16 %v7128
  %v8630 = vunpack.c.l.b16 %v7129
  %v8631 = vunpack.c.h.b16 %v7129
  %v8632 = vunpack.c.l.b16 %v7130
  %v8633 = vunpack.c.h.b16 %v7130
  %v8634 = vunpack.c.l.b16 %v7131
  %v8635 = vunpack.c.h.b16 %v7131
  %v8636 = vunpack.c.l.b16 %v7132
  %v8637 = vunpack.c.h.b16 %v7132
  %v8638 = vunpack.c.l.b16 %v7133
  %v8639 = vunpack.c.h.b16 %v7133
  %v8640 = vunpack.c.l.b16 %v7134
  %v8641 = vunpack.c.h.b16 %v7134
  %v8642 = vunpack.c.l.b16 %v7135
  %v8643 = vunpack.c.h.b16 %v7135
  %v8644 = vunpack.c.l.b16 %v7136
  %v8645 = vunpack.c.h.b16 %v7136
  %v8646 = vunpack.c.l.b16 %v7137
  %v8647 = vunpack.c.h.b16 %v7137
  %v8648 = vunpack.c.l.b16 %v7138
  %v8649 = vunpack.c.h.b16 %v7138
  %v8650 = vunpack.c.l.b16 %v7139
  %v8651 = vunpack.c.h.b16 %v7139
  %v8652 = vunpack.c.l.b16 %v7140
  %v8653 = vunpack.c.h.b16 %v7140
  %v8654 = vunpack.c.l.b16 %v7141
  %v8655 = vunpack.c.h.b16 %v7141
  %v8656 = vunpack.c.l.b16 %v7142
  %v8657 = vunpack.c.h.b16 %v7142
  %v8658 = vunpack.c.l.b16 %v7143
  %v8659 = vunpack.c.h.b16 %v7143
  %v8660 = vunpack.c.l.b16 %v7144
  %v8661 = vunpack.c.h.b16 %v7144
  %v8662 = vunpack.c.l.b16 %v7145
  %v8663 = vunpack.c.h.b16 %v7145
  %v8664 = vunpack.c.l.b16 %v7146
  %v8665 = vunpack.c.h.b16 %v7146
  %v8666 = vunpack.c.l.b16 %v7147
  %v8667 = vunpack.c.h.b16 %v7147
  %v8668 = vunpack.c.l.b16 %v7148
  %v8669 = vunpack.c.h.b16 %v7148
  %v8670 = vunpack.c.l.b16 %v7149
  %v8671 = vunpack.c.h.b16 %v7149
  %v8672 = vunpack.c.l.b16 %v7150
  %v8673 = vunpack.c.h.b16 %v7150
  %v8674 = vunpack.c.l.b16 %v7151
  %v8675 = vunpack.c.h.b16 %v7151
  %v8676 = vunpack.c.l.b16 %v7152
  %v8677 = vunpack.c.h.b16 %v7152
  %v8678 = vunpack.c.l.b16 %v7153
  %v8679 = vunpack.c.h.b16 %v7153
  %v8680 = vunpack.c.l.b16 %v7154
  %v8681 = vunpack.c.h.b16 %v7154
  %v8682 = vunpack.c.l.b16 %v7155
  %v8683 = vunpack.c.h.b16 %v7155
  %v8684 = vunpack.c.l.b16 %v7156
  %v8685 = vunpack.c.h.b16 %v7156
  %v8686 = vunpack.c.l.b16 %v7157
  %v8687 = vunpack.c.h.b16 %v7157
  %v8688 = vunpack.c.l.b16 %v7158
  %v8689 = vunpack.c.h.b16 %v7158
  %v8690 = vunpack.c.l.b16 %v7159
  %v8691 = vunpack.c.h.b16 %v7159
  %v8692 = vunpack.c.l.b16 %v7160
  %v8693 = vunpack.c.h.b16 %v7160
  %v8694 = vunpack.c.l.b16 %v7161
  %v8695 = vunpack.c.h.b16 %v7161
  %v8696 = vunpack.c.l.b16 %v7162
  %v8697 = vunpack.c.h.b16 %v7162
  %v8698 = vunpack.c.l.b16 %v7163
  %v8699 = vunpack.c.h.b16 %v7163
  %v8700 = vunpack.c.l.b16 %v7164
  %v8701 = vunpack.c.h.b16 %v7164
  %v8702 = vunpack.c.l.b16 %v7165
  %v8703 = vunpack.c.h.b16 %v7165
  %v8704 = vunpack.c.l.b16 %v7166
  %v8705 = vunpack.c.h.b16 %v7166
  %v8706 = vunpack.c.l.b16 %v7167
  %v8707 = vunpack.c.h.b16 %v7167
  %v8708 = vunpack.c.l.b16 %v7168
  %v8709 = vunpack.c.h.b16 %v7168
  %v8710 = vunpack.c.l.b16 %v7169
  %v8711 = vunpack.c.h.b16 %v7169
  %v8712 = vunpack.c.l.b16 %v7170
  %v8713 = vunpack.c.h.b16 %v7170
  %v8714 = vunpack.c.l.b16 %v7171
  %v8715 = vunpack.c.h.b16 %v7171
  %v8716 = vunpack.c.l.b16 %v7172
  %v8717 = vunpack.c.h.b16 %v7172
  %v8718 = vunpack.c.l.b16 %v7173
  %v8719 = vunpack.c.h.b16 %v7173
  %v8720 = vunpack.c.l.b16 %v7174
  %v8721 = vunpack.c.h.b16 %v7174
  %v8722 = vunpack.c.l.b16 %v7175
  %v8723 = vunpack.c.h.b16 %v7175
  %v8724 = vunpack.c.l.b16 %v7176
  %v8725 = vunpack.c.h.b16 %v7176
  %v8726 = vunpack.c.l.b16 %v7177
  %v8727 = vunpack.c.h.b16 %v7177
  %v8728 = vunpack.c.l.b16 %v7178
  %v8729 = vunpack.c.h.b16 %v7178
  %v8730 = vunpack.c.l.b16 %v7179
  %v8731 = vunpack.c.h.b16 %v7179
  %v8732 = vunpack.c.l.b16 %v7180
  %v8733 = vunpack.c.h.b16 %v7180
  %v8734 = vunpack.c.l.b16 %v7181
  %v8735 = vunpack.c.h.b16 %v7181
  %v8736 = vunpack.c.l.b16 %v7182
  %v8737 = vunpack.c.h.b16 %v7182
  %v8738 = vpack.c.b16 %v8228, %v8226
  %v8739 = vpack.c.b16 %v8229, %v8227
  %v8740 = vpack.c.b16 %v8232, %v8230
  %v8741 = vpack.c.b16 %v8233, %v8231
  %v8742 = vpack.c.b16 %v8236, %v8234
  %v8743 = vpack.c.b16 %v8237, %v8235
  %v8744 = vpack.c.b16 %v8240, %v8238
  %v8745 = vpack.c.b16 %v8241, %v8239
  %v8746 = vpack.c.b16 %v8244, %v8242
  %v8747 = vpack.c.b16 %v8245, %v8243
  %v8748 = vpack.c.b16 %v8248, %v8246
  %v8749 = vpack.c.b16 %v8249, %v8247
  %v8750 = vpack.c.b16 %v8252, %v8250
  %v8751 = vpack.c.b16 %v8253, %v8251
  %v8752 = vpack.c.b16 %v8256, %v8254
  %v8753 = vpack.c.b16 %v8257, %v8255
  %v8754 = vpack.c.b16 %v8260, %v8258
  %v8755 = vpack.c.b16 %v8261, %v8259
  %v8756 = vpack.c.b16 %v8264, %v8262
  %v8757 = vpack.c.b16 %v8265, %v8263
  %v8758 = vpack.c.b16 %v8268, %v8266
  %v8759 = vpack.c.b16 %v8269, %v8267
  %v8760 = vpack.c.b16 %v8272, %v8270
  %v8761 = vpack.c.b16 %v8273, %v8271
  %v8762 = vpack.c.b16 %v8276, %v8274
  %v8763 = vpack.c.b16 %v8277, %v8275
  %v8764 = vpack.c.b16 %v8280, %v8278
  %v8765 = vpack.c.b16 %v8281, %v8279
  %v8766 = vpack.c.b16 %v8284, %v8282
  %v8767 = vpack.c.b16 %v8285, %v8283
  %v8768 = vpack.c.b16 %v8288, %v8286
  %v8769 = vpack.c.b16 %v8289, %v8287
  %v8770 = vpack.c.b16 %v8292, %v8290
  %v8771 = vpack.c.b16 %v8293, %v8291
  %v8772 = vpack.c.b16 %v8296, %v8294
  %v8773 = vpack.c.b16 %v8297, %v8295
  %v8774 = vpack.c.b16 %v8300, %v8298
  %v8775 = vpack.c.b16 %v8301, %v8299
  %v8776 = vpack.c.b16 %v8304, %v8302
  %v8777 = vpack.c.b16 %v8305, %v8303
  %v8778 = vpack.c.b16 %v8308, %v8306
  %v8779 = vpack.c.b16 %v8309, %v8307
  %v8780 = vpack.c.b16 %v8312, %v8310
  %v8781 = vpack.c.b16 %v8313, %v8311
  %v8782 = vpack.c.b16 %v8316, %v8314
  %v8783 = vpack.c.b16 %v8317, %v8315
  %v8784 = vpack.c.b16 %v8320, %v8318
  %v8785 = vpack.c.b16 %v8321, %v8319
  %v8786 = vpack.c.b16 %v8324, %v8322
  %v8787 = vpack.c.b16 %v8325, %v8323
  %v8788 = vpack.c.b16 %v8328, %v8326
  %v8789 = vpack.c.b16 %v8329, %v8327
  %v8790 = vpack.c.b16 %v8332, %v8330
  %v8791 = vpack.c.b16 %v8333, %v8331
  %v8792 = vpack.c.b16 %v8336, %v8334
  %v8793 = vpack.c.b16 %v8337, %v8335
  %v8794 = vpack.c.b16 %v8340, %v8338
  %v8795 = vpack.c.b16 %v8341, %v8339
  %v8796 = vpack.c.b16 %v8344, %v8342
  %v8797 = vpack.c.b16 %v8345, %v8343
  %v8798 = vpack.c.b16 %v8348, %v8346
  %v8799 = vpack.c.b16 %v8349, %v8347
  %v8800 = vpack.c.b16 %v8352, %v8350
  %v8801 = vpack.c.b16 %v8353, %v8351
  %v8802 = vpack.c.b16 %v8356, %v8354
  %v8803 = vpack.c.b16 %v8357, %v8355
  %v8804 = vpack.c.b16 %v8360, %v8358
  %v8805 = vpack.c.b16 %v8361, %v8359
  %v8806 = vpack.c.b16 %v8364, %v8362
  %v8807 = vpack.c.b16 %v8365, %v8363
  %v8808 = vpack.c.b16 %v8368, %v8366
  %v8809 = vpack.c.b16 %v8369, %v8367
  %v8810 = vpack.c.b16 %v8372, %v8370
  %v8811 = vpack.c.b16 %v8373, %v8371
  %v8812 = vpack.c.b16 %v8376, %v8374
  %v8813 = vpack.c.b16 %v8377, %v8375
  %v8814 = vpack.c.b16 %v8380, %v8378
  %v8815 = vpack.c.b16 %v8381, %v8379
  %v8816 = vpack.c.b16 %v8384, %v8382
  %v8817 = vpack.c.b16 %v8385, %v8383
  %v8818 = vpack.c.b16 %v8388, %v8386
  %v8819 = vpack.c.b16 %v8389, %v8387
  %v8820 = vpack.c.b16 %v8392, %v8390
  %v8821 = vpack.c.b16 %v8393, %v8391
  %v8822 = vpack.c.b16 %v8396, %v8394
  %v8823 = vpack.c.b16 %v8397, %v8395
  %v8824 = vpack.c.b16 %v8400, %v8398
  %v8825 = vpack.c.b16 %v8401, %v8399
  %v8826 = vpack.c.b16 %v8404, %v8402
  %v8827 = vpack.c.b16 %v8405, %v8403
  %v8828 = vpack.c.b16 %v8408, %v8406
  %v8829 = vpack.c.b16 %v8409, %v8407
  %v8830 = vpack.c.b16 %v8412, %v8410
  %v8831 = vpack.c.b16 %v8413, %v8411
  %v8832 = vpack.c.b16 %v8416, %v8414
  %v8833 = vpack.c.b16 %v8417, %v8415
  %v8834 = vpack.c.b16 %v8420, %v8418
  %v8835 = vpack.c.b16 %v8421, %v8419
  %v8836 = vpack.c.b16 %v8424, %v8422
  %v8837 = vpack.c.b16 %v8425, %v8423
  %v8838 = vpack.c.b16 %v8428, %v8426
  %v8839 = vpack.c.b16 %v8429, %v8427
  %v8840 = vpack.c.b16 %v8432, %v8430
  %v8841 = vpack.c.b16 %v8433, %v8431
  %v8842 = vpack.c.b16 %v8436, %v8434
  %v8843 = vpack.c.b16 %v8437, %v8435
  %v8844 = vpack.c.b16 %v8440, %v8438
  %v8845 = vpack.c.b16 %v8441, %v8439
  %v8846 = vpack.c.b16 %v8444, %v8442
  %v8847 = vpack.c.b16 %v8445, %v8443
  %v8848 = vpack.c.b16 %v8448, %v8446
  %v8849 = vpack.c.b16 %v8449, %v8447
  %v8850 = vpack.c.b16 %v8452, %v8450
  %v8851 = vpack.c.b16 %v8453, %v8451
  %v8852 = vpack.c.b16 %v8456, %v8454
  %v8853 = vpack.c.b16 %v8457, %v8455
  %v8854 = vpack.c.b16 %v8460, %v8458
  %v8855 = vpack.c.b16 %v8461, %v8459
  %v8856 = vpack.c.b16 %v8464, %v8462
  %v8857 = vpack.c.b16 %v8465, %v8463
  %v8858 = vpack.c.b16 %v8468, %v8466
  %v8859 = vpack.c.b16 %v8469, %v8467
  %v8860 = vpack.c.b16 %v8472, %v8470
  %v8861 = vpack.c.b16 %v8473, %v8471
  %v8862 = vpack.c.b16 %v8476, %v8474
  %v8863 = vpack.c.b16 %v8477, %v8475
  %v8864 = vpack.c.b16 %v8480, %v8478
  %v8865 = vpack.c.b16 %v8481, %v8479
  %v8866 = vpack.c.b16 %v8484, %v8482
  %v8867 = vpack.c.b16 %v8485, %v8483
  %v8868 = vpack.c.b16 %v8488, %v8486
  %v8869 = vpack.c.b16 %v8489, %v8487
  %v8870 = vpack.c.b16 %v8492, %v8490
  %v8871 = vpack.c.b16 %v8493, %v8491
  %v8872 = vpack.c.b16 %v8496, %v8494
  %v8873 = vpack.c.b16 %v8497, %v8495
  %v8874 = vpack.c.b16 %v8500, %v8498
  %v8875 = vpack.c.b16 %v8501, %v8499
  %v8876 = vpack.c.b16 %v8504, %v8502
  %v8877 = vpack.c.b16 %v8505, %v8503
  %v8878 = vpack.c.b16 %v8508, %v8506
  %v8879 = vpack.c.b16 %v8509, %v8507
  %v8880 = vpack.c.b16 %v8512, %v8510
  %v8881 = vpack.c.b16 %v8513, %v8511
  %v8882 = vpack.c.b16 %v8516, %v8514
  %v8883 = vpack.c.b16 %v8517, %v8515
  %v8884 = vpack.c.b16 %v8520, %v8518
  %v8885 = vpack.c.b16 %v8521, %v8519
  %v8886 = vpack.c.b16 %v8524, %v8522
  %v8887 = vpack.c.b16 %v8525, %v8523
  %v8888 = vpack.c.b16 %v8528, %v8526
  %v8889 = vpack.c.b16 %v8529, %v8527
  %v8890 = vpack.c.b16 %v8532, %v8530
  %v8891 = vpack.c.b16 %v8533, %v8531
  %v8892 = vpack.c.b16 %v8536, %v8534
  %v8893 = vpack.c.b16 %v8537, %v8535
  %v8894 = vpack.c.b16 %v8540, %v8538
  %v8895 = vpack.c.b16 %v8541, %v8539
  %v8896 = vpack.c.b16 %v8544, %v8542
  %v8897 = vpack.c.b16 %v8545, %v8543
  %v8898 = vpack.c.b16 %v8548, %v8546
  %v8899 = vpack.c.b16 %v8549, %v8547
  %v8900 = vpack.c.b16 %v8552, %v8550
  %v8901 = vpack.c.b16 %v8553, %v8551
  %v8902 = vpack.c.b16 %v8556, %v8554
  %v8903 = vpack.c.b16 %v8557, %v8555
  %v8904 = vpack.c.b16 %v8560, %v8558
  %v8905 = vpack.c.b16 %v8561, %v8559
  %v8906 = vpack.c.b16 %v8564, %v8562
  %v8907 = vpack.c.b16 %v8565, %v8563
  %v8908 = vpack.c.b16 %v8568, %v8566
  %v8909 = vpack.c.b16 %v8569, %v8567
  %v8910 = vpack.c.b16 %v8572, %v8570
  %v8911 = vpack.c.b16 %v8573, %v8571
  %v8912 = vpack.c.b16 %v8576, %v8574
  %v8913 = vpack.c.b16 %v8577, %v8575
  %v8914 = vpack.c.b16 %v8580, %v8578
  %v8915 = vpack.c.b16 %v8581, %v8579
  %v8916 = vpack.c.b16 %v8584, %v8582
  %v8917 = vpack.c.b16 %v8585, %v8583
  %v8918 = vpack.c.b16 %v8588, %v8586
  %v8919 = vpack.c.b16 %v8589, %v8587
  %v8920 = vpack.c.b16 %v8592, %v8590
  %v8921 = vpack.c.b16 %v8593, %v8591
  %v8922 = vpack.c.b16 %v8596, %v8594
  %v8923 = vpack.c.b16 %v8597, %v8595
  %v8924 = vpack.c.b16 %v8600, %v8598
  %v8925 = vpack.c.b16 %v8601, %v8599
  %v8926 = vpack.c.b16 %v8604, %v8602
  %v8927 = vpack.c.b16 %v8605, %v8603
  %v8928 = vpack.c.b16 %v8608, %v8606
  %v8929 = vpack.c.b16 %v8609, %v8607
  %v8930 = vpack.c.b16 %v8612, %v8610
  %v8931 = vpack.c.b16 %v8613, %v8611
  %v8932 = vpack.c.b16 %v8616, %v8614
  %v8933 = vpack.c.b16 %v8617, %v8615
  %v8934 = vpack.c.b16 %v8620, %v8618
  %v8935 = vpack.c.b16 %v8621, %v8619
  %v8936 = vpack.c.b16 %v8624, %v8622
  %v8937 = vpack.c.b16 %v8625, %v8623
  %v8938 = vpack.c.b16 %v8628, %v8626
  %v8939 = vpack.c.b16 %v8629, %v8627
  %v8940 = vpack.c.b16 %v8632, %v8630
  %v8941 = vpack.c.b16 %v8633, %v8631
  %v8942 = vpack.c.b16 %v8636, %v8634
  %v8943 = vpack.c.b16 %v8637, %v8635
  %v8944 = vpack.c.b16 %v8640, %v8638
  %v8945 = vpack.c.b16 %v8641, %v8639
  %v8946 = vpack.c.b16 %v8644, %v8642
  %v8947 = vpack.c.b16 %v8645, %v8643
  %v8948 = vpack.c.b16 %v8648, %v8646
  %v8949 = vpack.c.b16 %v8649, %v8647
  %v8950 = vpack.c.b16 %v8652, %v8650
  %v8951 = vpack.c.b16 %v8653, %v8651
  %v8952 = vpack.c.b16 %v8656, %v8654
  %v8953 = vpack.c.b16 %v8657, %v8655
  %v8954 = vpack.c.b16 %v8660, %v8658
  %v8955 = vpack.c.b16 %v8661, %v8659
  %v8956 = vpack.c.b16 %v8664, %v8662
  %v8957 = vpack.c.b16 %v8665, %v8663
  %v8958 = vpack.c.b16 %v8668, %v8666
  %v8959 = vpack.c.b16 %v8669, %v8667
  %v8960 = vpack.c.b16 %v8672, %v8670
  %v8961 = vpack.c.b16 %v8673, %v8671
  %v8962 = vpack.c.b16 %v8676, %v8674
  %v8963 = vpack.c.b16 %v8677, %v8675
  %v8964 = vpack.c.b16 %v8680, %v8678
  %v8965 = vpack.c.b16 %v8681, %v8679
  %v8966 = vpack.c.b16 %v8684, %v8682
  %v8967 = vpack.c.b16 %v8685, %v8683
  %v8968 = vpack.c.b16 %v8688, %v8686
  %v8969 = vpack.c.b16 %v8689, %v8687
  %v8970 = vpack.c.b16 %v8692, %v8690
  %v8971 = vpack.c.b16 %v8693, %v8691
  %v8972 = vpack.c.b16 %v8696, %v8694
  %v8973 = vpack.c.b16 %v8697, %v8695
  %v8974 = vpack.c.b16 %v8700, %v8698
  %v8975 = vpack.c.b16 %v8701, %v8699
  %v8976 = vpack.c.b16 %v8704, %v8702
  %v8977 = vpack.c.b16 %v8705, %v8703
  %v8978 = vpack.c.b16 %v8708, %v8706
  %v8979 = vpack.c.b16 %v8709, %v8707
  %v8980 = vpack.c.b16 %v8712, %v8710
  %v8981 = vpack.c.b16 %v8713, %v8711
  %v8982 = vpack.c.b16 %v8716, %v8714
  %v8983 = vpack.c.b16 %v8717, %v8715
  %v8984 = vpack.c.b16 %v8720, %v8718
  %v8985 = vpack.c.b16 %v8721, %v8719
  %v8986 = vpack.c.b16 %v8724, %v8722
  %v8987 = vpack.c.b16 %v8725, %v8723
  %v8988 = vpack.c.b16 %v8728, %v8726
  %v8989 = vpack.c.b16 %v8729, %v8727
  %v8990 = vpack.c.b16 %v8732, %v8730
  %v8991 = vpack.c.b16 %v8733, %v8731
  %v8992 = vpack.c.b16 %v8736, %v8734
  %v8993 = vpack.c.b16 %v8737, %v8735
  %9250 = vmatprep.subr.bf16.mxu0 %v8739
  %9251 = vmatpush1.bf16.msra.mxu0 %v8738
  %9252 = vmatprep.subr.bf16.mxu0 %v8741
  %9253 = vmatpush1.bf16.msra.mxu0 %v8740
  %9254 = vmatprep.subr.bf16.mxu0 %v8743
  %9255 = vmatpush1.bf16.msra.mxu0 %v8742
  %9256 = vmatprep.subr.bf16.mxu0 %v8745
  %9257 = vmatpush1.bf16.msra.mxu0 %v8744
  %9258 = vmatprep.subr.bf16.mxu0 %v8747
  %9259 = vmatpush1.bf16.msra.mxu0 %v8746
  %9260 = vmatprep.subr.bf16.mxu0 %v8749
  %9261 = vmatpush1.bf16.msra.mxu0 %v8748
  %9262 = vmatprep.subr.bf16.mxu0 %v8751
  %9263 = vmatpush1.bf16.msra.mxu0 %v8750
  %9264 = vmatprep.subr.bf16.mxu0 %v8753
  %9265 = vmatpush1.bf16.msra.mxu0 %v8752
  %9266 = vmatprep.subr.bf16.mxu0 %v8755
  %9267 = vmatpush1.bf16.msra.mxu0 %v8754
  %9268 = vmatprep.subr.bf16.mxu0 %v8757
  %9269 = vmatpush1.bf16.msra.mxu0 %v8756
  %9270 = vmatprep.subr.bf16.mxu0 %v8759
  %9271 = vmatpush1.bf16.msra.mxu0 %v8758
  %9272 = vmatprep.subr.bf16.mxu0 %v8761
  %9273 = vmatpush1.bf16.msra.mxu0 %v8760
  %9274 = vmatprep.subr.bf16.mxu0 %v8763
  %9275 = vmatpush1.bf16.msra.mxu0 %v8762
  %9276 = vmatprep.subr.bf16.mxu0 %v8765
  %9277 = vmatpush1.bf16.msra.mxu0 %v8764
  %9278 = vmatprep.subr.bf16.mxu0 %v8767
  %9279 = vmatpush1.bf16.msra.mxu0 %v8766
  %9280 = vmatprep.subr.bf16.mxu0 %v8769
  %9281 = vmatpush1.bf16.msra.mxu0 %v8768
  %9282 = vmatprep.mubr.bf16.mxu0 %v7939
  %9283 = vmatmul.mubr.bf16.gmra.mrb[0].mxu0 %v7938
  %v9284 = vpop.f32.mrb[0].mxu0
  %v9285 = vadd.f32 %v7188, %v9284
  %v9286 = vpop.f32.mrb[0].mxu0
  %v9287 = vadd.f32 %v7192, %v9286
  %v9288 = vpop.f32.mrb[0].mxu0
  %v9289 = vadd.f32 %v7188, %v9288
  %v9290 = vpop.f32.mrb[0].mxu0
  %v9291 = vadd.f32 %v7192, %v9290
  %9292 = vdwg.mxu0
  %9293 = vmatprep.subr.bf16.mxu0 %v8771
  %9294 = vmatpush1.bf16.msra.mxu0 %v8770
  %9295 = vmatprep.subr.bf16.mxu0 %v8773
  %9296 = vmatpush1.bf16.msra.mxu0 %v8772
  %9297 = vmatprep.subr.bf16.mxu0 %v8775
  %9298 = vmatpush1.bf16.msra.mxu0 %v8774
  %9299 = vmatprep.subr.bf16.mxu0 %v8777
  %9300 = vmatpush1.bf16.msra.mxu0 %v8776
  %9301 = vmatprep.subr.bf16.mxu0 %v8779
  %9302 = vmatpush1.bf16.msra.mxu0 %v8778
  %9303 = vmatprep.subr.bf16.mxu0 %v8781
  %9304 = vmatpush1.bf16.msra.mxu0 %v8780
  %9305 = vmatprep.subr.bf16.mxu0 %v8783
  %9306 = vmatpush1.bf16.msra.mxu0 %v8782
  %9307 = vmatprep.subr.bf16.mxu0 %v8785
  %9308 = vmatpush1.bf16.msra.mxu0 %v8784
  %9309 = vmatprep.subr.bf16.mxu0 %v8787
  %9310 = vmatpush1.bf16.msra.mxu0 %v8786
  %9311 = vmatprep.subr.bf16.mxu0 %v8789
  %9312 = vmatpush1.bf16.msra.mxu0 %v8788
  %9313 = vmatprep.subr.bf16.mxu0 %v8791
  %9314 = vmatpush1.bf16.msra.mxu0 %v8790
  %9315 = vmatprep.subr.bf16.mxu0 %v8793
  %9316 = vmatpush1.bf16.msra.mxu0 %v8792
  %9317 = vmatprep.subr.bf16.mxu0 %v8795
  %9318 = vmatpush1.bf16.msra.mxu0 %v8794
  %9319 = vmatprep.subr.bf16.mxu0 %v8797
  %9320 = vmatpush1.bf16.msra.mxu0 %v8796
  %9321 = vmatprep.subr.bf16.mxu0 %v8799
  %9322 = vmatpush1.bf16.msra.mxu0 %v8798
  %9323 = vmatprep.subr.bf16.mxu0 %v8801
  %9324 = vmatpush1.bf16.msra.mxu0 %v8800
  %9325 = vmatprep.mubr.bf16.mxu0 %v7941
  %9326 = vmatmul.mubr.bf16.gmra.mrb[0].mxu0 %v7940
  %v9327 = vpop.f32.mrb[0].mxu0
  %v9328 = vadd.f32 %v9285, %v9327
  %v9329 = vpop.f32.mrb[0].mxu0
  %v9330 = vadd.f32 %v9287, %v9329
  %v9331 = vpop.f32.mrb[0].mxu0
  %v9332 = vadd.f32 %v9289, %v9331
  %v9333 = vpop.f32.mrb[0].mxu0
  %v9334 = vadd.f32 %v9291, %v9333
  %9335 = vdwg.mxu0
  %9336 = vmatprep.subr.bf16.mxu0 %v8803
  %9337 = vmatpush1.bf16.msra.mxu0 %v8802
  %9338 = vmatprep.subr.bf16.mxu0 %v8805
  %9339 = vmatpush1.bf16.msra.mxu0 %v8804
  %9340 = vmatprep.subr.bf16.mxu0 %v8807
  %9341 = vmatpush1.bf16.msra.mxu0 %v8806
  %9342 = vmatprep.subr.bf16.mxu0 %v8809
  %9343 = vmatpush1.bf16.msra.mxu0 %v8808
  %9344 = vmatprep.subr.bf16.mxu0 %v8811
  %9345 = vmatpush1.bf16.msra.mxu0 %v8810
  %9346 = vmatprep.subr.bf16.mxu0 %v8813
  %9347 = vmatpush1.bf16.msra.mxu0 %v8812
  %9348 = vmatprep.subr.bf16.mxu0 %v8815
  %9349 = vmatpush1.bf16.msra.mxu0 %v8814
  %9350 = vmatprep.subr.bf16.mxu0 %v8817
  %9351 = vmatpush1.bf16.msra.mxu0 %v8816
  %9352 = vmatprep.subr.bf16.mxu0 %v8819
  %9353 = vmatpush1.bf16.msra.mxu0 %v8818
  %9354 = vmatprep.subr.bf16.mxu0 %v8821
  %9355 = vmatpush1.bf16.msra.mxu0 %v8820
  %9356 = vmatprep.subr.bf16.mxu0 %v8823
  %9357 = vmatpush1.bf16.msra.mxu0 %v8822
  %9358 = vmatprep.subr.bf16.mxu0 %v8825
  %9359 = vmatpush1.bf16.msra.mxu0 %v8824
  %9360 = vmatprep.subr.bf16.mxu0 %v8827
  %9361 = vmatpush1.bf16.msra.mxu0 %v8826
  %9362 = vmatprep.subr.bf16.mxu0 %v8829
  %9363 = vmatpush1.bf16.msra.mxu0 %v8828
  %9364 = vmatprep.subr.bf16.mxu0 %v8831
  %9365 = vmatpush1.bf16.msra.mxu0 %v8830
  %9366 = vmatprep.subr.bf16.mxu0 %v8833
  %9367 = vmatpush1.bf16.msra.mxu0 %v8832
  %9368 = vmatprep.mubr.bf16.mxu0 %v7943
  %9369 = vmatmul.mubr.bf16.gmra.mrb[0].mxu0 %v7942
  %v9370 = vpop.f32.mrb[0].mxu0
  %v9371 = vadd.f32 %v9328, %v9370
  %v9372 = vpop.f32.mrb[0].mxu0
  %v9373 = vadd.f32 %v9330, %v9372
  %v9374 = vpop.f32.mrb[0].mxu0
  %v9375 = vadd.f32 %v9332, %v9374
  %v9376 = vpop.f32.mrb[0].mxu0
  %v9377 = vadd.f32 %v9334, %v9376
  %9378 = vdwg.mxu0
  %9379 = vmatprep.subr.bf16.mxu0 %v8835
  %9380 = vmatpush1.bf16.msra.mxu0 %v8834
  %9381 = vmatprep.subr.bf16.mxu0 %v8837
  %9382 = vmatpush1.bf16.msra.mxu0 %v8836
  %9383 = vmatprep.subr.bf16.mxu0 %v8839
  %9384 = vmatpush1.bf16.msra.mxu0 %v8838
  %9385 = vmatprep.subr.bf16.mxu0 %v8841
  %9386 = vmatpush1.bf16.msra.mxu0 %v8840
  %9387 = vmatprep.subr.bf16.mxu0 %v8843
  %9388 = vmatpush1.bf16.msra.mxu0 %v8842
  %9389 = vmatprep.subr.bf16.mxu0 %v8845
  %9390 = vmatpush1.bf16.msra.mxu0 %v8844
  %9391 = vmatprep.subr.bf16.mxu0 %v8847
  %9392 = vmatpush1.bf16.msra.mxu0 %v8846
  %9393 = vmatprep.subr.bf16.mxu0 %v8849
  %9394 = vmatpush1.bf16.msra.mxu0 %v8848
  %9395 = vmatprep.subr.bf16.mxu0 %v8851
  %9396 = vmatpush1.bf16.msra.mxu0 %v8850
  %9397 = vmatprep.subr.bf16.mxu0 %v8853
  %9398 = vmatpush1.bf16.msra.mxu0 %v8852
  %9399 = vmatprep.subr.bf16.mxu0 %v8855
  %9400 = vmatpush1.bf16.msra.mxu0 %v8854
  %9401 = vmatprep.subr.bf16.mxu0 %v8857
  %9402 = vmatpush1.bf16.msra.mxu0 %v8856
  %9403 = vmatprep.subr.bf16.mxu0 %v8859
  %9404 = vmatpush1.bf16.msra.mxu0 %v8858
  %9405 = vmatprep.subr.bf16.mxu0 %v8861
  %9406 = vmatpush1.bf16.msra.mxu0 %v8860
  %9407 = vmatprep.subr.bf16.mxu0 %v8863
  %9408 = vmatpush1.bf16.msra.mxu0 %v8862
  %9409 = vmatprep.subr.bf16.mxu0 %v8865
  %9410 = vmatpush1.bf16.msra.mxu0 %v8864
  %9411 = vmatprep.mubr.bf16.mxu0 %v7945
  %9412 = vmatmul.mubr.bf16.gmra.mrb[0].mxu0 %v7944
  %v9413 = vpop.f32.mrb[0].mxu0
  %v9414 = vadd.f32 %v9371, %v9413
  %v9415 = vpop.f32.mrb[0].mxu0
  %v9416 = vadd.f32 %v9373, %v9415
  %v9417 = vpop.f32.mrb[0].mxu0
  %v9418 = vadd.f32 %v9375, %v9417
  %v9419 = vpop.f32.mrb[0].mxu0
  %v9420 = vadd.f32 %v9377, %v9419
  %9421 = vdwg.mxu0
  %9422 = vmatprep.subr.bf16.mxu0 %v8867
  %9423 = vmatpush1.bf16.msra.mxu0 %v8866
  %9424 = vmatprep.subr.bf16.mxu0 %v8869
  %9425 = vmatpush1.bf16.msra.mxu0 %v8868
  %9426 = vmatprep.subr.bf16.mxu0 %v8871
  %9427 = vmatpush1.bf16.msra.mxu0 %v8870
  %9428 = vmatprep.subr.bf16.mxu0 %v8873
  %9429 = vmatpush1.bf16.msra.mxu0 %v8872
  %9430 = vmatprep.subr.bf16.mxu0 %v8875
  %9431 = vmatpush1.bf16.msra.mxu0 %v8874
  %9432 = vmatprep.subr.bf16.mxu0 %v8877
  %9433 = vmatpush1.bf16.msra.mxu0 %v8876
  %9434 = vmatprep.subr.bf16.mxu0 %v8879
  %9435 = vmatpush1.bf16.msra.mxu0 %v8878
  %9436 = vmatprep.subr.bf16.mxu0 %v8881
  %9437 = vmatpush1.bf16.msra.mxu0 %v8880
  %9438 = vmatprep.subr.bf16.mxu0 %v8883
  %9439 = vmatpush1.bf16.msra.mxu0 %v8882
  %9440 = vmatprep.subr.bf16.mxu0 %v8885
  %9441 = vmatpush1.bf16.msra.mxu0 %v8884
  %9442 = vmatprep.subr.bf16.mxu0 %v8887
  %9443 = vmatpush1.bf16.msra.mxu0 %v8886
  %9444 = vmatprep.subr.bf16.mxu0 %v8889
  %9445 = vmatpush1.bf16.msra.mxu0 %v8888
  %9446 = vmatprep.subr.bf16.mxu0 %v8891
  %9447 = vmatpush1.bf16.msra.mxu0 %v8890
  %9448 = vmatprep.subr.bf16.mxu0 %v8893
  %9449 = vmatpush1.bf16.msra.mxu0 %v8892
  %9450 = vmatprep.subr.bf16.mxu0 %v8895
  %9451 = vmatpush1.bf16.msra.mxu0 %v8894
  %9452 = vmatprep.subr.bf16.mxu0 %v8897
  %9453 = vmatpush1.bf16.msra.mxu0 %v8896
  %9454 = vmatprep.mubr.bf16.mxu0 %v7947
  %9455 = vmatmul.mubr.bf16.gmra.mrb[0].mxu0 %v7946
  %v9456 = vpop.f32.mrb[0].mxu0
  %v9457 = vadd.f32 %v9414, %v9456
  %v9458 = vpop.f32.mrb[0].mxu0
  %v9459 = vadd.f32 %v9416, %v9458
  %v9460 = vpop.f32.mrb[0].mxu0
  %v9461 = vadd.f32 %v9418, %v9460
  %v9462 = vpop.f32.mrb[0].mxu0
  %v9463 = vadd.f32 %v9420, %v9462
  %9464 = vdwg.mxu0
  %9465 = vmatprep.subr.bf16.mxu0 %v8899
  %9466 = vmatpush1.bf16.msra.mxu0 %v8898
  %9467 = vmatprep.subr.bf16.mxu0 %v8901
  %9468 = vmatpush1.bf16.msra.mxu0 %v8900
  %9469 = vmatprep.subr.bf16.mxu0 %v8903
  %9470 = vmatpush1.bf16.msra.mxu0 %v8902
  %9471 = vmatprep.subr.bf16.mxu0 %v8905
  %9472 = vmatpush1.bf16.msra.mxu0 %v8904
  %9473 = vmatprep.subr.bf16.mxu0 %v8907
  %9474 = vmatpush1.bf16.msra.mxu0 %v8906
  %9475 = vmatprep.subr.bf16.mxu0 %v8909
  %9476 = vmatpush1.bf16.msra.mxu0 %v8908
  %9477 = vmatprep.subr.bf16.mxu0 %v8911
  %9478 = vmatpush1.bf16.msra.mxu0 %v8910
  %9479 = vmatprep.subr.bf16.mxu0 %v8913
  %9480 = vmatpush1.bf16.msra.mxu0 %v8912
  %9481 = vmatprep.subr.bf16.mxu0 %v8915
  %9482 = vmatpush1.bf16.msra.mxu0 %v8914
  %9483 = vmatprep.subr.bf16.mxu0 %v8917
  %9484 = vmatpush1.bf16.msra.mxu0 %v8916
  %9485 = vmatprep.subr.bf16.mxu0 %v8919
  %9486 = vmatpush1.bf16.msra.mxu0 %v8918
  %9487 = vmatprep.subr.bf16.mxu0 %v8921
  %9488 = vmatpush1.bf16.msra.mxu0 %v8920
  %9489 = vmatprep.subr.bf16.mxu0 %v8923
  %9490 = vmatpush1.bf16.msra.mxu0 %v8922
  %9491 = vmatprep.subr.bf16.mxu0 %v8925
  %9492 = vmatpush1.bf16.msra.mxu0 %v8924
  %9493 = vmatprep.subr.bf16.mxu0 %v8927
  %9494 = vmatpush1.bf16.msra.mxu0 %v8926
  %9495 = vmatprep.subr.bf16.mxu0 %v8929
  %9496 = vmatpush1.bf16.msra.mxu0 %v8928
  %9497 = vmatprep.mubr.bf16.mxu0 %v7949
  %9498 = vmatmul.mubr.bf16.gmra.mrb[0].mxu0 %v7948
  %v9499 = vpop.f32.mrb[0].mxu0
  %v9500 = vadd.f32 %v9457, %v9499
  %v9501 = vpop.f32.mrb[0].mxu0
  %v9502 = vadd.f32 %v9459, %v9501
  %v9503 = vpop.f32.mrb[0].mxu0
  %v9504 = vadd.f32 %v9461, %v9503
  %v9505 = vpop.f32.mrb[0].mxu0
  %v9506 = vadd.f32 %v9463, %v9505
  %9507 = vdwg.mxu0
  %9508 = vmatprep.subr.bf16.mxu0 %v8931
  %9509 = vmatpush1.bf16.msra.mxu0 %v8930
  %9510 = vmatprep.subr.bf16.mxu0 %v8933
  %9511 = vmatpush1.bf16.msra.mxu0 %v8932
  %9512 = vmatprep.subr.bf16.mxu0 %v8935
  %9513 = vmatpush1.bf16.msra.mxu0 %v8934
  %9514 = vmatprep.subr.bf16.mxu0 %v8937
  %9515 = vmatpush1.bf16.msra.mxu0 %v8936
  %9516 = vmatprep.subr.bf16.mxu0 %v8939
  %9517 = vmatpush1.bf16.msra.mxu0 %v8938
  %9518 = vmatprep.subr.bf16.mxu0 %v8941
  %9519 = vmatpush1.bf16.msra.mxu0 %v8940
  %9520 = vmatprep.subr.bf16.mxu0 %v8943
  %9521 = vmatpush1.bf16.msra.mxu0 %v8942
  %9522 = vmatprep.subr.bf16.mxu0 %v8945
  %9523 = vmatpush1.bf16.msra.mxu0 %v8944
  %9524 = vmatprep.subr.bf16.mxu0 %v8947
  %9525 = vmatpush1.bf16.msra.mxu0 %v8946
  %9526 = vmatprep.subr.bf16.mxu0 %v8949
  %9527 = vmatpush1.bf16.msra.mxu0 %v8948
  %9528 = vmatprep.subr.bf16.mxu0 %v8951
  %9529 = vmatpush1.bf16.msra.mxu0 %v8950
  %9530 = vmatprep.subr.bf16.mxu0 %v8953
  %9531 = vmatpush1.bf16.msra.mxu0 %v8952
  %9532 = vmatprep.subr.bf16.mxu0 %v8955
  %9533 = vmatpush1.bf16.msra.mxu0 %v8954
  %9534 = vmatprep.subr.bf16.mxu0 %v8957
  %9535 = vmatpush1.bf16.msra.mxu0 %v8956
  %9536 = vmatprep.subr.bf16.mxu0 %v8959
  %9537 = vmatpush1.bf16.msra.mxu0 %v8958
  %9538 = vmatprep.subr.bf16.mxu0 %v8961
  %9539 = vmatpush1.bf16.msra.mxu0 %v8960
  %9540 = vmatprep.mubr.bf16.mxu0 %v7951
  %9541 = vmatmul.mubr.bf16.gmra.mrb[0].mxu0 %v7950
  %v9542 = vpop.f32.mrb[0].mxu0
  %v9543 = vadd.f32 %v9500, %v9542
  %v9544 = vpop.f32.mrb[0].mxu0
  %v9545 = vadd.f32 %v9502, %v9544
  %v9546 = vpop.f32.mrb[0].mxu0
  %v9547 = vadd.f32 %v9504, %v9546
  %v9548 = vpop.f32.mrb[0].mxu0
  %v9549 = vadd.f32 %v9506, %v9548
  %9550 = vdwg.mxu0
  %9551 = vmatprep.subr.bf16.mxu0 %v8963
  %9552 = vmatpush1.bf16.msra.mxu0 %v8962
  %9553 = vmatprep.subr.bf16.mxu0 %v8965
  %9554 = vmatpush1.bf16.msra.mxu0 %v8964
  %9555 = vmatprep.subr.bf16.mxu0 %v8967
  %9556 = vmatpush1.bf16.msra.mxu0 %v8966
  %9557 = vmatprep.subr.bf16.mxu0 %v8969
  %9558 = vmatpush1.bf16.msra.mxu0 %v8968
  %9559 = vmatprep.subr.bf16.mxu0 %v8971
  %9560 = vmatpush1.bf16.msra.mxu0 %v8970
  %9561 = vmatprep.subr.bf16.mxu0 %v8973
  %9562 = vmatpush1.bf16.msra.mxu0 %v8972
  %9563 = vmatprep.subr.bf16.mxu0 %v8975
  %9564 = vmatpush1.bf16.msra.mxu0 %v8974
  %9565 = vmatprep.subr.bf16.mxu0 %v8977
  %9566 = vmatpush1.bf16.msra.mxu0 %v8976
  %9567 = vmatprep.subr.bf16.mxu0 %v8979
  %9568 = vmatpush1.bf16.msra.mxu0 %v8978
  %9569 = vmatprep.subr.bf16.mxu0 %v8981
  %9570 = vmatpush1.bf16.msra.mxu0 %v8980
  %9571 = vmatprep.subr.bf16.mxu0 %v8983
  %9572 = vmatpush1.bf16.msra.mxu0 %v8982
  %9573 = vmatprep.subr.bf16.mxu0 %v8985
  %9574 = vmatpush1.bf16.msra.mxu0 %v8984
  %9575 = vmatprep.subr.bf16.mxu0 %v8987
  %9576 = vmatpush1.bf16.msra.mxu0 %v8986
  %9577 = vmatprep.subr.bf16.mxu0 %v8989
  %9578 = vmatpush1.bf16.msra.mxu0 %v8988
  %9579 = vmatprep.subr.bf16.mxu0 %v8991
  %9580 = vmatpush1.bf16.msra.mxu0 %v8990
  %9581 = vmatprep.subr.bf16.mxu0 %v8993
  %9582 = vmatpush1.bf16.msra.mxu0 %v8992
  %9583 = vmatprep.mubr.bf16.mxu0 %v7953
  %9584 = vmatmul.mubr.bf16.gmra.mrb[0].mxu0 %v7952
  %v9585 = vpop.f32.mrb[0].mxu0
  %v9586 = vadd.f32 %v9543, %v9585
  %v9587 = vpop.f32.mrb[0].mxu0
  %v9588 = vadd.f32 %v9545, %v9587
  %v9589 = vpop.f32.mrb[0].mxu0
  %v9590 = vadd.f32 %v9547, %v9589
  %v9591 = vpop.f32.mrb[0].mxu0
  %v9592 = vadd.f32 %v9549, %v9591
  %9593 = vdwg.mxu0
  %9594 = vst [vmem:[%s3] sm:$0xff] %v9586
  %9595 = vst [vmem:[%s3 + $0x8] sm:$0xff] %v9588
  %9596 = vst [vmem:[%s3 + $0x10] sm:$0xff] %v9590
  %9597 = vst [vmem:[%s3 + $0x18] sm:$0xff] %v9592
  // Predicated region
  $region14: #{inceptionv3_forward.1} parent=0 // pred_check
    _
  $region15: #{inceptionv3_forward.1} parent=0 // pred_check_branch
    %9599 = sbr.rel (0) target = $region17
  $region16: #{inceptionv3_forward.1} parent=0 // pred_region
    _
  $region17: #{inceptionv3_forward.1} parent=0 // pred_fallthru
    _
  // Predicated region
  $region18: #{inceptionv3_forward.1} parent=0 // pred_check
    _
  $region19: #{inceptionv3_forward.1} parent=0 // pred_check_branch
    %9601 = sbr.rel (0) target = $region21
  $region20: #{inceptionv3_forward.1} parent=0 // pred_region
    _
  $region21: #{inceptionv3_forward.1} parent=0 // pred_fallthru
    _

</llo_original>
